<compile_context>
chip_gen: v5e
topology: v5e:2x2
jax: 0.10.0
libtpu: 0.0.40
codegen_flags: <defaults>
</compile_context>

<pallas_src>
import functools

import jax
import jax.numpy as jnp
from jax.experimental import pallas as pl
from jax.experimental.pallas import tpu as pltpu

CIN = 73                   # physical in/out channels of the autoencoder
CPAD = 128                 # channels zero-padded to a full lane group
CH = 256                   # hidden channels
K = 25                     # conv kernel size
PAD = 12                   # conv padding
NPAIR = (K + 1) // 2       # 13 paired taps (offsets 0..12 in the pooled domain)
HHALF = 6                  # transposed conv reaches h[s-6 .. s+6]
HSIDE = 8                  # pooled halo rows per side (>= HHALF, multiple of 8)
TAPEXT = 16                # paired conv taps reach 12 extra rows; padded to 16
WEXT = 2 * HSIDE + TAPEXT  # extra input-window rows per tile (= 32)
KDIM_E = NPAIR * 2 * CPAD  # 3328: encoder im2col contraction depth
KDIM_D = NPAIR * CH        # 3328: decoder im2col contraction depth


# ------------------------------- kernel ------------------------------------ #

def _fused_kernel(x_hbm, we_ref, be_ref, wd_ref, bd_ref, o_ref, xbuf, sem,
                  *, tt, n_valid):
    """One (batch, time-tile) step of the fused encoder+decoder.

    x_hbm : (N, to_pad+WEXT, 2*CPAD) bf16  frame-paired input, resident in HBM
    we_ref: (3328, 512) bf16  paired encoder taps, im2col order (even|odd phase)
    be_ref: (1, CH)     f32   encoder bias
    wd_ref: (3328, 256) bf16  paired flipped decoder taps (even|odd output phase)
    bd_ref: (1, 2*CPAD) f32   decoder bias (padded, duplicated)
    o_ref : (1, tt, 2*CPAD) f32  row s packs [y(2*(s0+s)) | y(2*(s0+s)+1)]
    xbuf  : (tt+WEXT, 2*CPAD) bf16 VMEM scratch for the input window
    """
    n = pl.program_id(0)
    t = pl.program_id(1)
    t0 = t * tt
    rows_h = tt + 2 * HSIDE                          # multiple of 8

    # Overlapping input window [t0, t0 + tt + WEXT) fetched straight from HBM
    # (no pre-stacked halo copies in the wrapper).
    cp = pltpu.make_async_copy(x_hbm.at[n, pl.ds(t0, tt + WEXT), :], xbuf, sem)
    cp.start()
    cp.wait()
    x = xbuf[...]                                    # (tt+WEXT, 256) bf16

    # -------- encoder: Conv1d + bias + ReLU + MaxPool(2,2) -- one big-K matmul --
    # im2col column block i holds the paired input shifted by i rows; even/odd
    # conv time phases land in the two 256-lane halves of the 512-wide result.
    # (offsets 1..12 are not sublane aligned; grouping them by offset % 8 with
    #  pltpu.roll is a further micro-opt if vector-load slots ever bind.)
    lhs_e = jnp.concatenate([x[i:i + rows_h, :] for i in range(NPAIR)], axis=1)
    acc = jnp.dot(lhs_e, we_ref[...], preferred_element_type=jnp.float32)
    c_even = acc[:, :CH] + be_ref[...]               # conv output at even frames
    c_odd = acc[:, CH:] + be_ref[...]                # conv output at odd frames
    h = jnp.maximum(jnp.maximum(c_even, c_odd), 0.0)  # max(relu, relu)

    # Zero halo rows outside the real pooled sequence [0, n_valid): exactly the
    # zero padding the transposed conv sees around h.  Fused with the bf16 cast.
    g = (t0 - HSIDE) + jax.lax.broadcasted_iota(jnp.int32, (rows_h, 1), 0)
    h = jnp.where((g >= 0) & (g < n_valid), h, 0.0).astype(jnp.bfloat16)

    # -------- decoder: polyphase ConvTranspose1d (stride 2) -- one big-K matmul -
    # Output row r needs h at pooled offsets r-6 .. r+6 -> local rows r+2 .. r+14.
    d0 = HSIDE - HHALF                               # = 2
    lhs_d = jnp.concatenate([h[d0 + i:d0 + i + tt, :] for i in range(NPAIR)],
                            axis=1)
    y = jnp.dot(lhs_d, wd_ref[...], preferred_element_type=jnp.float32)
    o_ref[0] = y + bd_ref[...]


# ----------------------------- weight packing ------------------------------ #

def _pack_params(params):
    """Rearrange PyTorch-layout weights into paired / padded / im2col form."""
    w_enc = params["w_enc"]            # (CH, CIN, K)  Conv1d weight (out, in, K)
    b_enc = params["b_enc"]            # (CH,)
    w_dec = params["w_dec"]            # (CH, CIN, K)  ConvTranspose1d weight (in, out, K)
    b_dec = params["b_dec"]            # (CIN,)

    # encoder taps, channels-last, CIN padded to 128, plus one all-zero tap
    w = jnp.transpose(w_enc, (2, 1, 0))                        # (K, CIN, CH)
    w = jnp.pad(w, ((0, 1), (0, CPAD - CIN), (0, 0)))          # (K+1, CPAD, CH)
    # even conv phase: offset i uses taps (2i, 2i+1)
    we_even = w.reshape(NPAIR, 2 * CPAD, CH)
    # odd  conv phase: offset 0 uses (0, w0); offset i>=1 uses (w(2i-1), w(2i))
    w_shift = jnp.concatenate([jnp.zeros((1, CPAD, CH), w.dtype), w[:K]], axis=0)
    we_odd = w_shift.reshape(NPAIR, 2 * CPAD, CH)
    we = jnp.concatenate([we_even, we_odd], axis=2).astype(jnp.bfloat16)
    we = we.reshape(KDIM_E, 2 * CH)                            # (3328, 512)
    be = b_enc.reshape(1, CH).astype(jnp.float32)

    # decoder: flipped taps wf[k] = w_dec[:, :, K-1-k], out channels padded to 128
    wf = jnp.transpose(w_dec[:, :, ::-1], (2, 0, 1))           # (K, CH, CIN)
    wf = jnp.pad(wf, ((0, 0), (0, 0), (0, CPAD - CIN)))        # (K, CH, CPAD)
    wd_even = wf[0::2]                                         # even outputs: wf[2i]
    wd_odd = jnp.concatenate([jnp.zeros((1, CH, CPAD), wf.dtype), wf[1::2]], axis=0)
    wd = jnp.concatenate([wd_even, wd_odd], axis=2).astype(jnp.bfloat16)
    wd = wd.reshape(KDIM_D, 2 * CPAD)                          # (3328, 256)
    bdp = jnp.pad(b_dec, (0, CPAD - CIN))
    bd = jnp.concatenate([bdp, bdp]).reshape(1, 2 * CPAD).astype(jnp.float32)
    return we, be, wd, bd


def _vmem_limit_bytes():
    """Explicit scoped-VMEM budget with headroom (fits every TPU generation)."""
    try:
        cap = pltpu.get_tpu_info().vmem_capacity_bytes
    except Exception:          # interpret mode / CPU: best-effort hint only
        cap = 64 * 2 ** 20
    return int(min(48 * 2 ** 20, (cap * 3) // 4))


# -------------------------------- wrapper ----------------------------------- #

@functools.partial(jax.jit, static_argnames=("tile_cap",))
def autoencoder_forward(x_nct, params, tile_cap=512):
    """x_nct: (N, 73, T) float32, NCW like PyTorch.  Returns (N, 73, T) float32."""
    N, C, T = x_nct.shape
    # odd T: pad one frame outside and mask; documented limitation of this kernel
    assert C == CIN and T % 2 == 0, (C, T)
    To = T // 2

    # pooled-time tiling: tt rows of h (= 2*tt output frames) per grid step
    cap = max(8, (int(tile_cap) // 8) * 8)
    tt = min(cap, -(-To // 8) * 8)                    # multiple of 8
    n_t = -(-To // tt)
    if N * n_t < 2 and To >= 16:                      # keep both v7x cores busy
        half = -(-To // 2)
        tt = min(tt, max(8, -(-half // 8) * 8))
        n_t = -(-To // tt)
    to_pad = n_t * tt

    we, be, wd, bd = _pack_params(params)

    # NCW -> channels-last bf16; ONE pad covering the channel pad (73->128), the
    # conv's 12-frame zero pad, the 8-pooled-row halo and the tile/window tail;
    # then pair adjacent frames along lanes: paired row q packs frames 2q-28, 2q-27.
    lpad = 2 * HSIDE + PAD                            # 28 frames
    rpad = 2 * (to_pad + WEXT) - lpad - T             # tail zeros (>= 36)
    xt = jnp.transpose(x_nct, (0, 2, 1)).astype(jnp.bfloat16)          # (N, T, 73)
    xt = jnp.pad(xt, ((0, 0), (lpad, rpad), (0, CPAD - CIN)))          # frame pad
    xp = xt.reshape(N, to_pad + WEXT, 2 * CPAD)                        # frame-paired

    flops = 2 * N * n_t * KDIM_E * ((tt + 2 * HSIDE) * 2 * CH + tt * 2 * CPAD)
    bytes_accessed = (N * n_t * ((tt + WEXT) * 2 * CPAD * 2 + tt * 2 * CPAD * 4)
                      + (we.size + wd.size) * 2 + (be.size + bd.size) * 4)

    out = pl.pallas_call(
        functools.partial(_fused_kernel, tt=tt, n_valid=To),
        out_shape=jax.ShapeDtypeStruct((N, to_pad, 2 * CPAD), jnp.float32),
        grid=(N, n_t),
        in_specs=[
            pl.BlockSpec(memory_space=pl.ANY),        # input stays in HBM; manual DMA
            pl.BlockSpec((KDIM_E, 2 * CH), lambda n, t: (0, 0),
                         pipeline_mode=pl.Buffered(1)),    # grid-invariant weights:
            pl.BlockSpec((1, CH), lambda n, t: (0, 0)),    #   single-buffered
            pl.BlockSpec((KDIM_D, 2 * CPAD), lambda n, t: (0, 0),
                         pipeline_mode=pl.Buffered(1)),
            pl.BlockSpec((1, 2 * CPAD), lambda n, t: (0, 0)),
        ],
        out_specs=pl.BlockSpec((1, tt, 2 * CPAD), lambda n, t: (n, t, 0)),
        scratch_shapes=[pltpu.VMEM((tt + WEXT, 2 * CPAD), jnp.bfloat16),
                        pltpu.SemaphoreType.DMA(())],
        compiler_params=pltpu.CompilerParams(
            dimension_semantics=("parallel", "parallel"),
            vmem_limit_bytes=_vmem_limit_bytes()),
        cost_estimate=pl.CostEstimate(flops=flops, transcendentals=0,
                                      bytes_accessed=bytes_accessed),
    )(xp, we, be, wd, bd)

    # row s of `out` packs [y(2s) | y(2s+1)]: de-interleave via a free reshape,
    # drop the channel / time padding, and return to NCW (the module's contract).
    y = out.reshape(N, 2 * to_pad, CPAD)[:, :T, :CIN]
    return jnp.transpose(y, (0, 2, 1))


# ----------------------- pure-JAX reference (for check) --------------------- #

def _reference_forward(x_nct, params):
    """f32 reference that mirrors the kernel's precision policy: bf16 operands
    into the matmuls, f32 accumulation, bf16 hidden activations."""
    rnd = lambda a: a.astype(jnp.bfloat16).astype(jnp.float32)
    dn = ("NCH", "OIH", "NCH")
    hi = jax.lax.conv_general_dilated(
        rnd(x_nct), rnd(params["w_enc"]), window_strides=(1,), padding=[(PAD, PAD)],
        dimension_numbers=dn, precision=jax.lax.Precision.HIGHEST)
    hi = hi + params["b_enc"][None, :, None]
    hi = jnp.maximum(hi, 0.0)
    N, C, T = hi.shape
    hi = jnp.max(hi.reshape(N, C, T // 2, 2), axis=-1)                 # MaxPool1d(2,2)
    hi = rnd(hi)                                      # kernel feeds decoder MXU in bf16
    w_t = jnp.flip(rnd(params["w_dec"]), axis=-1).transpose(1, 0, 2)   # (73, 256, K) OIH
    y = jax.lax.conv_general_dilated(
        hi, w_t, window_strides=(1,), padding=[(K - 1 - PAD, K - 1 - PAD + 1)],
        lhs_dilation=(2,), dimension_numbers=dn,
        precision=jax.lax.Precision.HIGHEST)
    return y + params["b_dec"][None, :, None]


def _check(x, params, tile_cap=512, tol=2e-2):
    out = jax.block_until_ready(autoencoder_forward(x, params, tile_cap=tile_cap))
    ref = jax.block_until_ready(_reference_forward(x, params))
    assert out.shape == ref.shape, (out.shape, ref.shape)
    err = float(jnp.max(jnp.abs(out - ref)))
    assert err < tol, err


# ---------------------------------- main ------------------------------------ #

if __name__ == "__main__":
    key = jax.random.PRNGKey(0)
    kx, k1, k2, k3, k4 = jax.random.split(key, 5)

    N, T = 2, 16
    x = jax.random.normal(kx, (N, CIN, T), dtype=jnp.float32)          # NCW like PyTorch
    params = {
        # Conv1d weight: (out=256, in=73, K)
        "w_enc": 0.02 * jax.random.normal(k1, (CH, CIN, K), dtype=jnp.float32),
        "b_enc": 0.02 * jax.random.normal(k2, (CH,), dtype=jnp.float32),
        # ConvTranspose1d weight: (in=256, out=73, K)
        "w_dec": 0.02 * jax.random.normal(k3, (CH, CIN, K), dtype=jnp.float32),
        "b_dec": 0.02 * jax.random.normal(k4, (CIN,), dtype=jnp.float32),
    }

    _check(x, params)                                   # single tile per sample
    x2 = jax.random.normal(kx, (1, CIN, 70), dtype=jnp.float32)
    _check(x2, params)                                  # non-x8 pooled length + batch-1 split
    x3 = jax.random.normal(kx, (1, CIN, 64), dtype=jnp.float32)
    _check(x3, params, tile_cap=16)                     # multiple explicit time tiles + halos

    print("KERNEL_OK")
</pallas_src>

<mosaic_0001>
module attributes {stable_mosaic.version = 11 : i64} {
  func.func @_fused_kernel(%arg0: i32, %arg1: i32, %arg2: memref<2x40x256xbf16, #tpu.memory_space<any>>, %arg3: memref<3328x512xbf16, #tpu.memory_space<vmem>>, %arg4: memref<1x256xf32, #tpu.memory_space<vmem>>, %arg5: memref<3328x256xbf16, #tpu.memory_space<vmem>>, %arg6: memref<1x256xf32, #tpu.memory_space<vmem>>, %arg7: memref<1x8x256xf32, #tpu.memory_space<vmem>>, %arg8: memref<40x256xbf16, #tpu.memory_space<vmem>>, %arg9: memref<!tpu.dma_semaphore, #tpu.memory_space<semaphore_mem>>) attributes {dimension_semantics = [#tpu.dimension_semantics<parallel>, #tpu.dimension_semantics<parallel>], iteration_bounds = array<i64: 2, 1>, scalar_prefetch = 0 : i64, scratch_operands = 2 : i64, tpu.core_type = #tpu.core_type<tc>, window_params = [{}, {pipeline_mode = #tpu.pipeline_mode<synchronous>, transform_indices = @transform_1, window_bounds = array<i64: 3328, 512>}, {pipeline_mode = #tpu.pipeline_mode<synchronous>, transform_indices = @transform_2, window_bounds = array<i64: 1, 256>}, {pipeline_mode = #tpu.pipeline_mode<synchronous>, transform_indices = @transform_3, window_bounds = array<i64: 3328, 256>}, {pipeline_mode = #tpu.pipeline_mode<synchronous>, transform_indices = @transform_4, window_bounds = array<i64: 1, 256>}, {transform_indices = @transform_5, window_bounds = array<i64: 1, 8, 256>}]} {
    %c8_i32 = arith.constant 8 : i32
    %0 = arith.muli %arg1, %c8_i32 : i32
    %c0_i32 = arith.constant 0 : i32
    %1 = tpu.memref_slice %arg2[%arg0, %0, %c0_i32] : memref<2x40x256xbf16, #tpu.memory_space<any>> -> memref<1x40x256xbf16, #tpu.memory_space<any>>
    %2 = tpu.memref_squeeze %1 : memref<1x40x256xbf16, #tpu.memory_space<any>> -> memref<40x256xbf16, #tpu.memory_space<any>>
    tpu.enqueue_dma source(%2 : memref<40x256xbf16, #tpu.memory_space<any>>) target(%arg8 : memref<40x256xbf16, #tpu.memory_space<vmem>>) target_semaphore(%arg9 : memref<!tpu.dma_semaphore, #tpu.memory_space<semaphore_mem>>)
    %c0_i32_0 = arith.constant 0 : i32
    %3 = tpu.memref_slice %arg2[%arg0, %0, %c0_i32_0] : memref<2x40x256xbf16, #tpu.memory_space<any>> -> memref<1x40x256xbf16, #tpu.memory_space<any>>
    %4 = tpu.memref_squeeze %3 : memref<1x40x256xbf16, #tpu.memory_space<any>> -> memref<40x256xbf16, #tpu.memory_space<any>>
    tpu.wait_dma2 semaphore(%arg9 : memref<!tpu.dma_semaphore, #tpu.memory_space<semaphore_mem>>) src(%4 : memref<40x256xbf16, #tpu.memory_space<any>>) dst(%arg8 : memref<40x256xbf16, #tpu.memory_space<vmem>>)
    %c0 = arith.constant 0 : index
    %c0_1 = arith.constant 0 : index
    %5 = vector.load %arg8[%c0, %c0_1] : memref<40x256xbf16, #tpu.memory_space<vmem>>, vector<40x256xbf16>
    %6 = vector.extract_strided_slice %5 {offsets = [0, 0], sizes = [24, 256], strides = [1, 1]} : vector<40x256xbf16> to vector<24x256xbf16>
    %7 = vector.extract_strided_slice %5 {offsets = [1, 0], sizes = [24, 256], strides = [1, 1]} : vector<40x256xbf16> to vector<24x256xbf16>
    %8 = vector.extract_strided_slice %5 {offsets = [2, 0], sizes = [24, 256], strides = [1, 1]} : vector<40x256xbf16> to vector<24x256xbf16>
    %9 = vector.extract_strided_slice %5 {offsets = [3, 0], sizes = [24, 256], strides = [1, 1]} : vector<40x256xbf16> to vector<24x256xbf16>
    %10 = vector.extract_strided_slice %5 {offsets = [4, 0], sizes = [24, 256], strides = [1, 1]} : vector<40x256xbf16> to vector<24x256xbf16>
    %11 = vector.extract_strided_slice %5 {offsets = [5, 0], sizes = [24, 256], strides = [1, 1]} : vector<40x256xbf16> to vector<24x256xbf16>
    %12 = vector.extract_strided_slice %5 {offsets = [6, 0], sizes = [24, 256], strides = [1, 1]} : vector<40x256xbf16> to vector<24x256xbf16>
    %13 = vector.extract_strided_slice %5 {offsets = [7, 0], sizes = [24, 256], strides = [1, 1]} : vector<40x256xbf16> to vector<24x256xbf16>
    %14 = vector.extract_strided_slice %5 {offsets = [8, 0], sizes = [24, 256], strides = [1, 1]} : vector<40x256xbf16> to vector<24x256xbf16>
    %15 = vector.extract_strided_slice %5 {offsets = [9, 0], sizes = [24, 256], strides = [1, 1]} : vector<40x256xbf16> to vector<24x256xbf16>
    %16 = vector.extract_strided_slice %5 {offsets = [10, 0], sizes = [24, 256], strides = [1, 1]} : vector<40x256xbf16> to vector<24x256xbf16>
    %17 = vector.extract_strided_slice %5 {offsets = [11, 0], sizes = [24, 256], strides = [1, 1]} : vector<40x256xbf16> to vector<24x256xbf16>
    %18 = vector.extract_strided_slice %5 {offsets = [12, 0], sizes = [24, 256], strides = [1, 1]} : vector<40x256xbf16> to vector<24x256xbf16>
    %19 = tpu.concatenate %6, %7, %8, %9, %10, %11, %12, %13, %14, %15, %16, %17, %18 in 1 : vector<24x256xbf16>, vector<24x256xbf16>, vector<24x256xbf16>, vector<24x256xbf16>, vector<24x256xbf16>, vector<24x256xbf16>, vector<24x256xbf16>, vector<24x256xbf16>, vector<24x256xbf16>, vector<24x256xbf16>, vector<24x256xbf16>, vector<24x256xbf16>, vector<24x256xbf16> -> vector<24x3328xbf16>
    %c0_2 = arith.constant 0 : index
    %c0_3 = arith.constant 0 : index
    %20 = vector.load %arg3[%c0_2, %c0_3] : memref<3328x512xbf16, #tpu.memory_space<vmem>>, vector<3328x512xbf16>
    %cst = arith.constant dense<0.000000e+00> : vector<24x512xf32>
    %21 = tpu.matmul %19, %20, %cst {dimension_numbers = #tpu.dot_dimension_numbers<[1], [0], [0], [1], [0, 0, 1, 1], [], []>} : vector<24x3328xbf16>, vector<3328x512xbf16>, vector<24x512xf32> -> vector<24x512xf32>
    %22 = vector.extract_strided_slice %21 {offsets = [0, 0], sizes = [24, 256], strides = [1, 1]} : vector<24x512xf32> to vector<24x256xf32>
    %c0_4 = arith.constant 0 : index
    %c0_5 = arith.constant 0 : index
    %23 = vector.load %arg4[%c0_4, %c0_5] : memref<1x256xf32, #tpu.memory_space<vmem>>, vector<1x256xf32>
    %24 = vector.broadcast %23 : vector<1x256xf32> to vector<24x256xf32>
    %25 = arith.addf %22, %24 : vector<24x256xf32>
    %26 = vector.extract_strided_slice %21 {offsets = [0, 256], sizes = [24, 256], strides = [1, 1]} : vector<24x512xf32> to vector<24x256xf32>
    %c0_6 = arith.constant 0 : index
    %c0_7 = arith.constant 0 : index
    %27 = vector.load %arg4[%c0_6, %c0_7] : memref<1x256xf32, #tpu.memory_space<vmem>>, vector<1x256xf32>
    %28 = vector.broadcast %27 : vector<1x256xf32> to vector<24x256xf32>
    %29 = arith.addf %26, %28 : vector<24x256xf32>
    %30 = arith.maximumf %25, %29 : vector<24x256xf32>
    %cst_8 = arith.constant 0.000000e+00 : f32
    %31 = vector.broadcast %cst_8 : f32 to vector<24x256xf32>
    %32 = arith.maximumf %30, %31 : vector<24x256xf32>
    %c8_i32_9 = arith.constant 8 : i32
    %33 = arith.subi %0, %c8_i32_9 : i32
    %34 = tpu.iota {dimensions = array<i32: 0>} : vector<24x1xi32>
    %35 = vector.broadcast %33 : i32 to vector<24x1xi32>
    %36 = arith.addi %35, %34 : vector<24x1xi32>
    %c0_i32_10 = arith.constant 0 : i32
    %37 = vector.broadcast %c0_i32_10 : i32 to vector<24x1xi32>
    %38 = arith.cmpi sge, %36, %37 : vector<24x1xi32>
    %c8_i32_11 = arith.constant 8 : i32
    %39 = vector.broadcast %c8_i32_11 : i32 to vector<24x1xi32>
    %40 = arith.cmpi slt, %36, %39 : vector<24x1xi32>
    %41 = arith.andi %38, %40 : vector<24x1xi1>
    %cst_12 = arith.constant 0.000000e+00 : f32
    %42 = vector.shape_cast %41 : vector<24x1xi1> to vector<24x1xi1>
    %43 = vector.broadcast %42 : vector<24x1xi1> to vector<24x256xi1>
    %44 = vector.broadcast %cst_12 : f32 to vector<24x256xf32>
    %45 = arith.select %43, %32, %44 : vector<24x256xi1>, vector<24x256xf32>
    %46 = arith.truncf %45 : vector<24x256xf32> to vector<24x256xbf16>
    %47 = vector.extract_strided_slice %46 {offsets = [2, 0], sizes = [8, 256], strides = [1, 1]} : vector<24x256xbf16> to vector<8x256xbf16>
    %48 = vector.extract_strided_slice %46 {offsets = [3, 0], sizes = [8, 256], strides = [1, 1]} : vector<24x256xbf16> to vector<8x256xbf16>
    %49 = vector.extract_strided_slice %46 {offsets = [4, 0], sizes = [8, 256], strides = [1, 1]} : vector<24x256xbf16> to vector<8x256xbf16>
    %50 = vector.extract_strided_slice %46 {offsets = [5, 0], sizes = [8, 256], strides = [1, 1]} : vector<24x256xbf16> to vector<8x256xbf16>
    %51 = vector.extract_strided_slice %46 {offsets = [6, 0], sizes = [8, 256], strides = [1, 1]} : vector<24x256xbf16> to vector<8x256xbf16>
    %52 = vector.extract_strided_slice %46 {offsets = [7, 0], sizes = [8, 256], strides = [1, 1]} : vector<24x256xbf16> to vector<8x256xbf16>
    %53 = vector.extract_strided_slice %46 {offsets = [8, 0], sizes = [8, 256], strides = [1, 1]} : vector<24x256xbf16> to vector<8x256xbf16>
    %54 = vector.extract_strided_slice %46 {offsets = [9, 0], sizes = [8, 256], strides = [1, 1]} : vector<24x256xbf16> to vector<8x256xbf16>
    %55 = vector.extract_strided_slice %46 {offsets = [10, 0], sizes = [8, 256], strides = [1, 1]} : vector<24x256xbf16> to vector<8x256xbf16>
    %56 = vector.extract_strided_slice %46 {offsets = [11, 0], sizes = [8, 256], strides = [1, 1]} : vector<24x256xbf16> to vector<8x256xbf16>
    %57 = vector.extract_strided_slice %46 {offsets = [12, 0], sizes = [8, 256], strides = [1, 1]} : vector<24x256xbf16> to vector<8x256xbf16>
    %58 = vector.extract_strided_slice %46 {offsets = [13, 0], sizes = [8, 256], strides = [1, 1]} : vector<24x256xbf16> to vector<8x256xbf16>
    %59 = vector.extract_strided_slice %46 {offsets = [14, 0], sizes = [8, 256], strides = [1, 1]} : vector<24x256xbf16> to vector<8x256xbf16>
    %60 = tpu.concatenate %47, %48, %49, %50, %51, %52, %53, %54, %55, %56, %57, %58, %59 in 1 : vector<8x256xbf16>, vector<8x256xbf16>, vector<8x256xbf16>, vector<8x256xbf16>, vector<8x256xbf16>, vector<8x256xbf16>, vector<8x256xbf16>, vector<8x256xbf16>, vector<8x256xbf16>, vector<8x256xbf16>, vector<8x256xbf16>, vector<8x256xbf16>, vector<8x256xbf16> -> vector<8x3328xbf16>
    %c0_13 = arith.constant 0 : index
    %c0_14 = arith.constant 0 : index
    %61 = vector.load %arg5[%c0_13, %c0_14] : memref<3328x256xbf16, #tpu.memory_space<vmem>>, vector<3328x256xbf16>
    %cst_15 = arith.constant dense<0.000000e+00> : vector<8x256xf32>
    %62 = tpu.matmul %60, %61, %cst_15 {dimension_numbers = #tpu.dot_dimension_numbers<[1], [0], [0], [1], [0, 0, 1, 1], [], []>} : vector<8x3328xbf16>, vector<3328x256xbf16>, vector<8x256xf32> -> vector<8x256xf32>
    %c0_16 = arith.constant 0 : index
    %c0_17 = arith.constant 0 : index
    %63 = vector.load %arg6[%c0_16, %c0_17] : memref<1x256xf32, #tpu.memory_space<vmem>>, vector<1x256xf32>
    %64 = vector.broadcast %63 : vector<1x256xf32> to vector<8x256xf32>
    %65 = arith.addf %62, %64 : vector<8x256xf32>
    %c0_18 = arith.constant 0 : index
    %c0_19 = arith.constant 0 : index
    %c0_20 = arith.constant 0 : index
    %66 = vector.load %arg7[%c0_18, %c0_19, %c0_20] : memref<1x8x256xf32, #tpu.memory_space<vmem>>, vector<1x8x256xf32>
    %67 = vector.shape_cast %66 : vector<1x8x256xf32> to vector<8x256xf32>
    %68 = vector.shape_cast %65 : vector<8x256xf32> to vector<1x8x256xf32>
    tpu.vector_store %arg7[%c0_18, %c0_19, %c0_20], %68 {strides = array<i32>} : memref<1x8x256xf32, #tpu.memory_space<vmem>>, vector<1x8x256xf32>,
    return
  }
  func.func @transform_1(%arg0: i32, %arg1: i32) -> (i32, i32) {
    %c0_i32 = arith.constant 0 : i32
    %c0_i32_0 = arith.constant 0 : i32
    %c0_i32_1 = arith.constant 0 : i32
    return %c0_i32, %c0_i32_0 : i32, i32
  }
  func.func @transform_2(%arg0: i32, %arg1: i32) -> (i32, i32) {
    %c0_i32 = arith.constant 0 : i32
    %c0_i32_0 = arith.constant 0 : i32
    %c0_i32_1 = arith.constant 0 : i32
    return %c0_i32, %c0_i32_0 : i32, i32
  }
  func.func @transform_3(%arg0: i32, %arg1: i32) -> (i32, i32) {
    %c0_i32 = arith.constant 0 : i32
    %c0_i32_0 = arith.constant 0 : i32
    %c0_i32_1 = arith.constant 0 : i32
    return %c0_i32, %c0_i32_0 : i32, i32
  }
  func.func @transform_4(%arg0: i32, %arg1: i32) -> (i32, i32) {
    %c0_i32 = arith.constant 0 : i32
    %c0_i32_0 = arith.constant 0 : i32
    %c0_i32_1 = arith.constant 0 : i32
    return %c0_i32, %c0_i32_0 : i32, i32
  }
  func.func @transform_5(%arg0: i32, %arg1: i32) -> (i32, i32, i32) {
    %c0_i32 = arith.constant 0 : i32
    %c0_i32_0 = arith.constant 0 : i32
    return %arg0, %arg1, %c0_i32 : i32, i32, i32
  }
}

</mosaic_0001>

<llo_original>
// kernel: autoencoder_forward.1
$region0: #{autoencoder_forward.1}
  #allocation0 [shape = 'u32[]', space=smem, size = 0x4, offset = 0x4, fixed_abs, tag = 'smem constant byte address 0x4 - core index']
  #allocation1 [shape = 'u32[72,128]{1,0:T(1,128)}', space=vmem, size = 0x9000, scoped, tag = 'internal scratch']
  #allocation2 [shape = 'bf16[40,256]{1,0:T(8,128)(2,1)}', space=vmem, size = 0x5000, scoped, tag = 'scratch operand']
  #allocation3 [shape = 's32[1]{0}', space=sflag, size = 0x4, scoped, tag = 'scratch operand']
  #allocation4 [shape = 's32[]', space=sflag, size = 0x4, offset = 0, fixed_abs, tag = 'sflag constant byte address 0x0 - dummy sync flag']
  %s0 = inlined_call_operand.vmem [shape: bf16[2,40,256], index: 0, kind: input, shape index: {}]
  %s1 = inlined_call_operand.vmem [shape: bf16[3328,512], index: 1, kind: input, shape index: {}]
  %s2 = inlined_call_operand.vmem [shape: f32[1,256], index: 2, kind: input, shape index: {}]
  %s3 = inlined_call_operand.vmem [shape: bf16[3328,256], index: 3, kind: input, shape index: {}]
  %s4 = inlined_call_operand.vmem [shape: f32[1,256], index: 4, kind: input, shape index: {}]
  %s5 = inlined_call_operand.vmem [shape: f32[2,8,256], index: 5, kind: output, shape index: {}]
  %s6 = sld [smem:[#allocation0]]
  $region68: #{autoencoder_forward.1} parent=0
    _
  %s8 = ssub.s32 1, %s6
  %s9 = scalar_select 0, %s8, %s6
  loop: start=0, step=1, limit=4
  $region2: #{autoencoder_forward.1} parent=0 // loop_pre_header
    _
  $region3: #{autoencoder_forward.1} parent=0 // loop_header
    %s11 = sphi 0, %s15
    %p12 = scmp.ge.s32.totalorder %s11, 4
    %s18 = sphi 0, %s30
    %s19 = sphi 0, %s26
    %s20 = sphi 0, %s18
    %s21 = sphi 0, %s19
    %s22 = sphi 0, %s20
    %s23 = sphi 0, %s21
    %s31 = sphi 0, %s31
    %s33 = sphi 0, %s31
    %s34 = sphi 0, %s33
    %s48 = sphi 0, %s34
    %s52 = sphi 0, %s52
    %s54 = sphi 0, %s52
    %s55 = sphi 0, %s54
    %s69 = sphi 0, %s55
    %s73 = sphi 0, %s73
    %s75 = sphi 0, %s73
    %s76 = sphi 0, %s75
    %s90 = sphi 0, %s76
    %s94 = sphi 0, %s94
    %s96 = sphi 0, %s94
    %s97 = sphi 0, %s96
    %s111 = sphi 0, %s97
    %s119 = sphi 0, %s121
    %s122 = sphi 0, %s119
    %s123 = sphi 0, %s122
    %s139 = sphi 0, %s123
  $region4: #{autoencoder_forward.1} parent=0 // loop_header_branch
    %14 = sbr.rel (%p12) target = $region8
  $region5: #{autoencoder_forward.1} parent=0 // loop_body
    %s16 = ssub.s32 %s11, 1
    %s17 = ssub.s32 %s11, 2
    %s24 = sadd.s32 1, %s19
    %p25 = scmp.ge.s32.totalorder %s24, 1
    %s26 = scalar_select %p25, 0, %s24
    %s27 = sadd.s32 1, %s18
    %s28 = scalar_select %p25, %s27, %s18
    %p29 = scmp.ge.s32.totalorder %s28, 2
    %s30 = scalar_select %p29, 0, %s28
    %s32 = sadd.s32 %s31, 1
    %p35 = scmp.eq.s32.totalorder %s11, 1
    %p36 = scmp.ne.s32.totalorder %s31, %s33
    %p37 = scmp.eq.s32.totalorder %s11, 0
    %p38 = por %p36, %p37
    %p39 = scmp.ne.s32.totalorder %s31, %s33
    %p40 = scmp.eq.s32.totalorder %s16, 1
    %p41 = por %p39, %p40
    %p42 = scmp.ne.s32.totalorder %s33, %s34
    %p43 = scmp.eq.s32.totalorder %s16, 0
    %p44 = por %p42, %p43
    %p45 = scmp.ne.s32.totalorder %s33, %s34
    %p46 = scmp.eq.s32.totalorder %s17, 1
    %p47 = por %p45, %p46
    %p49 = scmp.ne.s32.totalorder %s34, %s48
    %p50 = scmp.eq.s32.totalorder %s17, 0
    %p51 = por %p49, %p50
    %s53 = sadd.s32 %s52, 1
    %p56 = scmp.eq.s32.totalorder %s11, 1
    %p57 = scmp.ne.s32.totalorder %s52, %s54
    %p58 = scmp.eq.s32.totalorder %s11, 0
    %p59 = por %p57, %p58
    %p60 = scmp.ne.s32.totalorder %s52, %s54
    %p61 = scmp.eq.s32.totalorder %s16, 1
    %p62 = por %p60, %p61
    %p63 = scmp.ne.s32.totalorder %s54, %s55
    %p64 = scmp.eq.s32.totalorder %s16, 0
    %p65 = por %p63, %p64
    %p66 = scmp.ne.s32.totalorder %s54, %s55
    %p67 = scmp.eq.s32.totalorder %s17, 1
    %p68 = por %p66, %p67
    %p70 = scmp.ne.s32.totalorder %s55, %s69
    %p71 = scmp.eq.s32.totalorder %s17, 0
    %p72 = por %p70, %p71
    %s74 = sadd.s32 %s73, 1
    %p77 = scmp.eq.s32.totalorder %s11, 1
    %p78 = scmp.ne.s32.totalorder %s73, %s75
    %p79 = scmp.eq.s32.totalorder %s11, 0
    %p80 = por %p78, %p79
    %p81 = scmp.ne.s32.totalorder %s73, %s75
    %p82 = scmp.eq.s32.totalorder %s16, 1
    %p83 = por %p81, %p82
    %p84 = scmp.ne.s32.totalorder %s75, %s76
    %p85 = scmp.eq.s32.totalorder %s16, 0
    %p86 = por %p84, %p85
    %p87 = scmp.ne.s32.totalorder %s75, %s76
    %p88 = scmp.eq.s32.totalorder %s17, 1
    %p89 = por %p87, %p88
    %p91 = scmp.ne.s32.totalorder %s76, %s90
    %p92 = scmp.eq.s32.totalorder %s17, 0
    %p93 = por %p91, %p92
    %s95 = sadd.s32 %s94, 1
    %p98 = scmp.eq.s32.totalorder %s11, 1
    %p99 = scmp.ne.s32.totalorder %s94, %s96
    %p100 = scmp.eq.s32.totalorder %s11, 0
    %p101 = por %p99, %p100
    %p102 = scmp.ne.s32.totalorder %s94, %s96
    %p103 = scmp.eq.s32.totalorder %s16, 1
    %p104 = por %p102, %p103
    %p105 = scmp.ne.s32.totalorder %s96, %s97
    %p106 = scmp.eq.s32.totalorder %s16, 0
    %p107 = por %p105, %p106
    %p108 = scmp.ne.s32.totalorder %s96, %s97
    %p109 = scmp.eq.s32.totalorder %s17, 1
    %p110 = por %p108, %p109
    %p112 = scmp.ne.s32.totalorder %s97, %s111
    %p113 = scmp.eq.s32.totalorder %s17, 0
    %p114 = por %p112, %p113
    %s115 = ssub.s32 %s18, %s30
    %s116 = ssub.s32 %s19, %s26
    %s117 = sor.u32 %s115, %s116
    %p118 = scmp.eq.s32.totalorder %s117, 0
    %s120 = sadd.s32 %s119, 1
    %s121 = scalar_select %p118, %s119, %s120
    %p124 = pneg %p118
    %p125 = scmp.eq.s32.totalorder %s11, 1
    %p126 = por %p124, %p125
    %p127 = scmp.ne.s32.totalorder %s119, %s122
    %p128 = scmp.eq.s32.totalorder %s11, 0
    %p129 = por %p127, %p128
    %p130 = scmp.ne.s32.totalorder %s119, %s122
    %p131 = scmp.eq.s32.totalorder %s16, 1
    %p132 = por %p130, %p131
    %p133 = scmp.ne.s32.totalorder %s122, %s123
    %p134 = scmp.eq.s32.totalorder %s16, 0
    %p135 = por %p133, %p134
    %p136 = scmp.ne.s32.totalorder %s122, %s123
    %p137 = scmp.eq.s32.totalorder %s17, 1
    %p138 = por %p136, %p137
    %p140 = scmp.ne.s32.totalorder %s123, %s139
    %p141 = scmp.eq.s32.totalorder %s17, 0
    %p142 = por %p140, %p141
    %p143 = scmp.le.s32.totalorder 1, %s11
    %p144 = scmp.lt.s32.totalorder %s11, 3
    %p145 = pnand %p143, %p144
    %p146 = pneg %p145
    // Predicated region
    $region9: #{autoencoder_forward.1} parent=5 // pred_check
      _
    $region10: #{autoencoder_forward.1} parent=5 // pred_check_branch
      %148 = sbr.rel (%p145) target = $region12
    $region11: #{autoencoder_forward.1} parent=5 // pred_region
      %s149 = ssub.s32 %s11, 1
      // Predicated region
      $region13: #{autoencoder_forward.1} parent=11 // pred_check
        %p150 = pneg %p44
      $region14: #{autoencoder_forward.1} parent=11 // pred_check_branch
        %152 = sbr.rel (%p150) target = $region16
      $region15: #{autoencoder_forward.1} parent=11 // pred_region
        _
      $region16: #{autoencoder_forward.1} parent=11 // pred_fallthru
        _
      // Predicated region
      $region17: #{autoencoder_forward.1} parent=11 // pred_check
        %p153 = pneg %p65
      $region18: #{autoencoder_forward.1} parent=11 // pred_check_branch
        %155 = sbr.rel (%p153) target = $region20
      $region19: #{autoencoder_forward.1} parent=11 // pred_region
        _
      $region20: #{autoencoder_forward.1} parent=11 // pred_fallthru
        _
      // Predicated region
      $region21: #{autoencoder_forward.1} parent=11 // pred_check
        %p156 = pneg %p86
      $region22: #{autoencoder_forward.1} parent=11 // pred_check_branch
        %158 = sbr.rel (%p156) target = $region24
      $region23: #{autoencoder_forward.1} parent=11 // pred_region
        _
      $region24: #{autoencoder_forward.1} parent=11 // pred_fallthru
        _
      // Predicated region
      $region25: #{autoencoder_forward.1} parent=11 // pred_check
        %p159 = pneg %p107
      $region26: #{autoencoder_forward.1} parent=11 // pred_check_branch
        %161 = sbr.rel (%p159) target = $region28
      $region27: #{autoencoder_forward.1} parent=11 // pred_region
        _
      $region28: #{autoencoder_forward.1} parent=11 // pred_fallthru
        _
    $region12: #{autoencoder_forward.1} parent=5 // pred_fallthru
      _
    %p162 = scmp.lt.s32.totalorder %s11, 2
    // Predicated region
    $region29: #{autoencoder_forward.1} parent=5 // pred_check
      %p163 = pneg %p162
    $region30: #{autoencoder_forward.1} parent=5 // pred_check_branch
      %165 = sbr.rel (%p163) target = $region32
    $region31: #{autoencoder_forward.1} parent=5 // pred_region
      _
    $region32: #{autoencoder_forward.1} parent=5 // pred_fallthru
      _
    %p166 = scmp.le.s32.totalorder 1, %s11
    %p167 = scmp.lt.s32.totalorder %s11, 3
    %p168 = pnand %p166, %p167
    %p169 = pneg %p168
    // Predicated region
    $region33: #{autoencoder_forward.1} parent=5 // pred_check
      _
    $region34: #{autoencoder_forward.1} parent=5 // pred_check_branch
      %171 = sbr.rel (%p168) target = $region36
    $region35: #{autoencoder_forward.1} parent=5 // pred_region
      %s172 = ssub.s32 %s11, 1
      %p173 = pneg %p44
      %p174 = pneg %p41
      %p175 = pneg %p65
      %p176 = pneg %p62
      %p177 = pneg %p86
      %p178 = pneg %p83
      %p179 = pneg %p107
      %p180 = pneg %p104
      %p181 = pneg %p135
      %p182 = pneg %p132
      %p183 = scmp.lt.s32.totalorder %s20, 1
      %s184 = scalar_select %p183, %s20, 1
      %p185 = scmp.lt.s32.totalorder %s21, 0
      %s186 = scalar_select %p185, %s21, 0
      %s187 = smul.addr %s186, 2
      %s188 = smul.addr %s184, 2
      %s189 = sadd.s32 %s187, %s188
      %s190 = smul.addr %s189, 8
      %s191 = scalar_lea.vmem %s5, %s190
      %p192 = scmp.lt.s32.totalorder %s20, 1
      %s193 = scalar_select %p192, %s20, 1
      %p194 = scmp.lt.s32.totalorder %s21, 0
      %s195 = scalar_select %p194, %s21, 0
      %s196 = smul.addr %s195, 2
      %s197 = smul.addr %s193, 2
      %s198 = sadd.s32 %s196, %s197
      %s199 = smul.addr %s198, 8
      %s200 = scalar_lea.vmem %s5, %s199
      %s201 = smul.u32 %s21, 8
      %s202 = sshra.s32 %s201, 3
      %s203 = sand.u32 %s201, 7
      %s204 = smul.u32 %s202, 2
      %s205 = smul.u32 %s20, 10
      %s206 = sadd.s32 %s204, %s205
      %s207 = smul.addr %s206, 4
      %s208 = scalar_lea.vmem %s0, %s207
      // Predicated region
      $region37: #{autoencoder_forward.1} parent=35 // pred_check
        _
      $region38: #{autoencoder_forward.1} parent=35 // pred_check_branch
        %210 = sbr.rel (0) target = $region40
      $region39: #{autoencoder_forward.1} parent=35 // pred_region
        loop: start=0, step=1, limit=1
        $region41: #{autoencoder_forward.1} parent=39 // loop_pre_header
          _
        $region42: #{autoencoder_forward.1} parent=39 // loop_header
          %s212 = sphi 0, %s216
          %p213 = scmp.ge.s32.totalorder %s212, 1
          %s217 = sphi %s208, %s208
          %s218 = sphi [#allocation2], [#allocation2]
        $region43: #{autoencoder_forward.1} parent=39 // loop_header_branch
          %215 = sbr.rel (%p213) target = $region47
        $region44: #{autoencoder_forward.1} parent=39 // loop_body
          %v219 = vld [vmem:[%s217] sm:$0xff]
          %220 = vst [vmem:[%s218] sm:$0xff] %v219
          %v221 = vld [vmem:[%s217 + $0x8] sm:$0xff]
          %222 = vst [vmem:[%s218 + $0x8] sm:$0xff] %v221
          %v223 = vld [vmem:[%s217 + $0x10] sm:$0xff]
          %224 = vst [vmem:[%s218 + $0x10] sm:$0xff] %v223
          %v225 = vld [vmem:[%s217 + $0x18] sm:$0xff]
          %226 = vst [vmem:[%s218 + $0x18] sm:$0xff] %v225
          %v227 = vld [vmem:[%s217 + $0x20] sm:$0xff]
          %228 = vst [vmem:[%s218 + $0x20] sm:$0xff] %v227
        $region45: #{autoencoder_forward.1} parent=39 // loop_footer
          %s216 = sadd.s32 1, %s212
        $region46: #{autoencoder_forward.1} parent=39 // loop_footer_branch
          %211 = sbr.rel target = $region42
        $region47: #{autoencoder_forward.1} parent=39 // loop_exit
          _
      $region40: #{autoencoder_forward.1} parent=35 // pred_fallthru
        _
      // Predicated region
      $region48: #{autoencoder_forward.1} parent=35 // pred_check
        _
      $region49: #{autoencoder_forward.1} parent=35 // pred_check_branch
        %230 = sbr.rel target = $region51
      $region50: #{autoencoder_forward.1} parent=35 // pred_region
        _
      $region51: #{autoencoder_forward.1} parent=35 // pred_fallthru
        _
      // Predicated region
      $region52: #{autoencoder_forward.1} parent=35 // pred_check
        _
      $region53: #{autoencoder_forward.1} parent=35 // pred_check_branch
        %233 = sbr.rel (0) target = $region55
      $region54: #{autoencoder_forward.1} parent=35 // pred_region
        %234 = vsyncadd [#allocation3], 640
      $region55: #{autoencoder_forward.1} parent=35 // pred_fallthru
        _
      %s235 = smul.u32 4, 5
      %s236 = smul.u32 %s235, 2
      %s237 = sshll.u32 %s236, 4
      %238 = dma.done [#allocation3], %s237
      %v239 = vld [vmem:[#allocation2] sm:$0xff]
      %v240 = vld [vmem:[#allocation2 + $0x8] sm:$0xff]
      %v241 = vld [vmem:[#allocation2 + $0x10] sm:$0xff]
      %v242 = vld [vmem:[#allocation2 + $0x18] sm:$0xff]
      %v243 = vld [vmem:[#allocation2 + $0x20] sm:$0xff]
      %v247 = vunpack.c.l.b16 %v239
      %v248 = vunpack.c.h.b16 %v239
      %v249 = vunpack.c.l.b16 %v240
      %v250 = vunpack.c.h.b16 %v240
      %v251 = vunpack.c.l.b16 %v241
      %v252 = vunpack.c.h.b16 %v241
      %v253 = vpack.c.b16 %v249, %v247
      %v254 = vpack.c.b16 %v250, %v248
      %v255 = vpack.c.b16 %v251, %v251
      %v256 = vpack.c.b16 %v252, %v252
      %v262 = vunpack.c.l.b16 %v242
      %v263 = vunpack.c.h.b16 %v242
      %v264 = vpack.c.b16 %v262, %v251
      %v265 = vpack.c.b16 %v263, %v252
      %vm266 = vsmask.f32 7424
      %v268 = vshrl.u32 %v253, 16
      %v270 = vshll.u32 %v253, 16
      %v272 = vrot.slane %v270, 1
      %v273 = vor.u32 %v268, %v272
      %v275 = vshll.u32 %v264, 16
      %v277 = vrot.slane %v275, 1
      %v278 = vsel %vm266, %v273, %v277
      %v280 = vshrl.u32 %v254, 16
      %v282 = vshll.u32 %v254, 16
      %v284 = vrot.slane %v282, 1
      %v285 = vor.u32 %v280, %v284
      %v287 = vshll.u32 %v265, 16
      %v289 = vrot.slane %v287, 1
      %v290 = vsel %vm266, %v285, %v289
      %v291 = vshrl.u32 %v264, 16
      %v293 = vor.u32 %v291, %v277
      %v294 = vshrl.u32 %v265, 16
      %v296 = vor.u32 %v294, %v289
      %vm301 = vcmask 1046528
      %v302 = vrot.slane %v253, 1
      %v303 = vrot.slane %v264, 1
      %v304 = vsel %vm301, %v302, %v303
      %v305 = vrot.slane %v254, 1
      %v306 = vrot.slane %v265, 1
      %v307 = vsel %vm301, %v305, %v306
      %vm312 = vsmask.f32 6400
      %v313 = vrot.slane %v268, 1
      %v314 = vrot.slane %v270, 2
      %v315 = vor.u32 %v313, %v314
      %v316 = vrot.slane %v291, 1
      %v317 = vrot.slane %v275, 2
      %v318 = vor.u32 %v316, %v317
      %v319 = vsel %vm312, %v315, %v318
      %v320 = vrot.slane %v280, 1
      %v321 = vrot.slane %v282, 2
      %v322 = vor.u32 %v320, %v321
      %v323 = vrot.slane %v294, 1
      %v324 = vrot.slane %v287, 2
      %v325 = vor.u32 %v323, %v324
      %v326 = vsel %vm312, %v322, %v325
      %vm331 = vcmask 1045504
      %v332 = vrot.slane %v253, 2
      %v333 = vrot.slane %v264, 2
      %v334 = vsel %vm331, %v332, %v333
      %v335 = vrot.slane %v254, 2
      %v336 = vrot.slane %v265, 2
      %v337 = vsel %vm331, %v335, %v336
      %vm342 = vsmask.f32 5376
      %v343 = vrot.slane %v268, 2
      %v344 = vrot.slane %v270, 3
      %v345 = vor.u32 %v343, %v344
      %v346 = vrot.slane %v291, 2
      %v347 = vrot.slane %v275, 3
      %v348 = vor.u32 %v346, %v347
      %v349 = vsel %vm342, %v345, %v348
      %v350 = vrot.slane %v280, 2
      %v351 = vrot.slane %v282, 3
      %v352 = vor.u32 %v350, %v351
      %v353 = vrot.slane %v294, 2
      %v354 = vrot.slane %v287, 3
      %v355 = vor.u32 %v353, %v354
      %v356 = vsel %vm342, %v352, %v355
      %vm361 = vcmask 1044480
      %v362 = vrot.slane %v253, 3
      %v363 = vrot.slane %v264, 3
      %v364 = vsel %vm361, %v362, %v363
      %v365 = vrot.slane %v254, 3
      %v366 = vrot.slane %v265, 3
      %v367 = vsel %vm361, %v365, %v366
      %vm372 = vsmask.f32 4352
      %v373 = vrot.slane %v268, 3
      %v374 = vrot.slane %v270, 4
      %v375 = vor.u32 %v373, %v374
      %v376 = vrot.slane %v291, 3
      %v377 = vrot.slane %v275, 4
      %v378 = vor.u32 %v376, %v377
      %v379 = vsel %vm372, %v375, %v378
      %v380 = vrot.slane %v280, 3
      %v381 = vrot.slane %v282, 4
      %v382 = vor.u32 %v380, %v381
      %v383 = vrot.slane %v294, 3
      %v384 = vrot.slane %v287, 4
      %v385 = vor.u32 %v383, %v384
      %v386 = vsel %vm372, %v382, %v385
      %v391 = vpack.c.b16 %v251, %v249
      %v392 = vpack.c.b16 %v252, %v250
      %v393 = vpack.c.b16 %v262, %v262
      %v394 = vpack.c.b16 %v263, %v263
      %v400 = vunpack.c.l.b16 %v243
      %v401 = vunpack.c.h.b16 %v243
      %v402 = vpack.c.b16 %v400, %v262
      %v403 = vpack.c.b16 %v401, %v263
      %v405 = vshrl.u32 %v391, 16
      %v407 = vshll.u32 %v391, 16
      %v409 = vrot.slane %v407, 1
      %v410 = vor.u32 %v405, %v409
      %v412 = vshll.u32 %v402, 16
      %v414 = vrot.slane %v412, 1
      %v415 = vsel %vm266, %v410, %v414
      %v417 = vshrl.u32 %v392, 16
      %v419 = vshll.u32 %v392, 16
      %v421 = vrot.slane %v419, 1
      %v422 = vor.u32 %v417, %v421
      %v424 = vshll.u32 %v403, 16
      %v426 = vrot.slane %v424, 1
      %v427 = vsel %vm266, %v422, %v426
      %v428 = vshrl.u32 %v402, 16
      %v430 = vor.u32 %v428, %v414
      %v431 = vshrl.u32 %v403, 16
      %v433 = vor.u32 %v431, %v426
      %v438 = vrot.slane %v391, 1
      %v439 = vrot.slane %v402, 1
      %v440 = vsel %vm301, %v438, %v439
      %v441 = vrot.slane %v392, 1
      %v442 = vrot.slane %v403, 1
      %v443 = vsel %vm301, %v441, %v442
      %v448 = vrot.slane %v405, 1
      %v449 = vrot.slane %v407, 2
      %v450 = vor.u32 %v448, %v449
      %v451 = vrot.slane %v428, 1
      %v452 = vrot.slane %v412, 2
      %v453 = vor.u32 %v451, %v452
      %v454 = vsel %vm312, %v450, %v453
      %v455 = vrot.slane %v417, 1
      %v456 = vrot.slane %v419, 2
      %v457 = vor.u32 %v455, %v456
      %v458 = vrot.slane %v431, 1
      %v459 = vrot.slane %v424, 2
      %v460 = vor.u32 %v458, %v459
      %v461 = vsel %vm312, %v457, %v460
      %v466 = vrot.slane %v391, 2
      %v467 = vrot.slane %v402, 2
      %v468 = vsel %vm331, %v466, %v467
      %v469 = vrot.slane %v392, 2
      %v470 = vrot.slane %v403, 2
      %v471 = vsel %vm331, %v469, %v470
      %v476 = vld [vmem:[%s1] sm:$0xff]
      %v477 = vld [vmem:[%s1 + $0x8] sm:$0xff]
      %v478 = vld [vmem:[%s1 + $0x10] sm:$0xff]
      %v479 = vld [vmem:[%s1 + $0x18] sm:$0xff]
      %v480 = vld [vmem:[%s1 + $0x20] sm:$0xff]
      %v481 = vld [vmem:[%s1 + $0x28] sm:$0xff]
      %v482 = vld [vmem:[%s1 + $0x30] sm:$0xff]
      %v483 = vld [vmem:[%s1 + $0x38] sm:$0xff]
      %v484 = vld [vmem:[%s1 + $0x40] sm:$0xff]
      %v485 = vld [vmem:[%s1 + $0x48] sm:$0xff]
      %v486 = vld [vmem:[%s1 + $0x50] sm:$0xff]
      %v487 = vld [vmem:[%s1 + $0x58] sm:$0xff]
      %v488 = vld [vmem:[%s1 + $0x60] sm:$0xff]
      %v489 = vld [vmem:[%s1 + $0x68] sm:$0xff]
      %v490 = vld [vmem:[%s1 + $0x70] sm:$0xff]
      %v491 = vld [vmem:[%s1 + $0x78] sm:$0xff]
      %v492 = vld [vmem:[%s1 + $0x80] sm:$0xff]
      %v493 = vld [vmem:[%s1 + $0x88] sm:$0xff]
      %v494 = vld [vmem:[%s1 + $0x90] sm:$0xff]
      %v495 = vld [vmem:[%s1 + $0x98] sm:$0xff]
      %v496 = vld [vmem:[%s1 + $0xa0] sm:$0xff]
      %v497 = vld [vmem:[%s1 + $0xa8] sm:$0xff]
      %v498 = vld [vmem:[%s1 + $0xb0] sm:$0xff]
      %v499 = vld [vmem:[%s1 + $0xb8] sm:$0xff]
      %v500 = vld [vmem:[%s1 + $0xc0] sm:$0xff]
      %v501 = vld [vmem:[%s1 + $0xc8] sm:$0xff]
      %v502 = vld [vmem:[%s1 + $0xd0] sm:$0xff]
      %v503 = vld [vmem:[%s1 + $0xd8] sm:$0xff]
      %v504 = vld [vmem:[%s1 + $0xe0] sm:$0xff]
      %v505 = vld [vmem:[%s1 + $0xe8] sm:$0xff]
      %v506 = vld [vmem:[%s1 + $0xf0] sm:$0xff]
      %v507 = vld [vmem:[%s1 + $0xf8] sm:$0xff]
      %v508 = vld [vmem:[%s1 + $0x100] sm:$0xff]
      %v509 = vld [vmem:[%s1 + $0x108] sm:$0xff]
      %v510 = vld [vmem:[%s1 + $0x110] sm:$0xff]
      %v511 = vld [vmem:[%s1 + $0x118] sm:$0xff]
      %v512 = vld [vmem:[%s1 + $0x120] sm:$0xff]
      %v513 = vld [vmem:[%s1 + $0x128] sm:$0xff]
      %v514 = vld [vmem:[%s1 + $0x130] sm:$0xff]
      %v515 = vld [vmem:[%s1 + $0x138] sm:$0xff]
      %v516 = vld [vmem:[%s1 + $0x140] sm:$0xff]
      %v517 = vld [vmem:[%s1 + $0x148] sm:$0xff]
      %v518 = vld [vmem:[%s1 + $0x150] sm:$0xff]
      %v519 = vld [vmem:[%s1 + $0x158] sm:$0xff]
      %v520 = vld [vmem:[%s1 + $0x160] sm:$0xff]
      %v521 = vld [vmem:[%s1 + $0x168] sm:$0xff]
      %v522 = vld [vmem:[%s1 + $0x170] sm:$0xff]
      %v523 = vld [vmem:[%s1 + $0x178] sm:$0xff]
      %v524 = vld [vmem:[%s1 + $0x180] sm:$0xff]
      %v525 = vld [vmem:[%s1 + $0x188] sm:$0xff]
      %v526 = vld [vmem:[%s1 + $0x190] sm:$0xff]
      %v527 = vld [vmem:[%s1 + $0x198] sm:$0xff]
      %v528 = vld [vmem:[%s1 + $0x1a0] sm:$0xff]
      %v529 = vld [vmem:[%s1 + $0x1a8] sm:$0xff]
      %v530 = vld [vmem:[%s1 + $0x1b0] sm:$0xff]
      %v531 = vld [vmem:[%s1 + $0x1b8] sm:$0xff]
      %v532 = vld [vmem:[%s1 + $0x1c0] sm:$0xff]
      %v533 = vld [vmem:[%s1 + $0x1c8] sm:$0xff]
      %v534 = vld [vmem:[%s1 + $0x1d0] sm:$0xff]
      %v535 = vld [vmem:[%s1 + $0x1d8] sm:$0xff]
      %v536 = vld [vmem:[%s1 + $0x1e0] sm:$0xff]
      %v537 = vld [vmem:[%s1 + $0x1e8] sm:$0xff]
      %v538 = vld [vmem:[%s1 + $0x1f0] sm:$0xff]
      %v539 = vld [vmem:[%s1 + $0x1f8] sm:$0xff]
      %v540 = vld [vmem:[%s1 + $0x200] sm:$0xff]
      %v541 = vld [vmem:[%s1 + $0x208] sm:$0xff]
      %v542 = vld [vmem:[%s1 + $0x210] sm:$0xff]
      %v543 = vld [vmem:[%s1 + $0x218] sm:$0xff]
      %v544 = vld [vmem:[%s1 + $0x220] sm:$0xff]
      %v545 = vld [vmem:[%s1 + $0x228] sm:$0xff]
      %v546 = vld [vmem:[%s1 + $0x230] sm:$0xff]
      %v547 = vld [vmem:[%s1 + $0x238] sm:$0xff]
      %v548 = vld [vmem:[%s1 + $0x240] sm:$0xff]
      %v549 = vld [vmem:[%s1 + $0x248] sm:$0xff]
      %v550 = vld [vmem:[%s1 + $0x250] sm:$0xff]
      %v551 = vld [vmem:[%s1 + $0x258] sm:$0xff]
      %v552 = vld [vmem:[%s1 + $0x260] sm:$0xff]
      %v553 = vld [vmem:[%s1 + $0x268] sm:$0xff]
      %v554 = vld [vmem:[%s1 + $0x270] sm:$0xff]
      %v555 = vld [vmem:[%s1 + $0x278] sm:$0xff]
      %v556 = vld [vmem:[%s1 + $0x280] sm:$0xff]
      %v557 = vld [vmem:[%s1 + $0x288] sm:$0xff]
      %v558 = vld [vmem:[%s1 + $0x290] sm:$0xff]
      %v559 = vld [vmem:[%s1 + $0x298] sm:$0xff]
      %v560 = vld [vmem:[%s1 + $0x2a0] sm:$0xff]
      %v561 = vld [vmem:[%s1 + $0x2a8] sm:$0xff]
      %v562 = vld [vmem:[%s1 + $0x2b0] sm:$0xff]
      %v563 = vld [vmem:[%s1 + $0x2b8] sm:$0xff]
      %v564 = vld [vmem:[%s1 + $0x2c0] sm:$0xff]
      %v565 = vld [vmem:[%s1 + $0x2c8] sm:$0xff]
      %v566 = vld [vmem:[%s1 + $0x2d0] sm:$0xff]
      %v567 = vld [vmem:[%s1 + $0x2d8] sm:$0xff]
      %v568 = vld [vmem:[%s1 + $0x2e0] sm:$0xff]
      %v569 = vld [vmem:[%s1 + $0x2e8] sm:$0xff]
      %v570 = vld [vmem:[%s1 + $0x2f0] sm:$0xff]
      %v571 = vld [vmem:[%s1 + $0x2f8] sm:$0xff]
      %v572 = vld [vmem:[%s1 + $0x300] sm:$0xff]
      %v573 = vld [vmem:[%s1 + $0x308] sm:$0xff]
      %v574 = vld [vmem:[%s1 + $0x310] sm:$0xff]
      %v575 = vld [vmem:[%s1 + $0x318] sm:$0xff]
      %v576 = vld [vmem:[%s1 + $0x320] sm:$0xff]
      %v577 = vld [vmem:[%s1 + $0x328] sm:$0xff]
      %v578 = vld [vmem:[%s1 + $0x330] sm:$0xff]
      %v579 = vld [vmem:[%s1 + $0x338] sm:$0xff]
      %v580 = vld [vmem:[%s1 + $0x340] sm:$0xff]
      %v581 = vld [vmem:[%s1 + $0x348] sm:$0xff]
      %v582 = vld [vmem:[%s1 + $0x350] sm:$0xff]
      %v583 = vld [vmem:[%s1 + $0x358] sm:$0xff]
      %v584 = vld [vmem:[%s1 + $0x360] sm:$0xff]
      %v585 = vld [vmem:[%s1 + $0x368] sm:$0xff]
      %v586 = vld [vmem:[%s1 + $0x370] sm:$0xff]
      %v587 = vld [vmem:[%s1 + $0x378] sm:$0xff]
      %v588 = vld [vmem:[%s1 + $0x380] sm:$0xff]
      %v589 = vld [vmem:[%s1 + $0x388] sm:$0xff]
      %v590 = vld [vmem:[%s1 + $0x390] sm:$0xff]
      %v591 = vld [vmem:[%s1 + $0x398] sm:$0xff]
      %v592 = vld [vmem:[%s1 + $0x3a0] sm:$0xff]
      %v593 = vld [vmem:[%s1 + $0x3a8] sm:$0xff]
      %v594 = vld [vmem:[%s1 + $0x3b0] sm:$0xff]
      %v595 = vld [vmem:[%s1 + $0x3b8] sm:$0xff]
      %v596 = vld [vmem:[%s1 + $0x3c0] sm:$0xff]
      %v597 = vld [vmem:[%s1 + $0x3c8] sm:$0xff]
      %v598 = vld [vmem:[%s1 + $0x3d0] sm:$0xff]
      %v599 = vld [vmem:[%s1 + $0x3d8] sm:$0xff]
      %v600 = vld [vmem:[%s1 + $0x3e0] sm:$0xff]
      %v601 = vld [vmem:[%s1 + $0x3e8] sm:$0xff]
      %v602 = vld [vmem:[%s1 + $0x3f0] sm:$0xff]
      %v603 = vld [vmem:[%s1 + $0x3f8] sm:$0xff]
      %v604 = vld [vmem:[%s1 + $0x400] sm:$0xff]
      %v605 = vld [vmem:[%s1 + $0x408] sm:$0xff]
      %v606 = vld [vmem:[%s1 + $0x410] sm:$0xff]
      %v607 = vld [vmem:[%s1 + $0x418] sm:$0xff]
      %v608 = vld [vmem:[%s1 + $0x420] sm:$0xff]
      %v609 = vld [vmem:[%s1 + $0x428] sm:$0xff]
      %v610 = vld [vmem:[%s1 + $0x430] sm:$0xff]
      %v611 = vld [vmem:[%s1 + $0x438] sm:$0xff]
      %v612 = vld [vmem:[%s1 + $0x440] sm:$0xff]
      %v613 = vld [vmem:[%s1 + $0x448] sm:$0xff]
      %v614 = vld [vmem:[%s1 + $0x450] sm:$0xff]
      %v615 = vld [vmem:[%s1 + $0x458] sm:$0xff]
      %v616 = vld [vmem:[%s1 + $0x460] sm:$0xff]
      %v617 = vld [vmem:[%s1 + $0x468] sm:$0xff]
      %v618 = vld [vmem:[%s1 + $0x470] sm:$0xff]
      %v619 = vld [vmem:[%s1 + $0x478] sm:$0xff]
      %v620 = vld [vmem:[%s1 + $0x480] sm:$0xff]
      %v621 = vld [vmem:[%s1 + $0x488] sm:$0xff]
      %v622 = vld [vmem:[%s1 + $0x490] sm:$0xff]
      %v623 = vld [vmem:[%s1 + $0x498] sm:$0xff]
      %v624 = vld [vmem:[%s1 + $0x4a0] sm:$0xff]
      %v625 = vld [vmem:[%s1 + $0x4a8] sm:$0xff]
      %v626 = vld [vmem:[%s1 + $0x4b0] sm:$0xff]
      %v627 = vld [vmem:[%s1 + $0x4b8] sm:$0xff]
      %v628 = vld [vmem:[%s1 + $0x4c0] sm:$0xff]
      %v629 = vld [vmem:[%s1 + $0x4c8] sm:$0xff]
      %v630 = vld [vmem:[%s1 + $0x4d0] sm:$0xff]
      %v631 = vld [vmem:[%s1 + $0x4d8] sm:$0xff]
      %v632 = vld [vmem:[%s1 + $0x4e0] sm:$0xff]
      %v633 = vld [vmem:[%s1 + $0x4e8] sm:$0xff]
      %v634 = vld [vmem:[%s1 + $0x4f0] sm:$0xff]
      %v635 = vld [vmem:[%s1 + $0x4f8] sm:$0xff]
      %v636 = vld [vmem:[%s1 + $0x500] sm:$0xff]
      %v637 = vld [vmem:[%s1 + $0x508] sm:$0xff]
      %v638 = vld [vmem:[%s1 + $0x510] sm:$0xff]
      %v639 = vld [vmem:[%s1 + $0x518] sm:$0xff]
      %v640 = vld [vmem:[%s1 + $0x520] sm:$0xff]
      %v641 = vld [vmem:[%s1 + $0x528] sm:$0xff]
      %v642 = vld [vmem:[%s1 + $0x530] sm:$0xff]
      %v643 = vld [vmem:[%s1 + $0x538] sm:$0xff]
      %v644 = vld [vmem:[%s1 + $0x540] sm:$0xff]
      %v645 = vld [vmem:[%s1 + $0x548] sm:$0xff]
      %v646 = vld [vmem:[%s1 + $0x550] sm:$0xff]
      %v647 = vld [vmem:[%s1 + $0x558] sm:$0xff]
      %v648 = vld [vmem:[%s1 + $0x560] sm:$0xff]
      %v649 = vld [vmem:[%s1 + $0x568] sm:$0xff]
      %v650 = vld [vmem:[%s1 + $0x570] sm:$0xff]
      %v651 = vld [vmem:[%s1 + $0x578] sm:$0xff]
      %v652 = vld [vmem:[%s1 + $0x580] sm:$0xff]
      %v653 = vld [vmem:[%s1 + $0x588] sm:$0xff]
      %v654 = vld [vmem:[%s1 + $0x590] sm:$0xff]
      %v655 = vld [vmem:[%s1 + $0x598] sm:$0xff]
      %v656 = vld [vmem:[%s1 + $0x5a0] sm:$0xff]
      %v657 = vld [vmem:[%s1 + $0x5a8] sm:$0xff]
      %v658 = vld [vmem:[%s1 + $0x5b0] sm:$0xff]
      %v659 = vld [vmem:[%s1 + $0x5b8] sm:$0xff]
      %v660 = vld [vmem:[%s1 + $0x5c0] sm:$0xff]
      %v661 = vld [vmem:[%s1 + $0x5c8] sm:$0xff]
      %v662 = vld [vmem:[%s1 + $0x5d0] sm:$0xff]
      %v663 = vld [vmem:[%s1 + $0x5d8] sm:$0xff]
      %v664 = vld [vmem:[%s1 + $0x5e0] sm:$0xff]
      %v665 = vld [vmem:[%s1 + $0x5e8] sm:$0xff]
      %v666 = vld [vmem:[%s1 + $0x5f0] sm:$0xff]
      %v667 = vld [vmem:[%s1 + $0x5f8] sm:$0xff]
      %v668 = vld [vmem:[%s1 + $0x600] sm:$0xff]
      %v669 = vld [vmem:[%s1 + $0x608] sm:$0xff]
      %v670 = vld [vmem:[%s1 + $0x610] sm:$0xff]
      %v671 = vld [vmem:[%s1 + $0x618] sm:$0xff]
      %v672 = vld [vmem:[%s1 + $0x620] sm:$0xff]
      %v673 = vld [vmem:[%s1 + $0x628] sm:$0xff]
      %v674 = vld [vmem:[%s1 + $0x630] sm:$0xff]
      %v675 = vld [vmem:[%s1 + $0x638] sm:$0xff]
      %v676 = vld [vmem:[%s1 + $0x640] sm:$0xff]
      %v677 = vld [vmem:[%s1 + $0x648] sm:$0xff]
      %v678 = vld [vmem:[%s1 + $0x650] sm:$0xff]
      %v679 = vld [vmem:[%s1 + $0x658] sm:$0xff]
      %v680 = vld [vmem:[%s1 + $0x660] sm:$0xff]
      %v681 = vld [vmem:[%s1 + $0x668] sm:$0xff]
      %v682 = vld [vmem:[%s1 + $0x670] sm:$0xff]
      %v683 = vld [vmem:[%s1 + $0x678] sm:$0xff]
      %v684 = vld [vmem:[%s1 + $0x680] sm:$0xff]
      %v685 = vld [vmem:[%s1 + $0x688] sm:$0xff]
      %v686 = vld [vmem:[%s1 + $0x690] sm:$0xff]
      %v687 = vld [vmem:[%s1 + $0x698] sm:$0xff]
      %v688 = vld [vmem:[%s1 + $0x6a0] sm:$0xff]
      %v689 = vld [vmem:[%s1 + $0x6a8] sm:$0xff]
      %v690 = vld [vmem:[%s1 + $0x6b0] sm:$0xff]
      %v691 = vld [vmem:[%s1 + $0x6b8] sm:$0xff]
      %v692 = vld [vmem:[%s1 + $0x6c0] sm:$0xff]
      %v693 = vld [vmem:[%s1 + $0x6c8] sm:$0xff]
      %v694 = vld [vmem:[%s1 + $0x6d0] sm:$0xff]
      %v695 = vld [vmem:[%s1 + $0x6d8] sm:$0xff]
      %v696 = vld [vmem:[%s1 + $0x6e0] sm:$0xff]
      %v697 = vld [vmem:[%s1 + $0x6e8] sm:$0xff]
      %v698 = vld [vmem:[%s1 + $0x6f0] sm:$0xff]
      %v699 = vld [vmem:[%s1 + $0x6f8] sm:$0xff]
      %v700 = vld [vmem:[%s1 + $0x700] sm:$0xff]
      %v701 = vld [vmem:[%s1 + $0x708] sm:$0xff]
      %v702 = vld [vmem:[%s1 + $0x710] sm:$0xff]
      %v703 = vld [vmem:[%s1 + $0x718] sm:$0xff]
      %v704 = vld [vmem:[%s1 + $0x720] sm:$0xff]
      %v705 = vld [vmem:[%s1 + $0x728] sm:$0xff]
      %v706 = vld [vmem:[%s1 + $0x730] sm:$0xff]
      %v707 = vld [vmem:[%s1 + $0x738] sm:$0xff]
      %v708 = vld [vmem:[%s1 + $0x740] sm:$0xff]
      %v709 = vld [vmem:[%s1 + $0x748] sm:$0xff]
      %v710 = vld [vmem:[%s1 + $0x750] sm:$0xff]
      %v711 = vld [vmem:[%s1 + $0x758] sm:$0xff]
      %v712 = vld [vmem:[%s1 + $0x760] sm:$0xff]
      %v713 = vld [vmem:[%s1 + $0x768] sm:$0xff]
      %v714 = vld [vmem:[%s1 + $0x770] sm:$0xff]
      %v715 = vld [vmem:[%s1 + $0x778] sm:$0xff]
      %v716 = vld [vmem:[%s1 + $0x780] sm:$0xff]
      %v717 = vld [vmem:[%s1 + $0x788] sm:$0xff]
      %v718 = vld [vmem:[%s1 + $0x790] sm:$0xff]
      %v719 = vld [vmem:[%s1 + $0x798] sm:$0xff]
      %v720 = vld [vmem:[%s1 + $0x7a0] sm:$0xff]
      %v721 = vld [vmem:[%s1 + $0x7a8] sm:$0xff]
      %v722 = vld [vmem:[%s1 + $0x7b0] sm:$0xff]
      %v723 = vld [vmem:[%s1 + $0x7b8] sm:$0xff]
      %v724 = vld [vmem:[%s1 + $0x7c0] sm:$0xff]
      %v725 = vld [vmem:[%s1 + $0x7c8] sm:$0xff]
      %v726 = vld [vmem:[%s1 + $0x7d0] sm:$0xff]
      %v727 = vld [vmem:[%s1 + $0x7d8] sm:$0xff]
      %v728 = vld [vmem:[%s1 + $0x7e0] sm:$0xff]
      %v729 = vld [vmem:[%s1 + $0x7e8] sm:$0xff]
      %v730 = vld [vmem:[%s1 + $0x7f0] sm:$0xff]
      %v731 = vld [vmem:[%s1 + $0x7f8] sm:$0xff]
      %v732 = vld [vmem:[%s1 + $0x800] sm:$0xff]
      %v733 = vld [vmem:[%s1 + $0x808] sm:$0xff]
      %v734 = vld [vmem:[%s1 + $0x810] sm:$0xff]
      %v735 = vld [vmem:[%s1 + $0x818] sm:$0xff]
      %v736 = vld [vmem:[%s1 + $0x820] sm:$0xff]
      %v737 = vld [vmem:[%s1 + $0x828] sm:$0xff]
      %v738 = vld [vmem:[%s1 + $0x830] sm:$0xff]
      %v739 = vld [vmem:[%s1 + $0x838] sm:$0xff]
      %v740 = vld [vmem:[%s1 + $0x840] sm:$0xff]
      %v741 = vld [vmem:[%s1 + $0x848] sm:$0xff]
      %v742 = vld [vmem:[%s1 + $0x850] sm:$0xff]
      %v743 = vld [vmem:[%s1 + $0x858] sm:$0xff]
      %v744 = vld [vmem:[%s1 + $0x860] sm:$0xff]
      %v745 = vld [vmem:[%s1 + $0x868] sm:$0xff]
      %v746 = vld [vmem:[%s1 + $0x870] sm:$0xff]
      %v747 = vld [vmem:[%s1 + $0x878] sm:$0xff]
      %v748 = vld [vmem:[%s1 + $0x880] sm:$0xff]
      %v749 = vld [vmem:[%s1 + $0x888] sm:$0xff]
      %v750 = vld [vmem:[%s1 + $0x890] sm:$0xff]
      %v751 = vld [vmem:[%s1 + $0x898] sm:$0xff]
      %v752 = vld [vmem:[%s1 + $0x8a0] sm:$0xff]
      %v753 = vld [vmem:[%s1 + $0x8a8] sm:$0xff]
      %v754 = vld [vmem:[%s1 + $0x8b0] sm:$0xff]
      %v755 = vld [vmem:[%s1 + $0x8b8] sm:$0xff]
      %v756 = vld [vmem:[%s1 + $0x8c0] sm:$0xff]
      %v757 = vld [vmem:[%s1 + $0x8c8] sm:$0xff]
      %v758 = vld [vmem:[%s1 + $0x8d0] sm:$0xff]
      %v759 = vld [vmem:[%s1 + $0x8d8] sm:$0xff]
      %v760 = vld [vmem:[%s1 + $0x8e0] sm:$0xff]
      %v761 = vld [vmem:[%s1 + $0x8e8] sm:$0xff]
      %v762 = vld [vmem:[%s1 + $0x8f0] sm:$0xff]
      %v763 = vld [vmem:[%s1 + $0x8f8] sm:$0xff]
      %v764 = vld [vmem:[%s1 + $0x900] sm:$0xff]
      %v765 = vld [vmem:[%s1 + $0x908] sm:$0xff]
      %v766 = vld [vmem:[%s1 + $0x910] sm:$0xff]
      %v767 = vld [vmem:[%s1 + $0x918] sm:$0xff]
      %v768 = vld [vmem:[%s1 + $0x920] sm:$0xff]
      %v769 = vld [vmem:[%s1 + $0x928] sm:$0xff]
      %v770 = vld [vmem:[%s1 + $0x930] sm:$0xff]
      %v771 = vld [vmem:[%s1 + $0x938] sm:$0xff]
      %v772 = vld [vmem:[%s1 + $0x940] sm:$0xff]
      %v773 = vld [vmem:[%s1 + $0x948] sm:$0xff]
      %v774 = vld [vmem:[%s1 + $0x950] sm:$0xff]
      %v775 = vld [vmem:[%s1 + $0x958] sm:$0xff]
      %v776 = vld [vmem:[%s1 + $0x960] sm:$0xff]
      %v777 = vld [vmem:[%s1 + $0x968] sm:$0xff]
      %v778 = vld [vmem:[%s1 + $0x970] sm:$0xff]
      %v779 = vld [vmem:[%s1 + $0x978] sm:$0xff]
      %v780 = vld [vmem:[%s1 + $0x980] sm:$0xff]
      %v781 = vld [vmem:[%s1 + $0x988] sm:$0xff]
      %v782 = vld [vmem:[%s1 + $0x990] sm:$0xff]
      %v783 = vld [vmem:[%s1 + $0x998] sm:$0xff]
      %v784 = vld [vmem:[%s1 + $0x9a0] sm:$0xff]
      %v785 = vld [vmem:[%s1 + $0x9a8] sm:$0xff]
      %v786 = vld [vmem:[%s1 + $0x9b0] sm:$0xff]
      %v787 = vld [vmem:[%s1 + $0x9b8] sm:$0xff]
      %v788 = vld [vmem:[%s1 + $0x9c0] sm:$0xff]
      %v789 = vld [vmem:[%s1 + $0x9c8] sm:$0xff]
      %v790 = vld [vmem:[%s1 + $0x9d0] sm:$0xff]
      %v791 = vld [vmem:[%s1 + $0x9d8] sm:$0xff]
      %v792 = vld [vmem:[%s1 + $0x9e0] sm:$0xff]
      %v793 = vld [vmem:[%s1 + $0x9e8] sm:$0xff]
      %v794 = vld [vmem:[%s1 + $0x9f0] sm:$0xff]
      %v795 = vld [vmem:[%s1 + $0x9f8] sm:$0xff]
      %v796 = vld [vmem:[%s1 + $0xa00] sm:$0xff]
      %v797 = vld [vmem:[%s1 + $0xa08] sm:$0xff]
      %v798 = vld [vmem:[%s1 + $0xa10] sm:$0xff]
      %v799 = vld [vmem:[%s1 + $0xa18] sm:$0xff]
      %v800 = vld [vmem:[%s1 + $0xa20] sm:$0xff]
      %v801 = vld [vmem:[%s1 + $0xa28] sm:$0xff]
      %v802 = vld [vmem:[%s1 + $0xa30] sm:$0xff]
      %v803 = vld [vmem:[%s1 + $0xa38] sm:$0xff]
      %v804 = vld [vmem:[%s1 + $0xa40] sm:$0xff]
      %v805 = vld [vmem:[%s1 + $0xa48] sm:$0xff]
      %v806 = vld [vmem:[%s1 + $0xa50] sm:$0xff]
      %v807 = vld [vmem:[%s1 + $0xa58] sm:$0xff]
      %v808 = vld [vmem:[%s1 + $0xa60] sm:$0xff]
      %v809 = vld [vmem:[%s1 + $0xa68] sm:$0xff]
      %v810 = vld [vmem:[%s1 + $0xa70] sm:$0xff]
      %v811 = vld [vmem:[%s1 + $0xa78] sm:$0xff]
      %v812 = vld [vmem:[%s1 + $0xa80] sm:$0xff]
      %v813 = vld [vmem:[%s1 + $0xa88] sm:$0xff]
      %v814 = vld [vmem:[%s1 + $0xa90] sm:$0xff]
      %v815 = vld [vmem:[%s1 + $0xa98] sm:$0xff]
      %v816 = vld [vmem:[%s1 + $0xaa0] sm:$0xff]
      %v817 = vld [vmem:[%s1 + $0xaa8] sm:$0xff]
      %v818 = vld [vmem:[%s1 + $0xab0] sm:$0xff]
      %v819 = vld [vmem:[%s1 + $0xab8] sm:$0xff]
      %v820 = vld [vmem:[%s1 + $0xac0] sm:$0xff]
      %v821 = vld [vmem:[%s1 + $0xac8] sm:$0xff]
      %v822 = vld [vmem:[%s1 + $0xad0] sm:$0xff]
      %v823 = vld [vmem:[%s1 + $0xad8] sm:$0xff]
      %v824 = vld [vmem:[%s1 + $0xae0] sm:$0xff]
      %v825 = vld [vmem:[%s1 + $0xae8] sm:$0xff]
      %v826 = vld [vmem:[%s1 + $0xaf0] sm:$0xff]
      %v827 = vld [vmem:[%s1 + $0xaf8] sm:$0xff]
      %v828 = vld [vmem:[%s1 + $0xb00] sm:$0xff]
      %v829 = vld [vmem:[%s1 + $0xb08] sm:$0xff]
      %v830 = vld [vmem:[%s1 + $0xb10] sm:$0xff]
      %v831 = vld [vmem:[%s1 + $0xb18] sm:$0xff]
      %v832 = vld [vmem:[%s1 + $0xb20] sm:$0xff]
      %v833 = vld [vmem:[%s1 + $0xb28] sm:$0xff]
      %v834 = vld [vmem:[%s1 + $0xb30] sm:$0xff]
      %v835 = vld [vmem:[%s1 + $0xb38] sm:$0xff]
      %v836 = vld [vmem:[%s1 + $0xb40] sm:$0xff]
      %v837 = vld [vmem:[%s1 + $0xb48] sm:$0xff]
      %v838 = vld [vmem:[%s1 + $0xb50] sm:$0xff]
      %v839 = vld [vmem:[%s1 + $0xb58] sm:$0xff]
      %v840 = vld [vmem:[%s1 + $0xb60] sm:$0xff]
      %v841 = vld [vmem:[%s1 + $0xb68] sm:$0xff]
      %v842 = vld [vmem:[%s1 + $0xb70] sm:$0xff]
      %v843 = vld [vmem:[%s1 + $0xb78] sm:$0xff]
      %v844 = vld [vmem:[%s1 + $0xb80] sm:$0xff]
      %v845 = vld [vmem:[%s1 + $0xb88] sm:$0xff]
      %v846 = vld [vmem:[%s1 + $0xb90] sm:$0xff]
      %v847 = vld [vmem:[%s1 + $0xb98] sm:$0xff]
      %v848 = vld [vmem:[%s1 + $0xba0] sm:$0xff]
      %v849 = vld [vmem:[%s1 + $0xba8] sm:$0xff]
      %v850 = vld [vmem:[%s1 + $0xbb0] sm:$0xff]
      %v851 = vld [vmem:[%s1 + $0xbb8] sm:$0xff]
      %v852 = vld [vmem:[%s1 + $0xbc0] sm:$0xff]
      %v853 = vld [vmem:[%s1 + $0xbc8] sm:$0xff]
      %v854 = vld [vmem:[%s1 + $0xbd0] sm:$0xff]
      %v855 = vld [vmem:[%s1 + $0xbd8] sm:$0xff]
      %v856 = vld [vmem:[%s1 + $0xbe0] sm:$0xff]
      %v857 = vld [vmem:[%s1 + $0xbe8] sm:$0xff]
      %v858 = vld [vmem:[%s1 + $0xbf0] sm:$0xff]
      %v859 = vld [vmem:[%s1 + $0xbf8] sm:$0xff]
      %v860 = vld [vmem:[%s1 + $0xc00] sm:$0xff]
      %v861 = vld [vmem:[%s1 + $0xc08] sm:$0xff]
      %v862 = vld [vmem:[%s1 + $0xc10] sm:$0xff]
      %v863 = vld [vmem:[%s1 + $0xc18] sm:$0xff]
      %v864 = vld [vmem:[%s1 + $0xc20] sm:$0xff]
      %v865 = vld [vmem:[%s1 + $0xc28] sm:$0xff]
      %v866 = vld [vmem:[%s1 + $0xc30] sm:$0xff]
      %v867 = vld [vmem:[%s1 + $0xc38] sm:$0xff]
      %v868 = vld [vmem:[%s1 + $0xc40] sm:$0xff]
      %v869 = vld [vmem:[%s1 + $0xc48] sm:$0xff]
      %v870 = vld [vmem:[%s1 + $0xc50] sm:$0xff]
      %v871 = vld [vmem:[%s1 + $0xc58] sm:$0xff]
      %v872 = vld [vmem:[%s1 + $0xc60] sm:$0xff]
      %v873 = vld [vmem:[%s1 + $0xc68] sm:$0xff]
      %v874 = vld [vmem:[%s1 + $0xc70] sm:$0xff]
      %v875 = vld [vmem:[%s1 + $0xc78] sm:$0xff]
      %v876 = vld [vmem:[%s1 + $0xc80] sm:$0xff]
      %v877 = vld [vmem:[%s1 + $0xc88] sm:$0xff]
      %v878 = vld [vmem:[%s1 + $0xc90] sm:$0xff]
      %v879 = vld [vmem:[%s1 + $0xc98] sm:$0xff]
      %v880 = vld [vmem:[%s1 + $0xca0] sm:$0xff]
      %v881 = vld [vmem:[%s1 + $0xca8] sm:$0xff]
      %v882 = vld [vmem:[%s1 + $0xcb0] sm:$0xff]
      %v883 = vld [vmem:[%s1 + $0xcb8] sm:$0xff]
      %v884 = vld [vmem:[%s1 + $0xcc0] sm:$0xff]
      %v885 = vld [vmem:[%s1 + $0xcc8] sm:$0xff]
      %v886 = vld [vmem:[%s1 + $0xcd0] sm:$0xff]
      %v887 = vld [vmem:[%s1 + $0xcd8] sm:$0xff]
      %v888 = vld [vmem:[%s1 + $0xce0] sm:$0xff]
      %v889 = vld [vmem:[%s1 + $0xce8] sm:$0xff]
      %v890 = vld [vmem:[%s1 + $0xcf0] sm:$0xff]
      %v891 = vld [vmem:[%s1 + $0xcf8] sm:$0xff]
      %v892 = vld [vmem:[%s1 + $0xd00] sm:$0xff]
      %v893 = vld [vmem:[%s1 + $0xd08] sm:$0xff]
      %v894 = vld [vmem:[%s1 + $0xd10] sm:$0xff]
      %v895 = vld [vmem:[%s1 + $0xd18] sm:$0xff]
      %v896 = vld [vmem:[%s1 + $0xd20] sm:$0xff]
      %v897 = vld [vmem:[%s1 + $0xd28] sm:$0xff]
      %v898 = vld [vmem:[%s1 + $0xd30] sm:$0xff]
      %v899 = vld [vmem:[%s1 + $0xd38] sm:$0xff]
      %v900 = vld [vmem:[%s1 + $0xd40] sm:$0xff]
      %v901 = vld [vmem:[%s1 + $0xd48] sm:$0xff]
      %v902 = vld [vmem:[%s1 + $0xd50] sm:$0xff]
      %v903 = vld [vmem:[%s1 + $0xd58] sm:$0xff]
      %v904 = vld [vmem:[%s1 + $0xd60] sm:$0xff]
      %v905 = vld [vmem:[%s1 + $0xd68] sm:$0xff]
      %v906 = vld [vmem:[%s1 + $0xd70] sm:$0xff]
      %v907 = vld [vmem:[%s1 + $0xd78] sm:$0xff]
      %v908 = vld [vmem:[%s1 + $0xd80] sm:$0xff]
      %v909 = vld [vmem:[%s1 + $0xd88] sm:$0xff]
      %v910 = vld [vmem:[%s1 + $0xd90] sm:$0xff]
      %v911 = vld [vmem:[%s1 + $0xd98] sm:$0xff]
      %v912 = vld [vmem:[%s1 + $0xda0] sm:$0xff]
      %v913 = vld [vmem:[%s1 + $0xda8] sm:$0xff]
      %v914 = vld [vmem:[%s1 + $0xdb0] sm:$0xff]
      %v915 = vld [vmem:[%s1 + $0xdb8] sm:$0xff]
      %v916 = vld [vmem:[%s1 + $0xdc0] sm:$0xff]
      %v917 = vld [vmem:[%s1 + $0xdc8] sm:$0xff]
      %v918 = vld [vmem:[%s1 + $0xdd0] sm:$0xff]
      %v919 = vld [vmem:[%s1 + $0xdd8] sm:$0xff]
      %v920 = vld [vmem:[%s1 + $0xde0] sm:$0xff]
      %v921 = vld [vmem:[%s1 + $0xde8] sm:$0xff]
      %v922 = vld [vmem:[%s1 + $0xdf0] sm:$0xff]
      %v923 = vld [vmem:[%s1 + $0xdf8] sm:$0xff]
      %v924 = vld [vmem:[%s1 + $0xe00] sm:$0xff]
      %v925 = vld [vmem:[%s1 + $0xe08] sm:$0xff]
      %v926 = vld [vmem:[%s1 + $0xe10] sm:$0xff]
      %v927 = vld [vmem:[%s1 + $0xe18] sm:$0xff]
      %v928 = vld [vmem:[%s1 + $0xe20] sm:$0xff]
      %v929 = vld [vmem:[%s1 + $0xe28] sm:$0xff]
      %v930 = vld [vmem:[%s1 + $0xe30] sm:$0xff]
      %v931 = vld [vmem:[%s1 + $0xe38] sm:$0xff]
      %v932 = vld [vmem:[%s1 + $0xe40] sm:$0xff]
      %v933 = vld [vmem:[%s1 + $0xe48] sm:$0xff]
      %v934 = vld [vmem:[%s1 + $0xe50] sm:$0xff]
      %v935 = vld [vmem:[%s1 + $0xe58] sm:$0xff]
      %v936 = vld [vmem:[%s1 + $0xe60] sm:$0xff]
      %v937 = vld [vmem:[%s1 + $0xe68] sm:$0xff]
      %v938 = vld [vmem:[%s1 + $0xe70] sm:$0xff]
      %v939 = vld [vmem:[%s1 + $0xe78] sm:$0xff]
      %v940 = vld [vmem:[%s1 + $0xe80] sm:$0xff]
      %v941 = vld [vmem:[%s1 + $0xe88] sm:$0xff]
      %v942 = vld [vmem:[%s1 + $0xe90] sm:$0xff]
      %v943 = vld [vmem:[%s1 + $0xe98] sm:$0xff]
      %v944 = vld [vmem:[%s1 + $0xea0] sm:$0xff]
      %v945 = vld [vmem:[%s1 + $0xea8] sm:$0xff]
      %v946 = vld [vmem:[%s1 + $0xeb0] sm:$0xff]
      %v947 = vld [vmem:[%s1 + $0xeb8] sm:$0xff]
      %v948 = vld [vmem:[%s1 + $0xec0] sm:$0xff]
      %v949 = vld [vmem:[%s1 + $0xec8] sm:$0xff]
      %v950 = vld [vmem:[%s1 + $0xed0] sm:$0xff]
      %v951 = vld [vmem:[%s1 + $0xed8] sm:$0xff]
      %v952 = vld [vmem:[%s1 + $0xee0] sm:$0xff]
      %v953 = vld [vmem:[%s1 + $0xee8] sm:$0xff]
      %v954 = vld [vmem:[%s1 + $0xef0] sm:$0xff]
      %v955 = vld [vmem:[%s1 + $0xef8] sm:$0xff]
      %v956 = vld [vmem:[%s1 + $0xf00] sm:$0xff]
      %v957 = vld [vmem:[%s1 + $0xf08] sm:$0xff]
      %v958 = vld [vmem:[%s1 + $0xf10] sm:$0xff]
      %v959 = vld [vmem:[%s1 + $0xf18] sm:$0xff]
      %v960 = vld [vmem:[%s1 + $0xf20] sm:$0xff]
      %v961 = vld [vmem:[%s1 + $0xf28] sm:$0xff]
      %v962 = vld [vmem:[%s1 + $0xf30] sm:$0xff]
      %v963 = vld [vmem:[%s1 + $0xf38] sm:$0xff]
      %v964 = vld [vmem:[%s1 + $0xf40] sm:$0xff]
      %v965 = vld [vmem:[%s1 + $0xf48] sm:$0xff]
      %v966 = vld [vmem:[%s1 + $0xf50] sm:$0xff]
      %v967 = vld [vmem:[%s1 + $0xf58] sm:$0xff]
      %v968 = vld [vmem:[%s1 + $0xf60] sm:$0xff]
      %v969 = vld [vmem:[%s1 + $0xf68] sm:$0xff]
      %v970 = vld [vmem:[%s1 + $0xf70] sm:$0xff]
      %v971 = vld [vmem:[%s1 + $0xf78] sm:$0xff]
      %v972 = vld [vmem:[%s1 + $0xf80] sm:$0xff]
      %v973 = vld [vmem:[%s1 + $0xf88] sm:$0xff]
      %v974 = vld [vmem:[%s1 + $0xf90] sm:$0xff]
      %v975 = vld [vmem:[%s1 + $0xf98] sm:$0xff]
      %v976 = vld [vmem:[%s1 + $0xfa0] sm:$0xff]
      %v977 = vld [vmem:[%s1 + $0xfa8] sm:$0xff]
      %v978 = vld [vmem:[%s1 + $0xfb0] sm:$0xff]
      %v979 = vld [vmem:[%s1 + $0xfb8] sm:$0xff]
      %v980 = vld [vmem:[%s1 + $0xfc0] sm:$0xff]
      %v981 = vld [vmem:[%s1 + $0xfc8] sm:$0xff]
      %v982 = vld [vmem:[%s1 + $0xfd0] sm:$0xff]
      %v983 = vld [vmem:[%s1 + $0xfd8] sm:$0xff]
      %v984 = vld [vmem:[%s1 + $0xfe0] sm:$0xff]
      %v985 = vld [vmem:[%s1 + $0xfe8] sm:$0xff]
      %v986 = vld [vmem:[%s1 + $0xff0] sm:$0xff]
      %v987 = vld [vmem:[%s1 + $0xff8] sm:$0xff]
      %v988 = vld [vmem:[%s1 + $0x1000] sm:$0xff]
      %v989 = vld [vmem:[%s1 + $0x1008] sm:$0xff]
      %v990 = vld [vmem:[%s1 + $0x1010] sm:$0xff]
      %v991 = vld [vmem:[%s1 + $0x1018] sm:$0xff]
      %v992 = vld [vmem:[%s1 + $0x1020] sm:$0xff]
      %v993 = vld [vmem:[%s1 + $0x1028] sm:$0xff]
      %v994 = vld [vmem:[%s1 + $0x1030] sm:$0xff]
      %v995 = vld [vmem:[%s1 + $0x1038] sm:$0xff]
      %v996 = vld [vmem:[%s1 + $0x1040] sm:$0xff]
      %v997 = vld [vmem:[%s1 + $0x1048] sm:$0xff]
      %v998 = vld [vmem:[%s1 + $0x1050] sm:$0xff]
      %v999 = vld [vmem:[%s1 + $0x1058] sm:$0xff]
      %v1000 = vld [vmem:[%s1 + $0x1060] sm:$0xff]
      %v1001 = vld [vmem:[%s1 + $0x1068] sm:$0xff]
      %v1002 = vld [vmem:[%s1 + $0x1070] sm:$0xff]
      %v1003 = vld [vmem:[%s1 + $0x1078] sm:$0xff]
      %v1004 = vld [vmem:[%s1 + $0x1080] sm:$0xff]
      %v1005 = vld [vmem:[%s1 + $0x1088] sm:$0xff]
      %v1006 = vld [vmem:[%s1 + $0x1090] sm:$0xff]
      %v1007 = vld [vmem:[%s1 + $0x1098] sm:$0xff]
      %v1008 = vld [vmem:[%s1 + $0x10a0] sm:$0xff]
      %v1009 = vld [vmem:[%s1 + $0x10a8] sm:$0xff]
      %v1010 = vld [vmem:[%s1 + $0x10b0] sm:$0xff]
      %v1011 = vld [vmem:[%s1 + $0x10b8] sm:$0xff]
      %v1012 = vld [vmem:[%s1 + $0x10c0] sm:$0xff]
      %v1013 = vld [vmem:[%s1 + $0x10c8] sm:$0xff]
      %v1014 = vld [vmem:[%s1 + $0x10d0] sm:$0xff]
      %v1015 = vld [vmem:[%s1 + $0x10d8] sm:$0xff]
      %v1016 = vld [vmem:[%s1 + $0x10e0] sm:$0xff]
      %v1017 = vld [vmem:[%s1 + $0x10e8] sm:$0xff]
      %v1018 = vld [vmem:[%s1 + $0x10f0] sm:$0xff]
      %v1019 = vld [vmem:[%s1 + $0x10f8] sm:$0xff]
      %v1020 = vld [vmem:[%s1 + $0x1100] sm:$0xff]
      %v1021 = vld [vmem:[%s1 + $0x1108] sm:$0xff]
      %v1022 = vld [vmem:[%s1 + $0x1110] sm:$0xff]
      %v1023 = vld [vmem:[%s1 + $0x1118] sm:$0xff]
      %v1024 = vld [vmem:[%s1 + $0x1120] sm:$0xff]
      %v1025 = vld [vmem:[%s1 + $0x1128] sm:$0xff]
      %v1026 = vld [vmem:[%s1 + $0x1130] sm:$0xff]
      %v1027 = vld [vmem:[%s1 + $0x1138] sm:$0xff]
      %v1028 = vld [vmem:[%s1 + $0x1140] sm:$0xff]
      %v1029 = vld [vmem:[%s1 + $0x1148] sm:$0xff]
      %v1030 = vld [vmem:[%s1 + $0x1150] sm:$0xff]
      %v1031 = vld [vmem:[%s1 + $0x1158] sm:$0xff]
      %v1032 = vld [vmem:[%s1 + $0x1160] sm:$0xff]
      %v1033 = vld [vmem:[%s1 + $0x1168] sm:$0xff]
      %v1034 = vld [vmem:[%s1 + $0x1170] sm:$0xff]
      %v1035 = vld [vmem:[%s1 + $0x1178] sm:$0xff]
      %v1036 = vld [vmem:[%s1 + $0x1180] sm:$0xff]
      %v1037 = vld [vmem:[%s1 + $0x1188] sm:$0xff]
      %v1038 = vld [vmem:[%s1 + $0x1190] sm:$0xff]
      %v1039 = vld [vmem:[%s1 + $0x1198] sm:$0xff]
      %v1040 = vld [vmem:[%s1 + $0x11a0] sm:$0xff]
      %v1041 = vld [vmem:[%s1 + $0x11a8] sm:$0xff]
      %v1042 = vld [vmem:[%s1 + $0x11b0] sm:$0xff]
      %v1043 = vld [vmem:[%s1 + $0x11b8] sm:$0xff]
      %v1044 = vld [vmem:[%s1 + $0x11c0] sm:$0xff]
      %v1045 = vld [vmem:[%s1 + $0x11c8] sm:$0xff]
      %v1046 = vld [vmem:[%s1 + $0x11d0] sm:$0xff]
      %v1047 = vld [vmem:[%s1 + $0x11d8] sm:$0xff]
      %v1048 = vld [vmem:[%s1 + $0x11e0] sm:$0xff]
      %v1049 = vld [vmem:[%s1 + $0x11e8] sm:$0xff]
      %v1050 = vld [vmem:[%s1 + $0x11f0] sm:$0xff]
      %v1051 = vld [vmem:[%s1 + $0x11f8] sm:$0xff]
      %v1052 = vld [vmem:[%s1 + $0x1200] sm:$0xff]
      %v1053 = vld [vmem:[%s1 + $0x1208] sm:$0xff]
      %v1054 = vld [vmem:[%s1 + $0x1210] sm:$0xff]
      %v1055 = vld [vmem:[%s1 + $0x1218] sm:$0xff]
      %v1056 = vld [vmem:[%s1 + $0x1220] sm:$0xff]
      %v1057 = vld [vmem:[%s1 + $0x1228] sm:$0xff]
      %v1058 = vld [vmem:[%s1 + $0x1230] sm:$0xff]
      %v1059 = vld [vmem:[%s1 + $0x1238] sm:$0xff]
      %v1060 = vld [vmem:[%s1 + $0x1240] sm:$0xff]
      %v1061 = vld [vmem:[%s1 + $0x1248] sm:$0xff]
      %v1062 = vld [vmem:[%s1 + $0x1250] sm:$0xff]
      %v1063 = vld [vmem:[%s1 + $0x1258] sm:$0xff]
      %v1064 = vld [vmem:[%s1 + $0x1260] sm:$0xff]
      %v1065 = vld [vmem:[%s1 + $0x1268] sm:$0xff]
      %v1066 = vld [vmem:[%s1 + $0x1270] sm:$0xff]
      %v1067 = vld [vmem:[%s1 + $0x1278] sm:$0xff]
      %v1068 = vld [vmem:[%s1 + $0x1280] sm:$0xff]
      %v1069 = vld [vmem:[%s1 + $0x1288] sm:$0xff]
      %v1070 = vld [vmem:[%s1 + $0x1290] sm:$0xff]
      %v1071 = vld [vmem:[%s1 + $0x1298] sm:$0xff]
      %v1072 = vld [vmem:[%s1 + $0x12a0] sm:$0xff]
      %v1073 = vld [vmem:[%s1 + $0x12a8] sm:$0xff]
      %v1074 = vld [vmem:[%s1 + $0x12b0] sm:$0xff]
      %v1075 = vld [vmem:[%s1 + $0x12b8] sm:$0xff]
      %v1076 = vld [vmem:[%s1 + $0x12c0] sm:$0xff]
      %v1077 = vld [vmem:[%s1 + $0x12c8] sm:$0xff]
      %v1078 = vld [vmem:[%s1 + $0x12d0] sm:$0xff]
      %v1079 = vld [vmem:[%s1 + $0x12d8] sm:$0xff]
      %v1080 = vld [vmem:[%s1 + $0x12e0] sm:$0xff]
      %v1081 = vld [vmem:[%s1 + $0x12e8] sm:$0xff]
      %v1082 = vld [vmem:[%s1 + $0x12f0] sm:$0xff]
      %v1083 = vld [vmem:[%s1 + $0x12f8] sm:$0xff]
      %v1084 = vld [vmem:[%s1 + $0x1300] sm:$0xff]
      %v1085 = vld [vmem:[%s1 + $0x1308] sm:$0xff]
      %v1086 = vld [vmem:[%s1 + $0x1310] sm:$0xff]
      %v1087 = vld [vmem:[%s1 + $0x1318] sm:$0xff]
      %v1088 = vld [vmem:[%s1 + $0x1320] sm:$0xff]
      %v1089 = vld [vmem:[%s1 + $0x1328] sm:$0xff]
      %v1090 = vld [vmem:[%s1 + $0x1330] sm:$0xff]
      %v1091 = vld [vmem:[%s1 + $0x1338] sm:$0xff]
      %v1092 = vld [vmem:[%s1 + $0x1340] sm:$0xff]
      %v1093 = vld [vmem:[%s1 + $0x1348] sm:$0xff]
      %v1094 = vld [vmem:[%s1 + $0x1350] sm:$0xff]
      %v1095 = vld [vmem:[%s1 + $0x1358] sm:$0xff]
      %v1096 = vld [vmem:[%s1 + $0x1360] sm:$0xff]
      %v1097 = vld [vmem:[%s1 + $0x1368] sm:$0xff]
      %v1098 = vld [vmem:[%s1 + $0x1370] sm:$0xff]
      %v1099 = vld [vmem:[%s1 + $0x1378] sm:$0xff]
      %v1100 = vld [vmem:[%s1 + $0x1380] sm:$0xff]
      %v1101 = vld [vmem:[%s1 + $0x1388] sm:$0xff]
      %v1102 = vld [vmem:[%s1 + $0x1390] sm:$0xff]
      %v1103 = vld [vmem:[%s1 + $0x1398] sm:$0xff]
      %v1104 = vld [vmem:[%s1 + $0x13a0] sm:$0xff]
      %v1105 = vld [vmem:[%s1 + $0x13a8] sm:$0xff]
      %v1106 = vld [vmem:[%s1 + $0x13b0] sm:$0xff]
      %v1107 = vld [vmem:[%s1 + $0x13b8] sm:$0xff]
      %v1108 = vld [vmem:[%s1 + $0x13c0] sm:$0xff]
      %v1109 = vld [vmem:[%s1 + $0x13c8] sm:$0xff]
      %v1110 = vld [vmem:[%s1 + $0x13d0] sm:$0xff]
      %v1111 = vld [vmem:[%s1 + $0x13d8] sm:$0xff]
      %v1112 = vld [vmem:[%s1 + $0x13e0] sm:$0xff]
      %v1113 = vld [vmem:[%s1 + $0x13e8] sm:$0xff]
      %v1114 = vld [vmem:[%s1 + $0x13f0] sm:$0xff]
      %v1115 = vld [vmem:[%s1 + $0x13f8] sm:$0xff]
      %v1116 = vld [vmem:[%s1 + $0x1400] sm:$0xff]
      %v1117 = vld [vmem:[%s1 + $0x1408] sm:$0xff]
      %v1118 = vld [vmem:[%s1 + $0x1410] sm:$0xff]
      %v1119 = vld [vmem:[%s1 + $0x1418] sm:$0xff]
      %v1120 = vld [vmem:[%s1 + $0x1420] sm:$0xff]
      %v1121 = vld [vmem:[%s1 + $0x1428] sm:$0xff]
      %v1122 = vld [vmem:[%s1 + $0x1430] sm:$0xff]
      %v1123 = vld [vmem:[%s1 + $0x1438] sm:$0xff]
      %v1124 = vld [vmem:[%s1 + $0x1440] sm:$0xff]
      %v1125 = vld [vmem:[%s1 + $0x1448] sm:$0xff]
      %v1126 = vld [vmem:[%s1 + $0x1450] sm:$0xff]
      %v1127 = vld [vmem:[%s1 + $0x1458] sm:$0xff]
      %v1128 = vld [vmem:[%s1 + $0x1460] sm:$0xff]
      %v1129 = vld [vmem:[%s1 + $0x1468] sm:$0xff]
      %v1130 = vld [vmem:[%s1 + $0x1470] sm:$0xff]
      %v1131 = vld [vmem:[%s1 + $0x1478] sm:$0xff]
      %v1132 = vld [vmem:[%s1 + $0x1480] sm:$0xff]
      %v1133 = vld [vmem:[%s1 + $0x1488] sm:$0xff]
      %v1134 = vld [vmem:[%s1 + $0x1490] sm:$0xff]
      %v1135 = vld [vmem:[%s1 + $0x1498] sm:$0xff]
      %v1136 = vld [vmem:[%s1 + $0x14a0] sm:$0xff]
      %v1137 = vld [vmem:[%s1 + $0x14a8] sm:$0xff]
      %v1138 = vld [vmem:[%s1 + $0x14b0] sm:$0xff]
      %v1139 = vld [vmem:[%s1 + $0x14b8] sm:$0xff]
      %v1140 = vld [vmem:[%s1 + $0x14c0] sm:$0xff]
      %v1141 = vld [vmem:[%s1 + $0x14c8] sm:$0xff]
      %v1142 = vld [vmem:[%s1 + $0x14d0] sm:$0xff]
      %v1143 = vld [vmem:[%s1 + $0x14d8] sm:$0xff]
      %v1144 = vld [vmem:[%s1 + $0x14e0] sm:$0xff]
      %v1145 = vld [vmem:[%s1 + $0x14e8] sm:$0xff]
      %v1146 = vld [vmem:[%s1 + $0x14f0] sm:$0xff]
      %v1147 = vld [vmem:[%s1 + $0x14f8] sm:$0xff]
      %v1148 = vld [vmem:[%s1 + $0x1500] sm:$0xff]
      %v1149 = vld [vmem:[%s1 + $0x1508] sm:$0xff]
      %v1150 = vld [vmem:[%s1 + $0x1510] sm:$0xff]
      %v1151 = vld [vmem:[%s1 + $0x1518] sm:$0xff]
      %v1152 = vld [vmem:[%s1 + $0x1520] sm:$0xff]
      %v1153 = vld [vmem:[%s1 + $0x1528] sm:$0xff]
      %v1154 = vld [vmem:[%s1 + $0x1530] sm:$0xff]
      %v1155 = vld [vmem:[%s1 + $0x1538] sm:$0xff]
      %v1156 = vld [vmem:[%s1 + $0x1540] sm:$0xff]
      %v1157 = vld [vmem:[%s1 + $0x1548] sm:$0xff]
      %v1158 = vld [vmem:[%s1 + $0x1550] sm:$0xff]
      %v1159 = vld [vmem:[%s1 + $0x1558] sm:$0xff]
      %v1160 = vld [vmem:[%s1 + $0x1560] sm:$0xff]
      %v1161 = vld [vmem:[%s1 + $0x1568] sm:$0xff]
      %v1162 = vld [vmem:[%s1 + $0x1570] sm:$0xff]
      %v1163 = vld [vmem:[%s1 + $0x1578] sm:$0xff]
      %v1164 = vld [vmem:[%s1 + $0x1580] sm:$0xff]
      %v1165 = vld [vmem:[%s1 + $0x1588] sm:$0xff]
      %v1166 = vld [vmem:[%s1 + $0x1590] sm:$0xff]
      %v1167 = vld [vmem:[%s1 + $0x1598] sm:$0xff]
      %v1168 = vld [vmem:[%s1 + $0x15a0] sm:$0xff]
      %v1169 = vld [vmem:[%s1 + $0x15a8] sm:$0xff]
      %v1170 = vld [vmem:[%s1 + $0x15b0] sm:$0xff]
      %v1171 = vld [vmem:[%s1 + $0x15b8] sm:$0xff]
      %v1172 = vld [vmem:[%s1 + $0x15c0] sm:$0xff]
      %v1173 = vld [vmem:[%s1 + $0x15c8] sm:$0xff]
      %v1174 = vld [vmem:[%s1 + $0x15d0] sm:$0xff]
      %v1175 = vld [vmem:[%s1 + $0x15d8] sm:$0xff]
      %v1176 = vld [vmem:[%s1 + $0x15e0] sm:$0xff]
      %v1177 = vld [vmem:[%s1 + $0x15e8] sm:$0xff]
      %v1178 = vld [vmem:[%s1 + $0x15f0] sm:$0xff]
      %v1179 = vld [vmem:[%s1 + $0x15f8] sm:$0xff]
      %v1180 = vld [vmem:[%s1 + $0x1600] sm:$0xff]
      %v1181 = vld [vmem:[%s1 + $0x1608] sm:$0xff]
      %v1182 = vld [vmem:[%s1 + $0x1610] sm:$0xff]
      %v1183 = vld [vmem:[%s1 + $0x1618] sm:$0xff]
      %v1184 = vld [vmem:[%s1 + $0x1620] sm:$0xff]
      %v1185 = vld [vmem:[%s1 + $0x1628] sm:$0xff]
      %v1186 = vld [vmem:[%s1 + $0x1630] sm:$0xff]
      %v1187 = vld [vmem:[%s1 + $0x1638] sm:$0xff]
      %v1188 = vld [vmem:[%s1 + $0x1640] sm:$0xff]
      %v1189 = vld [vmem:[%s1 + $0x1648] sm:$0xff]
      %v1190 = vld [vmem:[%s1 + $0x1650] sm:$0xff]
      %v1191 = vld [vmem:[%s1 + $0x1658] sm:$0xff]
      %v1192 = vld [vmem:[%s1 + $0x1660] sm:$0xff]
      %v1193 = vld [vmem:[%s1 + $0x1668] sm:$0xff]
      %v1194 = vld [vmem:[%s1 + $0x1670] sm:$0xff]
      %v1195 = vld [vmem:[%s1 + $0x1678] sm:$0xff]
      %v1196 = vld [vmem:[%s1 + $0x1680] sm:$0xff]
      %v1197 = vld [vmem:[%s1 + $0x1688] sm:$0xff]
      %v1198 = vld [vmem:[%s1 + $0x1690] sm:$0xff]
      %v1199 = vld [vmem:[%s1 + $0x1698] sm:$0xff]
      %v1200 = vld [vmem:[%s1 + $0x16a0] sm:$0xff]
      %v1201 = vld [vmem:[%s1 + $0x16a8] sm:$0xff]
      %v1202 = vld [vmem:[%s1 + $0x16b0] sm:$0xff]
      %v1203 = vld [vmem:[%s1 + $0x16b8] sm:$0xff]
      %v1204 = vld [vmem:[%s1 + $0x16c0] sm:$0xff]
      %v1205 = vld [vmem:[%s1 + $0x16c8] sm:$0xff]
      %v1206 = vld [vmem:[%s1 + $0x16d0] sm:$0xff]
      %v1207 = vld [vmem:[%s1 + $0x16d8] sm:$0xff]
      %v1208 = vld [vmem:[%s1 + $0x16e0] sm:$0xff]
      %v1209 = vld [vmem:[%s1 + $0x16e8] sm:$0xff]
      %v1210 = vld [vmem:[%s1 + $0x16f0] sm:$0xff]
      %v1211 = vld [vmem:[%s1 + $0x16f8] sm:$0xff]
      %v1212 = vld [vmem:[%s1 + $0x1700] sm:$0xff]
      %v1213 = vld [vmem:[%s1 + $0x1708] sm:$0xff]
      %v1214 = vld [vmem:[%s1 + $0x1710] sm:$0xff]
      %v1215 = vld [vmem:[%s1 + $0x1718] sm:$0xff]
      %v1216 = vld [vmem:[%s1 + $0x1720] sm:$0xff]
      %v1217 = vld [vmem:[%s1 + $0x1728] sm:$0xff]
      %v1218 = vld [vmem:[%s1 + $0x1730] sm:$0xff]
      %v1219 = vld [vmem:[%s1 + $0x1738] sm:$0xff]
      %v1220 = vld [vmem:[%s1 + $0x1740] sm:$0xff]
      %v1221 = vld [vmem:[%s1 + $0x1748] sm:$0xff]
      %v1222 = vld [vmem:[%s1 + $0x1750] sm:$0xff]
      %v1223 = vld [vmem:[%s1 + $0x1758] sm:$0xff]
      %v1224 = vld [vmem:[%s1 + $0x1760] sm:$0xff]
      %v1225 = vld [vmem:[%s1 + $0x1768] sm:$0xff]
      %v1226 = vld [vmem:[%s1 + $0x1770] sm:$0xff]
      %v1227 = vld [vmem:[%s1 + $0x1778] sm:$0xff]
      %v1228 = vld [vmem:[%s1 + $0x1780] sm:$0xff]
      %v1229 = vld [vmem:[%s1 + $0x1788] sm:$0xff]
      %v1230 = vld [vmem:[%s1 + $0x1790] sm:$0xff]
      %v1231 = vld [vmem:[%s1 + $0x1798] sm:$0xff]
      %v1232 = vld [vmem:[%s1 + $0x17a0] sm:$0xff]
      %v1233 = vld [vmem:[%s1 + $0x17a8] sm:$0xff]
      %v1234 = vld [vmem:[%s1 + $0x17b0] sm:$0xff]
      %v1235 = vld [vmem:[%s1 + $0x17b8] sm:$0xff]
      %v1236 = vld [vmem:[%s1 + $0x17c0] sm:$0xff]
      %v1237 = vld [vmem:[%s1 + $0x17c8] sm:$0xff]
      %v1238 = vld [vmem:[%s1 + $0x17d0] sm:$0xff]
      %v1239 = vld [vmem:[%s1 + $0x17d8] sm:$0xff]
      %v1240 = vld [vmem:[%s1 + $0x17e0] sm:$0xff]
      %v1241 = vld [vmem:[%s1 + $0x17e8] sm:$0xff]
      %v1242 = vld [vmem:[%s1 + $0x17f0] sm:$0xff]
      %v1243 = vld [vmem:[%s1 + $0x17f8] sm:$0xff]
      %v1244 = vld [vmem:[%s1 + $0x1800] sm:$0xff]
      %v1245 = vld [vmem:[%s1 + $0x1808] sm:$0xff]
      %v1246 = vld [vmem:[%s1 + $0x1810] sm:$0xff]
      %v1247 = vld [vmem:[%s1 + $0x1818] sm:$0xff]
      %v1248 = vld [vmem:[%s1 + $0x1820] sm:$0xff]
      %v1249 = vld [vmem:[%s1 + $0x1828] sm:$0xff]
      %v1250 = vld [vmem:[%s1 + $0x1830] sm:$0xff]
      %v1251 = vld [vmem:[%s1 + $0x1838] sm:$0xff]
      %v1252 = vld [vmem:[%s1 + $0x1840] sm:$0xff]
      %v1253 = vld [vmem:[%s1 + $0x1848] sm:$0xff]
      %v1254 = vld [vmem:[%s1 + $0x1850] sm:$0xff]
      %v1255 = vld [vmem:[%s1 + $0x1858] sm:$0xff]
      %v1256 = vld [vmem:[%s1 + $0x1860] sm:$0xff]
      %v1257 = vld [vmem:[%s1 + $0x1868] sm:$0xff]
      %v1258 = vld [vmem:[%s1 + $0x1870] sm:$0xff]
      %v1259 = vld [vmem:[%s1 + $0x1878] sm:$0xff]
      %v1260 = vld [vmem:[%s1 + $0x1880] sm:$0xff]
      %v1261 = vld [vmem:[%s1 + $0x1888] sm:$0xff]
      %v1262 = vld [vmem:[%s1 + $0x1890] sm:$0xff]
      %v1263 = vld [vmem:[%s1 + $0x1898] sm:$0xff]
      %v1264 = vld [vmem:[%s1 + $0x18a0] sm:$0xff]
      %v1265 = vld [vmem:[%s1 + $0x18a8] sm:$0xff]
      %v1266 = vld [vmem:[%s1 + $0x18b0] sm:$0xff]
      %v1267 = vld [vmem:[%s1 + $0x18b8] sm:$0xff]
      %v1268 = vld [vmem:[%s1 + $0x18c0] sm:$0xff]
      %v1269 = vld [vmem:[%s1 + $0x18c8] sm:$0xff]
      %v1270 = vld [vmem:[%s1 + $0x18d0] sm:$0xff]
      %v1271 = vld [vmem:[%s1 + $0x18d8] sm:$0xff]
      %v1272 = vld [vmem:[%s1 + $0x18e0] sm:$0xff]
      %v1273 = vld [vmem:[%s1 + $0x18e8] sm:$0xff]
      %v1274 = vld [vmem:[%s1 + $0x18f0] sm:$0xff]
      %v1275 = vld [vmem:[%s1 + $0x18f8] sm:$0xff]
      %v1276 = vld [vmem:[%s1 + $0x1900] sm:$0xff]
      %v1277 = vld [vmem:[%s1 + $0x1908] sm:$0xff]
      %v1278 = vld [vmem:[%s1 + $0x1910] sm:$0xff]
      %v1279 = vld [vmem:[%s1 + $0x1918] sm:$0xff]
      %v1280 = vld [vmem:[%s1 + $0x1920] sm:$0xff]
      %v1281 = vld [vmem:[%s1 + $0x1928] sm:$0xff]
      %v1282 = vld [vmem:[%s1 + $0x1930] sm:$0xff]
      %v1283 = vld [vmem:[%s1 + $0x1938] sm:$0xff]
      %v1284 = vld [vmem:[%s1 + $0x1940] sm:$0xff]
      %v1285 = vld [vmem:[%s1 + $0x1948] sm:$0xff]
      %v1286 = vld [vmem:[%s1 + $0x1950] sm:$0xff]
      %v1287 = vld [vmem:[%s1 + $0x1958] sm:$0xff]
      %v1288 = vld [vmem:[%s1 + $0x1960] sm:$0xff]
      %v1289 = vld [vmem:[%s1 + $0x1968] sm:$0xff]
      %v1290 = vld [vmem:[%s1 + $0x1970] sm:$0xff]
      %v1291 = vld [vmem:[%s1 + $0x1978] sm:$0xff]
      %v1292 = vld [vmem:[%s1 + $0x1980] sm:$0xff]
      %v1293 = vld [vmem:[%s1 + $0x1988] sm:$0xff]
      %v1294 = vld [vmem:[%s1 + $0x1990] sm:$0xff]
      %v1295 = vld [vmem:[%s1 + $0x1998] sm:$0xff]
      %v1296 = vld [vmem:[%s1 + $0x19a0] sm:$0xff]
      %v1297 = vld [vmem:[%s1 + $0x19a8] sm:$0xff]
      %v1298 = vld [vmem:[%s1 + $0x19b0] sm:$0xff]
      %v1299 = vld [vmem:[%s1 + $0x19b8] sm:$0xff]
      %v1300 = vld [vmem:[%s1 + $0x19c0] sm:$0xff]
      %v1301 = vld [vmem:[%s1 + $0x19c8] sm:$0xff]
      %v1302 = vld [vmem:[%s1 + $0x19d0] sm:$0xff]
      %v1303 = vld [vmem:[%s1 + $0x19d8] sm:$0xff]
      %v1304 = vld [vmem:[%s1 + $0x19e0] sm:$0xff]
      %v1305 = vld [vmem:[%s1 + $0x19e8] sm:$0xff]
      %v1306 = vld [vmem:[%s1 + $0x19f0] sm:$0xff]
      %v1307 = vld [vmem:[%s1 + $0x19f8] sm:$0xff]
      %v2140 = vunpack.c.l.b16 %v476
      %v2141 = vunpack.c.h.b16 %v476
      %v2142 = vunpack.c.l.b16 %v477
      %v2143 = vunpack.c.h.b16 %v477
      %v2144 = vunpack.c.l.b16 %v478
      %v2145 = vunpack.c.h.b16 %v478
      %v2146 = vunpack.c.l.b16 %v479
      %v2147 = vunpack.c.h.b16 %v479
      %v2148 = vunpack.c.l.b16 %v480
      %v2149 = vunpack.c.h.b16 %v480
      %v2150 = vunpack.c.l.b16 %v481
      %v2151 = vunpack.c.h.b16 %v481
      %v2152 = vunpack.c.l.b16 %v482
      %v2153 = vunpack.c.h.b16 %v482
      %v2154 = vunpack.c.l.b16 %v483
      %v2155 = vunpack.c.h.b16 %v483
      %v2156 = vunpack.c.l.b16 %v484
      %v2157 = vunpack.c.h.b16 %v484
      %v2158 = vunpack.c.l.b16 %v485
      %v2159 = vunpack.c.h.b16 %v485
      %v2160 = vunpack.c.l.b16 %v486
      %v2161 = vunpack.c.h.b16 %v486
      %v2162 = vunpack.c.l.b16 %v487
      %v2163 = vunpack.c.h.b16 %v487
      %v2164 = vunpack.c.l.b16 %v488
      %v2165 = vunpack.c.h.b16 %v488
      %v2166 = vunpack.c.l.b16 %v489
      %v2167 = vunpack.c.h.b16 %v489
      %v2168 = vunpack.c.l.b16 %v490
      %v2169 = vunpack.c.h.b16 %v490
      %v2170 = vunpack.c.l.b16 %v491
      %v2171 = vunpack.c.h.b16 %v491
      %v2172 = vunpack.c.l.b16 %v492
      %v2173 = vunpack.c.h.b16 %v492
      %v2174 = vunpack.c.l.b16 %v493
      %v2175 = vunpack.c.h.b16 %v493
      %v2176 = vunpack.c.l.b16 %v494
      %v2177 = vunpack.c.h.b16 %v494
      %v2178 = vunpack.c.l.b16 %v495
      %v2179 = vunpack.c.h.b16 %v495
      %v2180 = vunpack.c.l.b16 %v496
      %v2181 = vunpack.c.h.b16 %v496
      %v2182 = vunpack.c.l.b16 %v497
      %v2183 = vunpack.c.h.b16 %v497
      %v2184 = vunpack.c.l.b16 %v498
      %v2185 = vunpack.c.h.b16 %v498
      %v2186 = vunpack.c.l.b16 %v499
      %v2187 = vunpack.c.h.b16 %v499
      %v2188 = vunpack.c.l.b16 %v500
      %v2189 = vunpack.c.h.b16 %v500
      %v2190 = vunpack.c.l.b16 %v501
      %v2191 = vunpack.c.h.b16 %v501
      %v2192 = vunpack.c.l.b16 %v502
      %v2193 = vunpack.c.h.b16 %v502
      %v2194 = vunpack.c.l.b16 %v503
      %v2195 = vunpack.c.h.b16 %v503
      %v2196 = vunpack.c.l.b16 %v504
      %v2197 = vunpack.c.h.b16 %v504
      %v2198 = vunpack.c.l.b16 %v505
      %v2199 = vunpack.c.h.b16 %v505
      %v2200 = vunpack.c.l.b16 %v506
      %v2201 = vunpack.c.h.b16 %v506
      %v2202 = vunpack.c.l.b16 %v507
      %v2203 = vunpack.c.h.b16 %v507
      %v2204 = vunpack.c.l.b16 %v508
      %v2205 = vunpack.c.h.b16 %v508
      %v2206 = vunpack.c.l.b16 %v509
      %v2207 = vunpack.c.h.b16 %v509
      %v2208 = vunpack.c.l.b16 %v510
      %v2209 = vunpack.c.h.b16 %v510
      %v2210 = vunpack.c.l.b16 %v511
      %v2211 = vunpack.c.h.b16 %v511
      %v2212 = vunpack.c.l.b16 %v512
      %v2213 = vunpack.c.h.b16 %v512
      %v2214 = vunpack.c.l.b16 %v513
      %v2215 = vunpack.c.h.b16 %v513
      %v2216 = vunpack.c.l.b16 %v514
      %v2217 = vunpack.c.h.b16 %v514
      %v2218 = vunpack.c.l.b16 %v515
      %v2219 = vunpack.c.h.b16 %v515
      %v2220 = vunpack.c.l.b16 %v516
      %v2221 = vunpack.c.h.b16 %v516
      %v2222 = vunpack.c.l.b16 %v517
      %v2223 = vunpack.c.h.b16 %v517
      %v2224 = vunpack.c.l.b16 %v518
      %v2225 = vunpack.c.h.b16 %v518
      %v2226 = vunpack.c.l.b16 %v519
      %v2227 = vunpack.c.h.b16 %v519
      %v2228 = vunpack.c.l.b16 %v520
      %v2229 = vunpack.c.h.b16 %v520
      %v2230 = vunpack.c.l.b16 %v521
      %v2231 = vunpack.c.h.b16 %v521
      %v2232 = vunpack.c.l.b16 %v522
      %v2233 = vunpack.c.h.b16 %v522
      %v2234 = vunpack.c.l.b16 %v523
      %v2235 = vunpack.c.h.b16 %v523
      %v2236 = vunpack.c.l.b16 %v524
      %v2237 = vunpack.c.h.b16 %v524
      %v2238 = vunpack.c.l.b16 %v525
      %v2239 = vunpack.c.h.b16 %v525
      %v2240 = vunpack.c.l.b16 %v526
      %v2241 = vunpack.c.h.b16 %v526
      %v2242 = vunpack.c.l.b16 %v527
      %v2243 = vunpack.c.h.b16 %v527
      %v2244 = vunpack.c.l.b16 %v528
      %v2245 = vunpack.c.h.b16 %v528
      %v2246 = vunpack.c.l.b16 %v529
      %v2247 = vunpack.c.h.b16 %v529
      %v2248 = vunpack.c.l.b16 %v530
      %v2249 = vunpack.c.h.b16 %v530
      %v2250 = vunpack.c.l.b16 %v531
      %v2251 = vunpack.c.h.b16 %v531
      %v2252 = vunpack.c.l.b16 %v532
      %v2253 = vunpack.c.h.b16 %v532
      %v2254 = vunpack.c.l.b16 %v533
      %v2255 = vunpack.c.h.b16 %v533
      %v2256 = vunpack.c.l.b16 %v534
      %v2257 = vunpack.c.h.b16 %v534
      %v2258 = vunpack.c.l.b16 %v535
      %v2259 = vunpack.c.h.b16 %v535
      %v2260 = vunpack.c.l.b16 %v536
      %v2261 = vunpack.c.h.b16 %v536
      %v2262 = vunpack.c.l.b16 %v537
      %v2263 = vunpack.c.h.b16 %v537
      %v2264 = vunpack.c.l.b16 %v538
      %v2265 = vunpack.c.h.b16 %v538
      %v2266 = vunpack.c.l.b16 %v539
      %v2267 = vunpack.c.h.b16 %v539
      %v2268 = vunpack.c.l.b16 %v540
      %v2269 = vunpack.c.h.b16 %v540
      %v2270 = vunpack.c.l.b16 %v541
      %v2271 = vunpack.c.h.b16 %v541
      %v2272 = vunpack.c.l.b16 %v542
      %v2273 = vunpack.c.h.b16 %v542
      %v2274 = vunpack.c.l.b16 %v543
      %v2275 = vunpack.c.h.b16 %v543
      %v2276 = vunpack.c.l.b16 %v544
      %v2277 = vunpack.c.h.b16 %v544
      %v2278 = vunpack.c.l.b16 %v545
      %v2279 = vunpack.c.h.b16 %v545
      %v2280 = vunpack.c.l.b16 %v546
      %v2281 = vunpack.c.h.b16 %v546
      %v2282 = vunpack.c.l.b16 %v547
      %v2283 = vunpack.c.h.b16 %v547
      %v2284 = vunpack.c.l.b16 %v548
      %v2285 = vunpack.c.h.b16 %v548
      %v2286 = vunpack.c.l.b16 %v549
      %v2287 = vunpack.c.h.b16 %v549
      %v2288 = vunpack.c.l.b16 %v550
      %v2289 = vunpack.c.h.b16 %v550
      %v2290 = vunpack.c.l.b16 %v551
      %v2291 = vunpack.c.h.b16 %v551
      %v2292 = vunpack.c.l.b16 %v552
      %v2293 = vunpack.c.h.b16 %v552
      %v2294 = vunpack.c.l.b16 %v553
      %v2295 = vunpack.c.h.b16 %v553
      %v2296 = vunpack.c.l.b16 %v554
      %v2297 = vunpack.c.h.b16 %v554
      %v2298 = vunpack.c.l.b16 %v555
      %v2299 = vunpack.c.h.b16 %v555
      %v2300 = vunpack.c.l.b16 %v556
      %v2301 = vunpack.c.h.b16 %v556
      %v2302 = vunpack.c.l.b16 %v557
      %v2303 = vunpack.c.h.b16 %v557
      %v2304 = vunpack.c.l.b16 %v558
      %v2305 = vunpack.c.h.b16 %v558
      %v2306 = vunpack.c.l.b16 %v559
      %v2307 = vunpack.c.h.b16 %v559
      %v2308 = vunpack.c.l.b16 %v560
      %v2309 = vunpack.c.h.b16 %v560
      %v2310 = vunpack.c.l.b16 %v561
      %v2311 = vunpack.c.h.b16 %v561
      %v2312 = vunpack.c.l.b16 %v562
      %v2313 = vunpack.c.h.b16 %v562
      %v2314 = vunpack.c.l.b16 %v563
      %v2315 = vunpack.c.h.b16 %v563
      %v2316 = vunpack.c.l.b16 %v564
      %v2317 = vunpack.c.h.b16 %v564
      %v2318 = vunpack.c.l.b16 %v565
      %v2319 = vunpack.c.h.b16 %v565
      %v2320 = vunpack.c.l.b16 %v566
      %v2321 = vunpack.c.h.b16 %v566
      %v2322 = vunpack.c.l.b16 %v567
      %v2323 = vunpack.c.h.b16 %v567
      %v2324 = vunpack.c.l.b16 %v568
      %v2325 = vunpack.c.h.b16 %v568
      %v2326 = vunpack.c.l.b16 %v569
      %v2327 = vunpack.c.h.b16 %v569
      %v2328 = vunpack.c.l.b16 %v570
      %v2329 = vunpack.c.h.b16 %v570
      %v2330 = vunpack.c.l.b16 %v571
      %v2331 = vunpack.c.h.b16 %v571
      %v2332 = vunpack.c.l.b16 %v572
      %v2333 = vunpack.c.h.b16 %v572
      %v2334 = vunpack.c.l.b16 %v573
      %v2335 = vunpack.c.h.b16 %v573
      %v2336 = vunpack.c.l.b16 %v574
      %v2337 = vunpack.c.h.b16 %v574
      %v2338 = vunpack.c.l.b16 %v575
      %v2339 = vunpack.c.h.b16 %v575
      %v2340 = vunpack.c.l.b16 %v576
      %v2341 = vunpack.c.h.b16 %v576
      %v2342 = vunpack.c.l.b16 %v577
      %v2343 = vunpack.c.h.b16 %v577
      %v2344 = vunpack.c.l.b16 %v578
      %v2345 = vunpack.c.h.b16 %v578
      %v2346 = vunpack.c.l.b16 %v579
      %v2347 = vunpack.c.h.b16 %v579
      %v2348 = vunpack.c.l.b16 %v580
      %v2349 = vunpack.c.h.b16 %v580
      %v2350 = vunpack.c.l.b16 %v581
      %v2351 = vunpack.c.h.b16 %v581
      %v2352 = vunpack.c.l.b16 %v582
      %v2353 = vunpack.c.h.b16 %v582
      %v2354 = vunpack.c.l.b16 %v583
      %v2355 = vunpack.c.h.b16 %v583
      %v2356 = vunpack.c.l.b16 %v584
      %v2357 = vunpack.c.h.b16 %v584
      %v2358 = vunpack.c.l.b16 %v585
      %v2359 = vunpack.c.h.b16 %v585
      %v2360 = vunpack.c.l.b16 %v586
      %v2361 = vunpack.c.h.b16 %v586
      %v2362 = vunpack.c.l.b16 %v587
      %v2363 = vunpack.c.h.b16 %v587
      %v2364 = vunpack.c.l.b16 %v588
      %v2365 = vunpack.c.h.b16 %v588
      %v2366 = vunpack.c.l.b16 %v589
      %v2367 = vunpack.c.h.b16 %v589
      %v2368 = vunpack.c.l.b16 %v590
      %v2369 = vunpack.c.h.b16 %v590
      %v2370 = vunpack.c.l.b16 %v591
      %v2371 = vunpack.c.h.b16 %v591
      %v2372 = vunpack.c.l.b16 %v592
      %v2373 = vunpack.c.h.b16 %v592
      %v2374 = vunpack.c.l.b16 %v593
      %v2375 = vunpack.c.h.b16 %v593
      %v2376 = vunpack.c.l.b16 %v594
      %v2377 = vunpack.c.h.b16 %v594
      %v2378 = vunpack.c.l.b16 %v595
      %v2379 = vunpack.c.h.b16 %v595
      %v2380 = vunpack.c.l.b16 %v596
      %v2381 = vunpack.c.h.b16 %v596
      %v2382 = vunpack.c.l.b16 %v597
      %v2383 = vunpack.c.h.b16 %v597
      %v2384 = vunpack.c.l.b16 %v598
      %v2385 = vunpack.c.h.b16 %v598
      %v2386 = vunpack.c.l.b16 %v599
      %v2387 = vunpack.c.h.b16 %v599
      %v2388 = vunpack.c.l.b16 %v600
      %v2389 = vunpack.c.h.b16 %v600
      %v2390 = vunpack.c.l.b16 %v601
      %v2391 = vunpack.c.h.b16 %v601
      %v2392 = vunpack.c.l.b16 %v602
      %v2393 = vunpack.c.h.b16 %v602
      %v2394 = vunpack.c.l.b16 %v603
      %v2395 = vunpack.c.h.b16 %v603
      %v2396 = vunpack.c.l.b16 %v604
      %v2397 = vunpack.c.h.b16 %v604
      %v2398 = vunpack.c.l.b16 %v605
      %v2399 = vunpack.c.h.b16 %v605
      %v2400 = vunpack.c.l.b16 %v606
      %v2401 = vunpack.c.h.b16 %v606
      %v2402 = vunpack.c.l.b16 %v607
      %v2403 = vunpack.c.h.b16 %v607
      %v2404 = vunpack.c.l.b16 %v608
      %v2405 = vunpack.c.h.b16 %v608
      %v2406 = vunpack.c.l.b16 %v609
      %v2407 = vunpack.c.h.b16 %v609
      %v2408 = vunpack.c.l.b16 %v610
      %v2409 = vunpack.c.h.b16 %v610
      %v2410 = vunpack.c.l.b16 %v611
      %v2411 = vunpack.c.h.b16 %v611
      %v2412 = vunpack.c.l.b16 %v612
      %v2413 = vunpack.c.h.b16 %v612
      %v2414 = vunpack.c.l.b16 %v613
      %v2415 = vunpack.c.h.b16 %v613
      %v2416 = vunpack.c.l.b16 %v614
      %v2417 = vunpack.c.h.b16 %v614
      %v2418 = vunpack.c.l.b16 %v615
      %v2419 = vunpack.c.h.b16 %v615
      %v2420 = vunpack.c.l.b16 %v616
      %v2421 = vunpack.c.h.b16 %v616
      %v2422 = vunpack.c.l.b16 %v617
      %v2423 = vunpack.c.h.b16 %v617
      %v2424 = vunpack.c.l.b16 %v618
      %v2425 = vunpack.c.h.b16 %v618
      %v2426 = vunpack.c.l.b16 %v619
      %v2427 = vunpack.c.h.b16 %v619
      %v2428 = vunpack.c.l.b16 %v620
      %v2429 = vunpack.c.h.b16 %v620
      %v2430 = vunpack.c.l.b16 %v621
      %v2431 = vunpack.c.h.b16 %v621
      %v2432 = vunpack.c.l.b16 %v622
      %v2433 = vunpack.c.h.b16 %v622
      %v2434 = vunpack.c.l.b16 %v623
      %v2435 = vunpack.c.h.b16 %v623
      %v2436 = vunpack.c.l.b16 %v624
      %v2437 = vunpack.c.h.b16 %v624
      %v2438 = vunpack.c.l.b16 %v625
      %v2439 = vunpack.c.h.b16 %v625
      %v2440 = vunpack.c.l.b16 %v626
      %v2441 = vunpack.c.h.b16 %v626
      %v2442 = vunpack.c.l.b16 %v627
      %v2443 = vunpack.c.h.b16 %v627
      %v2444 = vunpack.c.l.b16 %v628
      %v2445 = vunpack.c.h.b16 %v628
      %v2446 = vunpack.c.l.b16 %v629
      %v2447 = vunpack.c.h.b16 %v629
      %v2448 = vunpack.c.l.b16 %v630
      %v2449 = vunpack.c.h.b16 %v630
      %v2450 = vunpack.c.l.b16 %v631
      %v2451 = vunpack.c.h.b16 %v631
      %v2452 = vunpack.c.l.b16 %v632
      %v2453 = vunpack.c.h.b16 %v632
      %v2454 = vunpack.c.l.b16 %v633
      %v2455 = vunpack.c.h.b16 %v633
      %v2456 = vunpack.c.l.b16 %v634
      %v2457 = vunpack.c.h.b16 %v634
      %v2458 = vunpack.c.l.b16 %v635
      %v2459 = vunpack.c.h.b16 %v635
      %v2460 = vunpack.c.l.b16 %v636
      %v2461 = vunpack.c.h.b16 %v636
      %v2462 = vunpack.c.l.b16 %v637
      %v2463 = vunpack.c.h.b16 %v637
      %v2464 = vunpack.c.l.b16 %v638
      %v2465 = vunpack.c.h.b16 %v638
      %v2466 = vunpack.c.l.b16 %v639
      %v2467 = vunpack.c.h.b16 %v639
      %v2468 = vunpack.c.l.b16 %v640
      %v2469 = vunpack.c.h.b16 %v640
      %v2470 = vunpack.c.l.b16 %v641
      %v2471 = vunpack.c.h.b16 %v641
      %v2472 = vunpack.c.l.b16 %v642
      %v2473 = vunpack.c.h.b16 %v642
      %v2474 = vunpack.c.l.b16 %v643
      %v2475 = vunpack.c.h.b16 %v643
      %v2476 = vunpack.c.l.b16 %v644
      %v2477 = vunpack.c.h.b16 %v644
      %v2478 = vunpack.c.l.b16 %v645
      %v2479 = vunpack.c.h.b16 %v645
      %v2480 = vunpack.c.l.b16 %v646
      %v2481 = vunpack.c.h.b16 %v646
      %v2482 = vunpack.c.l.b16 %v647
      %v2483 = vunpack.c.h.b16 %v647
      %v2484 = vunpack.c.l.b16 %v648
      %v2485 = vunpack.c.h.b16 %v648
      %v2486 = vunpack.c.l.b16 %v649
      %v2487 = vunpack.c.h.b16 %v649
      %v2488 = vunpack.c.l.b16 %v650
      %v2489 = vunpack.c.h.b16 %v650
      %v2490 = vunpack.c.l.b16 %v651
      %v2491 = vunpack.c.h.b16 %v651
      %v2492 = vunpack.c.l.b16 %v652
      %v2493 = vunpack.c.h.b16 %v652
      %v2494 = vunpack.c.l.b16 %v653
      %v2495 = vunpack.c.h.b16 %v653
      %v2496 = vunpack.c.l.b16 %v654
      %v2497 = vunpack.c.h.b16 %v654
      %v2498 = vunpack.c.l.b16 %v655
      %v2499 = vunpack.c.h.b16 %v655
      %v2500 = vunpack.c.l.b16 %v656
      %v2501 = vunpack.c.h.b16 %v656
      %v2502 = vunpack.c.l.b16 %v657
      %v2503 = vunpack.c.h.b16 %v657
      %v2504 = vunpack.c.l.b16 %v658
      %v2505 = vunpack.c.h.b16 %v658
      %v2506 = vunpack.c.l.b16 %v659
      %v2507 = vunpack.c.h.b16 %v659
      %v2508 = vunpack.c.l.b16 %v660
      %v2509 = vunpack.c.h.b16 %v660
      %v2510 = vunpack.c.l.b16 %v661
      %v2511 = vunpack.c.h.b16 %v661
      %v2512 = vunpack.c.l.b16 %v662
      %v2513 = vunpack.c.h.b16 %v662
      %v2514 = vunpack.c.l.b16 %v663
      %v2515 = vunpack.c.h.b16 %v663
      %v2516 = vunpack.c.l.b16 %v664
      %v2517 = vunpack.c.h.b16 %v664
      %v2518 = vunpack.c.l.b16 %v665
      %v2519 = vunpack.c.h.b16 %v665
      %v2520 = vunpack.c.l.b16 %v666
      %v2521 = vunpack.c.h.b16 %v666
      %v2522 = vunpack.c.l.b16 %v667
      %v2523 = vunpack.c.h.b16 %v667
      %v2524 = vunpack.c.l.b16 %v668
      %v2525 = vunpack.c.h.b16 %v668
      %v2526 = vunpack.c.l.b16 %v669
      %v2527 = vunpack.c.h.b16 %v669
      %v2528 = vunpack.c.l.b16 %v670
      %v2529 = vunpack.c.h.b16 %v670
      %v2530 = vunpack.c.l.b16 %v671
      %v2531 = vunpack.c.h.b16 %v671
      %v2532 = vunpack.c.l.b16 %v672
      %v2533 = vunpack.c.h.b16 %v672
      %v2534 = vunpack.c.l.b16 %v673
      %v2535 = vunpack.c.h.b16 %v673
      %v2536 = vunpack.c.l.b16 %v674
      %v2537 = vunpack.c.h.b16 %v674
      %v2538 = vunpack.c.l.b16 %v675
      %v2539 = vunpack.c.h.b16 %v675
      %v2540 = vunpack.c.l.b16 %v676
      %v2541 = vunpack.c.h.b16 %v676
      %v2542 = vunpack.c.l.b16 %v677
      %v2543 = vunpack.c.h.b16 %v677
      %v2544 = vunpack.c.l.b16 %v678
      %v2545 = vunpack.c.h.b16 %v678
      %v2546 = vunpack.c.l.b16 %v679
      %v2547 = vunpack.c.h.b16 %v679
      %v2548 = vunpack.c.l.b16 %v680
      %v2549 = vunpack.c.h.b16 %v680
      %v2550 = vunpack.c.l.b16 %v681
      %v2551 = vunpack.c.h.b16 %v681
      %v2552 = vunpack.c.l.b16 %v682
      %v2553 = vunpack.c.h.b16 %v682
      %v2554 = vunpack.c.l.b16 %v683
      %v2555 = vunpack.c.h.b16 %v683
      %v2556 = vunpack.c.l.b16 %v684
      %v2557 = vunpack.c.h.b16 %v684
      %v2558 = vunpack.c.l.b16 %v685
      %v2559 = vunpack.c.h.b16 %v685
      %v2560 = vunpack.c.l.b16 %v686
      %v2561 = vunpack.c.h.b16 %v686
      %v2562 = vunpack.c.l.b16 %v687
      %v2563 = vunpack.c.h.b16 %v687
      %v2564 = vunpack.c.l.b16 %v688
      %v2565 = vunpack.c.h.b16 %v688
      %v2566 = vunpack.c.l.b16 %v689
      %v2567 = vunpack.c.h.b16 %v689
      %v2568 = vunpack.c.l.b16 %v690
      %v2569 = vunpack.c.h.b16 %v690
      %v2570 = vunpack.c.l.b16 %v691
      %v2571 = vunpack.c.h.b16 %v691
      %v2572 = vunpack.c.l.b16 %v692
      %v2573 = vunpack.c.h.b16 %v692
      %v2574 = vunpack.c.l.b16 %v693
      %v2575 = vunpack.c.h.b16 %v693
      %v2576 = vunpack.c.l.b16 %v694
      %v2577 = vunpack.c.h.b16 %v694
      %v2578 = vunpack.c.l.b16 %v695
      %v2579 = vunpack.c.h.b16 %v695
      %v2580 = vunpack.c.l.b16 %v696
      %v2581 = vunpack.c.h.b16 %v696
      %v2582 = vunpack.c.l.b16 %v697
      %v2583 = vunpack.c.h.b16 %v697
      %v2584 = vunpack.c.l.b16 %v698
      %v2585 = vunpack.c.h.b16 %v698
      %v2586 = vunpack.c.l.b16 %v699
      %v2587 = vunpack.c.h.b16 %v699
      %v2588 = vunpack.c.l.b16 %v700
      %v2589 = vunpack.c.h.b16 %v700
      %v2590 = vunpack.c.l.b16 %v701
      %v2591 = vunpack.c.h.b16 %v701
      %v2592 = vunpack.c.l.b16 %v702
      %v2593 = vunpack.c.h.b16 %v702
      %v2594 = vunpack.c.l.b16 %v703
      %v2595 = vunpack.c.h.b16 %v703
      %v2596 = vunpack.c.l.b16 %v704
      %v2597 = vunpack.c.h.b16 %v704
      %v2598 = vunpack.c.l.b16 %v705
      %v2599 = vunpack.c.h.b16 %v705
      %v2600 = vunpack.c.l.b16 %v706
      %v2601 = vunpack.c.h.b16 %v706
      %v2602 = vunpack.c.l.b16 %v707
      %v2603 = vunpack.c.h.b16 %v707
      %v2604 = vunpack.c.l.b16 %v708
      %v2605 = vunpack.c.h.b16 %v708
      %v2606 = vunpack.c.l.b16 %v709
      %v2607 = vunpack.c.h.b16 %v709
      %v2608 = vunpack.c.l.b16 %v710
      %v2609 = vunpack.c.h.b16 %v710
      %v2610 = vunpack.c.l.b16 %v711
      %v2611 = vunpack.c.h.b16 %v711
      %v2612 = vunpack.c.l.b16 %v712
      %v2613 = vunpack.c.h.b16 %v712
      %v2614 = vunpack.c.l.b16 %v713
      %v2615 = vunpack.c.h.b16 %v713
      %v2616 = vunpack.c.l.b16 %v714
      %v2617 = vunpack.c.h.b16 %v714
      %v2618 = vunpack.c.l.b16 %v715
      %v2619 = vunpack.c.h.b16 %v715
      %v2620 = vunpack.c.l.b16 %v716
      %v2621 = vunpack.c.h.b16 %v716
      %v2622 = vunpack.c.l.b16 %v717
      %v2623 = vunpack.c.h.b16 %v717
      %v2624 = vunpack.c.l.b16 %v718
      %v2625 = vunpack.c.h.b16 %v718
      %v2626 = vunpack.c.l.b16 %v719
      %v2627 = vunpack.c.h.b16 %v719
      %v2628 = vunpack.c.l.b16 %v720
      %v2629 = vunpack.c.h.b16 %v720
      %v2630 = vunpack.c.l.b16 %v721
      %v2631 = vunpack.c.h.b16 %v721
      %v2632 = vunpack.c.l.b16 %v722
      %v2633 = vunpack.c.h.b16 %v722
      %v2634 = vunpack.c.l.b16 %v723
      %v2635 = vunpack.c.h.b16 %v723
      %v2636 = vunpack.c.l.b16 %v724
      %v2637 = vunpack.c.h.b16 %v724
      %v2638 = vunpack.c.l.b16 %v725
      %v2639 = vunpack.c.h.b16 %v725
      %v2640 = vunpack.c.l.b16 %v726
      %v2641 = vunpack.c.h.b16 %v726
      %v2642 = vunpack.c.l.b16 %v727
      %v2643 = vunpack.c.h.b16 %v727
      %v2644 = vunpack.c.l.b16 %v728
      %v2645 = vunpack.c.h.b16 %v728
      %v2646 = vunpack.c.l.b16 %v729
      %v2647 = vunpack.c.h.b16 %v729
      %v2648 = vunpack.c.l.b16 %v730
      %v2649 = vunpack.c.h.b16 %v730
      %v2650 = vunpack.c.l.b16 %v731
      %v2651 = vunpack.c.h.b16 %v731
      %v2652 = vunpack.c.l.b16 %v732
      %v2653 = vunpack.c.h.b16 %v732
      %v2654 = vunpack.c.l.b16 %v733
      %v2655 = vunpack.c.h.b16 %v733
      %v2656 = vunpack.c.l.b16 %v734
      %v2657 = vunpack.c.h.b16 %v734
      %v2658 = vunpack.c.l.b16 %v735
      %v2659 = vunpack.c.h.b16 %v735
      %v2660 = vunpack.c.l.b16 %v736
      %v2661 = vunpack.c.h.b16 %v736
      %v2662 = vunpack.c.l.b16 %v737
      %v2663 = vunpack.c.h.b16 %v737
      %v2664 = vunpack.c.l.b16 %v738
      %v2665 = vunpack.c.h.b16 %v738
      %v2666 = vunpack.c.l.b16 %v739
      %v2667 = vunpack.c.h.b16 %v739
      %v2668 = vunpack.c.l.b16 %v740
      %v2669 = vunpack.c.h.b16 %v740
      %v2670 = vunpack.c.l.b16 %v741
      %v2671 = vunpack.c.h.b16 %v741
      %v2672 = vunpack.c.l.b16 %v742
      %v2673 = vunpack.c.h.b16 %v742
      %v2674 = vunpack.c.l.b16 %v743
      %v2675 = vunpack.c.h.b16 %v743
      %v2676 = vunpack.c.l.b16 %v744
      %v2677 = vunpack.c.h.b16 %v744
      %v2678 = vunpack.c.l.b16 %v745
      %v2679 = vunpack.c.h.b16 %v745
      %v2680 = vunpack.c.l.b16 %v746
      %v2681 = vunpack.c.h.b16 %v746
      %v2682 = vunpack.c.l.b16 %v747
      %v2683 = vunpack.c.h.b16 %v747
      %v2684 = vunpack.c.l.b16 %v748
      %v2685 = vunpack.c.h.b16 %v748
      %v2686 = vunpack.c.l.b16 %v749
      %v2687 = vunpack.c.h.b16 %v749
      %v2688 = vunpack.c.l.b16 %v750
      %v2689 = vunpack.c.h.b16 %v750
      %v2690 = vunpack.c.l.b16 %v751
      %v2691 = vunpack.c.h.b16 %v751
      %v2692 = vunpack.c.l.b16 %v752
      %v2693 = vunpack.c.h.b16 %v752
      %v2694 = vunpack.c.l.b16 %v753
      %v2695 = vunpack.c.h.b16 %v753
      %v2696 = vunpack.c.l.b16 %v754
      %v2697 = vunpack.c.h.b16 %v754
      %v2698 = vunpack.c.l.b16 %v755
      %v2699 = vunpack.c.h.b16 %v755
      %v2700 = vunpack.c.l.b16 %v756
      %v2701 = vunpack.c.h.b16 %v756
      %v2702 = vunpack.c.l.b16 %v757
      %v2703 = vunpack.c.h.b16 %v757
      %v2704 = vunpack.c.l.b16 %v758
      %v2705 = vunpack.c.h.b16 %v758
      %v2706 = vunpack.c.l.b16 %v759
      %v2707 = vunpack.c.h.b16 %v759
      %v2708 = vunpack.c.l.b16 %v760
      %v2709 = vunpack.c.h.b16 %v760
      %v2710 = vunpack.c.l.b16 %v761
      %v2711 = vunpack.c.h.b16 %v761
      %v2712 = vunpack.c.l.b16 %v762
      %v2713 = vunpack.c.h.b16 %v762
      %v2714 = vunpack.c.l.b16 %v763
      %v2715 = vunpack.c.h.b16 %v763
      %v2716 = vunpack.c.l.b16 %v764
      %v2717 = vunpack.c.h.b16 %v764
      %v2718 = vunpack.c.l.b16 %v765
      %v2719 = vunpack.c.h.b16 %v765
      %v2720 = vunpack.c.l.b16 %v766
      %v2721 = vunpack.c.h.b16 %v766
      %v2722 = vunpack.c.l.b16 %v767
      %v2723 = vunpack.c.h.b16 %v767
      %v2724 = vunpack.c.l.b16 %v768
      %v2725 = vunpack.c.h.b16 %v768
      %v2726 = vunpack.c.l.b16 %v769
      %v2727 = vunpack.c.h.b16 %v769
      %v2728 = vunpack.c.l.b16 %v770
      %v2729 = vunpack.c.h.b16 %v770
      %v2730 = vunpack.c.l.b16 %v771
      %v2731 = vunpack.c.h.b16 %v771
      %v2732 = vunpack.c.l.b16 %v772
      %v2733 = vunpack.c.h.b16 %v772
      %v2734 = vunpack.c.l.b16 %v773
      %v2735 = vunpack.c.h.b16 %v773
      %v2736 = vunpack.c.l.b16 %v774
      %v2737 = vunpack.c.h.b16 %v774
      %v2738 = vunpack.c.l.b16 %v775
      %v2739 = vunpack.c.h.b16 %v775
      %v2740 = vunpack.c.l.b16 %v776
      %v2741 = vunpack.c.h.b16 %v776
      %v2742 = vunpack.c.l.b16 %v777
      %v2743 = vunpack.c.h.b16 %v777
      %v2744 = vunpack.c.l.b16 %v778
      %v2745 = vunpack.c.h.b16 %v778
      %v2746 = vunpack.c.l.b16 %v779
      %v2747 = vunpack.c.h.b16 %v779
      %v2748 = vunpack.c.l.b16 %v780
      %v2749 = vunpack.c.h.b16 %v780
      %v2750 = vunpack.c.l.b16 %v781
      %v2751 = vunpack.c.h.b16 %v781
      %v2752 = vunpack.c.l.b16 %v782
      %v2753 = vunpack.c.h.b16 %v782
      %v2754 = vunpack.c.l.b16 %v783
      %v2755 = vunpack.c.h.b16 %v783
      %v2756 = vunpack.c.l.b16 %v784
      %v2757 = vunpack.c.h.b16 %v784
      %v2758 = vunpack.c.l.b16 %v785
      %v2759 = vunpack.c.h.b16 %v785
      %v2760 = vunpack.c.l.b16 %v786
      %v2761 = vunpack.c.h.b16 %v786
      %v2762 = vunpack.c.l.b16 %v787
      %v2763 = vunpack.c.h.b16 %v787
      %v2764 = vunpack.c.l.b16 %v788
      %v2765 = vunpack.c.h.b16 %v788
      %v2766 = vunpack.c.l.b16 %v789
      %v2767 = vunpack.c.h.b16 %v789
      %v2768 = vunpack.c.l.b16 %v790
      %v2769 = vunpack.c.h.b16 %v790
      %v2770 = vunpack.c.l.b16 %v791
      %v2771 = vunpack.c.h.b16 %v791
      %v2772 = vunpack.c.l.b16 %v792
      %v2773 = vunpack.c.h.b16 %v792
      %v2774 = vunpack.c.l.b16 %v793
      %v2775 = vunpack.c.h.b16 %v793
      %v2776 = vunpack.c.l.b16 %v794
      %v2777 = vunpack.c.h.b16 %v794
      %v2778 = vunpack.c.l.b16 %v795
      %v2779 = vunpack.c.h.b16 %v795
      %v2780 = vunpack.c.l.b16 %v796
      %v2781 = vunpack.c.h.b16 %v796
      %v2782 = vunpack.c.l.b16 %v797
      %v2783 = vunpack.c.h.b16 %v797
      %v2784 = vunpack.c.l.b16 %v798
      %v2785 = vunpack.c.h.b16 %v798
      %v2786 = vunpack.c.l.b16 %v799
      %v2787 = vunpack.c.h.b16 %v799
      %v2788 = vunpack.c.l.b16 %v800
      %v2789 = vunpack.c.h.b16 %v800
      %v2790 = vunpack.c.l.b16 %v801
      %v2791 = vunpack.c.h.b16 %v801
      %v2792 = vunpack.c.l.b16 %v802
      %v2793 = vunpack.c.h.b16 %v802
      %v2794 = vunpack.c.l.b16 %v803
      %v2795 = vunpack.c.h.b16 %v803
      %v2796 = vunpack.c.l.b16 %v804
      %v2797 = vunpack.c.h.b16 %v804
      %v2798 = vunpack.c.l.b16 %v805
      %v2799 = vunpack.c.h.b16 %v805
      %v2800 = vunpack.c.l.b16 %v806
      %v2801 = vunpack.c.h.b16 %v806
      %v2802 = vunpack.c.l.b16 %v807
      %v2803 = vunpack.c.h.b16 %v807
      %v2804 = vunpack.c.l.b16 %v808
      %v2805 = vunpack.c.h.b16 %v808
      %v2806 = vunpack.c.l.b16 %v809
      %v2807 = vunpack.c.h.b16 %v809
      %v2808 = vunpack.c.l.b16 %v810
      %v2809 = vunpack.c.h.b16 %v810
      %v2810 = vunpack.c.l.b16 %v811
      %v2811 = vunpack.c.h.b16 %v811
      %v2812 = vunpack.c.l.b16 %v812
      %v2813 = vunpack.c.h.b16 %v812
      %v2814 = vunpack.c.l.b16 %v813
      %v2815 = vunpack.c.h.b16 %v813
      %v2816 = vunpack.c.l.b16 %v814
      %v2817 = vunpack.c.h.b16 %v814
      %v2818 = vunpack.c.l.b16 %v815
      %v2819 = vunpack.c.h.b16 %v815
      %v2820 = vunpack.c.l.b16 %v816
      %v2821 = vunpack.c.h.b16 %v816
      %v2822 = vunpack.c.l.b16 %v817
      %v2823 = vunpack.c.h.b16 %v817
      %v2824 = vunpack.c.l.b16 %v818
      %v2825 = vunpack.c.h.b16 %v818
      %v2826 = vunpack.c.l.b16 %v819
      %v2827 = vunpack.c.h.b16 %v819
      %v2828 = vunpack.c.l.b16 %v820
      %v2829 = vunpack.c.h.b16 %v820
      %v2830 = vunpack.c.l.b16 %v821
      %v2831 = vunpack.c.h.b16 %v821
      %v2832 = vunpack.c.l.b16 %v822
      %v2833 = vunpack.c.h.b16 %v822
      %v2834 = vunpack.c.l.b16 %v823
      %v2835 = vunpack.c.h.b16 %v823
      %v2836 = vunpack.c.l.b16 %v824
      %v2837 = vunpack.c.h.b16 %v824
      %v2838 = vunpack.c.l.b16 %v825
      %v2839 = vunpack.c.h.b16 %v825
      %v2840 = vunpack.c.l.b16 %v826
      %v2841 = vunpack.c.h.b16 %v826
      %v2842 = vunpack.c.l.b16 %v827
      %v2843 = vunpack.c.h.b16 %v827
      %v2844 = vunpack.c.l.b16 %v828
      %v2845 = vunpack.c.h.b16 %v828
      %v2846 = vunpack.c.l.b16 %v829
      %v2847 = vunpack.c.h.b16 %v829
      %v2848 = vunpack.c.l.b16 %v830
      %v2849 = vunpack.c.h.b16 %v830
      %v2850 = vunpack.c.l.b16 %v831
      %v2851 = vunpack.c.h.b16 %v831
      %v2852 = vunpack.c.l.b16 %v832
      %v2853 = vunpack.c.h.b16 %v832
      %v2854 = vunpack.c.l.b16 %v833
      %v2855 = vunpack.c.h.b16 %v833
      %v2856 = vunpack.c.l.b16 %v834
      %v2857 = vunpack.c.h.b16 %v834
      %v2858 = vunpack.c.l.b16 %v835
      %v2859 = vunpack.c.h.b16 %v835
      %v2860 = vunpack.c.l.b16 %v836
      %v2861 = vunpack.c.h.b16 %v836
      %v2862 = vunpack.c.l.b16 %v837
      %v2863 = vunpack.c.h.b16 %v837
      %v2864 = vunpack.c.l.b16 %v838
      %v2865 = vunpack.c.h.b16 %v838
      %v2866 = vunpack.c.l.b16 %v839
      %v2867 = vunpack.c.h.b16 %v839
      %v2868 = vunpack.c.l.b16 %v840
      %v2869 = vunpack.c.h.b16 %v840
      %v2870 = vunpack.c.l.b16 %v841
      %v2871 = vunpack.c.h.b16 %v841
      %v2872 = vunpack.c.l.b16 %v842
      %v2873 = vunpack.c.h.b16 %v842
      %v2874 = vunpack.c.l.b16 %v843
      %v2875 = vunpack.c.h.b16 %v843
      %v2876 = vunpack.c.l.b16 %v844
      %v2877 = vunpack.c.h.b16 %v844
      %v2878 = vunpack.c.l.b16 %v845
      %v2879 = vunpack.c.h.b16 %v845
      %v2880 = vunpack.c.l.b16 %v846
      %v2881 = vunpack.c.h.b16 %v846
      %v2882 = vunpack.c.l.b16 %v847
      %v2883 = vunpack.c.h.b16 %v847
      %v2884 = vunpack.c.l.b16 %v848
      %v2885 = vunpack.c.h.b16 %v848
      %v2886 = vunpack.c.l.b16 %v849
      %v2887 = vunpack.c.h.b16 %v849
      %v2888 = vunpack.c.l.b16 %v850
      %v2889 = vunpack.c.h.b16 %v850
      %v2890 = vunpack.c.l.b16 %v851
      %v2891 = vunpack.c.h.b16 %v851
      %v2892 = vunpack.c.l.b16 %v852
      %v2893 = vunpack.c.h.b16 %v852
      %v2894 = vunpack.c.l.b16 %v853
      %v2895 = vunpack.c.h.b16 %v853
      %v2896 = vunpack.c.l.b16 %v854
      %v2897 = vunpack.c.h.b16 %v854
      %v2898 = vunpack.c.l.b16 %v855
      %v2899 = vunpack.c.h.b16 %v855
      %v2900 = vunpack.c.l.b16 %v856
      %v2901 = vunpack.c.h.b16 %v856
      %v2902 = vunpack.c.l.b16 %v857
      %v2903 = vunpack.c.h.b16 %v857
      %v2904 = vunpack.c.l.b16 %v858
      %v2905 = vunpack.c.h.b16 %v858
      %v2906 = vunpack.c.l.b16 %v859
      %v2907 = vunpack.c.h.b16 %v859
      %v2908 = vunpack.c.l.b16 %v860
      %v2909 = vunpack.c.h.b16 %v860
      %v2910 = vunpack.c.l.b16 %v861
      %v2911 = vunpack.c.h.b16 %v861
      %v2912 = vunpack.c.l.b16 %v862
      %v2913 = vunpack.c.h.b16 %v862
      %v2914 = vunpack.c.l.b16 %v863
      %v2915 = vunpack.c.h.b16 %v863
      %v2916 = vunpack.c.l.b16 %v864
      %v2917 = vunpack.c.h.b16 %v864
      %v2918 = vunpack.c.l.b16 %v865
      %v2919 = vunpack.c.h.b16 %v865
      %v2920 = vunpack.c.l.b16 %v866
      %v2921 = vunpack.c.h.b16 %v866
      %v2922 = vunpack.c.l.b16 %v867
      %v2923 = vunpack.c.h.b16 %v867
      %v2924 = vunpack.c.l.b16 %v868
      %v2925 = vunpack.c.h.b16 %v868
      %v2926 = vunpack.c.l.b16 %v869
      %v2927 = vunpack.c.h.b16 %v869
      %v2928 = vunpack.c.l.b16 %v870
      %v2929 = vunpack.c.h.b16 %v870
      %v2930 = vunpack.c.l.b16 %v871
      %v2931 = vunpack.c.h.b16 %v871
      %v2932 = vunpack.c.l.b16 %v872
      %v2933 = vunpack.c.h.b16 %v872
      %v2934 = vunpack.c.l.b16 %v873
      %v2935 = vunpack.c.h.b16 %v873
      %v2936 = vunpack.c.l.b16 %v874
      %v2937 = vunpack.c.h.b16 %v874
      %v2938 = vunpack.c.l.b16 %v875
      %v2939 = vunpack.c.h.b16 %v875
      %v2940 = vunpack.c.l.b16 %v876
      %v2941 = vunpack.c.h.b16 %v876
      %v2942 = vunpack.c.l.b16 %v877
      %v2943 = vunpack.c.h.b16 %v877
      %v2944 = vunpack.c.l.b16 %v878
      %v2945 = vunpack.c.h.b16 %v878
      %v2946 = vunpack.c.l.b16 %v879
      %v2947 = vunpack.c.h.b16 %v879
      %v2948 = vunpack.c.l.b16 %v880
      %v2949 = vunpack.c.h.b16 %v880
      %v2950 = vunpack.c.l.b16 %v881
      %v2951 = vunpack.c.h.b16 %v881
      %v2952 = vunpack.c.l.b16 %v882
      %v2953 = vunpack.c.h.b16 %v882
      %v2954 = vunpack.c.l.b16 %v883
      %v2955 = vunpack.c.h.b16 %v883
      %v2956 = vunpack.c.l.b16 %v884
      %v2957 = vunpack.c.h.b16 %v884
      %v2958 = vunpack.c.l.b16 %v885
      %v2959 = vunpack.c.h.b16 %v885
      %v2960 = vunpack.c.l.b16 %v886
      %v2961 = vunpack.c.h.b16 %v886
      %v2962 = vunpack.c.l.b16 %v887
      %v2963 = vunpack.c.h.b16 %v887
      %v2964 = vunpack.c.l.b16 %v888
      %v2965 = vunpack.c.h.b16 %v888
      %v2966 = vunpack.c.l.b16 %v889
      %v2967 = vunpack.c.h.b16 %v889
      %v2968 = vunpack.c.l.b16 %v890
      %v2969 = vunpack.c.h.b16 %v890
      %v2970 = vunpack.c.l.b16 %v891
      %v2971 = vunpack.c.h.b16 %v891
      %v2972 = vunpack.c.l.b16 %v892
      %v2973 = vunpack.c.h.b16 %v892
      %v2974 = vunpack.c.l.b16 %v893
      %v2975 = vunpack.c.h.b16 %v893
      %v2976 = vunpack.c.l.b16 %v894
      %v2977 = vunpack.c.h.b16 %v894
      %v2978 = vunpack.c.l.b16 %v895
      %v2979 = vunpack.c.h.b16 %v895
      %v2980 = vunpack.c.l.b16 %v896
      %v2981 = vunpack.c.h.b16 %v896
      %v2982 = vunpack.c.l.b16 %v897
      %v2983 = vunpack.c.h.b16 %v897
      %v2984 = vunpack.c.l.b16 %v898
      %v2985 = vunpack.c.h.b16 %v898
      %v2986 = vunpack.c.l.b16 %v899
      %v2987 = vunpack.c.h.b16 %v899
      %v2988 = vunpack.c.l.b16 %v900
      %v2989 = vunpack.c.h.b16 %v900
      %v2990 = vunpack.c.l.b16 %v901
      %v2991 = vunpack.c.h.b16 %v901
      %v2992 = vunpack.c.l.b16 %v902
      %v2993 = vunpack.c.h.b16 %v902
      %v2994 = vunpack.c.l.b16 %v903
      %v2995 = vunpack.c.h.b16 %v903
      %v2996 = vunpack.c.l.b16 %v904
      %v2997 = vunpack.c.h.b16 %v904
      %v2998 = vunpack.c.l.b16 %v905
      %v2999 = vunpack.c.h.b16 %v905
      %v3000 = vunpack.c.l.b16 %v906
      %v3001 = vunpack.c.h.b16 %v906
      %v3002 = vunpack.c.l.b16 %v907
      %v3003 = vunpack.c.h.b16 %v907
      %v3004 = vunpack.c.l.b16 %v908
      %v3005 = vunpack.c.h.b16 %v908
      %v3006 = vunpack.c.l.b16 %v909
      %v3007 = vunpack.c.h.b16 %v909
      %v3008 = vunpack.c.l.b16 %v910
      %v3009 = vunpack.c.h.b16 %v910
      %v3010 = vunpack.c.l.b16 %v911
      %v3011 = vunpack.c.h.b16 %v911
      %v3012 = vunpack.c.l.b16 %v912
      %v3013 = vunpack.c.h.b16 %v912
      %v3014 = vunpack.c.l.b16 %v913
      %v3015 = vunpack.c.h.b16 %v913
      %v3016 = vunpack.c.l.b16 %v914
      %v3017 = vunpack.c.h.b16 %v914
      %v3018 = vunpack.c.l.b16 %v915
      %v3019 = vunpack.c.h.b16 %v915
      %v3020 = vunpack.c.l.b16 %v916
      %v3021 = vunpack.c.h.b16 %v916
      %v3022 = vunpack.c.l.b16 %v917
      %v3023 = vunpack.c.h.b16 %v917
      %v3024 = vunpack.c.l.b16 %v918
      %v3025 = vunpack.c.h.b16 %v918
      %v3026 = vunpack.c.l.b16 %v919
      %v3027 = vunpack.c.h.b16 %v919
      %v3028 = vunpack.c.l.b16 %v920
      %v3029 = vunpack.c.h.b16 %v920
      %v3030 = vunpack.c.l.b16 %v921
      %v3031 = vunpack.c.h.b16 %v921
      %v3032 = vunpack.c.l.b16 %v922
      %v3033 = vunpack.c.h.b16 %v922
      %v3034 = vunpack.c.l.b16 %v923
      %v3035 = vunpack.c.h.b16 %v923
      %v3036 = vunpack.c.l.b16 %v924
      %v3037 = vunpack.c.h.b16 %v924
      %v3038 = vunpack.c.l.b16 %v925
      %v3039 = vunpack.c.h.b16 %v925
      %v3040 = vunpack.c.l.b16 %v926
      %v3041 = vunpack.c.h.b16 %v926
      %v3042 = vunpack.c.l.b16 %v927
      %v3043 = vunpack.c.h.b16 %v927
      %v3044 = vunpack.c.l.b16 %v928
      %v3045 = vunpack.c.h.b16 %v928
      %v3046 = vunpack.c.l.b16 %v929
      %v3047 = vunpack.c.h.b16 %v929
      %v3048 = vunpack.c.l.b16 %v930
      %v3049 = vunpack.c.h.b16 %v930
      %v3050 = vunpack.c.l.b16 %v931
      %v3051 = vunpack.c.h.b16 %v931
      %v3052 = vunpack.c.l.b16 %v932
      %v3053 = vunpack.c.h.b16 %v932
      %v3054 = vunpack.c.l.b16 %v933
      %v3055 = vunpack.c.h.b16 %v933
      %v3056 = vunpack.c.l.b16 %v934
      %v3057 = vunpack.c.h.b16 %v934
      %v3058 = vunpack.c.l.b16 %v935
      %v3059 = vunpack.c.h.b16 %v935
      %v3060 = vunpack.c.l.b16 %v936
      %v3061 = vunpack.c.h.b16 %v936
      %v3062 = vunpack.c.l.b16 %v937
      %v3063 = vunpack.c.h.b16 %v937
      %v3064 = vunpack.c.l.b16 %v938
      %v3065 = vunpack.c.h.b16 %v938
      %v3066 = vunpack.c.l.b16 %v939
      %v3067 = vunpack.c.h.b16 %v939
      %v3068 = vunpack.c.l.b16 %v940
      %v3069 = vunpack.c.h.b16 %v940
      %v3070 = vunpack.c.l.b16 %v941
      %v3071 = vunpack.c.h.b16 %v941
      %v3072 = vunpack.c.l.b16 %v942
      %v3073 = vunpack.c.h.b16 %v942
      %v3074 = vunpack.c.l.b16 %v943
      %v3075 = vunpack.c.h.b16 %v943
      %v3076 = vunpack.c.l.b16 %v944
      %v3077 = vunpack.c.h.b16 %v944
      %v3078 = vunpack.c.l.b16 %v945
      %v3079 = vunpack.c.h.b16 %v945
      %v3080 = vunpack.c.l.b16 %v946
      %v3081 = vunpack.c.h.b16 %v946
      %v3082 = vunpack.c.l.b16 %v947
      %v3083 = vunpack.c.h.b16 %v947
      %v3084 = vunpack.c.l.b16 %v948
      %v3085 = vunpack.c.h.b16 %v948
      %v3086 = vunpack.c.l.b16 %v949
      %v3087 = vunpack.c.h.b16 %v949
      %v3088 = vunpack.c.l.b16 %v950
      %v3089 = vunpack.c.h.b16 %v950
      %v3090 = vunpack.c.l.b16 %v951
      %v3091 = vunpack.c.h.b16 %v951
      %v3092 = vunpack.c.l.b16 %v952
      %v3093 = vunpack.c.h.b16 %v952
      %v3094 = vunpack.c.l.b16 %v953
      %v3095 = vunpack.c.h.b16 %v953
      %v3096 = vunpack.c.l.b16 %v954
      %v3097 = vunpack.c.h.b16 %v954
      %v3098 = vunpack.c.l.b16 %v955
      %v3099 = vunpack.c.h.b16 %v955
      %v3100 = vunpack.c.l.b16 %v956
      %v3101 = vunpack.c.h.b16 %v956
      %v3102 = vunpack.c.l.b16 %v957
      %v3103 = vunpack.c.h.b16 %v957
      %v3104 = vunpack.c.l.b16 %v958
      %v3105 = vunpack.c.h.b16 %v958
      %v3106 = vunpack.c.l.b16 %v959
      %v3107 = vunpack.c.h.b16 %v959
      %v3108 = vunpack.c.l.b16 %v960
      %v3109 = vunpack.c.h.b16 %v960
      %v3110 = vunpack.c.l.b16 %v961
      %v3111 = vunpack.c.h.b16 %v961
      %v3112 = vunpack.c.l.b16 %v962
      %v3113 = vunpack.c.h.b16 %v962
      %v3114 = vunpack.c.l.b16 %v963
      %v3115 = vunpack.c.h.b16 %v963
      %v3116 = vunpack.c.l.b16 %v964
      %v3117 = vunpack.c.h.b16 %v964
      %v3118 = vunpack.c.l.b16 %v965
      %v3119 = vunpack.c.h.b16 %v965
      %v3120 = vunpack.c.l.b16 %v966
      %v3121 = vunpack.c.h.b16 %v966
      %v3122 = vunpack.c.l.b16 %v967
      %v3123 = vunpack.c.h.b16 %v967
      %v3124 = vunpack.c.l.b16 %v968
      %v3125 = vunpack.c.h.b16 %v968
      %v3126 = vunpack.c.l.b16 %v969
      %v3127 = vunpack.c.h.b16 %v969
      %v3128 = vunpack.c.l.b16 %v970
      %v3129 = vunpack.c.h.b16 %v970
      %v3130 = vunpack.c.l.b16 %v971
      %v3131 = vunpack.c.h.b16 %v971
      %v3132 = vunpack.c.l.b16 %v972
      %v3133 = vunpack.c.h.b16 %v972
      %v3134 = vunpack.c.l.b16 %v973
      %v3135 = vunpack.c.h.b16 %v973
      %v3136 = vunpack.c.l.b16 %v974
      %v3137 = vunpack.c.h.b16 %v974
      %v3138 = vunpack.c.l.b16 %v975
      %v3139 = vunpack.c.h.b16 %v975
      %v3140 = vunpack.c.l.b16 %v976
      %v3141 = vunpack.c.h.b16 %v976
      %v3142 = vunpack.c.l.b16 %v977
      %v3143 = vunpack.c.h.b16 %v977
      %v3144 = vunpack.c.l.b16 %v978
      %v3145 = vunpack.c.h.b16 %v978
      %v3146 = vunpack.c.l.b16 %v979
      %v3147 = vunpack.c.h.b16 %v979
      %v3148 = vunpack.c.l.b16 %v980
      %v3149 = vunpack.c.h.b16 %v980
      %v3150 = vunpack.c.l.b16 %v981
      %v3151 = vunpack.c.h.b16 %v981
      %v3152 = vunpack.c.l.b16 %v982
      %v3153 = vunpack.c.h.b16 %v982
      %v3154 = vunpack.c.l.b16 %v983
      %v3155 = vunpack.c.h.b16 %v983
      %v3156 = vunpack.c.l.b16 %v984
      %v3157 = vunpack.c.h.b16 %v984
      %v3158 = vunpack.c.l.b16 %v985
      %v3159 = vunpack.c.h.b16 %v985
      %v3160 = vunpack.c.l.b16 %v986
      %v3161 = vunpack.c.h.b16 %v986
      %v3162 = vunpack.c.l.b16 %v987
      %v3163 = vunpack.c.h.b16 %v987
      %v3164 = vunpack.c.l.b16 %v988
      %v3165 = vunpack.c.h.b16 %v988
      %v3166 = vunpack.c.l.b16 %v989
      %v3167 = vunpack.c.h.b16 %v989
      %v3168 = vunpack.c.l.b16 %v990
      %v3169 = vunpack.c.h.b16 %v990
      %v3170 = vunpack.c.l.b16 %v991
      %v3171 = vunpack.c.h.b16 %v991
      %v3172 = vunpack.c.l.b16 %v992
      %v3173 = vunpack.c.h.b16 %v992
      %v3174 = vunpack.c.l.b16 %v993
      %v3175 = vunpack.c.h.b16 %v993
      %v3176 = vunpack.c.l.b16 %v994
      %v3177 = vunpack.c.h.b16 %v994
      %v3178 = vunpack.c.l.b16 %v995
      %v3179 = vunpack.c.h.b16 %v995
      %v3180 = vunpack.c.l.b16 %v996
      %v3181 = vunpack.c.h.b16 %v996
      %v3182 = vunpack.c.l.b16 %v997
      %v3183 = vunpack.c.h.b16 %v997
      %v3184 = vunpack.c.l.b16 %v998
      %v3185 = vunpack.c.h.b16 %v998
      %v3186 = vunpack.c.l.b16 %v999
      %v3187 = vunpack.c.h.b16 %v999
      %v3188 = vunpack.c.l.b16 %v1000
      %v3189 = vunpack.c.h.b16 %v1000
      %v3190 = vunpack.c.l.b16 %v1001
      %v3191 = vunpack.c.h.b16 %v1001
      %v3192 = vunpack.c.l.b16 %v1002
      %v3193 = vunpack.c.h.b16 %v1002
      %v3194 = vunpack.c.l.b16 %v1003
      %v3195 = vunpack.c.h.b16 %v1003
      %v3196 = vunpack.c.l.b16 %v1004
      %v3197 = vunpack.c.h.b16 %v1004
      %v3198 = vunpack.c.l.b16 %v1005
      %v3199 = vunpack.c.h.b16 %v1005
      %v3200 = vunpack.c.l.b16 %v1006
      %v3201 = vunpack.c.h.b16 %v1006
      %v3202 = vunpack.c.l.b16 %v1007
      %v3203 = vunpack.c.h.b16 %v1007
      %v3204 = vunpack.c.l.b16 %v1008
      %v3205 = vunpack.c.h.b16 %v1008
      %v3206 = vunpack.c.l.b16 %v1009
      %v3207 = vunpack.c.h.b16 %v1009
      %v3208 = vunpack.c.l.b16 %v1010
      %v3209 = vunpack.c.h.b16 %v1010
      %v3210 = vunpack.c.l.b16 %v1011
      %v3211 = vunpack.c.h.b16 %v1011
      %v3212 = vunpack.c.l.b16 %v1012
      %v3213 = vunpack.c.h.b16 %v1012
      %v3214 = vunpack.c.l.b16 %v1013
      %v3215 = vunpack.c.h.b16 %v1013
      %v3216 = vunpack.c.l.b16 %v1014
      %v3217 = vunpack.c.h.b16 %v1014
      %v3218 = vunpack.c.l.b16 %v1015
      %v3219 = vunpack.c.h.b16 %v1015
      %v3220 = vunpack.c.l.b16 %v1016
      %v3221 = vunpack.c.h.b16 %v1016
      %v3222 = vunpack.c.l.b16 %v1017
      %v3223 = vunpack.c.h.b16 %v1017
      %v3224 = vunpack.c.l.b16 %v1018
      %v3225 = vunpack.c.h.b16 %v1018
      %v3226 = vunpack.c.l.b16 %v1019
      %v3227 = vunpack.c.h.b16 %v1019
      %v3228 = vunpack.c.l.b16 %v1020
      %v3229 = vunpack.c.h.b16 %v1020
      %v3230 = vunpack.c.l.b16 %v1021
      %v3231 = vunpack.c.h.b16 %v1021
      %v3232 = vunpack.c.l.b16 %v1022
      %v3233 = vunpack.c.h.b16 %v1022
      %v3234 = vunpack.c.l.b16 %v1023
      %v3235 = vunpack.c.h.b16 %v1023
      %v3236 = vunpack.c.l.b16 %v1024
      %v3237 = vunpack.c.h.b16 %v1024
      %v3238 = vunpack.c.l.b16 %v1025
      %v3239 = vunpack.c.h.b16 %v1025
      %v3240 = vunpack.c.l.b16 %v1026
      %v3241 = vunpack.c.h.b16 %v1026
      %v3242 = vunpack.c.l.b16 %v1027
      %v3243 = vunpack.c.h.b16 %v1027
      %v3244 = vunpack.c.l.b16 %v1028
      %v3245 = vunpack.c.h.b16 %v1028
      %v3246 = vunpack.c.l.b16 %v1029
      %v3247 = vunpack.c.h.b16 %v1029
      %v3248 = vunpack.c.l.b16 %v1030
      %v3249 = vunpack.c.h.b16 %v1030
      %v3250 = vunpack.c.l.b16 %v1031
      %v3251 = vunpack.c.h.b16 %v1031
      %v3252 = vunpack.c.l.b16 %v1032
      %v3253 = vunpack.c.h.b16 %v1032
      %v3254 = vunpack.c.l.b16 %v1033
      %v3255 = vunpack.c.h.b16 %v1033
      %v3256 = vunpack.c.l.b16 %v1034
      %v3257 = vunpack.c.h.b16 %v1034
      %v3258 = vunpack.c.l.b16 %v1035
      %v3259 = vunpack.c.h.b16 %v1035
      %v3260 = vunpack.c.l.b16 %v1036
      %v3261 = vunpack.c.h.b16 %v1036
      %v3262 = vunpack.c.l.b16 %v1037
      %v3263 = vunpack.c.h.b16 %v1037
      %v3264 = vunpack.c.l.b16 %v1038
      %v3265 = vunpack.c.h.b16 %v1038
      %v3266 = vunpack.c.l.b16 %v1039
      %v3267 = vunpack.c.h.b16 %v1039
      %v3268 = vunpack.c.l.b16 %v1040
      %v3269 = vunpack.c.h.b16 %v1040
      %v3270 = vunpack.c.l.b16 %v1041
      %v3271 = vunpack.c.h.b16 %v1041
      %v3272 = vunpack.c.l.b16 %v1042
      %v3273 = vunpack.c.h.b16 %v1042
      %v3274 = vunpack.c.l.b16 %v1043
      %v3275 = vunpack.c.h.b16 %v1043
      %v3276 = vunpack.c.l.b16 %v1044
      %v3277 = vunpack.c.h.b16 %v1044
      %v3278 = vunpack.c.l.b16 %v1045
      %v3279 = vunpack.c.h.b16 %v1045
      %v3280 = vunpack.c.l.b16 %v1046
      %v3281 = vunpack.c.h.b16 %v1046
      %v3282 = vunpack.c.l.b16 %v1047
      %v3283 = vunpack.c.h.b16 %v1047
      %v3284 = vunpack.c.l.b16 %v1048
      %v3285 = vunpack.c.h.b16 %v1048
      %v3286 = vunpack.c.l.b16 %v1049
      %v3287 = vunpack.c.h.b16 %v1049
      %v3288 = vunpack.c.l.b16 %v1050
      %v3289 = vunpack.c.h.b16 %v1050
      %v3290 = vunpack.c.l.b16 %v1051
      %v3291 = vunpack.c.h.b16 %v1051
      %v3292 = vunpack.c.l.b16 %v1052
      %v3293 = vunpack.c.h.b16 %v1052
      %v3294 = vunpack.c.l.b16 %v1053
      %v3295 = vunpack.c.h.b16 %v1053
      %v3296 = vunpack.c.l.b16 %v1054
      %v3297 = vunpack.c.h.b16 %v1054
      %v3298 = vunpack.c.l.b16 %v1055
      %v3299 = vunpack.c.h.b16 %v1055
      %v3300 = vunpack.c.l.b16 %v1056
      %v3301 = vunpack.c.h.b16 %v1056
      %v3302 = vunpack.c.l.b16 %v1057
      %v3303 = vunpack.c.h.b16 %v1057
      %v3304 = vunpack.c.l.b16 %v1058
      %v3305 = vunpack.c.h.b16 %v1058
      %v3306 = vunpack.c.l.b16 %v1059
      %v3307 = vunpack.c.h.b16 %v1059
      %v3308 = vunpack.c.l.b16 %v1060
      %v3309 = vunpack.c.h.b16 %v1060
      %v3310 = vunpack.c.l.b16 %v1061
      %v3311 = vunpack.c.h.b16 %v1061
      %v3312 = vunpack.c.l.b16 %v1062
      %v3313 = vunpack.c.h.b16 %v1062
      %v3314 = vunpack.c.l.b16 %v1063
      %v3315 = vunpack.c.h.b16 %v1063
      %v3316 = vunpack.c.l.b16 %v1064
      %v3317 = vunpack.c.h.b16 %v1064
      %v3318 = vunpack.c.l.b16 %v1065
      %v3319 = vunpack.c.h.b16 %v1065
      %v3320 = vunpack.c.l.b16 %v1066
      %v3321 = vunpack.c.h.b16 %v1066
      %v3322 = vunpack.c.l.b16 %v1067
      %v3323 = vunpack.c.h.b16 %v1067
      %v3324 = vunpack.c.l.b16 %v1068
      %v3325 = vunpack.c.h.b16 %v1068
      %v3326 = vunpack.c.l.b16 %v1069
      %v3327 = vunpack.c.h.b16 %v1069
      %v3328 = vunpack.c.l.b16 %v1070
      %v3329 = vunpack.c.h.b16 %v1070
      %v3330 = vunpack.c.l.b16 %v1071
      %v3331 = vunpack.c.h.b16 %v1071
      %v3332 = vunpack.c.l.b16 %v1072
      %v3333 = vunpack.c.h.b16 %v1072
      %v3334 = vunpack.c.l.b16 %v1073
      %v3335 = vunpack.c.h.b16 %v1073
      %v3336 = vunpack.c.l.b16 %v1074
      %v3337 = vunpack.c.h.b16 %v1074
      %v3338 = vunpack.c.l.b16 %v1075
      %v3339 = vunpack.c.h.b16 %v1075
      %v3340 = vunpack.c.l.b16 %v1076
      %v3341 = vunpack.c.h.b16 %v1076
      %v3342 = vunpack.c.l.b16 %v1077
      %v3343 = vunpack.c.h.b16 %v1077
      %v3344 = vunpack.c.l.b16 %v1078
      %v3345 = vunpack.c.h.b16 %v1078
      %v3346 = vunpack.c.l.b16 %v1079
      %v3347 = vunpack.c.h.b16 %v1079
      %v3348 = vunpack.c.l.b16 %v1080
      %v3349 = vunpack.c.h.b16 %v1080
      %v3350 = vunpack.c.l.b16 %v1081
      %v3351 = vunpack.c.h.b16 %v1081
      %v3352 = vunpack.c.l.b16 %v1082
      %v3353 = vunpack.c.h.b16 %v1082
      %v3354 = vunpack.c.l.b16 %v1083
      %v3355 = vunpack.c.h.b16 %v1083
      %v3356 = vunpack.c.l.b16 %v1084
      %v3357 = vunpack.c.h.b16 %v1084
      %v3358 = vunpack.c.l.b16 %v1085
      %v3359 = vunpack.c.h.b16 %v1085
      %v3360 = vunpack.c.l.b16 %v1086
      %v3361 = vunpack.c.h.b16 %v1086
      %v3362 = vunpack.c.l.b16 %v1087
      %v3363 = vunpack.c.h.b16 %v1087
      %v3364 = vunpack.c.l.b16 %v1088
      %v3365 = vunpack.c.h.b16 %v1088
      %v3366 = vunpack.c.l.b16 %v1089
      %v3367 = vunpack.c.h.b16 %v1089
      %v3368 = vunpack.c.l.b16 %v1090
      %v3369 = vunpack.c.h.b16 %v1090
      %v3370 = vunpack.c.l.b16 %v1091
      %v3371 = vunpack.c.h.b16 %v1091
      %v3372 = vunpack.c.l.b16 %v1092
      %v3373 = vunpack.c.h.b16 %v1092
      %v3374 = vunpack.c.l.b16 %v1093
      %v3375 = vunpack.c.h.b16 %v1093
      %v3376 = vunpack.c.l.b16 %v1094
      %v3377 = vunpack.c.h.b16 %v1094
      %v3378 = vunpack.c.l.b16 %v1095
      %v3379 = vunpack.c.h.b16 %v1095
      %v3380 = vunpack.c.l.b16 %v1096
      %v3381 = vunpack.c.h.b16 %v1096
      %v3382 = vunpack.c.l.b16 %v1097
      %v3383 = vunpack.c.h.b16 %v1097
      %v3384 = vunpack.c.l.b16 %v1098
      %v3385 = vunpack.c.h.b16 %v1098
      %v3386 = vunpack.c.l.b16 %v1099
      %v3387 = vunpack.c.h.b16 %v1099
      %v3388 = vunpack.c.l.b16 %v1100
      %v3389 = vunpack.c.h.b16 %v1100
      %v3390 = vunpack.c.l.b16 %v1101
      %v3391 = vunpack.c.h.b16 %v1101
      %v3392 = vunpack.c.l.b16 %v1102
      %v3393 = vunpack.c.h.b16 %v1102
      %v3394 = vunpack.c.l.b16 %v1103
      %v3395 = vunpack.c.h.b16 %v1103
      %v3396 = vunpack.c.l.b16 %v1104
      %v3397 = vunpack.c.h.b16 %v1104
      %v3398 = vunpack.c.l.b16 %v1105
      %v3399 = vunpack.c.h.b16 %v1105
      %v3400 = vunpack.c.l.b16 %v1106
      %v3401 = vunpack.c.h.b16 %v1106
      %v3402 = vunpack.c.l.b16 %v1107
      %v3403 = vunpack.c.h.b16 %v1107
      %v3404 = vunpack.c.l.b16 %v1108
      %v3405 = vunpack.c.h.b16 %v1108
      %v3406 = vunpack.c.l.b16 %v1109
      %v3407 = vunpack.c.h.b16 %v1109
      %v3408 = vunpack.c.l.b16 %v1110
      %v3409 = vunpack.c.h.b16 %v1110
      %v3410 = vunpack.c.l.b16 %v1111
      %v3411 = vunpack.c.h.b16 %v1111
      %v3412 = vunpack.c.l.b16 %v1112
      %v3413 = vunpack.c.h.b16 %v1112
      %v3414 = vunpack.c.l.b16 %v1113
      %v3415 = vunpack.c.h.b16 %v1113
      %v3416 = vunpack.c.l.b16 %v1114
      %v3417 = vunpack.c.h.b16 %v1114
      %v3418 = vunpack.c.l.b16 %v1115
      %v3419 = vunpack.c.h.b16 %v1115
      %v3420 = vunpack.c.l.b16 %v1116
      %v3421 = vunpack.c.h.b16 %v1116
      %v3422 = vunpack.c.l.b16 %v1117
      %v3423 = vunpack.c.h.b16 %v1117
      %v3424 = vunpack.c.l.b16 %v1118
      %v3425 = vunpack.c.h.b16 %v1118
      %v3426 = vunpack.c.l.b16 %v1119
      %v3427 = vunpack.c.h.b16 %v1119
      %v3428 = vunpack.c.l.b16 %v1120
      %v3429 = vunpack.c.h.b16 %v1120
      %v3430 = vunpack.c.l.b16 %v1121
      %v3431 = vunpack.c.h.b16 %v1121
      %v3432 = vunpack.c.l.b16 %v1122
      %v3433 = vunpack.c.h.b16 %v1122
      %v3434 = vunpack.c.l.b16 %v1123
      %v3435 = vunpack.c.h.b16 %v1123
      %v3436 = vunpack.c.l.b16 %v1124
      %v3437 = vunpack.c.h.b16 %v1124
      %v3438 = vunpack.c.l.b16 %v1125
      %v3439 = vunpack.c.h.b16 %v1125
      %v3440 = vunpack.c.l.b16 %v1126
      %v3441 = vunpack.c.h.b16 %v1126
      %v3442 = vunpack.c.l.b16 %v1127
      %v3443 = vunpack.c.h.b16 %v1127
      %v3444 = vunpack.c.l.b16 %v1128
      %v3445 = vunpack.c.h.b16 %v1128
      %v3446 = vunpack.c.l.b16 %v1129
      %v3447 = vunpack.c.h.b16 %v1129
      %v3448 = vunpack.c.l.b16 %v1130
      %v3449 = vunpack.c.h.b16 %v1130
      %v3450 = vunpack.c.l.b16 %v1131
      %v3451 = vunpack.c.h.b16 %v1131
      %v3452 = vunpack.c.l.b16 %v1132
      %v3453 = vunpack.c.h.b16 %v1132
      %v3454 = vunpack.c.l.b16 %v1133
      %v3455 = vunpack.c.h.b16 %v1133
      %v3456 = vunpack.c.l.b16 %v1134
      %v3457 = vunpack.c.h.b16 %v1134
      %v3458 = vunpack.c.l.b16 %v1135
      %v3459 = vunpack.c.h.b16 %v1135
      %v3460 = vunpack.c.l.b16 %v1136
      %v3461 = vunpack.c.h.b16 %v1136
      %v3462 = vunpack.c.l.b16 %v1137
      %v3463 = vunpack.c.h.b16 %v1137
      %v3464 = vunpack.c.l.b16 %v1138
      %v3465 = vunpack.c.h.b16 %v1138
      %v3466 = vunpack.c.l.b16 %v1139
      %v3467 = vunpack.c.h.b16 %v1139
      %v3468 = vunpack.c.l.b16 %v1140
      %v3469 = vunpack.c.h.b16 %v1140
      %v3470 = vunpack.c.l.b16 %v1141
      %v3471 = vunpack.c.h.b16 %v1141
      %v3472 = vunpack.c.l.b16 %v1142
      %v3473 = vunpack.c.h.b16 %v1142
      %v3474 = vunpack.c.l.b16 %v1143
      %v3475 = vunpack.c.h.b16 %v1143
      %v3476 = vunpack.c.l.b16 %v1144
      %v3477 = vunpack.c.h.b16 %v1144
      %v3478 = vunpack.c.l.b16 %v1145
      %v3479 = vunpack.c.h.b16 %v1145
      %v3480 = vunpack.c.l.b16 %v1146
      %v3481 = vunpack.c.h.b16 %v1146
      %v3482 = vunpack.c.l.b16 %v1147
      %v3483 = vunpack.c.h.b16 %v1147
      %v3484 = vunpack.c.l.b16 %v1148
      %v3485 = vunpack.c.h.b16 %v1148
      %v3486 = vunpack.c.l.b16 %v1149
      %v3487 = vunpack.c.h.b16 %v1149
      %v3488 = vunpack.c.l.b16 %v1150
      %v3489 = vunpack.c.h.b16 %v1150
      %v3490 = vunpack.c.l.b16 %v1151
      %v3491 = vunpack.c.h.b16 %v1151
      %v3492 = vunpack.c.l.b16 %v1152
      %v3493 = vunpack.c.h.b16 %v1152
      %v3494 = vunpack.c.l.b16 %v1153
      %v3495 = vunpack.c.h.b16 %v1153
      %v3496 = vunpack.c.l.b16 %v1154
      %v3497 = vunpack.c.h.b16 %v1154
      %v3498 = vunpack.c.l.b16 %v1155
      %v3499 = vunpack.c.h.b16 %v1155
      %v3500 = vunpack.c.l.b16 %v1156
      %v3501 = vunpack.c.h.b16 %v1156
      %v3502 = vunpack.c.l.b16 %v1157
      %v3503 = vunpack.c.h.b16 %v1157
      %v3504 = vunpack.c.l.b16 %v1158
      %v3505 = vunpack.c.h.b16 %v1158
      %v3506 = vunpack.c.l.b16 %v1159
      %v3507 = vunpack.c.h.b16 %v1159
      %v3508 = vunpack.c.l.b16 %v1160
      %v3509 = vunpack.c.h.b16 %v1160
      %v3510 = vunpack.c.l.b16 %v1161
      %v3511 = vunpack.c.h.b16 %v1161
      %v3512 = vunpack.c.l.b16 %v1162
      %v3513 = vunpack.c.h.b16 %v1162
      %v3514 = vunpack.c.l.b16 %v1163
      %v3515 = vunpack.c.h.b16 %v1163
      %v3516 = vunpack.c.l.b16 %v1164
      %v3517 = vunpack.c.h.b16 %v1164
      %v3518 = vunpack.c.l.b16 %v1165
      %v3519 = vunpack.c.h.b16 %v1165
      %v3520 = vunpack.c.l.b16 %v1166
      %v3521 = vunpack.c.h.b16 %v1166
      %v3522 = vunpack.c.l.b16 %v1167
      %v3523 = vunpack.c.h.b16 %v1167
      %v3524 = vunpack.c.l.b16 %v1168
      %v3525 = vunpack.c.h.b16 %v1168
      %v3526 = vunpack.c.l.b16 %v1169
      %v3527 = vunpack.c.h.b16 %v1169
      %v3528 = vunpack.c.l.b16 %v1170
      %v3529 = vunpack.c.h.b16 %v1170
      %v3530 = vunpack.c.l.b16 %v1171
      %v3531 = vunpack.c.h.b16 %v1171
      %v3532 = vunpack.c.l.b16 %v1172
      %v3533 = vunpack.c.h.b16 %v1172
      %v3534 = vunpack.c.l.b16 %v1173
      %v3535 = vunpack.c.h.b16 %v1173
      %v3536 = vunpack.c.l.b16 %v1174
      %v3537 = vunpack.c.h.b16 %v1174
      %v3538 = vunpack.c.l.b16 %v1175
      %v3539 = vunpack.c.h.b16 %v1175
      %v3540 = vunpack.c.l.b16 %v1176
      %v3541 = vunpack.c.h.b16 %v1176
      %v3542 = vunpack.c.l.b16 %v1177
      %v3543 = vunpack.c.h.b16 %v1177
      %v3544 = vunpack.c.l.b16 %v1178
      %v3545 = vunpack.c.h.b16 %v1178
      %v3546 = vunpack.c.l.b16 %v1179
      %v3547 = vunpack.c.h.b16 %v1179
      %v3548 = vunpack.c.l.b16 %v1180
      %v3549 = vunpack.c.h.b16 %v1180
      %v3550 = vunpack.c.l.b16 %v1181
      %v3551 = vunpack.c.h.b16 %v1181
      %v3552 = vunpack.c.l.b16 %v1182
      %v3553 = vunpack.c.h.b16 %v1182
      %v3554 = vunpack.c.l.b16 %v1183
      %v3555 = vunpack.c.h.b16 %v1183
      %v3556 = vunpack.c.l.b16 %v1184
      %v3557 = vunpack.c.h.b16 %v1184
      %v3558 = vunpack.c.l.b16 %v1185
      %v3559 = vunpack.c.h.b16 %v1185
      %v3560 = vunpack.c.l.b16 %v1186
      %v3561 = vunpack.c.h.b16 %v1186
      %v3562 = vunpack.c.l.b16 %v1187
      %v3563 = vunpack.c.h.b16 %v1187
      %v3564 = vunpack.c.l.b16 %v1188
      %v3565 = vunpack.c.h.b16 %v1188
      %v3566 = vunpack.c.l.b16 %v1189
      %v3567 = vunpack.c.h.b16 %v1189
      %v3568 = vunpack.c.l.b16 %v1190
      %v3569 = vunpack.c.h.b16 %v1190
      %v3570 = vunpack.c.l.b16 %v1191
      %v3571 = vunpack.c.h.b16 %v1191
      %v3572 = vunpack.c.l.b16 %v1192
      %v3573 = vunpack.c.h.b16 %v1192
      %v3574 = vunpack.c.l.b16 %v1193
      %v3575 = vunpack.c.h.b16 %v1193
      %v3576 = vunpack.c.l.b16 %v1194
      %v3577 = vunpack.c.h.b16 %v1194
      %v3578 = vunpack.c.l.b16 %v1195
      %v3579 = vunpack.c.h.b16 %v1195
      %v3580 = vunpack.c.l.b16 %v1196
      %v3581 = vunpack.c.h.b16 %v1196
      %v3582 = vunpack.c.l.b16 %v1197
      %v3583 = vunpack.c.h.b16 %v1197
      %v3584 = vunpack.c.l.b16 %v1198
      %v3585 = vunpack.c.h.b16 %v1198
      %v3586 = vunpack.c.l.b16 %v1199
      %v3587 = vunpack.c.h.b16 %v1199
      %v3588 = vunpack.c.l.b16 %v1200
      %v3589 = vunpack.c.h.b16 %v1200
      %v3590 = vunpack.c.l.b16 %v1201
      %v3591 = vunpack.c.h.b16 %v1201
      %v3592 = vunpack.c.l.b16 %v1202
      %v3593 = vunpack.c.h.b16 %v1202
      %v3594 = vunpack.c.l.b16 %v1203
      %v3595 = vunpack.c.h.b16 %v1203
      %v3596 = vunpack.c.l.b16 %v1204
      %v3597 = vunpack.c.h.b16 %v1204
      %v3598 = vunpack.c.l.b16 %v1205
      %v3599 = vunpack.c.h.b16 %v1205
      %v3600 = vunpack.c.l.b16 %v1206
      %v3601 = vunpack.c.h.b16 %v1206
      %v3602 = vunpack.c.l.b16 %v1207
      %v3603 = vunpack.c.h.b16 %v1207
      %v3604 = vunpack.c.l.b16 %v1208
      %v3605 = vunpack.c.h.b16 %v1208
      %v3606 = vunpack.c.l.b16 %v1209
      %v3607 = vunpack.c.h.b16 %v1209
      %v3608 = vunpack.c.l.b16 %v1210
      %v3609 = vunpack.c.h.b16 %v1210
      %v3610 = vunpack.c.l.b16 %v1211
      %v3611 = vunpack.c.h.b16 %v1211
      %v3612 = vunpack.c.l.b16 %v1212
      %v3613 = vunpack.c.h.b16 %v1212
      %v3614 = vunpack.c.l.b16 %v1213
      %v3615 = vunpack.c.h.b16 %v1213
      %v3616 = vunpack.c.l.b16 %v1214
      %v3617 = vunpack.c.h.b16 %v1214
      %v3618 = vunpack.c.l.b16 %v1215
      %v3619 = vunpack.c.h.b16 %v1215
      %v3620 = vunpack.c.l.b16 %v1216
      %v3621 = vunpack.c.h.b16 %v1216
      %v3622 = vunpack.c.l.b16 %v1217
      %v3623 = vunpack.c.h.b16 %v1217
      %v3624 = vunpack.c.l.b16 %v1218
      %v3625 = vunpack.c.h.b16 %v1218
      %v3626 = vunpack.c.l.b16 %v1219
      %v3627 = vunpack.c.h.b16 %v1219
      %v3628 = vunpack.c.l.b16 %v1220
      %v3629 = vunpack.c.h.b16 %v1220
      %v3630 = vunpack.c.l.b16 %v1221
      %v3631 = vunpack.c.h.b16 %v1221
      %v3632 = vunpack.c.l.b16 %v1222
      %v3633 = vunpack.c.h.b16 %v1222
      %v3634 = vunpack.c.l.b16 %v1223
      %v3635 = vunpack.c.h.b16 %v1223
      %v3636 = vunpack.c.l.b16 %v1224
      %v3637 = vunpack.c.h.b16 %v1224
      %v3638 = vunpack.c.l.b16 %v1225
      %v3639 = vunpack.c.h.b16 %v1225
      %v3640 = vunpack.c.l.b16 %v1226
      %v3641 = vunpack.c.h.b16 %v1226
      %v3642 = vunpack.c.l.b16 %v1227
      %v3643 = vunpack.c.h.b16 %v1227
      %v3644 = vunpack.c.l.b16 %v1228
      %v3645 = vunpack.c.h.b16 %v1228
      %v3646 = vunpack.c.l.b16 %v1229
      %v3647 = vunpack.c.h.b16 %v1229
      %v3648 = vunpack.c.l.b16 %v1230
      %v3649 = vunpack.c.h.b16 %v1230
      %v3650 = vunpack.c.l.b16 %v1231
      %v3651 = vunpack.c.h.b16 %v1231
      %v3652 = vunpack.c.l.b16 %v1232
      %v3653 = vunpack.c.h.b16 %v1232
      %v3654 = vunpack.c.l.b16 %v1233
      %v3655 = vunpack.c.h.b16 %v1233
      %v3656 = vunpack.c.l.b16 %v1234
      %v3657 = vunpack.c.h.b16 %v1234
      %v3658 = vunpack.c.l.b16 %v1235
      %v3659 = vunpack.c.h.b16 %v1235
      %v3660 = vunpack.c.l.b16 %v1236
      %v3661 = vunpack.c.h.b16 %v1236
      %v3662 = vunpack.c.l.b16 %v1237
      %v3663 = vunpack.c.h.b16 %v1237
      %v3664 = vunpack.c.l.b16 %v1238
      %v3665 = vunpack.c.h.b16 %v1238
      %v3666 = vunpack.c.l.b16 %v1239
      %v3667 = vunpack.c.h.b16 %v1239
      %v3668 = vunpack.c.l.b16 %v1240
      %v3669 = vunpack.c.h.b16 %v1240
      %v3670 = vunpack.c.l.b16 %v1241
      %v3671 = vunpack.c.h.b16 %v1241
      %v3672 = vunpack.c.l.b16 %v1242
      %v3673 = vunpack.c.h.b16 %v1242
      %v3674 = vunpack.c.l.b16 %v1243
      %v3675 = vunpack.c.h.b16 %v1243
      %v3676 = vunpack.c.l.b16 %v1244
      %v3677 = vunpack.c.h.b16 %v1244
      %v3678 = vunpack.c.l.b16 %v1245
      %v3679 = vunpack.c.h.b16 %v1245
      %v3680 = vunpack.c.l.b16 %v1246
      %v3681 = vunpack.c.h.b16 %v1246
      %v3682 = vunpack.c.l.b16 %v1247
      %v3683 = vunpack.c.h.b16 %v1247
      %v3684 = vunpack.c.l.b16 %v1248
      %v3685 = vunpack.c.h.b16 %v1248
      %v3686 = vunpack.c.l.b16 %v1249
      %v3687 = vunpack.c.h.b16 %v1249
      %v3688 = vunpack.c.l.b16 %v1250
      %v3689 = vunpack.c.h.b16 %v1250
      %v3690 = vunpack.c.l.b16 %v1251
      %v3691 = vunpack.c.h.b16 %v1251
      %v3692 = vunpack.c.l.b16 %v1252
      %v3693 = vunpack.c.h.b16 %v1252
      %v3694 = vunpack.c.l.b16 %v1253
      %v3695 = vunpack.c.h.b16 %v1253
      %v3696 = vunpack.c.l.b16 %v1254
      %v3697 = vunpack.c.h.b16 %v1254
      %v3698 = vunpack.c.l.b16 %v1255
      %v3699 = vunpack.c.h.b16 %v1255
      %v3700 = vunpack.c.l.b16 %v1256
      %v3701 = vunpack.c.h.b16 %v1256
      %v3702 = vunpack.c.l.b16 %v1257
      %v3703 = vunpack.c.h.b16 %v1257
      %v3704 = vunpack.c.l.b16 %v1258
      %v3705 = vunpack.c.h.b16 %v1258
      %v3706 = vunpack.c.l.b16 %v1259
      %v3707 = vunpack.c.h.b16 %v1259
      %v3708 = vunpack.c.l.b16 %v1260
      %v3709 = vunpack.c.h.b16 %v1260
      %v3710 = vunpack.c.l.b16 %v1261
      %v3711 = vunpack.c.h.b16 %v1261
      %v3712 = vunpack.c.l.b16 %v1262
      %v3713 = vunpack.c.h.b16 %v1262
      %v3714 = vunpack.c.l.b16 %v1263
      %v3715 = vunpack.c.h.b16 %v1263
      %v3716 = vunpack.c.l.b16 %v1264
      %v3717 = vunpack.c.h.b16 %v1264
      %v3718 = vunpack.c.l.b16 %v1265
      %v3719 = vunpack.c.h.b16 %v1265
      %v3720 = vunpack.c.l.b16 %v1266
      %v3721 = vunpack.c.h.b16 %v1266
      %v3722 = vunpack.c.l.b16 %v1267
      %v3723 = vunpack.c.h.b16 %v1267
      %v3724 = vunpack.c.l.b16 %v1268
      %v3725 = vunpack.c.h.b16 %v1268
      %v3726 = vunpack.c.l.b16 %v1269
      %v3727 = vunpack.c.h.b16 %v1269
      %v3728 = vunpack.c.l.b16 %v1270
      %v3729 = vunpack.c.h.b16 %v1270
      %v3730 = vunpack.c.l.b16 %v1271
      %v3731 = vunpack.c.h.b16 %v1271
      %v3732 = vunpack.c.l.b16 %v1272
      %v3733 = vunpack.c.h.b16 %v1272
      %v3734 = vunpack.c.l.b16 %v1273
      %v3735 = vunpack.c.h.b16 %v1273
      %v3736 = vunpack.c.l.b16 %v1274
      %v3737 = vunpack.c.h.b16 %v1274
      %v3738 = vunpack.c.l.b16 %v1275
      %v3739 = vunpack.c.h.b16 %v1275
      %v3740 = vunpack.c.l.b16 %v1276
      %v3741 = vunpack.c.h.b16 %v1276
      %v3742 = vunpack.c.l.b16 %v1277
      %v3743 = vunpack.c.h.b16 %v1277
      %v3744 = vunpack.c.l.b16 %v1278
      %v3745 = vunpack.c.h.b16 %v1278
      %v3746 = vunpack.c.l.b16 %v1279
      %v3747 = vunpack.c.h.b16 %v1279
      %v3748 = vunpack.c.l.b16 %v1280
      %v3749 = vunpack.c.h.b16 %v1280
      %v3750 = vunpack.c.l.b16 %v1281
      %v3751 = vunpack.c.h.b16 %v1281
      %v3752 = vunpack.c.l.b16 %v1282
      %v3753 = vunpack.c.h.b16 %v1282
      %v3754 = vunpack.c.l.b16 %v1283
      %v3755 = vunpack.c.h.b16 %v1283
      %v3756 = vunpack.c.l.b16 %v1284
      %v3757 = vunpack.c.h.b16 %v1284
      %v3758 = vunpack.c.l.b16 %v1285
      %v3759 = vunpack.c.h.b16 %v1285
      %v3760 = vunpack.c.l.b16 %v1286
      %v3761 = vunpack.c.h.b16 %v1286
      %v3762 = vunpack.c.l.b16 %v1287
      %v3763 = vunpack.c.h.b16 %v1287
      %v3764 = vunpack.c.l.b16 %v1288
      %v3765 = vunpack.c.h.b16 %v1288
      %v3766 = vunpack.c.l.b16 %v1289
      %v3767 = vunpack.c.h.b16 %v1289
      %v3768 = vunpack.c.l.b16 %v1290
      %v3769 = vunpack.c.h.b16 %v1290
      %v3770 = vunpack.c.l.b16 %v1291
      %v3771 = vunpack.c.h.b16 %v1291
      %v3772 = vunpack.c.l.b16 %v1292
      %v3773 = vunpack.c.h.b16 %v1292
      %v3774 = vunpack.c.l.b16 %v1293
      %v3775 = vunpack.c.h.b16 %v1293
      %v3776 = vunpack.c.l.b16 %v1294
      %v3777 = vunpack.c.h.b16 %v1294
      %v3778 = vunpack.c.l.b16 %v1295
      %v3779 = vunpack.c.h.b16 %v1295
      %v3780 = vunpack.c.l.b16 %v1296
      %v3781 = vunpack.c.h.b16 %v1296
      %v3782 = vunpack.c.l.b16 %v1297
      %v3783 = vunpack.c.h.b16 %v1297
      %v3784 = vunpack.c.l.b16 %v1298
      %v3785 = vunpack.c.h.b16 %v1298
      %v3786 = vunpack.c.l.b16 %v1299
      %v3787 = vunpack.c.h.b16 %v1299
      %v3788 = vunpack.c.l.b16 %v1300
      %v3789 = vunpack.c.h.b16 %v1300
      %v3790 = vunpack.c.l.b16 %v1301
      %v3791 = vunpack.c.h.b16 %v1301
      %v3792 = vunpack.c.l.b16 %v1302
      %v3793 = vunpack.c.h.b16 %v1302
      %v3794 = vunpack.c.l.b16 %v1303
      %v3795 = vunpack.c.h.b16 %v1303
      %v3796 = vunpack.c.l.b16 %v1304
      %v3797 = vunpack.c.h.b16 %v1304
      %v3798 = vunpack.c.l.b16 %v1305
      %v3799 = vunpack.c.h.b16 %v1305
      %v3800 = vunpack.c.l.b16 %v1306
      %v3801 = vunpack.c.h.b16 %v1306
      %v3802 = vunpack.c.l.b16 %v1307
      %v3803 = vunpack.c.h.b16 %v1307
      %v3804 = vpack.c.b16 %v2144, %v2140
      %v3805 = vpack.c.b16 %v2145, %v2141
      %v3806 = vpack.c.b16 %v2146, %v2142
      %v3807 = vpack.c.b16 %v2147, %v2143
      %v3808 = vpack.c.b16 %v2152, %v2148
      %v3809 = vpack.c.b16 %v2153, %v2149
      %v3810 = vpack.c.b16 %v2154, %v2150
      %v3811 = vpack.c.b16 %v2155, %v2151
      %v3812 = vpack.c.b16 %v2160, %v2156
      %v3813 = vpack.c.b16 %v2161, %v2157
      %v3814 = vpack.c.b16 %v2162, %v2158
      %v3815 = vpack.c.b16 %v2163, %v2159
      %v3816 = vpack.c.b16 %v2168, %v2164
      %v3817 = vpack.c.b16 %v2169, %v2165
      %v3818 = vpack.c.b16 %v2170, %v2166
      %v3819 = vpack.c.b16 %v2171, %v2167
      %v3820 = vpack.c.b16 %v2176, %v2172
      %v3821 = vpack.c.b16 %v2177, %v2173
      %v3822 = vpack.c.b16 %v2178, %v2174
      %v3823 = vpack.c.b16 %v2179, %v2175
      %v3824 = vpack.c.b16 %v2184, %v2180
      %v3825 = vpack.c.b16 %v2185, %v2181
      %v3826 = vpack.c.b16 %v2186, %v2182
      %v3827 = vpack.c.b16 %v2187, %v2183
      %v3828 = vpack.c.b16 %v2192, %v2188
      %v3829 = vpack.c.b16 %v2193, %v2189
      %v3830 = vpack.c.b16 %v2194, %v2190
      %v3831 = vpack.c.b16 %v2195, %v2191
      %v3832 = vpack.c.b16 %v2200, %v2196
      %v3833 = vpack.c.b16 %v2201, %v2197
      %v3834 = vpack.c.b16 %v2202, %v2198
      %v3835 = vpack.c.b16 %v2203, %v2199
      %v3836 = vpack.c.b16 %v2208, %v2204
      %v3837 = vpack.c.b16 %v2209, %v2205
      %v3838 = vpack.c.b16 %v2210, %v2206
      %v3839 = vpack.c.b16 %v2211, %v2207
      %v3840 = vpack.c.b16 %v2216, %v2212
      %v3841 = vpack.c.b16 %v2217, %v2213
      %v3842 = vpack.c.b16 %v2218, %v2214
      %v3843 = vpack.c.b16 %v2219, %v2215
      %v3844 = vpack.c.b16 %v2224, %v2220
      %v3845 = vpack.c.b16 %v2225, %v2221
      %v3846 = vpack.c.b16 %v2226, %v2222
      %v3847 = vpack.c.b16 %v2227, %v2223
      %v3848 = vpack.c.b16 %v2232, %v2228
      %v3849 = vpack.c.b16 %v2233, %v2229
      %v3850 = vpack.c.b16 %v2234, %v2230
      %v3851 = vpack.c.b16 %v2235, %v2231
      %v3852 = vpack.c.b16 %v2240, %v2236
      %v3853 = vpack.c.b16 %v2241, %v2237
      %v3854 = vpack.c.b16 %v2242, %v2238
      %v3855 = vpack.c.b16 %v2243, %v2239
      %v3856 = vpack.c.b16 %v2248, %v2244
      %v3857 = vpack.c.b16 %v2249, %v2245
      %v3858 = vpack.c.b16 %v2250, %v2246
      %v3859 = vpack.c.b16 %v2251, %v2247
      %v3860 = vpack.c.b16 %v2256, %v2252
      %v3861 = vpack.c.b16 %v2257, %v2253
      %v3862 = vpack.c.b16 %v2258, %v2254
      %v3863 = vpack.c.b16 %v2259, %v2255
      %v3864 = vpack.c.b16 %v2264, %v2260
      %v3865 = vpack.c.b16 %v2265, %v2261
      %v3866 = vpack.c.b16 %v2266, %v2262
      %v3867 = vpack.c.b16 %v2267, %v2263
      %v3868 = vpack.c.b16 %v2272, %v2268
      %v3869 = vpack.c.b16 %v2273, %v2269
      %v3870 = vpack.c.b16 %v2274, %v2270
      %v3871 = vpack.c.b16 %v2275, %v2271
      %v3872 = vpack.c.b16 %v2280, %v2276
      %v3873 = vpack.c.b16 %v2281, %v2277
      %v3874 = vpack.c.b16 %v2282, %v2278
      %v3875 = vpack.c.b16 %v2283, %v2279
      %v3876 = vpack.c.b16 %v2288, %v2284
      %v3877 = vpack.c.b16 %v2289, %v2285
      %v3878 = vpack.c.b16 %v2290, %v2286
      %v3879 = vpack.c.b16 %v2291, %v2287
      %v3880 = vpack.c.b16 %v2296, %v2292
      %v3881 = vpack.c.b16 %v2297, %v2293
      %v3882 = vpack.c.b16 %v2298, %v2294
      %v3883 = vpack.c.b16 %v2299, %v2295
      %v3884 = vpack.c.b16 %v2304, %v2300
      %v3885 = vpack.c.b16 %v2305, %v2301
      %v3886 = vpack.c.b16 %v2306, %v2302
      %v3887 = vpack.c.b16 %v2307, %v2303
      %v3888 = vpack.c.b16 %v2312, %v2308
      %v3889 = vpack.c.b16 %v2313, %v2309
      %v3890 = vpack.c.b16 %v2314, %v2310
      %v3891 = vpack.c.b16 %v2315, %v2311
      %v3892 = vpack.c.b16 %v2320, %v2316
      %v3893 = vpack.c.b16 %v2321, %v2317
      %v3894 = vpack.c.b16 %v2322, %v2318
      %v3895 = vpack.c.b16 %v2323, %v2319
      %v3896 = vpack.c.b16 %v2328, %v2324
      %v3897 = vpack.c.b16 %v2329, %v2325
      %v3898 = vpack.c.b16 %v2330, %v2326
      %v3899 = vpack.c.b16 %v2331, %v2327
      %v3900 = vpack.c.b16 %v2336, %v2332
      %v3901 = vpack.c.b16 %v2337, %v2333
      %v3902 = vpack.c.b16 %v2338, %v2334
      %v3903 = vpack.c.b16 %v2339, %v2335
      %v3904 = vpack.c.b16 %v2344, %v2340
      %v3905 = vpack.c.b16 %v2345, %v2341
      %v3906 = vpack.c.b16 %v2346, %v2342
      %v3907 = vpack.c.b16 %v2347, %v2343
      %v3908 = vpack.c.b16 %v2352, %v2348
      %v3909 = vpack.c.b16 %v2353, %v2349
      %v3910 = vpack.c.b16 %v2354, %v2350
      %v3911 = vpack.c.b16 %v2355, %v2351
      %v3912 = vpack.c.b16 %v2360, %v2356
      %v3913 = vpack.c.b16 %v2361, %v2357
      %v3914 = vpack.c.b16 %v2362, %v2358
      %v3915 = vpack.c.b16 %v2363, %v2359
      %v3916 = vpack.c.b16 %v2368, %v2364
      %v3917 = vpack.c.b16 %v2369, %v2365
      %v3918 = vpack.c.b16 %v2370, %v2366
      %v3919 = vpack.c.b16 %v2371, %v2367
      %v3920 = vpack.c.b16 %v2376, %v2372
      %v3921 = vpack.c.b16 %v2377, %v2373
      %v3922 = vpack.c.b16 %v2378, %v2374
      %v3923 = vpack.c.b16 %v2379, %v2375
      %v3924 = vpack.c.b16 %v2384, %v2380
      %v3925 = vpack.c.b16 %v2385, %v2381
      %v3926 = vpack.c.b16 %v2386, %v2382
      %v3927 = vpack.c.b16 %v2387, %v2383
      %v3928 = vpack.c.b16 %v2392, %v2388
      %v3929 = vpack.c.b16 %v2393, %v2389
      %v3930 = vpack.c.b16 %v2394, %v2390
      %v3931 = vpack.c.b16 %v2395, %v2391
      %v3932 = vpack.c.b16 %v2400, %v2396
      %v3933 = vpack.c.b16 %v2401, %v2397
      %v3934 = vpack.c.b16 %v2402, %v2398
      %v3935 = vpack.c.b16 %v2403, %v2399
      %v3936 = vpack.c.b16 %v2408, %v2404
      %v3937 = vpack.c.b16 %v2409, %v2405
      %v3938 = vpack.c.b16 %v2410, %v2406
      %v3939 = vpack.c.b16 %v2411, %v2407
      %v3940 = vpack.c.b16 %v2416, %v2412
      %v3941 = vpack.c.b16 %v2417, %v2413
      %v3942 = vpack.c.b16 %v2418, %v2414
      %v3943 = vpack.c.b16 %v2419, %v2415
      %v3944 = vpack.c.b16 %v2424, %v2420
      %v3945 = vpack.c.b16 %v2425, %v2421
      %v3946 = vpack.c.b16 %v2426, %v2422
      %v3947 = vpack.c.b16 %v2427, %v2423
      %v3948 = vpack.c.b16 %v2432, %v2428
      %v3949 = vpack.c.b16 %v2433, %v2429
      %v3950 = vpack.c.b16 %v2434, %v2430
      %v3951 = vpack.c.b16 %v2435, %v2431
      %v3952 = vpack.c.b16 %v2440, %v2436
      %v3953 = vpack.c.b16 %v2441, %v2437
      %v3954 = vpack.c.b16 %v2442, %v2438
      %v3955 = vpack.c.b16 %v2443, %v2439
      %v3956 = vpack.c.b16 %v2448, %v2444
      %v3957 = vpack.c.b16 %v2449, %v2445
      %v3958 = vpack.c.b16 %v2450, %v2446
      %v3959 = vpack.c.b16 %v2451, %v2447
      %v3960 = vpack.c.b16 %v2456, %v2452
      %v3961 = vpack.c.b16 %v2457, %v2453
      %v3962 = vpack.c.b16 %v2458, %v2454
      %v3963 = vpack.c.b16 %v2459, %v2455
      %v3964 = vpack.c.b16 %v2464, %v2460
      %v3965 = vpack.c.b16 %v2465, %v2461
      %v3966 = vpack.c.b16 %v2466, %v2462
      %v3967 = vpack.c.b16 %v2467, %v2463
      %v3968 = vpack.c.b16 %v2472, %v2468
      %v3969 = vpack.c.b16 %v2473, %v2469
      %v3970 = vpack.c.b16 %v2474, %v2470
      %v3971 = vpack.c.b16 %v2475, %v2471
      %v3972 = vpack.c.b16 %v2480, %v2476
      %v3973 = vpack.c.b16 %v2481, %v2477
      %v3974 = vpack.c.b16 %v2482, %v2478
      %v3975 = vpack.c.b16 %v2483, %v2479
      %v3976 = vpack.c.b16 %v2488, %v2484
      %v3977 = vpack.c.b16 %v2489, %v2485
      %v3978 = vpack.c.b16 %v2490, %v2486
      %v3979 = vpack.c.b16 %v2491, %v2487
      %v3980 = vpack.c.b16 %v2496, %v2492
      %v3981 = vpack.c.b16 %v2497, %v2493
      %v3982 = vpack.c.b16 %v2498, %v2494
      %v3983 = vpack.c.b16 %v2499, %v2495
      %v3984 = vpack.c.b16 %v2504, %v2500
      %v3985 = vpack.c.b16 %v2505, %v2501
      %v3986 = vpack.c.b16 %v2506, %v2502
      %v3987 = vpack.c.b16 %v2507, %v2503
      %v3988 = vpack.c.b16 %v2512, %v2508
      %v3989 = vpack.c.b16 %v2513, %v2509
      %v3990 = vpack.c.b16 %v2514, %v2510
      %v3991 = vpack.c.b16 %v2515, %v2511
      %v3992 = vpack.c.b16 %v2520, %v2516
      %v3993 = vpack.c.b16 %v2521, %v2517
      %v3994 = vpack.c.b16 %v2522, %v2518
      %v3995 = vpack.c.b16 %v2523, %v2519
      %v3996 = vpack.c.b16 %v2528, %v2524
      %v3997 = vpack.c.b16 %v2529, %v2525
      %v3998 = vpack.c.b16 %v2530, %v2526
      %v3999 = vpack.c.b16 %v2531, %v2527
      %v4000 = vpack.c.b16 %v2536, %v2532
      %v4001 = vpack.c.b16 %v2537, %v2533
      %v4002 = vpack.c.b16 %v2538, %v2534
      %v4003 = vpack.c.b16 %v2539, %v2535
      %v4004 = vpack.c.b16 %v2544, %v2540
      %v4005 = vpack.c.b16 %v2545, %v2541
      %v4006 = vpack.c.b16 %v2546, %v2542
      %v4007 = vpack.c.b16 %v2547, %v2543
      %v4008 = vpack.c.b16 %v2552, %v2548
      %v4009 = vpack.c.b16 %v2553, %v2549
      %v4010 = vpack.c.b16 %v2554, %v2550
      %v4011 = vpack.c.b16 %v2555, %v2551
      %v4012 = vpack.c.b16 %v2560, %v2556
      %v4013 = vpack.c.b16 %v2561, %v2557
      %v4014 = vpack.c.b16 %v2562, %v2558
      %v4015 = vpack.c.b16 %v2563, %v2559
      %v4016 = vpack.c.b16 %v2568, %v2564
      %v4017 = vpack.c.b16 %v2569, %v2565
      %v4018 = vpack.c.b16 %v2570, %v2566
      %v4019 = vpack.c.b16 %v2571, %v2567
      %v4020 = vpack.c.b16 %v2576, %v2572
      %v4021 = vpack.c.b16 %v2577, %v2573
      %v4022 = vpack.c.b16 %v2578, %v2574
      %v4023 = vpack.c.b16 %v2579, %v2575
      %v4024 = vpack.c.b16 %v2584, %v2580
      %v4025 = vpack.c.b16 %v2585, %v2581
      %v4026 = vpack.c.b16 %v2586, %v2582
      %v4027 = vpack.c.b16 %v2587, %v2583
      %v4028 = vpack.c.b16 %v2592, %v2588
      %v4029 = vpack.c.b16 %v2593, %v2589
      %v4030 = vpack.c.b16 %v2594, %v2590
      %v4031 = vpack.c.b16 %v2595, %v2591
      %v4032 = vpack.c.b16 %v2600, %v2596
      %v4033 = vpack.c.b16 %v2601, %v2597
      %v4034 = vpack.c.b16 %v2602, %v2598
      %v4035 = vpack.c.b16 %v2603, %v2599
      %v4036 = vpack.c.b16 %v2608, %v2604
      %v4037 = vpack.c.b16 %v2609, %v2605
      %v4038 = vpack.c.b16 %v2610, %v2606
      %v4039 = vpack.c.b16 %v2611, %v2607
      %v4040 = vpack.c.b16 %v2616, %v2612
      %v4041 = vpack.c.b16 %v2617, %v2613
      %v4042 = vpack.c.b16 %v2618, %v2614
      %v4043 = vpack.c.b16 %v2619, %v2615
      %v4044 = vpack.c.b16 %v2624, %v2620
      %v4045 = vpack.c.b16 %v2625, %v2621
      %v4046 = vpack.c.b16 %v2626, %v2622
      %v4047 = vpack.c.b16 %v2627, %v2623
      %v4048 = vpack.c.b16 %v2632, %v2628
      %v4049 = vpack.c.b16 %v2633, %v2629
      %v4050 = vpack.c.b16 %v2634, %v2630
      %v4051 = vpack.c.b16 %v2635, %v2631
      %v4052 = vpack.c.b16 %v2640, %v2636
      %v4053 = vpack.c.b16 %v2641, %v2637
      %v4054 = vpack.c.b16 %v2642, %v2638
      %v4055 = vpack.c.b16 %v2643, %v2639
      %v4056 = vpack.c.b16 %v2648, %v2644
      %v4057 = vpack.c.b16 %v2649, %v2645
      %v4058 = vpack.c.b16 %v2650, %v2646
      %v4059 = vpack.c.b16 %v2651, %v2647
      %v4060 = vpack.c.b16 %v2656, %v2652
      %v4061 = vpack.c.b16 %v2657, %v2653
      %v4062 = vpack.c.b16 %v2658, %v2654
      %v4063 = vpack.c.b16 %v2659, %v2655
      %v4064 = vpack.c.b16 %v2664, %v2660
      %v4065 = vpack.c.b16 %v2665, %v2661
      %v4066 = vpack.c.b16 %v2666, %v2662
      %v4067 = vpack.c.b16 %v2667, %v2663
      %v4068 = vpack.c.b16 %v2672, %v2668
      %v4069 = vpack.c.b16 %v2673, %v2669
      %v4070 = vpack.c.b16 %v2674, %v2670
      %v4071 = vpack.c.b16 %v2675, %v2671
      %v4072 = vpack.c.b16 %v2680, %v2676
      %v4073 = vpack.c.b16 %v2681, %v2677
      %v4074 = vpack.c.b16 %v2682, %v2678
      %v4075 = vpack.c.b16 %v2683, %v2679
      %v4076 = vpack.c.b16 %v2688, %v2684
      %v4077 = vpack.c.b16 %v2689, %v2685
      %v4078 = vpack.c.b16 %v2690, %v2686
      %v4079 = vpack.c.b16 %v2691, %v2687
      %v4080 = vpack.c.b16 %v2696, %v2692
      %v4081 = vpack.c.b16 %v2697, %v2693
      %v4082 = vpack.c.b16 %v2698, %v2694
      %v4083 = vpack.c.b16 %v2699, %v2695
      %v4084 = vpack.c.b16 %v2704, %v2700
      %v4085 = vpack.c.b16 %v2705, %v2701
      %v4086 = vpack.c.b16 %v2706, %v2702
      %v4087 = vpack.c.b16 %v2707, %v2703
      %v4088 = vpack.c.b16 %v2712, %v2708
      %v4089 = vpack.c.b16 %v2713, %v2709
      %v4090 = vpack.c.b16 %v2714, %v2710
      %v4091 = vpack.c.b16 %v2715, %v2711
      %v4092 = vpack.c.b16 %v2720, %v2716
      %v4093 = vpack.c.b16 %v2721, %v2717
      %v4094 = vpack.c.b16 %v2722, %v2718
      %v4095 = vpack.c.b16 %v2723, %v2719
      %v4096 = vpack.c.b16 %v2728, %v2724
      %v4097 = vpack.c.b16 %v2729, %v2725
      %v4098 = vpack.c.b16 %v2730, %v2726
      %v4099 = vpack.c.b16 %v2731, %v2727
      %v4100 = vpack.c.b16 %v2736, %v2732
      %v4101 = vpack.c.b16 %v2737, %v2733
      %v4102 = vpack.c.b16 %v2738, %v2734
      %v4103 = vpack.c.b16 %v2739, %v2735
      %v4104 = vpack.c.b16 %v2744, %v2740
      %v4105 = vpack.c.b16 %v2745, %v2741
      %v4106 = vpack.c.b16 %v2746, %v2742
      %v4107 = vpack.c.b16 %v2747, %v2743
      %v4108 = vpack.c.b16 %v2752, %v2748
      %v4109 = vpack.c.b16 %v2753, %v2749
      %v4110 = vpack.c.b16 %v2754, %v2750
      %v4111 = vpack.c.b16 %v2755, %v2751
      %v4112 = vpack.c.b16 %v2760, %v2756
      %v4113 = vpack.c.b16 %v2761, %v2757
      %v4114 = vpack.c.b16 %v2762, %v2758
      %v4115 = vpack.c.b16 %v2763, %v2759
      %v4116 = vpack.c.b16 %v2768, %v2764
      %v4117 = vpack.c.b16 %v2769, %v2765
      %v4118 = vpack.c.b16 %v2770, %v2766
      %v4119 = vpack.c.b16 %v2771, %v2767
      %v4120 = vpack.c.b16 %v2776, %v2772
      %v4121 = vpack.c.b16 %v2777, %v2773
      %v4122 = vpack.c.b16 %v2778, %v2774
      %v4123 = vpack.c.b16 %v2779, %v2775
      %v4124 = vpack.c.b16 %v2784, %v2780
      %v4125 = vpack.c.b16 %v2785, %v2781
      %v4126 = vpack.c.b16 %v2786, %v2782
      %v4127 = vpack.c.b16 %v2787, %v2783
      %v4128 = vpack.c.b16 %v2792, %v2788
      %v4129 = vpack.c.b16 %v2793, %v2789
      %v4130 = vpack.c.b16 %v2794, %v2790
      %v4131 = vpack.c.b16 %v2795, %v2791
      %v4132 = vpack.c.b16 %v2800, %v2796
      %v4133 = vpack.c.b16 %v2801, %v2797
      %v4134 = vpack.c.b16 %v2802, %v2798
      %v4135 = vpack.c.b16 %v2803, %v2799
      %v4136 = vpack.c.b16 %v2808, %v2804
      %v4137 = vpack.c.b16 %v2809, %v2805
      %v4138 = vpack.c.b16 %v2810, %v2806
      %v4139 = vpack.c.b16 %v2811, %v2807
      %v4140 = vpack.c.b16 %v2816, %v2812
      %v4141 = vpack.c.b16 %v2817, %v2813
      %v4142 = vpack.c.b16 %v2818, %v2814
      %v4143 = vpack.c.b16 %v2819, %v2815
      %v4144 = vpack.c.b16 %v2824, %v2820
      %v4145 = vpack.c.b16 %v2825, %v2821
      %v4146 = vpack.c.b16 %v2826, %v2822
      %v4147 = vpack.c.b16 %v2827, %v2823
      %v4148 = vpack.c.b16 %v2832, %v2828
      %v4149 = vpack.c.b16 %v2833, %v2829
      %v4150 = vpack.c.b16 %v2834, %v2830
      %v4151 = vpack.c.b16 %v2835, %v2831
      %v4152 = vpack.c.b16 %v2840, %v2836
      %v4153 = vpack.c.b16 %v2841, %v2837
      %v4154 = vpack.c.b16 %v2842, %v2838
      %v4155 = vpack.c.b16 %v2843, %v2839
      %v4156 = vpack.c.b16 %v2848, %v2844
      %v4157 = vpack.c.b16 %v2849, %v2845
      %v4158 = vpack.c.b16 %v2850, %v2846
      %v4159 = vpack.c.b16 %v2851, %v2847
      %v4160 = vpack.c.b16 %v2856, %v2852
      %v4161 = vpack.c.b16 %v2857, %v2853
      %v4162 = vpack.c.b16 %v2858, %v2854
      %v4163 = vpack.c.b16 %v2859, %v2855
      %v4164 = vpack.c.b16 %v2864, %v2860
      %v4165 = vpack.c.b16 %v2865, %v2861
      %v4166 = vpack.c.b16 %v2866, %v2862
      %v4167 = vpack.c.b16 %v2867, %v2863
      %v4168 = vpack.c.b16 %v2872, %v2868
      %v4169 = vpack.c.b16 %v2873, %v2869
      %v4170 = vpack.c.b16 %v2874, %v2870
      %v4171 = vpack.c.b16 %v2875, %v2871
      %v4172 = vpack.c.b16 %v2880, %v2876
      %v4173 = vpack.c.b16 %v2881, %v2877
      %v4174 = vpack.c.b16 %v2882, %v2878
      %v4175 = vpack.c.b16 %v2883, %v2879
      %v4176 = vpack.c.b16 %v2888, %v2884
      %v4177 = vpack.c.b16 %v2889, %v2885
      %v4178 = vpack.c.b16 %v2890, %v2886
      %v4179 = vpack.c.b16 %v2891, %v2887
      %v4180 = vpack.c.b16 %v2896, %v2892
      %v4181 = vpack.c.b16 %v2897, %v2893
      %v4182 = vpack.c.b16 %v2898, %v2894
      %v4183 = vpack.c.b16 %v2899, %v2895
      %v4184 = vpack.c.b16 %v2904, %v2900
      %v4185 = vpack.c.b16 %v2905, %v2901
      %v4186 = vpack.c.b16 %v2906, %v2902
      %v4187 = vpack.c.b16 %v2907, %v2903
      %v4188 = vpack.c.b16 %v2912, %v2908
      %v4189 = vpack.c.b16 %v2913, %v2909
      %v4190 = vpack.c.b16 %v2914, %v2910
      %v4191 = vpack.c.b16 %v2915, %v2911
      %v4192 = vpack.c.b16 %v2920, %v2916
      %v4193 = vpack.c.b16 %v2921, %v2917
      %v4194 = vpack.c.b16 %v2922, %v2918
      %v4195 = vpack.c.b16 %v2923, %v2919
      %v4196 = vpack.c.b16 %v2928, %v2924
      %v4197 = vpack.c.b16 %v2929, %v2925
      %v4198 = vpack.c.b16 %v2930, %v2926
      %v4199 = vpack.c.b16 %v2931, %v2927
      %v4200 = vpack.c.b16 %v2936, %v2932
      %v4201 = vpack.c.b16 %v2937, %v2933
      %v4202 = vpack.c.b16 %v2938, %v2934
      %v4203 = vpack.c.b16 %v2939, %v2935
      %v4204 = vpack.c.b16 %v2944, %v2940
      %v4205 = vpack.c.b16 %v2945, %v2941
      %v4206 = vpack.c.b16 %v2946, %v2942
      %v4207 = vpack.c.b16 %v2947, %v2943
      %v4208 = vpack.c.b16 %v2952, %v2948
      %v4209 = vpack.c.b16 %v2953, %v2949
      %v4210 = vpack.c.b16 %v2954, %v2950
      %v4211 = vpack.c.b16 %v2955, %v2951
      %v4212 = vpack.c.b16 %v2960, %v2956
      %v4213 = vpack.c.b16 %v2961, %v2957
      %v4214 = vpack.c.b16 %v2962, %v2958
      %v4215 = vpack.c.b16 %v2963, %v2959
      %v4216 = vpack.c.b16 %v2968, %v2964
      %v4217 = vpack.c.b16 %v2969, %v2965
      %v4218 = vpack.c.b16 %v2970, %v2966
      %v4219 = vpack.c.b16 %v2971, %v2967
      %v4220 = vpack.c.b16 %v2976, %v2972
      %v4221 = vpack.c.b16 %v2977, %v2973
      %v4222 = vpack.c.b16 %v2978, %v2974
      %v4223 = vpack.c.b16 %v2979, %v2975
      %v4224 = vpack.c.b16 %v2984, %v2980
      %v4225 = vpack.c.b16 %v2985, %v2981
      %v4226 = vpack.c.b16 %v2986, %v2982
      %v4227 = vpack.c.b16 %v2987, %v2983
      %v4228 = vpack.c.b16 %v2992, %v2988
      %v4229 = vpack.c.b16 %v2993, %v2989
      %v4230 = vpack.c.b16 %v2994, %v2990
      %v4231 = vpack.c.b16 %v2995, %v2991
      %v4232 = vpack.c.b16 %v3000, %v2996
      %v4233 = vpack.c.b16 %v3001, %v2997
      %v4234 = vpack.c.b16 %v3002, %v2998
      %v4235 = vpack.c.b16 %v3003, %v2999
      %v4236 = vpack.c.b16 %v3008, %v3004
      %v4237 = vpack.c.b16 %v3009, %v3005
      %v4238 = vpack.c.b16 %v3010, %v3006
      %v4239 = vpack.c.b16 %v3011, %v3007
      %v4240 = vpack.c.b16 %v3016, %v3012
      %v4241 = vpack.c.b16 %v3017, %v3013
      %v4242 = vpack.c.b16 %v3018, %v3014
      %v4243 = vpack.c.b16 %v3019, %v3015
      %v4244 = vpack.c.b16 %v3024, %v3020
      %v4245 = vpack.c.b16 %v3025, %v3021
      %v4246 = vpack.c.b16 %v3026, %v3022
      %v4247 = vpack.c.b16 %v3027, %v3023
      %v4248 = vpack.c.b16 %v3032, %v3028
      %v4249 = vpack.c.b16 %v3033, %v3029
      %v4250 = vpack.c.b16 %v3034, %v3030
      %v4251 = vpack.c.b16 %v3035, %v3031
      %v4252 = vpack.c.b16 %v3040, %v3036
      %v4253 = vpack.c.b16 %v3041, %v3037
      %v4254 = vpack.c.b16 %v3042, %v3038
      %v4255 = vpack.c.b16 %v3043, %v3039
      %v4256 = vpack.c.b16 %v3048, %v3044
      %v4257 = vpack.c.b16 %v3049, %v3045
      %v4258 = vpack.c.b16 %v3050, %v3046
      %v4259 = vpack.c.b16 %v3051, %v3047
      %v4260 = vpack.c.b16 %v3056, %v3052
      %v4261 = vpack.c.b16 %v3057, %v3053
      %v4262 = vpack.c.b16 %v3058, %v3054
      %v4263 = vpack.c.b16 %v3059, %v3055
      %v4264 = vpack.c.b16 %v3064, %v3060
      %v4265 = vpack.c.b16 %v3065, %v3061
      %v4266 = vpack.c.b16 %v3066, %v3062
      %v4267 = vpack.c.b16 %v3067, %v3063
      %v4268 = vpack.c.b16 %v3072, %v3068
      %v4269 = vpack.c.b16 %v3073, %v3069
      %v4270 = vpack.c.b16 %v3074, %v3070
      %v4271 = vpack.c.b16 %v3075, %v3071
      %v4272 = vpack.c.b16 %v3080, %v3076
      %v4273 = vpack.c.b16 %v3081, %v3077
      %v4274 = vpack.c.b16 %v3082, %v3078
      %v4275 = vpack.c.b16 %v3083, %v3079
      %v4276 = vpack.c.b16 %v3088, %v3084
      %v4277 = vpack.c.b16 %v3089, %v3085
      %v4278 = vpack.c.b16 %v3090, %v3086
      %v4279 = vpack.c.b16 %v3091, %v3087
      %v4280 = vpack.c.b16 %v3096, %v3092
      %v4281 = vpack.c.b16 %v3097, %v3093
      %v4282 = vpack.c.b16 %v3098, %v3094
      %v4283 = vpack.c.b16 %v3099, %v3095
      %v4284 = vpack.c.b16 %v3104, %v3100
      %v4285 = vpack.c.b16 %v3105, %v3101
      %v4286 = vpack.c.b16 %v3106, %v3102
      %v4287 = vpack.c.b16 %v3107, %v3103
      %v4288 = vpack.c.b16 %v3112, %v3108
      %v4289 = vpack.c.b16 %v3113, %v3109
      %v4290 = vpack.c.b16 %v3114, %v3110
      %v4291 = vpack.c.b16 %v3115, %v3111
      %v4292 = vpack.c.b16 %v3120, %v3116
      %v4293 = vpack.c.b16 %v3121, %v3117
      %v4294 = vpack.c.b16 %v3122, %v3118
      %v4295 = vpack.c.b16 %v3123, %v3119
      %v4296 = vpack.c.b16 %v3128, %v3124
      %v4297 = vpack.c.b16 %v3129, %v3125
      %v4298 = vpack.c.b16 %v3130, %v3126
      %v4299 = vpack.c.b16 %v3131, %v3127
      %v4300 = vpack.c.b16 %v3136, %v3132
      %v4301 = vpack.c.b16 %v3137, %v3133
      %v4302 = vpack.c.b16 %v3138, %v3134
      %v4303 = vpack.c.b16 %v3139, %v3135
      %v4304 = vpack.c.b16 %v3144, %v3140
      %v4305 = vpack.c.b16 %v3145, %v3141
      %v4306 = vpack.c.b16 %v3146, %v3142
      %v4307 = vpack.c.b16 %v3147, %v3143
      %v4308 = vpack.c.b16 %v3152, %v3148
      %v4309 = vpack.c.b16 %v3153, %v3149
      %v4310 = vpack.c.b16 %v3154, %v3150
      %v4311 = vpack.c.b16 %v3155, %v3151
      %v4312 = vpack.c.b16 %v3160, %v3156
      %v4313 = vpack.c.b16 %v3161, %v3157
      %v4314 = vpack.c.b16 %v3162, %v3158
      %v4315 = vpack.c.b16 %v3163, %v3159
      %v4316 = vpack.c.b16 %v3168, %v3164
      %v4317 = vpack.c.b16 %v3169, %v3165
      %v4318 = vpack.c.b16 %v3170, %v3166
      %v4319 = vpack.c.b16 %v3171, %v3167
      %v4320 = vpack.c.b16 %v3176, %v3172
      %v4321 = vpack.c.b16 %v3177, %v3173
      %v4322 = vpack.c.b16 %v3178, %v3174
      %v4323 = vpack.c.b16 %v3179, %v3175
      %v4324 = vpack.c.b16 %v3184, %v3180
      %v4325 = vpack.c.b16 %v3185, %v3181
      %v4326 = vpack.c.b16 %v3186, %v3182
      %v4327 = vpack.c.b16 %v3187, %v3183
      %v4328 = vpack.c.b16 %v3192, %v3188
      %v4329 = vpack.c.b16 %v3193, %v3189
      %v4330 = vpack.c.b16 %v3194, %v3190
      %v4331 = vpack.c.b16 %v3195, %v3191
      %v4332 = vpack.c.b16 %v3200, %v3196
      %v4333 = vpack.c.b16 %v3201, %v3197
      %v4334 = vpack.c.b16 %v3202, %v3198
      %v4335 = vpack.c.b16 %v3203, %v3199
      %v4336 = vpack.c.b16 %v3208, %v3204
      %v4337 = vpack.c.b16 %v3209, %v3205
      %v4338 = vpack.c.b16 %v3210, %v3206
      %v4339 = vpack.c.b16 %v3211, %v3207
      %v4340 = vpack.c.b16 %v3216, %v3212
      %v4341 = vpack.c.b16 %v3217, %v3213
      %v4342 = vpack.c.b16 %v3218, %v3214
      %v4343 = vpack.c.b16 %v3219, %v3215
      %v4344 = vpack.c.b16 %v3224, %v3220
      %v4345 = vpack.c.b16 %v3225, %v3221
      %v4346 = vpack.c.b16 %v3226, %v3222
      %v4347 = vpack.c.b16 %v3227, %v3223
      %v4348 = vpack.c.b16 %v3232, %v3228
      %v4349 = vpack.c.b16 %v3233, %v3229
      %v4350 = vpack.c.b16 %v3234, %v3230
      %v4351 = vpack.c.b16 %v3235, %v3231
      %v4352 = vpack.c.b16 %v3240, %v3236
      %v4353 = vpack.c.b16 %v3241, %v3237
      %v4354 = vpack.c.b16 %v3242, %v3238
      %v4355 = vpack.c.b16 %v3243, %v3239
      %v4356 = vpack.c.b16 %v3248, %v3244
      %v4357 = vpack.c.b16 %v3249, %v3245
      %v4358 = vpack.c.b16 %v3250, %v3246
      %v4359 = vpack.c.b16 %v3251, %v3247
      %v4360 = vpack.c.b16 %v3256, %v3252
      %v4361 = vpack.c.b16 %v3257, %v3253
      %v4362 = vpack.c.b16 %v3258, %v3254
      %v4363 = vpack.c.b16 %v3259, %v3255
      %v4364 = vpack.c.b16 %v3264, %v3260
      %v4365 = vpack.c.b16 %v3265, %v3261
      %v4366 = vpack.c.b16 %v3266, %v3262
      %v4367 = vpack.c.b16 %v3267, %v3263
      %v4368 = vpack.c.b16 %v3272, %v3268
      %v4369 = vpack.c.b16 %v3273, %v3269
      %v4370 = vpack.c.b16 %v3274, %v3270
      %v4371 = vpack.c.b16 %v3275, %v3271
      %v4372 = vpack.c.b16 %v3280, %v3276
      %v4373 = vpack.c.b16 %v3281, %v3277
      %v4374 = vpack.c.b16 %v3282, %v3278
      %v4375 = vpack.c.b16 %v3283, %v3279
      %v4376 = vpack.c.b16 %v3288, %v3284
      %v4377 = vpack.c.b16 %v3289, %v3285
      %v4378 = vpack.c.b16 %v3290, %v3286
      %v4379 = vpack.c.b16 %v3291, %v3287
      %v4380 = vpack.c.b16 %v3296, %v3292
      %v4381 = vpack.c.b16 %v3297, %v3293
      %v4382 = vpack.c.b16 %v3298, %v3294
      %v4383 = vpack.c.b16 %v3299, %v3295
      %v4384 = vpack.c.b16 %v3304, %v3300
      %v4385 = vpack.c.b16 %v3305, %v3301
      %v4386 = vpack.c.b16 %v3306, %v3302
      %v4387 = vpack.c.b16 %v3307, %v3303
      %v4388 = vpack.c.b16 %v3312, %v3308
      %v4389 = vpack.c.b16 %v3313, %v3309
      %v4390 = vpack.c.b16 %v3314, %v3310
      %v4391 = vpack.c.b16 %v3315, %v3311
      %v4392 = vpack.c.b16 %v3320, %v3316
      %v4393 = vpack.c.b16 %v3321, %v3317
      %v4394 = vpack.c.b16 %v3322, %v3318
      %v4395 = vpack.c.b16 %v3323, %v3319
      %v4396 = vpack.c.b16 %v3328, %v3324
      %v4397 = vpack.c.b16 %v3329, %v3325
      %v4398 = vpack.c.b16 %v3330, %v3326
      %v4399 = vpack.c.b16 %v3331, %v3327
      %v4400 = vpack.c.b16 %v3336, %v3332
      %v4401 = vpack.c.b16 %v3337, %v3333
      %v4402 = vpack.c.b16 %v3338, %v3334
      %v4403 = vpack.c.b16 %v3339, %v3335
      %v4404 = vpack.c.b16 %v3344, %v3340
      %v4405 = vpack.c.b16 %v3345, %v3341
      %v4406 = vpack.c.b16 %v3346, %v3342
      %v4407 = vpack.c.b16 %v3347, %v3343
      %v4408 = vpack.c.b16 %v3352, %v3348
      %v4409 = vpack.c.b16 %v3353, %v3349
      %v4410 = vpack.c.b16 %v3354, %v3350
      %v4411 = vpack.c.b16 %v3355, %v3351
      %v4412 = vpack.c.b16 %v3360, %v3356
      %v4413 = vpack.c.b16 %v3361, %v3357
      %v4414 = vpack.c.b16 %v3362, %v3358
      %v4415 = vpack.c.b16 %v3363, %v3359
      %v4416 = vpack.c.b16 %v3368, %v3364
      %v4417 = vpack.c.b16 %v3369, %v3365
      %v4418 = vpack.c.b16 %v3370, %v3366
      %v4419 = vpack.c.b16 %v3371, %v3367
      %v4420 = vpack.c.b16 %v3376, %v3372
      %v4421 = vpack.c.b16 %v3377, %v3373
      %v4422 = vpack.c.b16 %v3378, %v3374
      %v4423 = vpack.c.b16 %v3379, %v3375
      %v4424 = vpack.c.b16 %v3384, %v3380
      %v4425 = vpack.c.b16 %v3385, %v3381
      %v4426 = vpack.c.b16 %v3386, %v3382
      %v4427 = vpack.c.b16 %v3387, %v3383
      %v4428 = vpack.c.b16 %v3392, %v3388
      %v4429 = vpack.c.b16 %v3393, %v3389
      %v4430 = vpack.c.b16 %v3394, %v3390
      %v4431 = vpack.c.b16 %v3395, %v3391
      %v4432 = vpack.c.b16 %v3400, %v3396
      %v4433 = vpack.c.b16 %v3401, %v3397
      %v4434 = vpack.c.b16 %v3402, %v3398
      %v4435 = vpack.c.b16 %v3403, %v3399
      %v4436 = vpack.c.b16 %v3408, %v3404
      %v4437 = vpack.c.b16 %v3409, %v3405
      %v4438 = vpack.c.b16 %v3410, %v3406
      %v4439 = vpack.c.b16 %v3411, %v3407
      %v4440 = vpack.c.b16 %v3416, %v3412
      %v4441 = vpack.c.b16 %v3417, %v3413
      %v4442 = vpack.c.b16 %v3418, %v3414
      %v4443 = vpack.c.b16 %v3419, %v3415
      %v4444 = vpack.c.b16 %v3424, %v3420
      %v4445 = vpack.c.b16 %v3425, %v3421
      %v4446 = vpack.c.b16 %v3426, %v3422
      %v4447 = vpack.c.b16 %v3427, %v3423
      %v4448 = vpack.c.b16 %v3432, %v3428
      %v4449 = vpack.c.b16 %v3433, %v3429
      %v4450 = vpack.c.b16 %v3434, %v3430
      %v4451 = vpack.c.b16 %v3435, %v3431
      %v4452 = vpack.c.b16 %v3440, %v3436
      %v4453 = vpack.c.b16 %v3441, %v3437
      %v4454 = vpack.c.b16 %v3442, %v3438
      %v4455 = vpack.c.b16 %v3443, %v3439
      %v4456 = vpack.c.b16 %v3448, %v3444
      %v4457 = vpack.c.b16 %v3449, %v3445
      %v4458 = vpack.c.b16 %v3450, %v3446
      %v4459 = vpack.c.b16 %v3451, %v3447
      %v4460 = vpack.c.b16 %v3456, %v3452
      %v4461 = vpack.c.b16 %v3457, %v3453
      %v4462 = vpack.c.b16 %v3458, %v3454
      %v4463 = vpack.c.b16 %v3459, %v3455
      %v4464 = vpack.c.b16 %v3464, %v3460
      %v4465 = vpack.c.b16 %v3465, %v3461
      %v4466 = vpack.c.b16 %v3466, %v3462
      %v4467 = vpack.c.b16 %v3467, %v3463
      %v4468 = vpack.c.b16 %v3472, %v3468
      %v4469 = vpack.c.b16 %v3473, %v3469
      %v4470 = vpack.c.b16 %v3474, %v3470
      %v4471 = vpack.c.b16 %v3475, %v3471
      %v4472 = vpack.c.b16 %v3480, %v3476
      %v4473 = vpack.c.b16 %v3481, %v3477
      %v4474 = vpack.c.b16 %v3482, %v3478
      %v4475 = vpack.c.b16 %v3483, %v3479
      %v4476 = vpack.c.b16 %v3488, %v3484
      %v4477 = vpack.c.b16 %v3489, %v3485
      %v4478 = vpack.c.b16 %v3490, %v3486
      %v4479 = vpack.c.b16 %v3491, %v3487
      %v4480 = vpack.c.b16 %v3496, %v3492
      %v4481 = vpack.c.b16 %v3497, %v3493
      %v4482 = vpack.c.b16 %v3498, %v3494
      %v4483 = vpack.c.b16 %v3499, %v3495
      %v4484 = vpack.c.b16 %v3504, %v3500
      %v4485 = vpack.c.b16 %v3505, %v3501
      %v4486 = vpack.c.b16 %v3506, %v3502
      %v4487 = vpack.c.b16 %v3507, %v3503
      %v4488 = vpack.c.b16 %v3512, %v3508
      %v4489 = vpack.c.b16 %v3513, %v3509
      %v4490 = vpack.c.b16 %v3514, %v3510
      %v4491 = vpack.c.b16 %v3515, %v3511
      %v4492 = vpack.c.b16 %v3520, %v3516
      %v4493 = vpack.c.b16 %v3521, %v3517
      %v4494 = vpack.c.b16 %v3522, %v3518
      %v4495 = vpack.c.b16 %v3523, %v3519
      %v4496 = vpack.c.b16 %v3528, %v3524
      %v4497 = vpack.c.b16 %v3529, %v3525
      %v4498 = vpack.c.b16 %v3530, %v3526
      %v4499 = vpack.c.b16 %v3531, %v3527
      %v4500 = vpack.c.b16 %v3536, %v3532
      %v4501 = vpack.c.b16 %v3537, %v3533
      %v4502 = vpack.c.b16 %v3538, %v3534
      %v4503 = vpack.c.b16 %v3539, %v3535
      %v4504 = vpack.c.b16 %v3544, %v3540
      %v4505 = vpack.c.b16 %v3545, %v3541
      %v4506 = vpack.c.b16 %v3546, %v3542
      %v4507 = vpack.c.b16 %v3547, %v3543
      %v4508 = vpack.c.b16 %v3552, %v3548
      %v4509 = vpack.c.b16 %v3553, %v3549
      %v4510 = vpack.c.b16 %v3554, %v3550
      %v4511 = vpack.c.b16 %v3555, %v3551
      %v4512 = vpack.c.b16 %v3560, %v3556
      %v4513 = vpack.c.b16 %v3561, %v3557
      %v4514 = vpack.c.b16 %v3562, %v3558
      %v4515 = vpack.c.b16 %v3563, %v3559
      %v4516 = vpack.c.b16 %v3568, %v3564
      %v4517 = vpack.c.b16 %v3569, %v3565
      %v4518 = vpack.c.b16 %v3570, %v3566
      %v4519 = vpack.c.b16 %v3571, %v3567
      %v4520 = vpack.c.b16 %v3576, %v3572
      %v4521 = vpack.c.b16 %v3577, %v3573
      %v4522 = vpack.c.b16 %v3578, %v3574
      %v4523 = vpack.c.b16 %v3579, %v3575
      %v4524 = vpack.c.b16 %v3584, %v3580
      %v4525 = vpack.c.b16 %v3585, %v3581
      %v4526 = vpack.c.b16 %v3586, %v3582
      %v4527 = vpack.c.b16 %v3587, %v3583
      %v4528 = vpack.c.b16 %v3592, %v3588
      %v4529 = vpack.c.b16 %v3593, %v3589
      %v4530 = vpack.c.b16 %v3594, %v3590
      %v4531 = vpack.c.b16 %v3595, %v3591
      %v4532 = vpack.c.b16 %v3600, %v3596
      %v4533 = vpack.c.b16 %v3601, %v3597
      %v4534 = vpack.c.b16 %v3602, %v3598
      %v4535 = vpack.c.b16 %v3603, %v3599
      %v4536 = vpack.c.b16 %v3608, %v3604
      %v4537 = vpack.c.b16 %v3609, %v3605
      %v4538 = vpack.c.b16 %v3610, %v3606
      %v4539 = vpack.c.b16 %v3611, %v3607
      %v4540 = vpack.c.b16 %v3616, %v3612
      %v4541 = vpack.c.b16 %v3617, %v3613
      %v4542 = vpack.c.b16 %v3618, %v3614
      %v4543 = vpack.c.b16 %v3619, %v3615
      %v4544 = vpack.c.b16 %v3624, %v3620
      %v4545 = vpack.c.b16 %v3625, %v3621
      %v4546 = vpack.c.b16 %v3626, %v3622
      %v4547 = vpack.c.b16 %v3627, %v3623
      %v4548 = vpack.c.b16 %v3632, %v3628
      %v4549 = vpack.c.b16 %v3633, %v3629
      %v4550 = vpack.c.b16 %v3634, %v3630
      %v4551 = vpack.c.b16 %v3635, %v3631
      %v4552 = vpack.c.b16 %v3640, %v3636
      %v4553 = vpack.c.b16 %v3641, %v3637
      %v4554 = vpack.c.b16 %v3642, %v3638
      %v4555 = vpack.c.b16 %v3643, %v3639
      %v4556 = vpack.c.b16 %v3648, %v3644
      %v4557 = vpack.c.b16 %v3649, %v3645
      %v4558 = vpack.c.b16 %v3650, %v3646
      %v4559 = vpack.c.b16 %v3651, %v3647
      %v4560 = vpack.c.b16 %v3656, %v3652
      %v4561 = vpack.c.b16 %v3657, %v3653
      %v4562 = vpack.c.b16 %v3658, %v3654
      %v4563 = vpack.c.b16 %v3659, %v3655
      %v4564 = vpack.c.b16 %v3664, %v3660
      %v4565 = vpack.c.b16 %v3665, %v3661
      %v4566 = vpack.c.b16 %v3666, %v3662
      %v4567 = vpack.c.b16 %v3667, %v3663
      %v4568 = vpack.c.b16 %v3672, %v3668
      %v4569 = vpack.c.b16 %v3673, %v3669
      %v4570 = vpack.c.b16 %v3674, %v3670
      %v4571 = vpack.c.b16 %v3675, %v3671
      %v4572 = vpack.c.b16 %v3680, %v3676
      %v4573 = vpack.c.b16 %v3681, %v3677
      %v4574 = vpack.c.b16 %v3682, %v3678
      %v4575 = vpack.c.b16 %v3683, %v3679
      %v4576 = vpack.c.b16 %v3688, %v3684
      %v4577 = vpack.c.b16 %v3689, %v3685
      %v4578 = vpack.c.b16 %v3690, %v3686
      %v4579 = vpack.c.b16 %v3691, %v3687
      %v4580 = vpack.c.b16 %v3696, %v3692
      %v4581 = vpack.c.b16 %v3697, %v3693
      %v4582 = vpack.c.b16 %v3698, %v3694
      %v4583 = vpack.c.b16 %v3699, %v3695
      %v4584 = vpack.c.b16 %v3704, %v3700
      %v4585 = vpack.c.b16 %v3705, %v3701
      %v4586 = vpack.c.b16 %v3706, %v3702
      %v4587 = vpack.c.b16 %v3707, %v3703
      %v4588 = vpack.c.b16 %v3712, %v3708
      %v4589 = vpack.c.b16 %v3713, %v3709
      %v4590 = vpack.c.b16 %v3714, %v3710
      %v4591 = vpack.c.b16 %v3715, %v3711
      %v4592 = vpack.c.b16 %v3720, %v3716
      %v4593 = vpack.c.b16 %v3721, %v3717
      %v4594 = vpack.c.b16 %v3722, %v3718
      %v4595 = vpack.c.b16 %v3723, %v3719
      %v4596 = vpack.c.b16 %v3728, %v3724
      %v4597 = vpack.c.b16 %v3729, %v3725
      %v4598 = vpack.c.b16 %v3730, %v3726
      %v4599 = vpack.c.b16 %v3731, %v3727
      %v4600 = vpack.c.b16 %v3736, %v3732
      %v4601 = vpack.c.b16 %v3737, %v3733
      %v4602 = vpack.c.b16 %v3738, %v3734
      %v4603 = vpack.c.b16 %v3739, %v3735
      %v4604 = vpack.c.b16 %v3744, %v3740
      %v4605 = vpack.c.b16 %v3745, %v3741
      %v4606 = vpack.c.b16 %v3746, %v3742
      %v4607 = vpack.c.b16 %v3747, %v3743
      %v4608 = vpack.c.b16 %v3752, %v3748
      %v4609 = vpack.c.b16 %v3753, %v3749
      %v4610 = vpack.c.b16 %v3754, %v3750
      %v4611 = vpack.c.b16 %v3755, %v3751
      %v4612 = vpack.c.b16 %v3760, %v3756
      %v4613 = vpack.c.b16 %v3761, %v3757
      %v4614 = vpack.c.b16 %v3762, %v3758
      %v4615 = vpack.c.b16 %v3763, %v3759
      %v4616 = vpack.c.b16 %v3768, %v3764
      %v4617 = vpack.c.b16 %v3769, %v3765
      %v4618 = vpack.c.b16 %v3770, %v3766
      %v4619 = vpack.c.b16 %v3771, %v3767
      %v4620 = vpack.c.b16 %v3776, %v3772
      %v4621 = vpack.c.b16 %v3777, %v3773
      %v4622 = vpack.c.b16 %v3778, %v3774
      %v4623 = vpack.c.b16 %v3779, %v3775
      %v4624 = vpack.c.b16 %v3784, %v3780
      %v4625 = vpack.c.b16 %v3785, %v3781
      %v4626 = vpack.c.b16 %v3786, %v3782
      %v4627 = vpack.c.b16 %v3787, %v3783
      %v4628 = vpack.c.b16 %v3792, %v3788
      %v4629 = vpack.c.b16 %v3793, %v3789
      %v4630 = vpack.c.b16 %v3794, %v3790
      %v4631 = vpack.c.b16 %v3795, %v3791
      %v4632 = vpack.c.b16 %v3800, %v3796
      %v4633 = vpack.c.b16 %v3801, %v3797
      %v4634 = vpack.c.b16 %v3802, %v3798
      %v4635 = vpack.c.b16 %v3803, %v3799
      %5468 = vmatpush.bf16.msra.mxu0 %v3832
      %5469 = vmatpush.bf16.msra.mxu0 %v3828
      %5470 = vmatpush.bf16.msra.mxu0 %v3824
      %5471 = vmatpush.bf16.msra.mxu0 %v3820
      %5472 = vmatpush.bf16.msra.mxu0 %v3816
      %5473 = vmatpush.bf16.msra.mxu0 %v3812
      %5474 = vmatpush.bf16.msra.mxu0 %v3808
      %5475 = vmatpush.bf16.msra.mxu0 %v3804
      %5476 = vmatmul.bf16.gmra.mxu0 %v253
      %v5477 = vpop.f32.mrf.mxu0
      %v5478 = vadd.f32 0.0, %v5477
      %v5479 = vpop.f32.mrf.mxu0
      %v5480 = vadd.f32 0.0, %v5479
      %5481 = vmatmul.bf16.gmra.mxu0 %v255
      %v5482 = vpop.f32.mrf.mxu0
      %v5483 = vadd.f32 0.0, %v5482
      %v5484 = vpop.f32.mrf.mxu0
      %5485 = vdwg.mxu0
      %5486 = vmatpush.bf16.msra.mxu0 %v3864
      %5487 = vmatpush.bf16.msra.mxu0 %v3860
      %5488 = vmatpush.bf16.msra.mxu0 %v3856
      %5489 = vmatpush.bf16.msra.mxu0 %v3852
      %5490 = vmatpush.bf16.msra.mxu0 %v3848
      %5491 = vmatpush.bf16.msra.mxu0 %v3844
      %5492 = vmatpush.bf16.msra.mxu0 %v3840
      %5493 = vmatpush.bf16.msra.mxu0 %v3836
      %5494 = vmatmul.bf16.gmra.mxu0 %v254
      %v5495 = vpop.f32.mrf.mxu0
      %v5496 = vadd.f32 %v5478, %v5495
      %v5497 = vpop.f32.mrf.mxu0
      %v5498 = vadd.f32 %v5480, %v5497
      %5499 = vmatmul.bf16.gmra.mxu0 %v256
      %v5500 = vpop.f32.mrf.mxu0
      %v5501 = vadd.f32 %v5483, %v5500
      %v5502 = vpop.f32.mrf.mxu0
      %5503 = vdwg.mxu0
      %5504 = vmatpush.bf16.msra.mxu0 %v3896
      %5505 = vmatpush.bf16.msra.mxu0 %v3892
      %5506 = vmatpush.bf16.msra.mxu0 %v3888
      %5507 = vmatpush.bf16.msra.mxu0 %v3884
      %5508 = vmatpush.bf16.msra.mxu0 %v3880
      %5509 = vmatpush.bf16.msra.mxu0 %v3876
      %5510 = vmatpush.bf16.msra.mxu0 %v3872
      %5511 = vmatpush.bf16.msra.mxu0 %v3868
      %5512 = vmatmul.bf16.gmra.mxu0 %v278
      %v5513 = vpop.f32.mrf.mxu0
      %v5514 = vadd.f32 %v5496, %v5513
      %v5515 = vpop.f32.mrf.mxu0
      %v5516 = vadd.f32 %v5498, %v5515
      %5517 = vmatmul.bf16.gmra.mxu0 %v293
      %v5518 = vpop.f32.mrf.mxu0
      %v5519 = vadd.f32 %v5501, %v5518
      %v5520 = vpop.f32.mrf.mxu0
      %5521 = vdwg.mxu0
      %5522 = vmatpush.bf16.msra.mxu0 %v3928
      %5523 = vmatpush.bf16.msra.mxu0 %v3924
      %5524 = vmatpush.bf16.msra.mxu0 %v3920
      %5525 = vmatpush.bf16.msra.mxu0 %v3916
      %5526 = vmatpush.bf16.msra.mxu0 %v3912
      %5527 = vmatpush.bf16.msra.mxu0 %v3908
      %5528 = vmatpush.bf16.msra.mxu0 %v3904
      %5529 = vmatpush.bf16.msra.mxu0 %v3900
      %5530 = vmatmul.bf16.gmra.mxu0 %v290
      %v5531 = vpop.f32.mrf.mxu0
      %v5532 = vadd.f32 %v5514, %v5531
      %v5533 = vpop.f32.mrf.mxu0
      %v5534 = vadd.f32 %v5516, %v5533
      %5535 = vmatmul.bf16.gmra.mxu0 %v296
      %v5536 = vpop.f32.mrf.mxu0
      %v5537 = vadd.f32 %v5519, %v5536
      %v5538 = vpop.f32.mrf.mxu0
      %5539 = vdwg.mxu0
      %5540 = vmatpush.bf16.msra.mxu0 %v3960
      %5541 = vmatpush.bf16.msra.mxu0 %v3956
      %5542 = vmatpush.bf16.msra.mxu0 %v3952
      %5543 = vmatpush.bf16.msra.mxu0 %v3948
      %5544 = vmatpush.bf16.msra.mxu0 %v3944
      %5545 = vmatpush.bf16.msra.mxu0 %v3940
      %5546 = vmatpush.bf16.msra.mxu0 %v3936
      %5547 = vmatpush.bf16.msra.mxu0 %v3932
      %5548 = vmatmul.bf16.gmra.mxu0 %v304
      %v5549 = vpop.f32.mrf.mxu0
      %v5550 = vadd.f32 %v5532, %v5549
      %v5551 = vpop.f32.mrf.mxu0
      %v5552 = vadd.f32 %v5534, %v5551
      %5553 = vmatmul.bf16.gmra.mxu0 %v303
      %v5554 = vpop.f32.mrf.mxu0
      %v5555 = vadd.f32 %v5537, %v5554
      %v5556 = vpop.f32.mrf.mxu0
      %5557 = vdwg.mxu0
      %5558 = vmatpush.bf16.msra.mxu0 %v3992
      %5559 = vmatpush.bf16.msra.mxu0 %v3988
      %5560 = vmatpush.bf16.msra.mxu0 %v3984
      %5561 = vmatpush.bf16.msra.mxu0 %v3980
      %5562 = vmatpush.bf16.msra.mxu0 %v3976
      %5563 = vmatpush.bf16.msra.mxu0 %v3972
      %5564 = vmatpush.bf16.msra.mxu0 %v3968
      %5565 = vmatpush.bf16.msra.mxu0 %v3964
      %5566 = vmatmul.bf16.gmra.mxu0 %v307
      %v5567 = vpop.f32.mrf.mxu0
      %v5568 = vadd.f32 %v5550, %v5567
      %v5569 = vpop.f32.mrf.mxu0
      %v5570 = vadd.f32 %v5552, %v5569
      %5571 = vmatmul.bf16.gmra.mxu0 %v306
      %v5572 = vpop.f32.mrf.mxu0
      %v5573 = vadd.f32 %v5555, %v5572
      %v5574 = vpop.f32.mrf.mxu0
      %5575 = vdwg.mxu0
      %5576 = vmatpush.bf16.msra.mxu0 %v4024
      %5577 = vmatpush.bf16.msra.mxu0 %v4020
      %5578 = vmatpush.bf16.msra.mxu0 %v4016
      %5579 = vmatpush.bf16.msra.mxu0 %v4012
      %5580 = vmatpush.bf16.msra.mxu0 %v4008
      %5581 = vmatpush.bf16.msra.mxu0 %v4004
      %5582 = vmatpush.bf16.msra.mxu0 %v4000
      %5583 = vmatpush.bf16.msra.mxu0 %v3996
      %5584 = vmatmul.bf16.gmra.mxu0 %v319
      %v5585 = vpop.f32.mrf.mxu0
      %v5586 = vadd.f32 %v5568, %v5585
      %v5587 = vpop.f32.mrf.mxu0
      %v5588 = vadd.f32 %v5570, %v5587
      %5589 = vmatmul.bf16.gmra.mxu0 %v318
      %v5590 = vpop.f32.mrf.mxu0
      %v5591 = vadd.f32 %v5573, %v5590
      %v5592 = vpop.f32.mrf.mxu0
      %5593 = vdwg.mxu0
      %5594 = vmatpush.bf16.msra.mxu0 %v4056
      %5595 = vmatpush.bf16.msra.mxu0 %v4052
      %5596 = vmatpush.bf16.msra.mxu0 %v4048
      %5597 = vmatpush.bf16.msra.mxu0 %v4044
      %5598 = vmatpush.bf16.msra.mxu0 %v4040
      %5599 = vmatpush.bf16.msra.mxu0 %v4036
      %5600 = vmatpush.bf16.msra.mxu0 %v4032
      %5601 = vmatpush.bf16.msra.mxu0 %v4028
      %5602 = vmatmul.bf16.gmra.mxu0 %v326
      %v5603 = vpop.f32.mrf.mxu0
      %v5604 = vadd.f32 %v5586, %v5603
      %v5605 = vpop.f32.mrf.mxu0
      %v5606 = vadd.f32 %v5588, %v5605
      %5607 = vmatmul.bf16.gmra.mxu0 %v325
      %v5608 = vpop.f32.mrf.mxu0
      %v5609 = vadd.f32 %v5591, %v5608
      %v5610 = vpop.f32.mrf.mxu0
      %5611 = vdwg.mxu0
      %5612 = vmatpush.bf16.msra.mxu0 %v4088
      %5613 = vmatpush.bf16.msra.mxu0 %v4084
      %5614 = vmatpush.bf16.msra.mxu0 %v4080
      %5615 = vmatpush.bf16.msra.mxu0 %v4076
      %5616 = vmatpush.bf16.msra.mxu0 %v4072
      %5617 = vmatpush.bf16.msra.mxu0 %v4068
      %5618 = vmatpush.bf16.msra.mxu0 %v4064
      %5619 = vmatpush.bf16.msra.mxu0 %v4060
      %5620 = vmatmul.bf16.gmra.mxu0 %v334
      %v5621 = vpop.f32.mrf.mxu0
      %v5622 = vadd.f32 %v5604, %v5621
      %v5623 = vpop.f32.mrf.mxu0
      %v5624 = vadd.f32 %v5606, %v5623
      %5625 = vmatmul.bf16.gmra.mxu0 %v333
      %v5626 = vpop.f32.mrf.mxu0
      %v5627 = vadd.f32 %v5609, %v5626
      %v5628 = vpop.f32.mrf.mxu0
      %5629 = vdwg.mxu0
      %5630 = vmatpush.bf16.msra.mxu0 %v4120
      %5631 = vmatpush.bf16.msra.mxu0 %v4116
      %5632 = vmatpush.bf16.msra.mxu0 %v4112
      %5633 = vmatpush.bf16.msra.mxu0 %v4108
      %5634 = vmatpush.bf16.msra.mxu0 %v4104
      %5635 = vmatpush.bf16.msra.mxu0 %v4100
      %5636 = vmatpush.bf16.msra.mxu0 %v4096
      %5637 = vmatpush.bf16.msra.mxu0 %v4092
      %5638 = vmatmul.bf16.gmra.mxu0 %v337
      %v5639 = vpop.f32.mrf.mxu0
      %v5640 = vadd.f32 %v5622, %v5639
      %v5641 = vpop.f32.mrf.mxu0
      %v5642 = vadd.f32 %v5624, %v5641
      %5643 = vmatmul.bf16.gmra.mxu0 %v336
      %v5644 = vpop.f32.mrf.mxu0
      %v5645 = vadd.f32 %v5627, %v5644
      %v5646 = vpop.f32.mrf.mxu0
      %5647 = vdwg.mxu0
      %5648 = vmatpush.bf16.msra.mxu0 %v4152
      %5649 = vmatpush.bf16.msra.mxu0 %v4148
      %5650 = vmatpush.bf16.msra.mxu0 %v4144
      %5651 = vmatpush.bf16.msra.mxu0 %v4140
      %5652 = vmatpush.bf16.msra.mxu0 %v4136
      %5653 = vmatpush.bf16.msra.mxu0 %v4132
      %5654 = vmatpush.bf16.msra.mxu0 %v4128
      %5655 = vmatpush.bf16.msra.mxu0 %v4124
      %5656 = vmatmul.bf16.gmra.mxu0 %v349
      %v5657 = vpop.f32.mrf.mxu0
      %v5658 = vadd.f32 %v5640, %v5657
      %v5659 = vpop.f32.mrf.mxu0
      %v5660 = vadd.f32 %v5642, %v5659
      %5661 = vmatmul.bf16.gmra.mxu0 %v348
      %v5662 = vpop.f32.mrf.mxu0
      %v5663 = vadd.f32 %v5645, %v5662
      %v5664 = vpop.f32.mrf.mxu0
      %5665 = vdwg.mxu0
      %5666 = vmatpush.bf16.msra.mxu0 %v4184
      %5667 = vmatpush.bf16.msra.mxu0 %v4180
      %5668 = vmatpush.bf16.msra.mxu0 %v4176
      %5669 = vmatpush.bf16.msra.mxu0 %v4172
      %5670 = vmatpush.bf16.msra.mxu0 %v4168
      %5671 = vmatpush.bf16.msra.mxu0 %v4164
      %5672 = vmatpush.bf16.msra.mxu0 %v4160
      %5673 = vmatpush.bf16.msra.mxu0 %v4156
      %5674 = vmatmul.bf16.gmra.mxu0 %v356
      %v5675 = vpop.f32.mrf.mxu0
      %v5676 = vadd.f32 %v5658, %v5675
      %v5677 = vpop.f32.mrf.mxu0
      %v5678 = vadd.f32 %v5660, %v5677
      %5679 = vmatmul.bf16.gmra.mxu0 %v355
      %v5680 = vpop.f32.mrf.mxu0
      %v5681 = vadd.f32 %v5663, %v5680
      %v5682 = vpop.f32.mrf.mxu0
      %5683 = vdwg.mxu0
      %5684 = vmatpush.bf16.msra.mxu0 %v4216
      %5685 = vmatpush.bf16.msra.mxu0 %v4212
      %5686 = vmatpush.bf16.msra.mxu0 %v4208
      %5687 = vmatpush.bf16.msra.mxu0 %v4204
      %5688 = vmatpush.bf16.msra.mxu0 %v4200
      %5689 = vmatpush.bf16.msra.mxu0 %v4196
      %5690 = vmatpush.bf16.msra.mxu0 %v4192
      %5691 = vmatpush.bf16.msra.mxu0 %v4188
      %5692 = vmatmul.bf16.gmra.mxu0 %v364
      %v5693 = vpop.f32.mrf.mxu0
      %v5694 = vadd.f32 %v5676, %v5693
      %v5695 = vpop.f32.mrf.mxu0
      %v5696 = vadd.f32 %v5678, %v5695
      %5697 = vmatmul.bf16.gmra.mxu0 %v363
      %v5698 = vpop.f32.mrf.mxu0
      %v5699 = vadd.f32 %v5681, %v5698
      %v5700 = vpop.f32.mrf.mxu0
      %5701 = vdwg.mxu0
      %5702 = vmatpush.bf16.msra.mxu0 %v4248
      %5703 = vmatpush.bf16.msra.mxu0 %v4244
      %5704 = vmatpush.bf16.msra.mxu0 %v4240
      %5705 = vmatpush.bf16.msra.mxu0 %v4236
      %5706 = vmatpush.bf16.msra.mxu0 %v4232
      %5707 = vmatpush.bf16.msra.mxu0 %v4228
      %5708 = vmatpush.bf16.msra.mxu0 %v4224
      %5709 = vmatpush.bf16.msra.mxu0 %v4220
      %5710 = vmatmul.bf16.gmra.mxu0 %v367
      %v5711 = vpop.f32.mrf.mxu0
      %v5712 = vadd.f32 %v5694, %v5711
      %v5713 = vpop.f32.mrf.mxu0
      %v5714 = vadd.f32 %v5696, %v5713
      %5715 = vmatmul.bf16.gmra.mxu0 %v366
      %v5716 = vpop.f32.mrf.mxu0
      %v5717 = vadd.f32 %v5699, %v5716
      %v5718 = vpop.f32.mrf.mxu0
      %5719 = vdwg.mxu0
      %5720 = vmatpush.bf16.msra.mxu0 %v4280
      %5721 = vmatpush.bf16.msra.mxu0 %v4276
      %5722 = vmatpush.bf16.msra.mxu0 %v4272
      %5723 = vmatpush.bf16.msra.mxu0 %v4268
      %5724 = vmatpush.bf16.msra.mxu0 %v4264
      %5725 = vmatpush.bf16.msra.mxu0 %v4260
      %5726 = vmatpush.bf16.msra.mxu0 %v4256
      %5727 = vmatpush.bf16.msra.mxu0 %v4252
      %5728 = vmatmul.bf16.gmra.mxu0 %v379
      %v5729 = vpop.f32.mrf.mxu0
      %v5730 = vadd.f32 %v5712, %v5729
      %v5731 = vpop.f32.mrf.mxu0
      %v5732 = vadd.f32 %v5714, %v5731
      %5733 = vmatmul.bf16.gmra.mxu0 %v378
      %v5734 = vpop.f32.mrf.mxu0
      %v5735 = vadd.f32 %v5717, %v5734
      %v5736 = vpop.f32.mrf.mxu0
      %5737 = vdwg.mxu0
      %5738 = vmatpush.bf16.msra.mxu0 %v4312
      %5739 = vmatpush.bf16.msra.mxu0 %v4308
      %5740 = vmatpush.bf16.msra.mxu0 %v4304
      %5741 = vmatpush.bf16.msra.mxu0 %v4300
      %5742 = vmatpush.bf16.msra.mxu0 %v4296
      %5743 = vmatpush.bf16.msra.mxu0 %v4292
      %5744 = vmatpush.bf16.msra.mxu0 %v4288
      %5745 = vmatpush.bf16.msra.mxu0 %v4284
      %5746 = vmatmul.bf16.gmra.mxu0 %v386
      %v5747 = vpop.f32.mrf.mxu0
      %v5748 = vadd.f32 %v5730, %v5747
      %v5749 = vpop.f32.mrf.mxu0
      %v5750 = vadd.f32 %v5732, %v5749
      %5751 = vmatmul.bf16.gmra.mxu0 %v385
      %v5752 = vpop.f32.mrf.mxu0
      %v5753 = vadd.f32 %v5735, %v5752
      %v5754 = vpop.f32.mrf.mxu0
      %5755 = vdwg.mxu0
      %5756 = vmatpush.bf16.msra.mxu0 %v4344
      %5757 = vmatpush.bf16.msra.mxu0 %v4340
      %5758 = vmatpush.bf16.msra.mxu0 %v4336
      %5759 = vmatpush.bf16.msra.mxu0 %v4332
      %5760 = vmatpush.bf16.msra.mxu0 %v4328
      %5761 = vmatpush.bf16.msra.mxu0 %v4324
      %5762 = vmatpush.bf16.msra.mxu0 %v4320
      %5763 = vmatpush.bf16.msra.mxu0 %v4316
      %5764 = vmatmul.bf16.gmra.mxu0 %v391
      %v5765 = vpop.f32.mrf.mxu0
      %v5766 = vadd.f32 %v5748, %v5765
      %v5767 = vpop.f32.mrf.mxu0
      %v5768 = vadd.f32 %v5750, %v5767
      %5769 = vmatmul.bf16.gmra.mxu0 %v393
      %v5770 = vpop.f32.mrf.mxu0
      %v5771 = vadd.f32 %v5753, %v5770
      %v5772 = vpop.f32.mrf.mxu0
      %5773 = vdwg.mxu0
      %5774 = vmatpush.bf16.msra.mxu0 %v4376
      %5775 = vmatpush.bf16.msra.mxu0 %v4372
      %5776 = vmatpush.bf16.msra.mxu0 %v4368
      %5777 = vmatpush.bf16.msra.mxu0 %v4364
      %5778 = vmatpush.bf16.msra.mxu0 %v4360
      %5779 = vmatpush.bf16.msra.mxu0 %v4356
      %5780 = vmatpush.bf16.msra.mxu0 %v4352
      %5781 = vmatpush.bf16.msra.mxu0 %v4348
      %5782 = vmatmul.bf16.gmra.mxu0 %v392
      %v5783 = vpop.f32.mrf.mxu0
      %v5784 = vadd.f32 %v5766, %v5783
      %v5785 = vpop.f32.mrf.mxu0
      %v5786 = vadd.f32 %v5768, %v5785
      %5787 = vmatmul.bf16.gmra.mxu0 %v394
      %v5788 = vpop.f32.mrf.mxu0
      %v5789 = vadd.f32 %v5771, %v5788
      %v5790 = vpop.f32.mrf.mxu0
      %5791 = vdwg.mxu0
      %5792 = vmatpush.bf16.msra.mxu0 %v4408
      %5793 = vmatpush.bf16.msra.mxu0 %v4404
      %5794 = vmatpush.bf16.msra.mxu0 %v4400
      %5795 = vmatpush.bf16.msra.mxu0 %v4396
      %5796 = vmatpush.bf16.msra.mxu0 %v4392
      %5797 = vmatpush.bf16.msra.mxu0 %v4388
      %5798 = vmatpush.bf16.msra.mxu0 %v4384
      %5799 = vmatpush.bf16.msra.mxu0 %v4380
      %5800 = vmatmul.bf16.gmra.mxu0 %v415
      %v5801 = vpop.f32.mrf.mxu0
      %v5802 = vadd.f32 %v5784, %v5801
      %v5803 = vpop.f32.mrf.mxu0
      %v5804 = vadd.f32 %v5786, %v5803
      %5805 = vmatmul.bf16.gmra.mxu0 %v430
      %v5806 = vpop.f32.mrf.mxu0
      %v5807 = vadd.f32 %v5789, %v5806
      %v5808 = vpop.f32.mrf.mxu0
      %5809 = vdwg.mxu0
      %5810 = vmatpush.bf16.msra.mxu0 %v4440
      %5811 = vmatpush.bf16.msra.mxu0 %v4436
      %5812 = vmatpush.bf16.msra.mxu0 %v4432
      %5813 = vmatpush.bf16.msra.mxu0 %v4428
      %5814 = vmatpush.bf16.msra.mxu0 %v4424
      %5815 = vmatpush.bf16.msra.mxu0 %v4420
      %5816 = vmatpush.bf16.msra.mxu0 %v4416
      %5817 = vmatpush.bf16.msra.mxu0 %v4412
      %5818 = vmatmul.bf16.gmra.mxu0 %v427
      %v5819 = vpop.f32.mrf.mxu0
      %v5820 = vadd.f32 %v5802, %v5819
      %v5821 = vpop.f32.mrf.mxu0
      %v5822 = vadd.f32 %v5804, %v5821
      %5823 = vmatmul.bf16.gmra.mxu0 %v433
      %v5824 = vpop.f32.mrf.mxu0
      %v5825 = vadd.f32 %v5807, %v5824
      %v5826 = vpop.f32.mrf.mxu0
      %5827 = vdwg.mxu0
      %5828 = vmatpush.bf16.msra.mxu0 %v4472
      %5829 = vmatpush.bf16.msra.mxu0 %v4468
      %5830 = vmatpush.bf16.msra.mxu0 %v4464
      %5831 = vmatpush.bf16.msra.mxu0 %v4460
      %5832 = vmatpush.bf16.msra.mxu0 %v4456
      %5833 = vmatpush.bf16.msra.mxu0 %v4452
      %5834 = vmatpush.bf16.msra.mxu0 %v4448
      %5835 = vmatpush.bf16.msra.mxu0 %v4444
      %5836 = vmatmul.bf16.gmra.mxu0 %v440
      %v5837 = vpop.f32.mrf.mxu0
      %v5838 = vadd.f32 %v5820, %v5837
      %v5839 = vpop.f32.mrf.mxu0
      %v5840 = vadd.f32 %v5822, %v5839
      %5841 = vmatmul.bf16.gmra.mxu0 %v439
      %v5842 = vpop.f32.mrf.mxu0
      %v5843 = vadd.f32 %v5825, %v5842
      %v5844 = vpop.f32.mrf.mxu0
      %5845 = vdwg.mxu0
      %5846 = vmatpush.bf16.msra.mxu0 %v4504
      %5847 = vmatpush.bf16.msra.mxu0 %v4500
      %5848 = vmatpush.bf16.msra.mxu0 %v4496
      %5849 = vmatpush.bf16.msra.mxu0 %v4492
      %5850 = vmatpush.bf16.msra.mxu0 %v4488
      %5851 = vmatpush.bf16.msra.mxu0 %v4484
      %5852 = vmatpush.bf16.msra.mxu0 %v4480
      %5853 = vmatpush.bf16.msra.mxu0 %v4476
      %5854 = vmatmul.bf16.gmra.mxu0 %v443
      %v5855 = vpop.f32.mrf.mxu0
      %v5856 = vadd.f32 %v5838, %v5855
      %v5857 = vpop.f32.mrf.mxu0
      %v5858 = vadd.f32 %v5840, %v5857
      %5859 = vmatmul.bf16.gmra.mxu0 %v442
      %v5860 = vpop.f32.mrf.mxu0
      %v5861 = vadd.f32 %v5843, %v5860
      %v5862 = vpop.f32.mrf.mxu0
      %5863 = vdwg.mxu0
      %5864 = vmatpush.bf16.msra.mxu0 %v4536
      %5865 = vmatpush.bf16.msra.mxu0 %v4532
      %5866 = vmatpush.bf16.msra.mxu0 %v4528
      %5867 = vmatpush.bf16.msra.mxu0 %v4524
      %5868 = vmatpush.bf16.msra.mxu0 %v4520
      %5869 = vmatpush.bf16.msra.mxu0 %v4516
      %5870 = vmatpush.bf16.msra.mxu0 %v4512
      %5871 = vmatpush.bf16.msra.mxu0 %v4508
      %5872 = vmatmul.bf16.gmra.mxu0 %v454
      %v5873 = vpop.f32.mrf.mxu0
      %v5874 = vadd.f32 %v5856, %v5873
      %v5875 = vpop.f32.mrf.mxu0
      %v5876 = vadd.f32 %v5858, %v5875
      %5877 = vmatmul.bf16.gmra.mxu0 %v453
      %v5878 = vpop.f32.mrf.mxu0
      %v5879 = vadd.f32 %v5861, %v5878
      %v5880 = vpop.f32.mrf.mxu0
      %5881 = vdwg.mxu0
      %5882 = vmatpush.bf16.msra.mxu0 %v4568
      %5883 = vmatpush.bf16.msra.mxu0 %v4564
      %5884 = vmatpush.bf16.msra.mxu0 %v4560
      %5885 = vmatpush.bf16.msra.mxu0 %v4556
      %5886 = vmatpush.bf16.msra.mxu0 %v4552
      %5887 = vmatpush.bf16.msra.mxu0 %v4548
      %5888 = vmatpush.bf16.msra.mxu0 %v4544
      %5889 = vmatpush.bf16.msra.mxu0 %v4540
      %5890 = vmatmul.bf16.gmra.mxu0 %v461
      %v5891 = vpop.f32.mrf.mxu0
      %v5892 = vadd.f32 %v5874, %v5891
      %v5893 = vpop.f32.mrf.mxu0
      %v5894 = vadd.f32 %v5876, %v5893
      %5895 = vmatmul.bf16.gmra.mxu0 %v460
      %v5896 = vpop.f32.mrf.mxu0
      %v5897 = vadd.f32 %v5879, %v5896
      %v5898 = vpop.f32.mrf.mxu0
      %5899 = vdwg.mxu0
      %5900 = vmatpush.bf16.msra.mxu0 %v4600
      %5901 = vmatpush.bf16.msra.mxu0 %v4596
      %5902 = vmatpush.bf16.msra.mxu0 %v4592
      %5903 = vmatpush.bf16.msra.mxu0 %v4588
      %5904 = vmatpush.bf16.msra.mxu0 %v4584
      %5905 = vmatpush.bf16.msra.mxu0 %v4580
      %5906 = vmatpush.bf16.msra.mxu0 %v4576
      %5907 = vmatpush.bf16.msra.mxu0 %v4572
      %5908 = vmatmul.bf16.gmra.mxu0 %v468
      %v5909 = vpop.f32.mrf.mxu0
      %v5910 = vadd.f32 %v5892, %v5909
      %v5911 = vpop.f32.mrf.mxu0
      %v5912 = vadd.f32 %v5894, %v5911
      %5913 = vmatmul.bf16.gmra.mxu0 %v467
      %v5914 = vpop.f32.mrf.mxu0
      %v5915 = vadd.f32 %v5897, %v5914
      %v5916 = vpop.f32.mrf.mxu0
      %5917 = vdwg.mxu0
      %5918 = vmatpush.bf16.msra.mxu0 %v4632
      %5919 = vmatpush.bf16.msra.mxu0 %v4628
      %5920 = vmatpush.bf16.msra.mxu0 %v4624
      %5921 = vmatpush.bf16.msra.mxu0 %v4620
      %5922 = vmatpush.bf16.msra.mxu0 %v4616
      %5923 = vmatpush.bf16.msra.mxu0 %v4612
      %5924 = vmatpush.bf16.msra.mxu0 %v4608
      %5925 = vmatpush.bf16.msra.mxu0 %v4604
      %5926 = vmatmul.bf16.gmra.mxu0 %v471
      %v5927 = vpop.f32.mrf.mxu0
      %v5928 = vadd.f32 %v5910, %v5927
      %v5929 = vpop.f32.mrf.mxu0
      %v5930 = vadd.f32 %v5912, %v5929
      %5931 = vmatmul.bf16.gmra.mxu0 %v470
      %v5932 = vpop.f32.mrf.mxu0
      %v5933 = vadd.f32 %v5915, %v5932
      %v5934 = vpop.f32.mrf.mxu0
      %5935 = vdwg.mxu0
      %5936 = vmatpush.bf16.msra.mxu0 %v3833
      %5937 = vmatpush.bf16.msra.mxu0 %v3829
      %5938 = vmatpush.bf16.msra.mxu0 %v3825
      %5939 = vmatpush.bf16.msra.mxu0 %v3821
      %5940 = vmatpush.bf16.msra.mxu0 %v3817
      %5941 = vmatpush.bf16.msra.mxu0 %v3813
      %5942 = vmatpush.bf16.msra.mxu0 %v3809
      %5943 = vmatpush.bf16.msra.mxu0 %v3805
      %5944 = vmatmul.bf16.gmra.mxu0 %v253
      %v5945 = vpop.f32.mrf.mxu0
      %v5946 = vadd.f32 0.0, %v5945
      %v5947 = vpop.f32.mrf.mxu0
      %v5948 = vadd.f32 0.0, %v5947
      %5949 = vmatmul.bf16.gmra.mxu0 %v255
      %v5950 = vpop.f32.mrf.mxu0
      %v5951 = vadd.f32 0.0, %v5950
      %v5952 = vpop.f32.mrf.mxu0
      %5953 = vdwg.mxu0
      %5954 = vmatpush.bf16.msra.mxu0 %v3865
      %5955 = vmatpush.bf16.msra.mxu0 %v3861
      %5956 = vmatpush.bf16.msra.mxu0 %v3857
      %5957 = vmatpush.bf16.msra.mxu0 %v3853
      %5958 = vmatpush.bf16.msra.mxu0 %v3849
      %5959 = vmatpush.bf16.msra.mxu0 %v3845
      %5960 = vmatpush.bf16.msra.mxu0 %v3841
      %5961 = vmatpush.bf16.msra.mxu0 %v3837
      %5962 = vmatmul.bf16.gmra.mxu0 %v254
      %v5963 = vpop.f32.mrf.mxu0
      %v5964 = vadd.f32 %v5946, %v5963
      %v5965 = vpop.f32.mrf.mxu0
      %v5966 = vadd.f32 %v5948, %v5965
      %5967 = vmatmul.bf16.gmra.mxu0 %v256
      %v5968 = vpop.f32.mrf.mxu0
      %v5969 = vadd.f32 %v5951, %v5968
      %v5970 = vpop.f32.mrf.mxu0
      %5971 = vdwg.mxu0
      %5972 = vmatpush.bf16.msra.mxu0 %v3897
      %5973 = vmatpush.bf16.msra.mxu0 %v3893
      %5974 = vmatpush.bf16.msra.mxu0 %v3889
      %5975 = vmatpush.bf16.msra.mxu0 %v3885
      %5976 = vmatpush.bf16.msra.mxu0 %v3881
      %5977 = vmatpush.bf16.msra.mxu0 %v3877
      %5978 = vmatpush.bf16.msra.mxu0 %v3873
      %5979 = vmatpush.bf16.msra.mxu0 %v3869
      %5980 = vmatmul.bf16.gmra.mxu0 %v278
      %v5981 = vpop.f32.mrf.mxu0
      %v5982 = vadd.f32 %v5964, %v5981
      %v5983 = vpop.f32.mrf.mxu0
      %v5984 = vadd.f32 %v5966, %v5983
      %5985 = vmatmul.bf16.gmra.mxu0 %v293
      %v5986 = vpop.f32.mrf.mxu0
      %v5987 = vadd.f32 %v5969, %v5986
      %v5988 = vpop.f32.mrf.mxu0
      %5989 = vdwg.mxu0
      %5990 = vmatpush.bf16.msra.mxu0 %v3929
      %5991 = vmatpush.bf16.msra.mxu0 %v3925
      %5992 = vmatpush.bf16.msra.mxu0 %v3921
      %5993 = vmatpush.bf16.msra.mxu0 %v3917
      %5994 = vmatpush.bf16.msra.mxu0 %v3913
      %5995 = vmatpush.bf16.msra.mxu0 %v3909
      %5996 = vmatpush.bf16.msra.mxu0 %v3905
      %5997 = vmatpush.bf16.msra.mxu0 %v3901
      %5998 = vmatmul.bf16.gmra.mxu0 %v290
      %v5999 = vpop.f32.mrf.mxu0
      %v6000 = vadd.f32 %v5982, %v5999
      %v6001 = vpop.f32.mrf.mxu0
      %v6002 = vadd.f32 %v5984, %v6001
      %6003 = vmatmul.bf16.gmra.mxu0 %v296
      %v6004 = vpop.f32.mrf.mxu0
      %v6005 = vadd.f32 %v5987, %v6004
      %v6006 = vpop.f32.mrf.mxu0
      %6007 = vdwg.mxu0
      %6008 = vmatpush.bf16.msra.mxu0 %v3961
      %6009 = vmatpush.bf16.msra.mxu0 %v3957
      %6010 = vmatpush.bf16.msra.mxu0 %v3953
      %6011 = vmatpush.bf16.msra.mxu0 %v3949
      %6012 = vmatpush.bf16.msra.mxu0 %v3945
      %6013 = vmatpush.bf16.msra.mxu0 %v3941
      %6014 = vmatpush.bf16.msra.mxu0 %v3937
      %6015 = vmatpush.bf16.msra.mxu0 %v3933
      %6016 = vmatmul.bf16.gmra.mxu0 %v304
      %v6017 = vpop.f32.mrf.mxu0
      %v6018 = vadd.f32 %v6000, %v6017
      %v6019 = vpop.f32.mrf.mxu0
      %v6020 = vadd.f32 %v6002, %v6019
      %6021 = vmatmul.bf16.gmra.mxu0 %v303
      %v6022 = vpop.f32.mrf.mxu0
      %v6023 = vadd.f32 %v6005, %v6022
      %v6024 = vpop.f32.mrf.mxu0
      %6025 = vdwg.mxu0
      %6026 = vmatpush.bf16.msra.mxu0 %v3993
      %6027 = vmatpush.bf16.msra.mxu0 %v3989
      %6028 = vmatpush.bf16.msra.mxu0 %v3985
      %6029 = vmatpush.bf16.msra.mxu0 %v3981
      %6030 = vmatpush.bf16.msra.mxu0 %v3977
      %6031 = vmatpush.bf16.msra.mxu0 %v3973
      %6032 = vmatpush.bf16.msra.mxu0 %v3969
      %6033 = vmatpush.bf16.msra.mxu0 %v3965
      %6034 = vmatmul.bf16.gmra.mxu0 %v307
      %v6035 = vpop.f32.mrf.mxu0
      %v6036 = vadd.f32 %v6018, %v6035
      %v6037 = vpop.f32.mrf.mxu0
      %v6038 = vadd.f32 %v6020, %v6037
      %6039 = vmatmul.bf16.gmra.mxu0 %v306
      %v6040 = vpop.f32.mrf.mxu0
      %v6041 = vadd.f32 %v6023, %v6040
      %v6042 = vpop.f32.mrf.mxu0
      %6043 = vdwg.mxu0
      %6044 = vmatpush.bf16.msra.mxu0 %v4025
      %6045 = vmatpush.bf16.msra.mxu0 %v4021
      %6046 = vmatpush.bf16.msra.mxu0 %v4017
      %6047 = vmatpush.bf16.msra.mxu0 %v4013
      %6048 = vmatpush.bf16.msra.mxu0 %v4009
      %6049 = vmatpush.bf16.msra.mxu0 %v4005
      %6050 = vmatpush.bf16.msra.mxu0 %v4001
      %6051 = vmatpush.bf16.msra.mxu0 %v3997
      %6052 = vmatmul.bf16.gmra.mxu0 %v319
      %v6053 = vpop.f32.mrf.mxu0
      %v6054 = vadd.f32 %v6036, %v6053
      %v6055 = vpop.f32.mrf.mxu0
      %v6056 = vadd.f32 %v6038, %v6055
      %6057 = vmatmul.bf16.gmra.mxu0 %v318
      %v6058 = vpop.f32.mrf.mxu0
      %v6059 = vadd.f32 %v6041, %v6058
      %v6060 = vpop.f32.mrf.mxu0
      %6061 = vdwg.mxu0
      %6062 = vmatpush.bf16.msra.mxu0 %v4057
      %6063 = vmatpush.bf16.msra.mxu0 %v4053
      %6064 = vmatpush.bf16.msra.mxu0 %v4049
      %6065 = vmatpush.bf16.msra.mxu0 %v4045
      %6066 = vmatpush.bf16.msra.mxu0 %v4041
      %6067 = vmatpush.bf16.msra.mxu0 %v4037
      %6068 = vmatpush.bf16.msra.mxu0 %v4033
      %6069 = vmatpush.bf16.msra.mxu0 %v4029
      %6070 = vmatmul.bf16.gmra.mxu0 %v326
      %v6071 = vpop.f32.mrf.mxu0
      %v6072 = vadd.f32 %v6054, %v6071
      %v6073 = vpop.f32.mrf.mxu0
      %v6074 = vadd.f32 %v6056, %v6073
      %6075 = vmatmul.bf16.gmra.mxu0 %v325
      %v6076 = vpop.f32.mrf.mxu0
      %v6077 = vadd.f32 %v6059, %v6076
      %v6078 = vpop.f32.mrf.mxu0
      %6079 = vdwg.mxu0
      %6080 = vmatpush.bf16.msra.mxu0 %v4089
      %6081 = vmatpush.bf16.msra.mxu0 %v4085
      %6082 = vmatpush.bf16.msra.mxu0 %v4081
      %6083 = vmatpush.bf16.msra.mxu0 %v4077
      %6084 = vmatpush.bf16.msra.mxu0 %v4073
      %6085 = vmatpush.bf16.msra.mxu0 %v4069
      %6086 = vmatpush.bf16.msra.mxu0 %v4065
      %6087 = vmatpush.bf16.msra.mxu0 %v4061
      %6088 = vmatmul.bf16.gmra.mxu0 %v334
      %v6089 = vpop.f32.mrf.mxu0
      %v6090 = vadd.f32 %v6072, %v6089
      %v6091 = vpop.f32.mrf.mxu0
      %v6092 = vadd.f32 %v6074, %v6091
      %6093 = vmatmul.bf16.gmra.mxu0 %v333
      %v6094 = vpop.f32.mrf.mxu0
      %v6095 = vadd.f32 %v6077, %v6094
      %v6096 = vpop.f32.mrf.mxu0
      %6097 = vdwg.mxu0
      %6098 = vmatpush.bf16.msra.mxu0 %v4121
      %6099 = vmatpush.bf16.msra.mxu0 %v4117
      %6100 = vmatpush.bf16.msra.mxu0 %v4113
      %6101 = vmatpush.bf16.msra.mxu0 %v4109
      %6102 = vmatpush.bf16.msra.mxu0 %v4105
      %6103 = vmatpush.bf16.msra.mxu0 %v4101
      %6104 = vmatpush.bf16.msra.mxu0 %v4097
      %6105 = vmatpush.bf16.msra.mxu0 %v4093
      %6106 = vmatmul.bf16.gmra.mxu0 %v337
      %v6107 = vpop.f32.mrf.mxu0
      %v6108 = vadd.f32 %v6090, %v6107
      %v6109 = vpop.f32.mrf.mxu0
      %v6110 = vadd.f32 %v6092, %v6109
      %6111 = vmatmul.bf16.gmra.mxu0 %v336
      %v6112 = vpop.f32.mrf.mxu0
      %v6113 = vadd.f32 %v6095, %v6112
      %v6114 = vpop.f32.mrf.mxu0
      %6115 = vdwg.mxu0
      %6116 = vmatpush.bf16.msra.mxu0 %v4153
      %6117 = vmatpush.bf16.msra.mxu0 %v4149
      %6118 = vmatpush.bf16.msra.mxu0 %v4145
      %6119 = vmatpush.bf16.msra.mxu0 %v4141
      %6120 = vmatpush.bf16.msra.mxu0 %v4137
      %6121 = vmatpush.bf16.msra.mxu0 %v4133
      %6122 = vmatpush.bf16.msra.mxu0 %v4129
      %6123 = vmatpush.bf16.msra.mxu0 %v4125
      %6124 = vmatmul.bf16.gmra.mxu0 %v349
      %v6125 = vpop.f32.mrf.mxu0
      %v6126 = vadd.f32 %v6108, %v6125
      %v6127 = vpop.f32.mrf.mxu0
      %v6128 = vadd.f32 %v6110, %v6127
      %6129 = vmatmul.bf16.gmra.mxu0 %v348
      %v6130 = vpop.f32.mrf.mxu0
      %v6131 = vadd.f32 %v6113, %v6130
      %v6132 = vpop.f32.mrf.mxu0
      %6133 = vdwg.mxu0
      %6134 = vmatpush.bf16.msra.mxu0 %v4185
      %6135 = vmatpush.bf16.msra.mxu0 %v4181
      %6136 = vmatpush.bf16.msra.mxu0 %v4177
      %6137 = vmatpush.bf16.msra.mxu0 %v4173
      %6138 = vmatpush.bf16.msra.mxu0 %v4169
      %6139 = vmatpush.bf16.msra.mxu0 %v4165
      %6140 = vmatpush.bf16.msra.mxu0 %v4161
      %6141 = vmatpush.bf16.msra.mxu0 %v4157
      %6142 = vmatmul.bf16.gmra.mxu0 %v356
      %v6143 = vpop.f32.mrf.mxu0
      %v6144 = vadd.f32 %v6126, %v6143
      %v6145 = vpop.f32.mrf.mxu0
      %v6146 = vadd.f32 %v6128, %v6145
      %6147 = vmatmul.bf16.gmra.mxu0 %v355
      %v6148 = vpop.f32.mrf.mxu0
      %v6149 = vadd.f32 %v6131, %v6148
      %v6150 = vpop.f32.mrf.mxu0
      %6151 = vdwg.mxu0
      %6152 = vmatpush.bf16.msra.mxu0 %v4217
      %6153 = vmatpush.bf16.msra.mxu0 %v4213
      %6154 = vmatpush.bf16.msra.mxu0 %v4209
      %6155 = vmatpush.bf16.msra.mxu0 %v4205
      %6156 = vmatpush.bf16.msra.mxu0 %v4201
      %6157 = vmatpush.bf16.msra.mxu0 %v4197
      %6158 = vmatpush.bf16.msra.mxu0 %v4193
      %6159 = vmatpush.bf16.msra.mxu0 %v4189
      %6160 = vmatmul.bf16.gmra.mxu0 %v364
      %v6161 = vpop.f32.mrf.mxu0
      %v6162 = vadd.f32 %v6144, %v6161
      %v6163 = vpop.f32.mrf.mxu0
      %v6164 = vadd.f32 %v6146, %v6163
      %6165 = vmatmul.bf16.gmra.mxu0 %v363
      %v6166 = vpop.f32.mrf.mxu0
      %v6167 = vadd.f32 %v6149, %v6166
      %v6168 = vpop.f32.mrf.mxu0
      %6169 = vdwg.mxu0
      %6170 = vmatpush.bf16.msra.mxu0 %v4249
      %6171 = vmatpush.bf16.msra.mxu0 %v4245
      %6172 = vmatpush.bf16.msra.mxu0 %v4241
      %6173 = vmatpush.bf16.msra.mxu0 %v4237
      %6174 = vmatpush.bf16.msra.mxu0 %v4233
      %6175 = vmatpush.bf16.msra.mxu0 %v4229
      %6176 = vmatpush.bf16.msra.mxu0 %v4225
      %6177 = vmatpush.bf16.msra.mxu0 %v4221
      %6178 = vmatmul.bf16.gmra.mxu0 %v367
      %v6179 = vpop.f32.mrf.mxu0
      %v6180 = vadd.f32 %v6162, %v6179
      %v6181 = vpop.f32.mrf.mxu0
      %v6182 = vadd.f32 %v6164, %v6181
      %6183 = vmatmul.bf16.gmra.mxu0 %v366
      %v6184 = vpop.f32.mrf.mxu0
      %v6185 = vadd.f32 %v6167, %v6184
      %v6186 = vpop.f32.mrf.mxu0
      %6187 = vdwg.mxu0
      %6188 = vmatpush.bf16.msra.mxu0 %v4281
      %6189 = vmatpush.bf16.msra.mxu0 %v4277
      %6190 = vmatpush.bf16.msra.mxu0 %v4273
      %6191 = vmatpush.bf16.msra.mxu0 %v4269
      %6192 = vmatpush.bf16.msra.mxu0 %v4265
      %6193 = vmatpush.bf16.msra.mxu0 %v4261
      %6194 = vmatpush.bf16.msra.mxu0 %v4257
      %6195 = vmatpush.bf16.msra.mxu0 %v4253
      %6196 = vmatmul.bf16.gmra.mxu0 %v379
      %v6197 = vpop.f32.mrf.mxu0
      %v6198 = vadd.f32 %v6180, %v6197
      %v6199 = vpop.f32.mrf.mxu0
      %v6200 = vadd.f32 %v6182, %v6199
      %6201 = vmatmul.bf16.gmra.mxu0 %v378
      %v6202 = vpop.f32.mrf.mxu0
      %v6203 = vadd.f32 %v6185, %v6202
      %v6204 = vpop.f32.mrf.mxu0
      %6205 = vdwg.mxu0
      %6206 = vmatpush.bf16.msra.mxu0 %v4313
      %6207 = vmatpush.bf16.msra.mxu0 %v4309
      %6208 = vmatpush.bf16.msra.mxu0 %v4305
      %6209 = vmatpush.bf16.msra.mxu0 %v4301
      %6210 = vmatpush.bf16.msra.mxu0 %v4297
      %6211 = vmatpush.bf16.msra.mxu0 %v4293
      %6212 = vmatpush.bf16.msra.mxu0 %v4289
      %6213 = vmatpush.bf16.msra.mxu0 %v4285
      %6214 = vmatmul.bf16.gmra.mxu0 %v386
      %v6215 = vpop.f32.mrf.mxu0
      %v6216 = vadd.f32 %v6198, %v6215
      %v6217 = vpop.f32.mrf.mxu0
      %v6218 = vadd.f32 %v6200, %v6217
      %6219 = vmatmul.bf16.gmra.mxu0 %v385
      %v6220 = vpop.f32.mrf.mxu0
      %v6221 = vadd.f32 %v6203, %v6220
      %v6222 = vpop.f32.mrf.mxu0
      %6223 = vdwg.mxu0
      %6224 = vmatpush.bf16.msra.mxu0 %v4345
      %6225 = vmatpush.bf16.msra.mxu0 %v4341
      %6226 = vmatpush.bf16.msra.mxu0 %v4337
      %6227 = vmatpush.bf16.msra.mxu0 %v4333
      %6228 = vmatpush.bf16.msra.mxu0 %v4329
      %6229 = vmatpush.bf16.msra.mxu0 %v4325
      %6230 = vmatpush.bf16.msra.mxu0 %v4321
      %6231 = vmatpush.bf16.msra.mxu0 %v4317
      %6232 = vmatmul.bf16.gmra.mxu0 %v391
      %v6233 = vpop.f32.mrf.mxu0
      %v6234 = vadd.f32 %v6216, %v6233
      %v6235 = vpop.f32.mrf.mxu0
      %v6236 = vadd.f32 %v6218, %v6235
      %6237 = vmatmul.bf16.gmra.mxu0 %v393
      %v6238 = vpop.f32.mrf.mxu0
      %v6239 = vadd.f32 %v6221, %v6238
      %v6240 = vpop.f32.mrf.mxu0
      %6241 = vdwg.mxu0
      %6242 = vmatpush.bf16.msra.mxu0 %v4377
      %6243 = vmatpush.bf16.msra.mxu0 %v4373
      %6244 = vmatpush.bf16.msra.mxu0 %v4369
      %6245 = vmatpush.bf16.msra.mxu0 %v4365
      %6246 = vmatpush.bf16.msra.mxu0 %v4361
      %6247 = vmatpush.bf16.msra.mxu0 %v4357
      %6248 = vmatpush.bf16.msra.mxu0 %v4353
      %6249 = vmatpush.bf16.msra.mxu0 %v4349
      %6250 = vmatmul.bf16.gmra.mxu0 %v392
      %v6251 = vpop.f32.mrf.mxu0
      %v6252 = vadd.f32 %v6234, %v6251
      %v6253 = vpop.f32.mrf.mxu0
      %v6254 = vadd.f32 %v6236, %v6253
      %6255 = vmatmul.bf16.gmra.mxu0 %v394
      %v6256 = vpop.f32.mrf.mxu0
      %v6257 = vadd.f32 %v6239, %v6256
      %v6258 = vpop.f32.mrf.mxu0
      %6259 = vdwg.mxu0
      %6260 = vmatpush.bf16.msra.mxu0 %v4409
      %6261 = vmatpush.bf16.msra.mxu0 %v4405
      %6262 = vmatpush.bf16.msra.mxu0 %v4401
      %6263 = vmatpush.bf16.msra.mxu0 %v4397
      %6264 = vmatpush.bf16.msra.mxu0 %v4393
      %6265 = vmatpush.bf16.msra.mxu0 %v4389
      %6266 = vmatpush.bf16.msra.mxu0 %v4385
      %6267 = vmatpush.bf16.msra.mxu0 %v4381
      %6268 = vmatmul.bf16.gmra.mxu0 %v415
      %v6269 = vpop.f32.mrf.mxu0
      %v6270 = vadd.f32 %v6252, %v6269
      %v6271 = vpop.f32.mrf.mxu0
      %v6272 = vadd.f32 %v6254, %v6271
      %6273 = vmatmul.bf16.gmra.mxu0 %v430
      %v6274 = vpop.f32.mrf.mxu0
      %v6275 = vadd.f32 %v6257, %v6274
      %v6276 = vpop.f32.mrf.mxu0
      %6277 = vdwg.mxu0
      %6278 = vmatpush.bf16.msra.mxu0 %v4441
      %6279 = vmatpush.bf16.msra.mxu0 %v4437
      %6280 = vmatpush.bf16.msra.mxu0 %v4433
      %6281 = vmatpush.bf16.msra.mxu0 %v4429
      %6282 = vmatpush.bf16.msra.mxu0 %v4425
      %6283 = vmatpush.bf16.msra.mxu0 %v4421
      %6284 = vmatpush.bf16.msra.mxu0 %v4417
      %6285 = vmatpush.bf16.msra.mxu0 %v4413
      %6286 = vmatmul.bf16.gmra.mxu0 %v427
      %v6287 = vpop.f32.mrf.mxu0
      %v6288 = vadd.f32 %v6270, %v6287
      %v6289 = vpop.f32.mrf.mxu0
      %v6290 = vadd.f32 %v6272, %v6289
      %6291 = vmatmul.bf16.gmra.mxu0 %v433
      %v6292 = vpop.f32.mrf.mxu0
      %v6293 = vadd.f32 %v6275, %v6292
      %v6294 = vpop.f32.mrf.mxu0
      %6295 = vdwg.mxu0
      %6296 = vmatpush.bf16.msra.mxu0 %v4473
      %6297 = vmatpush.bf16.msra.mxu0 %v4469
      %6298 = vmatpush.bf16.msra.mxu0 %v4465
      %6299 = vmatpush.bf16.msra.mxu0 %v4461
      %6300 = vmatpush.bf16.msra.mxu0 %v4457
      %6301 = vmatpush.bf16.msra.mxu0 %v4453
      %6302 = vmatpush.bf16.msra.mxu0 %v4449
      %6303 = vmatpush.bf16.msra.mxu0 %v4445
      %6304 = vmatmul.bf16.gmra.mxu0 %v440
      %v6305 = vpop.f32.mrf.mxu0
      %v6306 = vadd.f32 %v6288, %v6305
      %v6307 = vpop.f32.mrf.mxu0
      %v6308 = vadd.f32 %v6290, %v6307
      %6309 = vmatmul.bf16.gmra.mxu0 %v439
      %v6310 = vpop.f32.mrf.mxu0
      %v6311 = vadd.f32 %v6293, %v6310
      %v6312 = vpop.f32.mrf.mxu0
      %6313 = vdwg.mxu0
      %6314 = vmatpush.bf16.msra.mxu0 %v4505
      %6315 = vmatpush.bf16.msra.mxu0 %v4501
      %6316 = vmatpush.bf16.msra.mxu0 %v4497
      %6317 = vmatpush.bf16.msra.mxu0 %v4493
      %6318 = vmatpush.bf16.msra.mxu0 %v4489
      %6319 = vmatpush.bf16.msra.mxu0 %v4485
      %6320 = vmatpush.bf16.msra.mxu0 %v4481
      %6321 = vmatpush.bf16.msra.mxu0 %v4477
      %6322 = vmatmul.bf16.gmra.mxu0 %v443
      %v6323 = vpop.f32.mrf.mxu0
      %v6324 = vadd.f32 %v6306, %v6323
      %v6325 = vpop.f32.mrf.mxu0
      %v6326 = vadd.f32 %v6308, %v6325
      %6327 = vmatmul.bf16.gmra.mxu0 %v442
      %v6328 = vpop.f32.mrf.mxu0
      %v6329 = vadd.f32 %v6311, %v6328
      %v6330 = vpop.f32.mrf.mxu0
      %6331 = vdwg.mxu0
      %6332 = vmatpush.bf16.msra.mxu0 %v4537
      %6333 = vmatpush.bf16.msra.mxu0 %v4533
      %6334 = vmatpush.bf16.msra.mxu0 %v4529
      %6335 = vmatpush.bf16.msra.mxu0 %v4525
      %6336 = vmatpush.bf16.msra.mxu0 %v4521
      %6337 = vmatpush.bf16.msra.mxu0 %v4517
      %6338 = vmatpush.bf16.msra.mxu0 %v4513
      %6339 = vmatpush.bf16.msra.mxu0 %v4509
      %6340 = vmatmul.bf16.gmra.mxu0 %v454
      %v6341 = vpop.f32.mrf.mxu0
      %v6342 = vadd.f32 %v6324, %v6341
      %v6343 = vpop.f32.mrf.mxu0
      %v6344 = vadd.f32 %v6326, %v6343
      %6345 = vmatmul.bf16.gmra.mxu0 %v453
      %v6346 = vpop.f32.mrf.mxu0
      %v6347 = vadd.f32 %v6329, %v6346
      %v6348 = vpop.f32.mrf.mxu0
      %6349 = vdwg.mxu0
      %6350 = vmatpush.bf16.msra.mxu0 %v4569
      %6351 = vmatpush.bf16.msra.mxu0 %v4565
      %6352 = vmatpush.bf16.msra.mxu0 %v4561
      %6353 = vmatpush.bf16.msra.mxu0 %v4557
      %6354 = vmatpush.bf16.msra.mxu0 %v4553
      %6355 = vmatpush.bf16.msra.mxu0 %v4549
      %6356 = vmatpush.bf16.msra.mxu0 %v4545
      %6357 = vmatpush.bf16.msra.mxu0 %v4541
      %6358 = vmatmul.bf16.gmra.mxu0 %v461
      %v6359 = vpop.f32.mrf.mxu0
      %v6360 = vadd.f32 %v6342, %v6359
      %v6361 = vpop.f32.mrf.mxu0
      %v6362 = vadd.f32 %v6344, %v6361
      %6363 = vmatmul.bf16.gmra.mxu0 %v460
      %v6364 = vpop.f32.mrf.mxu0
      %v6365 = vadd.f32 %v6347, %v6364
      %v6366 = vpop.f32.mrf.mxu0
      %6367 = vdwg.mxu0
      %6368 = vmatpush.bf16.msra.mxu0 %v4601
      %6369 = vmatpush.bf16.msra.mxu0 %v4597
      %6370 = vmatpush.bf16.msra.mxu0 %v4593
      %6371 = vmatpush.bf16.msra.mxu0 %v4589
      %6372 = vmatpush.bf16.msra.mxu0 %v4585
      %6373 = vmatpush.bf16.msra.mxu0 %v4581
      %6374 = vmatpush.bf16.msra.mxu0 %v4577
      %6375 = vmatpush.bf16.msra.mxu0 %v4573
      %6376 = vmatmul.bf16.gmra.mxu0 %v468
      %v6377 = vpop.f32.mrf.mxu0
      %v6378 = vadd.f32 %v6360, %v6377
      %v6379 = vpop.f32.mrf.mxu0
      %v6380 = vadd.f32 %v6362, %v6379
      %6381 = vmatmul.bf16.gmra.mxu0 %v467
      %v6382 = vpop.f32.mrf.mxu0
      %v6383 = vadd.f32 %v6365, %v6382
      %v6384 = vpop.f32.mrf.mxu0
      %6385 = vdwg.mxu0
      %6386 = vmatpush.bf16.msra.mxu0 %v4633
      %6387 = vmatpush.bf16.msra.mxu0 %v4629
      %6388 = vmatpush.bf16.msra.mxu0 %v4625
      %6389 = vmatpush.bf16.msra.mxu0 %v4621
      %6390 = vmatpush.bf16.msra.mxu0 %v4617
      %6391 = vmatpush.bf16.msra.mxu0 %v4613
      %6392 = vmatpush.bf16.msra.mxu0 %v4609
      %6393 = vmatpush.bf16.msra.mxu0 %v4605
      %6394 = vmatmul.bf16.gmra.mxu0 %v471
      %v6395 = vpop.f32.mrf.mxu0
      %v6396 = vadd.f32 %v6378, %v6395
      %v6397 = vpop.f32.mrf.mxu0
      %v6398 = vadd.f32 %v6380, %v6397
      %6399 = vmatmul.bf16.gmra.mxu0 %v470
      %v6400 = vpop.f32.mrf.mxu0
      %v6401 = vadd.f32 %v6383, %v6400
      %v6402 = vpop.f32.mrf.mxu0
      %6403 = vdwg.mxu0
      %6404 = vmatpush.bf16.msra.mxu0 %v3834
      %6405 = vmatpush.bf16.msra.mxu0 %v3830
      %6406 = vmatpush.bf16.msra.mxu0 %v3826
      %6407 = vmatpush.bf16.msra.mxu0 %v3822
      %6408 = vmatpush.bf16.msra.mxu0 %v3818
      %6409 = vmatpush.bf16.msra.mxu0 %v3814
      %6410 = vmatpush.bf16.msra.mxu0 %v3810
      %6411 = vmatpush.bf16.msra.mxu0 %v3806
      %6412 = vmatmul.bf16.gmra.mxu0 %v253
      %v6413 = vpop.f32.mrf.mxu0
      %v6414 = vadd.f32 0.0, %v6413
      %v6415 = vpop.f32.mrf.mxu0
      %v6416 = vadd.f32 0.0, %v6415
      %6417 = vmatmul.bf16.gmra.mxu0 %v255
      %v6418 = vpop.f32.mrf.mxu0
      %v6419 = vadd.f32 0.0, %v6418
      %v6420 = vpop.f32.mrf.mxu0
      %6421 = vdwg.mxu0
      %6422 = vmatpush.bf16.msra.mxu0 %v3866
      %6423 = vmatpush.bf16.msra.mxu0 %v3862
      %6424 = vmatpush.bf16.msra.mxu0 %v3858
      %6425 = vmatpush.bf16.msra.mxu0 %v3854
      %6426 = vmatpush.bf16.msra.mxu0 %v3850
      %6427 = vmatpush.bf16.msra.mxu0 %v3846
      %6428 = vmatpush.bf16.msra.mxu0 %v3842
      %6429 = vmatpush.bf16.msra.mxu0 %v3838
      %6430 = vmatmul.bf16.gmra.mxu0 %v254
      %v6431 = vpop.f32.mrf.mxu0
      %v6432 = vadd.f32 %v6414, %v6431
      %v6433 = vpop.f32.mrf.mxu0
      %v6434 = vadd.f32 %v6416, %v6433
      %6435 = vmatmul.bf16.gmra.mxu0 %v256
      %v6436 = vpop.f32.mrf.mxu0
      %v6437 = vadd.f32 %v6419, %v6436
      %v6438 = vpop.f32.mrf.mxu0
      %6439 = vdwg.mxu0
      %6440 = vmatpush.bf16.msra.mxu0 %v3898
      %6441 = vmatpush.bf16.msra.mxu0 %v3894
      %6442 = vmatpush.bf16.msra.mxu0 %v3890
      %6443 = vmatpush.bf16.msra.mxu0 %v3886
      %6444 = vmatpush.bf16.msra.mxu0 %v3882
      %6445 = vmatpush.bf16.msra.mxu0 %v3878
      %6446 = vmatpush.bf16.msra.mxu0 %v3874
      %6447 = vmatpush.bf16.msra.mxu0 %v3870
      %6448 = vmatmul.bf16.gmra.mxu0 %v278
      %v6449 = vpop.f32.mrf.mxu0
      %v6450 = vadd.f32 %v6432, %v6449
      %v6451 = vpop.f32.mrf.mxu0
      %v6452 = vadd.f32 %v6434, %v6451
      %6453 = vmatmul.bf16.gmra.mxu0 %v293
      %v6454 = vpop.f32.mrf.mxu0
      %v6455 = vadd.f32 %v6437, %v6454
      %v6456 = vpop.f32.mrf.mxu0
      %6457 = vdwg.mxu0
      %6458 = vmatpush.bf16.msra.mxu0 %v3930
      %6459 = vmatpush.bf16.msra.mxu0 %v3926
      %6460 = vmatpush.bf16.msra.mxu0 %v3922
      %6461 = vmatpush.bf16.msra.mxu0 %v3918
      %6462 = vmatpush.bf16.msra.mxu0 %v3914
      %6463 = vmatpush.bf16.msra.mxu0 %v3910
      %6464 = vmatpush.bf16.msra.mxu0 %v3906
      %6465 = vmatpush.bf16.msra.mxu0 %v3902
      %6466 = vmatmul.bf16.gmra.mxu0 %v290
      %v6467 = vpop.f32.mrf.mxu0
      %v6468 = vadd.f32 %v6450, %v6467
      %v6469 = vpop.f32.mrf.mxu0
      %v6470 = vadd.f32 %v6452, %v6469
      %6471 = vmatmul.bf16.gmra.mxu0 %v296
      %v6472 = vpop.f32.mrf.mxu0
      %v6473 = vadd.f32 %v6455, %v6472
      %v6474 = vpop.f32.mrf.mxu0
      %6475 = vdwg.mxu0
      %6476 = vmatpush.bf16.msra.mxu0 %v3962
      %6477 = vmatpush.bf16.msra.mxu0 %v3958
      %6478 = vmatpush.bf16.msra.mxu0 %v3954
      %6479 = vmatpush.bf16.msra.mxu0 %v3950
      %6480 = vmatpush.bf16.msra.mxu0 %v3946
      %6481 = vmatpush.bf16.msra.mxu0 %v3942
      %6482 = vmatpush.bf16.msra.mxu0 %v3938
      %6483 = vmatpush.bf16.msra.mxu0 %v3934
      %6484 = vmatmul.bf16.gmra.mxu0 %v304
      %v6485 = vpop.f32.mrf.mxu0
      %v6486 = vadd.f32 %v6468, %v6485
      %v6487 = vpop.f32.mrf.mxu0
      %v6488 = vadd.f32 %v6470, %v6487
      %6489 = vmatmul.bf16.gmra.mxu0 %v303
      %v6490 = vpop.f32.mrf.mxu0
      %v6491 = vadd.f32 %v6473, %v6490
      %v6492 = vpop.f32.mrf.mxu0
      %6493 = vdwg.mxu0
      %6494 = vmatpush.bf16.msra.mxu0 %v3994
      %6495 = vmatpush.bf16.msra.mxu0 %v3990
      %6496 = vmatpush.bf16.msra.mxu0 %v3986
      %6497 = vmatpush.bf16.msra.mxu0 %v3982
      %6498 = vmatpush.bf16.msra.mxu0 %v3978
      %6499 = vmatpush.bf16.msra.mxu0 %v3974
      %6500 = vmatpush.bf16.msra.mxu0 %v3970
      %6501 = vmatpush.bf16.msra.mxu0 %v3966
      %6502 = vmatmul.bf16.gmra.mxu0 %v307
      %v6503 = vpop.f32.mrf.mxu0
      %v6504 = vadd.f32 %v6486, %v6503
      %v6505 = vpop.f32.mrf.mxu0
      %v6506 = vadd.f32 %v6488, %v6505
      %6507 = vmatmul.bf16.gmra.mxu0 %v306
      %v6508 = vpop.f32.mrf.mxu0
      %v6509 = vadd.f32 %v6491, %v6508
      %v6510 = vpop.f32.mrf.mxu0
      %6511 = vdwg.mxu0
      %6512 = vmatpush.bf16.msra.mxu0 %v4026
      %6513 = vmatpush.bf16.msra.mxu0 %v4022
      %6514 = vmatpush.bf16.msra.mxu0 %v4018
      %6515 = vmatpush.bf16.msra.mxu0 %v4014
      %6516 = vmatpush.bf16.msra.mxu0 %v4010
      %6517 = vmatpush.bf16.msra.mxu0 %v4006
      %6518 = vmatpush.bf16.msra.mxu0 %v4002
      %6519 = vmatpush.bf16.msra.mxu0 %v3998
      %6520 = vmatmul.bf16.gmra.mxu0 %v319
      %v6521 = vpop.f32.mrf.mxu0
      %v6522 = vadd.f32 %v6504, %v6521
      %v6523 = vpop.f32.mrf.mxu0
      %v6524 = vadd.f32 %v6506, %v6523
      %6525 = vmatmul.bf16.gmra.mxu0 %v318
      %v6526 = vpop.f32.mrf.mxu0
      %v6527 = vadd.f32 %v6509, %v6526
      %v6528 = vpop.f32.mrf.mxu0
      %6529 = vdwg.mxu0
      %6530 = vmatpush.bf16.msra.mxu0 %v4058
      %6531 = vmatpush.bf16.msra.mxu0 %v4054
      %6532 = vmatpush.bf16.msra.mxu0 %v4050
      %6533 = vmatpush.bf16.msra.mxu0 %v4046
      %6534 = vmatpush.bf16.msra.mxu0 %v4042
      %6535 = vmatpush.bf16.msra.mxu0 %v4038
      %6536 = vmatpush.bf16.msra.mxu0 %v4034
      %6537 = vmatpush.bf16.msra.mxu0 %v4030
      %6538 = vmatmul.bf16.gmra.mxu0 %v326
      %v6539 = vpop.f32.mrf.mxu0
      %v6540 = vadd.f32 %v6522, %v6539
      %v6541 = vpop.f32.mrf.mxu0
      %v6542 = vadd.f32 %v6524, %v6541
      %6543 = vmatmul.bf16.gmra.mxu0 %v325
      %v6544 = vpop.f32.mrf.mxu0
      %v6545 = vadd.f32 %v6527, %v6544
      %v6546 = vpop.f32.mrf.mxu0
      %6547 = vdwg.mxu0
      %6548 = vmatpush.bf16.msra.mxu0 %v4090
      %6549 = vmatpush.bf16.msra.mxu0 %v4086
      %6550 = vmatpush.bf16.msra.mxu0 %v4082
      %6551 = vmatpush.bf16.msra.mxu0 %v4078
      %6552 = vmatpush.bf16.msra.mxu0 %v4074
      %6553 = vmatpush.bf16.msra.mxu0 %v4070
      %6554 = vmatpush.bf16.msra.mxu0 %v4066
      %6555 = vmatpush.bf16.msra.mxu0 %v4062
      %6556 = vmatmul.bf16.gmra.mxu0 %v334
      %v6557 = vpop.f32.mrf.mxu0
      %v6558 = vadd.f32 %v6540, %v6557
      %v6559 = vpop.f32.mrf.mxu0
      %v6560 = vadd.f32 %v6542, %v6559
      %6561 = vmatmul.bf16.gmra.mxu0 %v333
      %v6562 = vpop.f32.mrf.mxu0
      %v6563 = vadd.f32 %v6545, %v6562
      %v6564 = vpop.f32.mrf.mxu0
      %6565 = vdwg.mxu0
      %6566 = vmatpush.bf16.msra.mxu0 %v4122
      %6567 = vmatpush.bf16.msra.mxu0 %v4118
      %6568 = vmatpush.bf16.msra.mxu0 %v4114
      %6569 = vmatpush.bf16.msra.mxu0 %v4110
      %6570 = vmatpush.bf16.msra.mxu0 %v4106
      %6571 = vmatpush.bf16.msra.mxu0 %v4102
      %6572 = vmatpush.bf16.msra.mxu0 %v4098
      %6573 = vmatpush.bf16.msra.mxu0 %v4094
      %6574 = vmatmul.bf16.gmra.mxu0 %v337
      %v6575 = vpop.f32.mrf.mxu0
      %v6576 = vadd.f32 %v6558, %v6575
      %v6577 = vpop.f32.mrf.mxu0
      %v6578 = vadd.f32 %v6560, %v6577
      %6579 = vmatmul.bf16.gmra.mxu0 %v336
      %v6580 = vpop.f32.mrf.mxu0
      %v6581 = vadd.f32 %v6563, %v6580
      %v6582 = vpop.f32.mrf.mxu0
      %6583 = vdwg.mxu0
      %6584 = vmatpush.bf16.msra.mxu0 %v4154
      %6585 = vmatpush.bf16.msra.mxu0 %v4150
      %6586 = vmatpush.bf16.msra.mxu0 %v4146
      %6587 = vmatpush.bf16.msra.mxu0 %v4142
      %6588 = vmatpush.bf16.msra.mxu0 %v4138
      %6589 = vmatpush.bf16.msra.mxu0 %v4134
      %6590 = vmatpush.bf16.msra.mxu0 %v4130
      %6591 = vmatpush.bf16.msra.mxu0 %v4126
      %6592 = vmatmul.bf16.gmra.mxu0 %v349
      %v6593 = vpop.f32.mrf.mxu0
      %v6594 = vadd.f32 %v6576, %v6593
      %v6595 = vpop.f32.mrf.mxu0
      %v6596 = vadd.f32 %v6578, %v6595
      %6597 = vmatmul.bf16.gmra.mxu0 %v348
      %v6598 = vpop.f32.mrf.mxu0
      %v6599 = vadd.f32 %v6581, %v6598
      %v6600 = vpop.f32.mrf.mxu0
      %6601 = vdwg.mxu0
      %6602 = vmatpush.bf16.msra.mxu0 %v4186
      %6603 = vmatpush.bf16.msra.mxu0 %v4182
      %6604 = vmatpush.bf16.msra.mxu0 %v4178
      %6605 = vmatpush.bf16.msra.mxu0 %v4174
      %6606 = vmatpush.bf16.msra.mxu0 %v4170
      %6607 = vmatpush.bf16.msra.mxu0 %v4166
      %6608 = vmatpush.bf16.msra.mxu0 %v4162
      %6609 = vmatpush.bf16.msra.mxu0 %v4158
      %6610 = vmatmul.bf16.gmra.mxu0 %v356
      %v6611 = vpop.f32.mrf.mxu0
      %v6612 = vadd.f32 %v6594, %v6611
      %v6613 = vpop.f32.mrf.mxu0
      %v6614 = vadd.f32 %v6596, %v6613
      %6615 = vmatmul.bf16.gmra.mxu0 %v355
      %v6616 = vpop.f32.mrf.mxu0
      %v6617 = vadd.f32 %v6599, %v6616
      %v6618 = vpop.f32.mrf.mxu0
      %6619 = vdwg.mxu0
      %6620 = vmatpush.bf16.msra.mxu0 %v4218
      %6621 = vmatpush.bf16.msra.mxu0 %v4214
      %6622 = vmatpush.bf16.msra.mxu0 %v4210
      %6623 = vmatpush.bf16.msra.mxu0 %v4206
      %6624 = vmatpush.bf16.msra.mxu0 %v4202
      %6625 = vmatpush.bf16.msra.mxu0 %v4198
      %6626 = vmatpush.bf16.msra.mxu0 %v4194
      %6627 = vmatpush.bf16.msra.mxu0 %v4190
      %6628 = vmatmul.bf16.gmra.mxu0 %v364
      %v6629 = vpop.f32.mrf.mxu0
      %v6630 = vadd.f32 %v6612, %v6629
      %v6631 = vpop.f32.mrf.mxu0
      %v6632 = vadd.f32 %v6614, %v6631
      %6633 = vmatmul.bf16.gmra.mxu0 %v363
      %v6634 = vpop.f32.mrf.mxu0
      %v6635 = vadd.f32 %v6617, %v6634
      %v6636 = vpop.f32.mrf.mxu0
      %6637 = vdwg.mxu0
      %6638 = vmatpush.bf16.msra.mxu0 %v4250
      %6639 = vmatpush.bf16.msra.mxu0 %v4246
      %6640 = vmatpush.bf16.msra.mxu0 %v4242
      %6641 = vmatpush.bf16.msra.mxu0 %v4238
      %6642 = vmatpush.bf16.msra.mxu0 %v4234
      %6643 = vmatpush.bf16.msra.mxu0 %v4230
      %6644 = vmatpush.bf16.msra.mxu0 %v4226
      %6645 = vmatpush.bf16.msra.mxu0 %v4222
      %6646 = vmatmul.bf16.gmra.mxu0 %v367
      %v6647 = vpop.f32.mrf.mxu0
      %v6648 = vadd.f32 %v6630, %v6647
      %v6649 = vpop.f32.mrf.mxu0
      %v6650 = vadd.f32 %v6632, %v6649
      %6651 = vmatmul.bf16.gmra.mxu0 %v366
      %v6652 = vpop.f32.mrf.mxu0
      %v6653 = vadd.f32 %v6635, %v6652
      %v6654 = vpop.f32.mrf.mxu0
      %6655 = vdwg.mxu0
      %6656 = vmatpush.bf16.msra.mxu0 %v4282
      %6657 = vmatpush.bf16.msra.mxu0 %v4278
      %6658 = vmatpush.bf16.msra.mxu0 %v4274
      %6659 = vmatpush.bf16.msra.mxu0 %v4270
      %6660 = vmatpush.bf16.msra.mxu0 %v4266
      %6661 = vmatpush.bf16.msra.mxu0 %v4262
      %6662 = vmatpush.bf16.msra.mxu0 %v4258
      %6663 = vmatpush.bf16.msra.mxu0 %v4254
      %6664 = vmatmul.bf16.gmra.mxu0 %v379
      %v6665 = vpop.f32.mrf.mxu0
      %v6666 = vadd.f32 %v6648, %v6665
      %v6667 = vpop.f32.mrf.mxu0
      %v6668 = vadd.f32 %v6650, %v6667
      %6669 = vmatmul.bf16.gmra.mxu0 %v378
      %v6670 = vpop.f32.mrf.mxu0
      %v6671 = vadd.f32 %v6653, %v6670
      %v6672 = vpop.f32.mrf.mxu0
      %6673 = vdwg.mxu0
      %6674 = vmatpush.bf16.msra.mxu0 %v4314
      %6675 = vmatpush.bf16.msra.mxu0 %v4310
      %6676 = vmatpush.bf16.msra.mxu0 %v4306
      %6677 = vmatpush.bf16.msra.mxu0 %v4302
      %6678 = vmatpush.bf16.msra.mxu0 %v4298
      %6679 = vmatpush.bf16.msra.mxu0 %v4294
      %6680 = vmatpush.bf16.msra.mxu0 %v4290
      %6681 = vmatpush.bf16.msra.mxu0 %v4286
      %6682 = vmatmul.bf16.gmra.mxu0 %v386
      %v6683 = vpop.f32.mrf.mxu0
      %v6684 = vadd.f32 %v6666, %v6683
      %v6685 = vpop.f32.mrf.mxu0
      %v6686 = vadd.f32 %v6668, %v6685
      %6687 = vmatmul.bf16.gmra.mxu0 %v385
      %v6688 = vpop.f32.mrf.mxu0
      %v6689 = vadd.f32 %v6671, %v6688
      %v6690 = vpop.f32.mrf.mxu0
      %6691 = vdwg.mxu0
      %6692 = vmatpush.bf16.msra.mxu0 %v4346
      %6693 = vmatpush.bf16.msra.mxu0 %v4342
      %6694 = vmatpush.bf16.msra.mxu0 %v4338
      %6695 = vmatpush.bf16.msra.mxu0 %v4334
      %6696 = vmatpush.bf16.msra.mxu0 %v4330
      %6697 = vmatpush.bf16.msra.mxu0 %v4326
      %6698 = vmatpush.bf16.msra.mxu0 %v4322
      %6699 = vmatpush.bf16.msra.mxu0 %v4318
      %6700 = vmatmul.bf16.gmra.mxu0 %v391
      %v6701 = vpop.f32.mrf.mxu0
      %v6702 = vadd.f32 %v6684, %v6701
      %v6703 = vpop.f32.mrf.mxu0
      %v6704 = vadd.f32 %v6686, %v6703
      %6705 = vmatmul.bf16.gmra.mxu0 %v393
      %v6706 = vpop.f32.mrf.mxu0
      %v6707 = vadd.f32 %v6689, %v6706
      %v6708 = vpop.f32.mrf.mxu0
      %6709 = vdwg.mxu0
      %6710 = vmatpush.bf16.msra.mxu0 %v4378
      %6711 = vmatpush.bf16.msra.mxu0 %v4374
      %6712 = vmatpush.bf16.msra.mxu0 %v4370
      %6713 = vmatpush.bf16.msra.mxu0 %v4366
      %6714 = vmatpush.bf16.msra.mxu0 %v4362
      %6715 = vmatpush.bf16.msra.mxu0 %v4358
      %6716 = vmatpush.bf16.msra.mxu0 %v4354
      %6717 = vmatpush.bf16.msra.mxu0 %v4350
      %6718 = vmatmul.bf16.gmra.mxu0 %v392
      %v6719 = vpop.f32.mrf.mxu0
      %v6720 = vadd.f32 %v6702, %v6719
      %v6721 = vpop.f32.mrf.mxu0
      %v6722 = vadd.f32 %v6704, %v6721
      %6723 = vmatmul.bf16.gmra.mxu0 %v394
      %v6724 = vpop.f32.mrf.mxu0
      %v6725 = vadd.f32 %v6707, %v6724
      %v6726 = vpop.f32.mrf.mxu0
      %6727 = vdwg.mxu0
      %6728 = vmatpush.bf16.msra.mxu0 %v4410
      %6729 = vmatpush.bf16.msra.mxu0 %v4406
      %6730 = vmatpush.bf16.msra.mxu0 %v4402
      %6731 = vmatpush.bf16.msra.mxu0 %v4398
      %6732 = vmatpush.bf16.msra.mxu0 %v4394
      %6733 = vmatpush.bf16.msra.mxu0 %v4390
      %6734 = vmatpush.bf16.msra.mxu0 %v4386
      %6735 = vmatpush.bf16.msra.mxu0 %v4382
      %6736 = vmatmul.bf16.gmra.mxu0 %v415
      %v6737 = vpop.f32.mrf.mxu0
      %v6738 = vadd.f32 %v6720, %v6737
      %v6739 = vpop.f32.mrf.mxu0
      %v6740 = vadd.f32 %v6722, %v6739
      %6741 = vmatmul.bf16.gmra.mxu0 %v430
      %v6742 = vpop.f32.mrf.mxu0
      %v6743 = vadd.f32 %v6725, %v6742
      %v6744 = vpop.f32.mrf.mxu0
      %6745 = vdwg.mxu0
      %6746 = vmatpush.bf16.msra.mxu0 %v4442
      %6747 = vmatpush.bf16.msra.mxu0 %v4438
      %6748 = vmatpush.bf16.msra.mxu0 %v4434
      %6749 = vmatpush.bf16.msra.mxu0 %v4430
      %6750 = vmatpush.bf16.msra.mxu0 %v4426
      %6751 = vmatpush.bf16.msra.mxu0 %v4422
      %6752 = vmatpush.bf16.msra.mxu0 %v4418
      %6753 = vmatpush.bf16.msra.mxu0 %v4414
      %6754 = vmatmul.bf16.gmra.mxu0 %v427
      %v6755 = vpop.f32.mrf.mxu0
      %v6756 = vadd.f32 %v6738, %v6755
      %v6757 = vpop.f32.mrf.mxu0
      %v6758 = vadd.f32 %v6740, %v6757
      %6759 = vmatmul.bf16.gmra.mxu0 %v433
      %v6760 = vpop.f32.mrf.mxu0
      %v6761 = vadd.f32 %v6743, %v6760
      %v6762 = vpop.f32.mrf.mxu0
      %6763 = vdwg.mxu0
      %6764 = vmatpush.bf16.msra.mxu0 %v4474
      %6765 = vmatpush.bf16.msra.mxu0 %v4470
      %6766 = vmatpush.bf16.msra.mxu0 %v4466
      %6767 = vmatpush.bf16.msra.mxu0 %v4462
      %6768 = vmatpush.bf16.msra.mxu0 %v4458
      %6769 = vmatpush.bf16.msra.mxu0 %v4454
      %6770 = vmatpush.bf16.msra.mxu0 %v4450
      %6771 = vmatpush.bf16.msra.mxu0 %v4446
      %6772 = vmatmul.bf16.gmra.mxu0 %v440
      %v6773 = vpop.f32.mrf.mxu0
      %v6774 = vadd.f32 %v6756, %v6773
      %v6775 = vpop.f32.mrf.mxu0
      %v6776 = vadd.f32 %v6758, %v6775
      %6777 = vmatmul.bf16.gmra.mxu0 %v439
      %v6778 = vpop.f32.mrf.mxu0
      %v6779 = vadd.f32 %v6761, %v6778
      %v6780 = vpop.f32.mrf.mxu0
      %6781 = vdwg.mxu0
      %6782 = vmatpush.bf16.msra.mxu0 %v4506
      %6783 = vmatpush.bf16.msra.mxu0 %v4502
      %6784 = vmatpush.bf16.msra.mxu0 %v4498
      %6785 = vmatpush.bf16.msra.mxu0 %v4494
      %6786 = vmatpush.bf16.msra.mxu0 %v4490
      %6787 = vmatpush.bf16.msra.mxu0 %v4486
      %6788 = vmatpush.bf16.msra.mxu0 %v4482
      %6789 = vmatpush.bf16.msra.mxu0 %v4478
      %6790 = vmatmul.bf16.gmra.mxu0 %v443
      %v6791 = vpop.f32.mrf.mxu0
      %v6792 = vadd.f32 %v6774, %v6791
      %v6793 = vpop.f32.mrf.mxu0
      %v6794 = vadd.f32 %v6776, %v6793
      %6795 = vmatmul.bf16.gmra.mxu0 %v442
      %v6796 = vpop.f32.mrf.mxu0
      %v6797 = vadd.f32 %v6779, %v6796
      %v6798 = vpop.f32.mrf.mxu0
      %6799 = vdwg.mxu0
      %6800 = vmatpush.bf16.msra.mxu0 %v4538
      %6801 = vmatpush.bf16.msra.mxu0 %v4534
      %6802 = vmatpush.bf16.msra.mxu0 %v4530
      %6803 = vmatpush.bf16.msra.mxu0 %v4526
      %6804 = vmatpush.bf16.msra.mxu0 %v4522
      %6805 = vmatpush.bf16.msra.mxu0 %v4518
      %6806 = vmatpush.bf16.msra.mxu0 %v4514
      %6807 = vmatpush.bf16.msra.mxu0 %v4510
      %6808 = vmatmul.bf16.gmra.mxu0 %v454
      %v6809 = vpop.f32.mrf.mxu0
      %v6810 = vadd.f32 %v6792, %v6809
      %v6811 = vpop.f32.mrf.mxu0
      %v6812 = vadd.f32 %v6794, %v6811
      %6813 = vmatmul.bf16.gmra.mxu0 %v453
      %v6814 = vpop.f32.mrf.mxu0
      %v6815 = vadd.f32 %v6797, %v6814
      %v6816 = vpop.f32.mrf.mxu0
      %6817 = vdwg.mxu0
      %6818 = vmatpush.bf16.msra.mxu0 %v4570
      %6819 = vmatpush.bf16.msra.mxu0 %v4566
      %6820 = vmatpush.bf16.msra.mxu0 %v4562
      %6821 = vmatpush.bf16.msra.mxu0 %v4558
      %6822 = vmatpush.bf16.msra.mxu0 %v4554
      %6823 = vmatpush.bf16.msra.mxu0 %v4550
      %6824 = vmatpush.bf16.msra.mxu0 %v4546
      %6825 = vmatpush.bf16.msra.mxu0 %v4542
      %6826 = vmatmul.bf16.gmra.mxu0 %v461
      %v6827 = vpop.f32.mrf.mxu0
      %v6828 = vadd.f32 %v6810, %v6827
      %v6829 = vpop.f32.mrf.mxu0
      %v6830 = vadd.f32 %v6812, %v6829
      %6831 = vmatmul.bf16.gmra.mxu0 %v460
      %v6832 = vpop.f32.mrf.mxu0
      %v6833 = vadd.f32 %v6815, %v6832
      %v6834 = vpop.f32.mrf.mxu0
      %6835 = vdwg.mxu0
      %6836 = vmatpush.bf16.msra.mxu0 %v4602
      %6837 = vmatpush.bf16.msra.mxu0 %v4598
      %6838 = vmatpush.bf16.msra.mxu0 %v4594
      %6839 = vmatpush.bf16.msra.mxu0 %v4590
      %6840 = vmatpush.bf16.msra.mxu0 %v4586
      %6841 = vmatpush.bf16.msra.mxu0 %v4582
      %6842 = vmatpush.bf16.msra.mxu0 %v4578
      %6843 = vmatpush.bf16.msra.mxu0 %v4574
      %6844 = vmatmul.bf16.gmra.mxu0 %v468
      %v6845 = vpop.f32.mrf.mxu0
      %v6846 = vadd.f32 %v6828, %v6845
      %v6847 = vpop.f32.mrf.mxu0
      %v6848 = vadd.f32 %v6830, %v6847
      %6849 = vmatmul.bf16.gmra.mxu0 %v467
      %v6850 = vpop.f32.mrf.mxu0
      %v6851 = vadd.f32 %v6833, %v6850
      %v6852 = vpop.f32.mrf.mxu0
      %6853 = vdwg.mxu0
      %6854 = vmatpush.bf16.msra.mxu0 %v4634
      %6855 = vmatpush.bf16.msra.mxu0 %v4630
      %6856 = vmatpush.bf16.msra.mxu0 %v4626
      %6857 = vmatpush.bf16.msra.mxu0 %v4622
      %6858 = vmatpush.bf16.msra.mxu0 %v4618
      %6859 = vmatpush.bf16.msra.mxu0 %v4614
      %6860 = vmatpush.bf16.msra.mxu0 %v4610
      %6861 = vmatpush.bf16.msra.mxu0 %v4606
      %6862 = vmatmul.bf16.gmra.mxu0 %v471
      %v6863 = vpop.f32.mrf.mxu0
      %v6864 = vadd.f32 %v6846, %v6863
      %v6865 = vpop.f32.mrf.mxu0
      %v6866 = vadd.f32 %v6848, %v6865
      %6867 = vmatmul.bf16.gmra.mxu0 %v470
      %v6868 = vpop.f32.mrf.mxu0
      %v6869 = vadd.f32 %v6851, %v6868
      %v6870 = vpop.f32.mrf.mxu0
      %6871 = vdwg.mxu0
      %6872 = vmatpush.bf16.msra.mxu0 %v3835
      %6873 = vmatpush.bf16.msra.mxu0 %v3831
      %6874 = vmatpush.bf16.msra.mxu0 %v3827
      %6875 = vmatpush.bf16.msra.mxu0 %v3823
      %6876 = vmatpush.bf16.msra.mxu0 %v3819
      %6877 = vmatpush.bf16.msra.mxu0 %v3815
      %6878 = vmatpush.bf16.msra.mxu0 %v3811
      %6879 = vmatpush.bf16.msra.mxu0 %v3807
      %6880 = vmatmul.bf16.gmra.mxu0 %v253
      %v6881 = vpop.f32.mrf.mxu0
      %v6882 = vadd.f32 0.0, %v6881
      %v6883 = vpop.f32.mrf.mxu0
      %v6884 = vadd.f32 0.0, %v6883
      %6885 = vmatmul.bf16.gmra.mxu0 %v255
      %v6886 = vpop.f32.mrf.mxu0
      %v6887 = vadd.f32 0.0, %v6886
      %v6888 = vpop.f32.mrf.mxu0
      %6889 = vdwg.mxu0
      %6890 = vmatpush.bf16.msra.mxu0 %v3867
      %6891 = vmatpush.bf16.msra.mxu0 %v3863
      %6892 = vmatpush.bf16.msra.mxu0 %v3859
      %6893 = vmatpush.bf16.msra.mxu0 %v3855
      %6894 = vmatpush.bf16.msra.mxu0 %v3851
      %6895 = vmatpush.bf16.msra.mxu0 %v3847
      %6896 = vmatpush.bf16.msra.mxu0 %v3843
      %6897 = vmatpush.bf16.msra.mxu0 %v3839
      %6898 = vmatmul.bf16.gmra.mxu0 %v254
      %v6899 = vpop.f32.mrf.mxu0
      %v6900 = vadd.f32 %v6882, %v6899
      %v6901 = vpop.f32.mrf.mxu0
      %v6902 = vadd.f32 %v6884, %v6901
      %6903 = vmatmul.bf16.gmra.mxu0 %v256
      %v6904 = vpop.f32.mrf.mxu0
      %v6905 = vadd.f32 %v6887, %v6904
      %v6906 = vpop.f32.mrf.mxu0
      %6907 = vdwg.mxu0
      %6908 = vmatpush.bf16.msra.mxu0 %v3899
      %6909 = vmatpush.bf16.msra.mxu0 %v3895
      %6910 = vmatpush.bf16.msra.mxu0 %v3891
      %6911 = vmatpush.bf16.msra.mxu0 %v3887
      %6912 = vmatpush.bf16.msra.mxu0 %v3883
      %6913 = vmatpush.bf16.msra.mxu0 %v3879
      %6914 = vmatpush.bf16.msra.mxu0 %v3875
      %6915 = vmatpush.bf16.msra.mxu0 %v3871
      %6916 = vmatmul.bf16.gmra.mxu0 %v278
      %v6917 = vpop.f32.mrf.mxu0
      %v6918 = vadd.f32 %v6900, %v6917
      %v6919 = vpop.f32.mrf.mxu0
      %v6920 = vadd.f32 %v6902, %v6919
      %6921 = vmatmul.bf16.gmra.mxu0 %v293
      %v6922 = vpop.f32.mrf.mxu0
      %v6923 = vadd.f32 %v6905, %v6922
      %v6924 = vpop.f32.mrf.mxu0
      %6925 = vdwg.mxu0
      %6926 = vmatpush.bf16.msra.mxu0 %v3931
      %6927 = vmatpush.bf16.msra.mxu0 %v3927
      %6928 = vmatpush.bf16.msra.mxu0 %v3923
      %6929 = vmatpush.bf16.msra.mxu0 %v3919
      %6930 = vmatpush.bf16.msra.mxu0 %v3915
      %6931 = vmatpush.bf16.msra.mxu0 %v3911
      %6932 = vmatpush.bf16.msra.mxu0 %v3907
      %6933 = vmatpush.bf16.msra.mxu0 %v3903
      %6934 = vmatmul.bf16.gmra.mxu0 %v290
      %v6935 = vpop.f32.mrf.mxu0
      %v6936 = vadd.f32 %v6918, %v6935
      %v6937 = vpop.f32.mrf.mxu0
      %v6938 = vadd.f32 %v6920, %v6937
      %6939 = vmatmul.bf16.gmra.mxu0 %v296
      %v6940 = vpop.f32.mrf.mxu0
      %v6941 = vadd.f32 %v6923, %v6940
      %v6942 = vpop.f32.mrf.mxu0
      %6943 = vdwg.mxu0
      %6944 = vmatpush.bf16.msra.mxu0 %v3963
      %6945 = vmatpush.bf16.msra.mxu0 %v3959
      %6946 = vmatpush.bf16.msra.mxu0 %v3955
      %6947 = vmatpush.bf16.msra.mxu0 %v3951
      %6948 = vmatpush.bf16.msra.mxu0 %v3947
      %6949 = vmatpush.bf16.msra.mxu0 %v3943
      %6950 = vmatpush.bf16.msra.mxu0 %v3939
      %6951 = vmatpush.bf16.msra.mxu0 %v3935
      %6952 = vmatmul.bf16.gmra.mxu0 %v304
      %v6953 = vpop.f32.mrf.mxu0
      %v6954 = vadd.f32 %v6936, %v6953
      %v6955 = vpop.f32.mrf.mxu0
      %v6956 = vadd.f32 %v6938, %v6955
      %6957 = vmatmul.bf16.gmra.mxu0 %v303
      %v6958 = vpop.f32.mrf.mxu0
      %v6959 = vadd.f32 %v6941, %v6958
      %v6960 = vpop.f32.mrf.mxu0
      %6961 = vdwg.mxu0
      %6962 = vmatpush.bf16.msra.mxu0 %v3995
      %6963 = vmatpush.bf16.msra.mxu0 %v3991
      %6964 = vmatpush.bf16.msra.mxu0 %v3987
      %6965 = vmatpush.bf16.msra.mxu0 %v3983
      %6966 = vmatpush.bf16.msra.mxu0 %v3979
      %6967 = vmatpush.bf16.msra.mxu0 %v3975
      %6968 = vmatpush.bf16.msra.mxu0 %v3971
      %6969 = vmatpush.bf16.msra.mxu0 %v3967
      %6970 = vmatmul.bf16.gmra.mxu0 %v307
      %v6971 = vpop.f32.mrf.mxu0
      %v6972 = vadd.f32 %v6954, %v6971
      %v6973 = vpop.f32.mrf.mxu0
      %v6974 = vadd.f32 %v6956, %v6973
      %6975 = vmatmul.bf16.gmra.mxu0 %v306
      %v6976 = vpop.f32.mrf.mxu0
      %v6977 = vadd.f32 %v6959, %v6976
      %v6978 = vpop.f32.mrf.mxu0
      %6979 = vdwg.mxu0
      %6980 = vmatpush.bf16.msra.mxu0 %v4027
      %6981 = vmatpush.bf16.msra.mxu0 %v4023
      %6982 = vmatpush.bf16.msra.mxu0 %v4019
      %6983 = vmatpush.bf16.msra.mxu0 %v4015
      %6984 = vmatpush.bf16.msra.mxu0 %v4011
      %6985 = vmatpush.bf16.msra.mxu0 %v4007
      %6986 = vmatpush.bf16.msra.mxu0 %v4003
      %6987 = vmatpush.bf16.msra.mxu0 %v3999
      %6988 = vmatmul.bf16.gmra.mxu0 %v319
      %v6989 = vpop.f32.mrf.mxu0
      %v6990 = vadd.f32 %v6972, %v6989
      %v6991 = vpop.f32.mrf.mxu0
      %v6992 = vadd.f32 %v6974, %v6991
      %6993 = vmatmul.bf16.gmra.mxu0 %v318
      %v6994 = vpop.f32.mrf.mxu0
      %v6995 = vadd.f32 %v6977, %v6994
      %v6996 = vpop.f32.mrf.mxu0
      %6997 = vdwg.mxu0
      %6998 = vmatpush.bf16.msra.mxu0 %v4059
      %6999 = vmatpush.bf16.msra.mxu0 %v4055
      %7000 = vmatpush.bf16.msra.mxu0 %v4051
      %7001 = vmatpush.bf16.msra.mxu0 %v4047
      %7002 = vmatpush.bf16.msra.mxu0 %v4043
      %7003 = vmatpush.bf16.msra.mxu0 %v4039
      %7004 = vmatpush.bf16.msra.mxu0 %v4035
      %7005 = vmatpush.bf16.msra.mxu0 %v4031
      %7006 = vmatmul.bf16.gmra.mxu0 %v326
      %v7007 = vpop.f32.mrf.mxu0
      %v7008 = vadd.f32 %v6990, %v7007
      %v7009 = vpop.f32.mrf.mxu0
      %v7010 = vadd.f32 %v6992, %v7009
      %7011 = vmatmul.bf16.gmra.mxu0 %v325
      %v7012 = vpop.f32.mrf.mxu0
      %v7013 = vadd.f32 %v6995, %v7012
      %v7014 = vpop.f32.mrf.mxu0
      %7015 = vdwg.mxu0
      %7016 = vmatpush.bf16.msra.mxu0 %v4091
      %7017 = vmatpush.bf16.msra.mxu0 %v4087
      %7018 = vmatpush.bf16.msra.mxu0 %v4083
      %7019 = vmatpush.bf16.msra.mxu0 %v4079
      %7020 = vmatpush.bf16.msra.mxu0 %v4075
      %7021 = vmatpush.bf16.msra.mxu0 %v4071
      %7022 = vmatpush.bf16.msra.mxu0 %v4067
      %7023 = vmatpush.bf16.msra.mxu0 %v4063
      %7024 = vmatmul.bf16.gmra.mxu0 %v334
      %v7025 = vpop.f32.mrf.mxu0
      %v7026 = vadd.f32 %v7008, %v7025
      %v7027 = vpop.f32.mrf.mxu0
      %v7028 = vadd.f32 %v7010, %v7027
      %7029 = vmatmul.bf16.gmra.mxu0 %v333
      %v7030 = vpop.f32.mrf.mxu0
      %v7031 = vadd.f32 %v7013, %v7030
      %v7032 = vpop.f32.mrf.mxu0
      %7033 = vdwg.mxu0
      %7034 = vmatpush.bf16.msra.mxu0 %v4123
      %7035 = vmatpush.bf16.msra.mxu0 %v4119
      %7036 = vmatpush.bf16.msra.mxu0 %v4115
      %7037 = vmatpush.bf16.msra.mxu0 %v4111
      %7038 = vmatpush.bf16.msra.mxu0 %v4107
      %7039 = vmatpush.bf16.msra.mxu0 %v4103
      %7040 = vmatpush.bf16.msra.mxu0 %v4099
      %7041 = vmatpush.bf16.msra.mxu0 %v4095
      %7042 = vmatmul.bf16.gmra.mxu0 %v337
      %v7043 = vpop.f32.mrf.mxu0
      %v7044 = vadd.f32 %v7026, %v7043
      %v7045 = vpop.f32.mrf.mxu0
      %v7046 = vadd.f32 %v7028, %v7045
      %7047 = vmatmul.bf16.gmra.mxu0 %v336
      %v7048 = vpop.f32.mrf.mxu0
      %v7049 = vadd.f32 %v7031, %v7048
      %v7050 = vpop.f32.mrf.mxu0
      %7051 = vdwg.mxu0
      %7052 = vmatpush.bf16.msra.mxu0 %v4155
      %7053 = vmatpush.bf16.msra.mxu0 %v4151
      %7054 = vmatpush.bf16.msra.mxu0 %v4147
      %7055 = vmatpush.bf16.msra.mxu0 %v4143
      %7056 = vmatpush.bf16.msra.mxu0 %v4139
      %7057 = vmatpush.bf16.msra.mxu0 %v4135
      %7058 = vmatpush.bf16.msra.mxu0 %v4131
      %7059 = vmatpush.bf16.msra.mxu0 %v4127
      %7060 = vmatmul.bf16.gmra.mxu0 %v349
      %v7061 = vpop.f32.mrf.mxu0
      %v7062 = vadd.f32 %v7044, %v7061
      %v7063 = vpop.f32.mrf.mxu0
      %v7064 = vadd.f32 %v7046, %v7063
      %7065 = vmatmul.bf16.gmra.mxu0 %v348
      %v7066 = vpop.f32.mrf.mxu0
      %v7067 = vadd.f32 %v7049, %v7066
      %v7068 = vpop.f32.mrf.mxu0
      %7069 = vdwg.mxu0
      %7070 = vmatpush.bf16.msra.mxu0 %v4187
      %7071 = vmatpush.bf16.msra.mxu0 %v4183
      %7072 = vmatpush.bf16.msra.mxu0 %v4179
      %7073 = vmatpush.bf16.msra.mxu0 %v4175
      %7074 = vmatpush.bf16.msra.mxu0 %v4171
      %7075 = vmatpush.bf16.msra.mxu0 %v4167
      %7076 = vmatpush.bf16.msra.mxu0 %v4163
      %7077 = vmatpush.bf16.msra.mxu0 %v4159
      %7078 = vmatmul.bf16.gmra.mxu0 %v356
      %v7079 = vpop.f32.mrf.mxu0
      %v7080 = vadd.f32 %v7062, %v7079
      %v7081 = vpop.f32.mrf.mxu0
      %v7082 = vadd.f32 %v7064, %v7081
      %7083 = vmatmul.bf16.gmra.mxu0 %v355
      %v7084 = vpop.f32.mrf.mxu0
      %v7085 = vadd.f32 %v7067, %v7084
      %v7086 = vpop.f32.mrf.mxu0
      %7087 = vdwg.mxu0
      %7088 = vmatpush.bf16.msra.mxu0 %v4219
      %7089 = vmatpush.bf16.msra.mxu0 %v4215
      %7090 = vmatpush.bf16.msra.mxu0 %v4211
      %7091 = vmatpush.bf16.msra.mxu0 %v4207
      %7092 = vmatpush.bf16.msra.mxu0 %v4203
      %7093 = vmatpush.bf16.msra.mxu0 %v4199
      %7094 = vmatpush.bf16.msra.mxu0 %v4195
      %7095 = vmatpush.bf16.msra.mxu0 %v4191
      %7096 = vmatmul.bf16.gmra.mxu0 %v364
      %v7097 = vpop.f32.mrf.mxu0
      %v7098 = vadd.f32 %v7080, %v7097
      %v7099 = vpop.f32.mrf.mxu0
      %v7100 = vadd.f32 %v7082, %v7099
      %7101 = vmatmul.bf16.gmra.mxu0 %v363
      %v7102 = vpop.f32.mrf.mxu0
      %v7103 = vadd.f32 %v7085, %v7102
      %v7104 = vpop.f32.mrf.mxu0
      %7105 = vdwg.mxu0
      %7106 = vmatpush.bf16.msra.mxu0 %v4251
      %7107 = vmatpush.bf16.msra.mxu0 %v4247
      %7108 = vmatpush.bf16.msra.mxu0 %v4243
      %7109 = vmatpush.bf16.msra.mxu0 %v4239
      %7110 = vmatpush.bf16.msra.mxu0 %v4235
      %7111 = vmatpush.bf16.msra.mxu0 %v4231
      %7112 = vmatpush.bf16.msra.mxu0 %v4227
      %7113 = vmatpush.bf16.msra.mxu0 %v4223
      %7114 = vmatmul.bf16.gmra.mxu0 %v367
      %v7115 = vpop.f32.mrf.mxu0
      %v7116 = vadd.f32 %v7098, %v7115
      %v7117 = vpop.f32.mrf.mxu0
      %v7118 = vadd.f32 %v7100, %v7117
      %7119 = vmatmul.bf16.gmra.mxu0 %v366
      %v7120 = vpop.f32.mrf.mxu0
      %v7121 = vadd.f32 %v7103, %v7120
      %v7122 = vpop.f32.mrf.mxu0
      %7123 = vdwg.mxu0
      %7124 = vmatpush.bf16.msra.mxu0 %v4283
      %7125 = vmatpush.bf16.msra.mxu0 %v4279
      %7126 = vmatpush.bf16.msra.mxu0 %v4275
      %7127 = vmatpush.bf16.msra.mxu0 %v4271
      %7128 = vmatpush.bf16.msra.mxu0 %v4267
      %7129 = vmatpush.bf16.msra.mxu0 %v4263
      %7130 = vmatpush.bf16.msra.mxu0 %v4259
      %7131 = vmatpush.bf16.msra.mxu0 %v4255
      %7132 = vmatmul.bf16.gmra.mxu0 %v379
      %v7133 = vpop.f32.mrf.mxu0
      %v7134 = vadd.f32 %v7116, %v7133
      %v7135 = vpop.f32.mrf.mxu0
      %v7136 = vadd.f32 %v7118, %v7135
      %7137 = vmatmul.bf16.gmra.mxu0 %v378
      %v7138 = vpop.f32.mrf.mxu0
      %v7139 = vadd.f32 %v7121, %v7138
      %v7140 = vpop.f32.mrf.mxu0
      %7141 = vdwg.mxu0
      %7142 = vmatpush.bf16.msra.mxu0 %v4315
      %7143 = vmatpush.bf16.msra.mxu0 %v4311
      %7144 = vmatpush.bf16.msra.mxu0 %v4307
      %7145 = vmatpush.bf16.msra.mxu0 %v4303
      %7146 = vmatpush.bf16.msra.mxu0 %v4299
      %7147 = vmatpush.bf16.msra.mxu0 %v4295
      %7148 = vmatpush.bf16.msra.mxu0 %v4291
      %7149 = vmatpush.bf16.msra.mxu0 %v4287
      %7150 = vmatmul.bf16.gmra.mxu0 %v386
      %v7151 = vpop.f32.mrf.mxu0
      %v7152 = vadd.f32 %v7134, %v7151
      %v7153 = vpop.f32.mrf.mxu0
      %v7154 = vadd.f32 %v7136, %v7153
      %7155 = vmatmul.bf16.gmra.mxu0 %v385
      %v7156 = vpop.f32.mrf.mxu0
      %v7157 = vadd.f32 %v7139, %v7156
      %v7158 = vpop.f32.mrf.mxu0
      %7159 = vdwg.mxu0
      %7160 = vmatpush.bf16.msra.mxu0 %v4347
      %7161 = vmatpush.bf16.msra.mxu0 %v4343
      %7162 = vmatpush.bf16.msra.mxu0 %v4339
      %7163 = vmatpush.bf16.msra.mxu0 %v4335
      %7164 = vmatpush.bf16.msra.mxu0 %v4331
      %7165 = vmatpush.bf16.msra.mxu0 %v4327
      %7166 = vmatpush.bf16.msra.mxu0 %v4323
      %7167 = vmatpush.bf16.msra.mxu0 %v4319
      %7168 = vmatmul.bf16.gmra.mxu0 %v391
      %v7169 = vpop.f32.mrf.mxu0
      %v7170 = vadd.f32 %v7152, %v7169
      %v7171 = vpop.f32.mrf.mxu0
      %v7172 = vadd.f32 %v7154, %v7171
      %7173 = vmatmul.bf16.gmra.mxu0 %v393
      %v7174 = vpop.f32.mrf.mxu0
      %v7175 = vadd.f32 %v7157, %v7174
      %v7176 = vpop.f32.mrf.mxu0
      %7177 = vdwg.mxu0
      %7178 = vmatpush.bf16.msra.mxu0 %v4379
      %7179 = vmatpush.bf16.msra.mxu0 %v4375
      %7180 = vmatpush.bf16.msra.mxu0 %v4371
      %7181 = vmatpush.bf16.msra.mxu0 %v4367
      %7182 = vmatpush.bf16.msra.mxu0 %v4363
      %7183 = vmatpush.bf16.msra.mxu0 %v4359
      %7184 = vmatpush.bf16.msra.mxu0 %v4355
      %7185 = vmatpush.bf16.msra.mxu0 %v4351
      %7186 = vmatmul.bf16.gmra.mxu0 %v392
      %v7187 = vpop.f32.mrf.mxu0
      %v7188 = vadd.f32 %v7170, %v7187
      %v7189 = vpop.f32.mrf.mxu0
      %v7190 = vadd.f32 %v7172, %v7189
      %7191 = vmatmul.bf16.gmra.mxu0 %v394
      %v7192 = vpop.f32.mrf.mxu0
      %v7193 = vadd.f32 %v7175, %v7192
      %v7194 = vpop.f32.mrf.mxu0
      %7195 = vdwg.mxu0
      %7196 = vmatpush.bf16.msra.mxu0 %v4411
      %7197 = vmatpush.bf16.msra.mxu0 %v4407
      %7198 = vmatpush.bf16.msra.mxu0 %v4403
      %7199 = vmatpush.bf16.msra.mxu0 %v4399
      %7200 = vmatpush.bf16.msra.mxu0 %v4395
      %7201 = vmatpush.bf16.msra.mxu0 %v4391
      %7202 = vmatpush.bf16.msra.mxu0 %v4387
      %7203 = vmatpush.bf16.msra.mxu0 %v4383
      %7204 = vmatmul.bf16.gmra.mxu0 %v415
      %v7205 = vpop.f32.mrf.mxu0
      %v7206 = vadd.f32 %v7188, %v7205
      %v7207 = vpop.f32.mrf.mxu0
      %v7208 = vadd.f32 %v7190, %v7207
      %7209 = vmatmul.bf16.gmra.mxu0 %v430
      %v7210 = vpop.f32.mrf.mxu0
      %v7211 = vadd.f32 %v7193, %v7210
      %v7212 = vpop.f32.mrf.mxu0
      %7213 = vdwg.mxu0
      %7214 = vmatpush.bf16.msra.mxu0 %v4443
      %7215 = vmatpush.bf16.msra.mxu0 %v4439
      %7216 = vmatpush.bf16.msra.mxu0 %v4435
      %7217 = vmatpush.bf16.msra.mxu0 %v4431
      %7218 = vmatpush.bf16.msra.mxu0 %v4427
      %7219 = vmatpush.bf16.msra.mxu0 %v4423
      %7220 = vmatpush.bf16.msra.mxu0 %v4419
      %7221 = vmatpush.bf16.msra.mxu0 %v4415
      %7222 = vmatmul.bf16.gmra.mxu0 %v427
      %v7223 = vpop.f32.mrf.mxu0
      %v7224 = vadd.f32 %v7206, %v7223
      %v7225 = vpop.f32.mrf.mxu0
      %v7226 = vadd.f32 %v7208, %v7225
      %7227 = vmatmul.bf16.gmra.mxu0 %v433
      %v7228 = vpop.f32.mrf.mxu0
      %v7229 = vadd.f32 %v7211, %v7228
      %v7230 = vpop.f32.mrf.mxu0
      %7231 = vdwg.mxu0
      %7232 = vmatpush.bf16.msra.mxu0 %v4475
      %7233 = vmatpush.bf16.msra.mxu0 %v4471
      %7234 = vmatpush.bf16.msra.mxu0 %v4467
      %7235 = vmatpush.bf16.msra.mxu0 %v4463
      %7236 = vmatpush.bf16.msra.mxu0 %v4459
      %7237 = vmatpush.bf16.msra.mxu0 %v4455
      %7238 = vmatpush.bf16.msra.mxu0 %v4451
      %7239 = vmatpush.bf16.msra.mxu0 %v4447
      %7240 = vmatmul.bf16.gmra.mxu0 %v440
      %v7241 = vpop.f32.mrf.mxu0
      %v7242 = vadd.f32 %v7224, %v7241
      %v7243 = vpop.f32.mrf.mxu0
      %v7244 = vadd.f32 %v7226, %v7243
      %7245 = vmatmul.bf16.gmra.mxu0 %v439
      %v7246 = vpop.f32.mrf.mxu0
      %v7247 = vadd.f32 %v7229, %v7246
      %v7248 = vpop.f32.mrf.mxu0
      %7249 = vdwg.mxu0
      %7250 = vmatpush.bf16.msra.mxu0 %v4507
      %7251 = vmatpush.bf16.msra.mxu0 %v4503
      %7252 = vmatpush.bf16.msra.mxu0 %v4499
      %7253 = vmatpush.bf16.msra.mxu0 %v4495
      %7254 = vmatpush.bf16.msra.mxu0 %v4491
      %7255 = vmatpush.bf16.msra.mxu0 %v4487
      %7256 = vmatpush.bf16.msra.mxu0 %v4483
      %7257 = vmatpush.bf16.msra.mxu0 %v4479
      %7258 = vmatmul.bf16.gmra.mxu0 %v443
      %v7259 = vpop.f32.mrf.mxu0
      %v7260 = vadd.f32 %v7242, %v7259
      %v7261 = vpop.f32.mrf.mxu0
      %v7262 = vadd.f32 %v7244, %v7261
      %7263 = vmatmul.bf16.gmra.mxu0 %v442
      %v7264 = vpop.f32.mrf.mxu0
      %v7265 = vadd.f32 %v7247, %v7264
      %v7266 = vpop.f32.mrf.mxu0
      %7267 = vdwg.mxu0
      %7268 = vmatpush.bf16.msra.mxu0 %v4539
      %7269 = vmatpush.bf16.msra.mxu0 %v4535
      %7270 = vmatpush.bf16.msra.mxu0 %v4531
      %7271 = vmatpush.bf16.msra.mxu0 %v4527
      %7272 = vmatpush.bf16.msra.mxu0 %v4523
      %7273 = vmatpush.bf16.msra.mxu0 %v4519
      %7274 = vmatpush.bf16.msra.mxu0 %v4515
      %7275 = vmatpush.bf16.msra.mxu0 %v4511
      %7276 = vmatmul.bf16.gmra.mxu0 %v454
      %v7277 = vpop.f32.mrf.mxu0
      %v7278 = vadd.f32 %v7260, %v7277
      %v7279 = vpop.f32.mrf.mxu0
      %v7280 = vadd.f32 %v7262, %v7279
      %7281 = vmatmul.bf16.gmra.mxu0 %v453
      %v7282 = vpop.f32.mrf.mxu0
      %v7283 = vadd.f32 %v7265, %v7282
      %v7284 = vpop.f32.mrf.mxu0
      %7285 = vdwg.mxu0
      %7286 = vmatpush.bf16.msra.mxu0 %v4571
      %7287 = vmatpush.bf16.msra.mxu0 %v4567
      %7288 = vmatpush.bf16.msra.mxu0 %v4563
      %7289 = vmatpush.bf16.msra.mxu0 %v4559
      %7290 = vmatpush.bf16.msra.mxu0 %v4555
      %7291 = vmatpush.bf16.msra.mxu0 %v4551
      %7292 = vmatpush.bf16.msra.mxu0 %v4547
      %7293 = vmatpush.bf16.msra.mxu0 %v4543
      %7294 = vmatmul.bf16.gmra.mxu0 %v461
      %v7295 = vpop.f32.mrf.mxu0
      %v7296 = vadd.f32 %v7278, %v7295
      %v7297 = vpop.f32.mrf.mxu0
      %v7298 = vadd.f32 %v7280, %v7297
      %7299 = vmatmul.bf16.gmra.mxu0 %v460
      %v7300 = vpop.f32.mrf.mxu0
      %v7301 = vadd.f32 %v7283, %v7300
      %v7302 = vpop.f32.mrf.mxu0
      %7303 = vdwg.mxu0
      %7304 = vmatpush.bf16.msra.mxu0 %v4603
      %7305 = vmatpush.bf16.msra.mxu0 %v4599
      %7306 = vmatpush.bf16.msra.mxu0 %v4595
      %7307 = vmatpush.bf16.msra.mxu0 %v4591
      %7308 = vmatpush.bf16.msra.mxu0 %v4587
      %7309 = vmatpush.bf16.msra.mxu0 %v4583
      %7310 = vmatpush.bf16.msra.mxu0 %v4579
      %7311 = vmatpush.bf16.msra.mxu0 %v4575
      %7312 = vmatmul.bf16.gmra.mxu0 %v468
      %v7313 = vpop.f32.mrf.mxu0
      %v7314 = vadd.f32 %v7296, %v7313
      %v7315 = vpop.f32.mrf.mxu0
      %v7316 = vadd.f32 %v7298, %v7315
      %7317 = vmatmul.bf16.gmra.mxu0 %v467
      %v7318 = vpop.f32.mrf.mxu0
      %v7319 = vadd.f32 %v7301, %v7318
      %v7320 = vpop.f32.mrf.mxu0
      %7321 = vdwg.mxu0
      %7322 = vmatpush.bf16.msra.mxu0 %v4635
      %7323 = vmatpush.bf16.msra.mxu0 %v4631
      %7324 = vmatpush.bf16.msra.mxu0 %v4627
      %7325 = vmatpush.bf16.msra.mxu0 %v4623
      %7326 = vmatpush.bf16.msra.mxu0 %v4619
      %7327 = vmatpush.bf16.msra.mxu0 %v4615
      %7328 = vmatpush.bf16.msra.mxu0 %v4611
      %7329 = vmatpush.bf16.msra.mxu0 %v4607
      %7330 = vmatmul.bf16.gmra.mxu0 %v471
      %v7331 = vpop.f32.mrf.mxu0
      %v7332 = vadd.f32 %v7314, %v7331
      %v7333 = vpop.f32.mrf.mxu0
      %v7334 = vadd.f32 %v7316, %v7333
      %7335 = vmatmul.bf16.gmra.mxu0 %v470
      %v7336 = vpop.f32.mrf.mxu0
      %v7337 = vadd.f32 %v7319, %v7336
      %v7338 = vpop.f32.mrf.mxu0
      %7339 = vdwg.mxu0
      %v7340 = vld [vmem:[%s2] sm:$0x3]
      %v7342 = vperm.slane %v7340, 0
      %v7343 = vperm.slane %v7340, 1
      %v7346 = vadd.f32 %v5928, %v7342
      %v7347 = vadd.f32 %v6396, %v7343
      %v7348 = vadd.f32 %v5930, %v7342
      %v7349 = vadd.f32 %v6398, %v7343
      %v7350 = vadd.f32 %v5933, %v7342
      %v7351 = vadd.f32 %v6401, %v7343
      %v7352 = vadd.f32 %v6864, %v7342
      %v7353 = vadd.f32 %v7332, %v7343
      %v7354 = vadd.f32 %v6866, %v7342
      %v7355 = vadd.f32 %v7334, %v7343
      %v7356 = vadd.f32 %v6869, %v7342
      %v7357 = vadd.f32 %v7337, %v7343
      %v7358 = vmax.f32 %v7346, %v7352
      %v7359 = vmax.f32 %v7347, %v7353
      %v7360 = vmax.f32 %v7348, %v7354
      %v7361 = vmax.f32 %v7349, %v7355
      %v7362 = vmax.f32 %v7350, %v7356
      %v7363 = vmax.f32 %v7351, %v7357
      %v7364 = vmax.f32 %v7358, 0.0
      %v7365 = vmax.f32 %v7359, 0.0
      %v7366 = vmax.f32 %v7360, 0.0
      %v7367 = vmax.f32 %v7361, 0.0
      %v7368 = vmax.f32 %v7362, 0.0
      %v7369 = vmax.f32 %v7363, 0.0
      %s7370 = ssub.s32 %s201, 8
      %v7371 = vlaneseq
      %v7372 = vshrl.u32 %v7371, 7
      %v7373 = vadd.s32 %v7372, 8
      %v7374 = vadd.s32 %v7372, 16
      %v7375 = vstv %s7370
      %v7376 = vadd.s32 %v7375, %v7372
      %v7377 = vadd.s32 %v7375, %v7373
      %v7378 = vadd.s32 %v7375, %v7374
      %vm7379 = vcmp.ge.s32.totalorder %v7376, 0
      %vm7380 = vcmp.ge.s32.totalorder %v7377, 0
      %vm7381 = vcmp.ge.s32.totalorder %v7378, 0
      %vm7382 = vcmp.lt.s32.totalorder %v7376, 8
      %vm7383 = vcmp.lt.s32.totalorder %v7377, 8
      %vm7384 = vcmp.lt.s32.totalorder %v7378, 8
      %vm7385 = vmand %vm7379, %vm7382
      %vm7386 = vmand %vm7380, %vm7383
      %vm7387 = vmand %vm7381, %vm7384
      %v7388 = vsel %vm7385, 1, 0
      %v7389 = vsel %vm7386, 1, 0
      %v7390 = vsel %vm7387, 1, 0
      %vm7391 = vcmp.eq.s32.totalorder %v7388, 1
      %vm7392 = vcmp.eq.s32.totalorder %v7389, 1
      %vm7393 = vcmp.eq.s32.totalorder %v7390, 1
      %v7394 = vsel %vm7391, %v7364, 0.0
      %v7395 = vsel %vm7391, %v7365, 0.0
      %v7396 = vsel %vm7392, %v7366, 0.0
      %v7397 = vsel %vm7392, %v7367, 0.0
      %v7398 = vsel %vm7393, %v7368, 0.0
      %v7399 = vsel %vm7393, %v7369, 0.0
      %v7400 = vpack.c.bf16 %v7395, %v7394
      %v7401 = vpack.c.bf16 %v7397, %v7396
      %v7402 = vpack.c.bf16 %v7399, %v7398
      %v7405 = vunpack.c.l.b16 %v7400
      %v7406 = vunpack.c.h.b16 %v7400
      %v7407 = vunpack.c.l.b16 %v7401
      %v7408 = vunpack.c.h.b16 %v7401
      %v7409 = vpack.c.b16 %v7407, %v7405
      %v7410 = vpack.c.b16 %v7408, %v7406
      %v7412 = vshrl.u32 %v7409, 16
      %v7414 = vshll.u32 %v7409, 16
      %v7416 = vrot.slane %v7414, 1
      %v7417 = vor.u32 %v7412, %v7416
      %v7419 = vshrl.u32 %v7410, 16
      %v7421 = vshll.u32 %v7410, 16
      %v7423 = vrot.slane %v7421, 1
      %v7424 = vor.u32 %v7419, %v7423
      %v7425 = vrot.slane %v7409, 1
      %v7426 = vrot.slane %v7410, 1
      %v7427 = vrot.slane %v7412, 1
      %v7428 = vrot.slane %v7414, 2
      %v7429 = vor.u32 %v7427, %v7428
      %v7430 = vrot.slane %v7419, 1
      %v7431 = vrot.slane %v7421, 2
      %v7432 = vor.u32 %v7430, %v7431
      %v7433 = vrot.slane %v7409, 2
      %v7434 = vrot.slane %v7410, 2
      %v7435 = vrot.slane %v7412, 2
      %v7436 = vrot.slane %v7414, 3
      %v7437 = vor.u32 %v7435, %v7436
      %v7438 = vrot.slane %v7419, 2
      %v7439 = vrot.slane %v7421, 3
      %v7440 = vor.u32 %v7438, %v7439
      %v7441 = vpack.c.b16 %v7407, %v7407
      %v7442 = vpack.c.b16 %v7408, %v7408
      %v7443 = vrot.slane %v7441, 7
      %v7444 = vrot.slane %v7442, 7
      %v7446 = vunpack.c.l.b16 %v7402
      %v7447 = vunpack.c.h.b16 %v7402
      %v7448 = vpack.c.b16 %v7446, %v7407
      %v7449 = vpack.c.b16 %v7447, %v7408
      %v7451 = vshrl.u32 %v7448, 16
      %v7453 = vrot.slane %v7451, 7
      %v7454 = vshll.u32 %v7448, 16
      %v7456 = vor.u32 %v7453, %v7454
      %v7458 = vshrl.u32 %v7449, 16
      %v7460 = vrot.slane %v7458, 7
      %v7461 = vshll.u32 %v7449, 16
      %v7463 = vor.u32 %v7460, %v7461
      %v7464 = vrot.slane %v7454, 1
      %v7465 = vor.u32 %v7451, %v7464
      %v7466 = vrot.slane %v7461, 1
      %v7467 = vor.u32 %v7458, %v7466
      %v7468 = vrot.slane %v7448, 1
      %v7469 = vrot.slane %v7449, 1
      %v7470 = vrot.slane %v7451, 1
      %v7471 = vrot.slane %v7454, 2
      %v7472 = vor.u32 %v7470, %v7471
      %v7473 = vrot.slane %v7458, 1
      %v7474 = vrot.slane %v7461, 2
      %v7475 = vor.u32 %v7473, %v7474
      %v7476 = vrot.slane %v7448, 2
      %v7477 = vrot.slane %v7449, 2
      %v7478 = vld [vmem:[%s3] sm:$0xff]
      %v7479 = vld [vmem:[%s3 + $0x8] sm:$0xff]
      %v7480 = vld [vmem:[%s3 + $0x10] sm:$0xff]
      %v7481 = vld [vmem:[%s3 + $0x18] sm:$0xff]
      %v7482 = vld [vmem:[%s3 + $0x20] sm:$0xff]
      %v7483 = vld [vmem:[%s3 + $0x28] sm:$0xff]
      %v7484 = vld [vmem:[%s3 + $0x30] sm:$0xff]
      %v7485 = vld [vmem:[%s3 + $0x38] sm:$0xff]
      %v7486 = vld [vmem:[%s3 + $0x40] sm:$0xff]
      %v7487 = vld [vmem:[%s3 + $0x48] sm:$0xff]
      %v7488 = vld [vmem:[%s3 + $0x50] sm:$0xff]
      %v7489 = vld [vmem:[%s3 + $0x58] sm:$0xff]
      %v7490 = vld [vmem:[%s3 + $0x60] sm:$0xff]
      %v7491 = vld [vmem:[%s3 + $0x68] sm:$0xff]
      %v7492 = vld [vmem:[%s3 + $0x70] sm:$0xff]
      %v7493 = vld [vmem:[%s3 + $0x78] sm:$0xff]
      %v7494 = vld [vmem:[%s3 + $0x80] sm:$0xff]
      %v7495 = vld [vmem:[%s3 + $0x88] sm:$0xff]
      %v7496 = vld [vmem:[%s3 + $0x90] sm:$0xff]
      %v7497 = vld [vmem:[%s3 + $0x98] sm:$0xff]
      %v7498 = vld [vmem:[%s3 + $0xa0] sm:$0xff]
      %v7499 = vld [vmem:[%s3 + $0xa8] sm:$0xff]
      %v7500 = vld [vmem:[%s3 + $0xb0] sm:$0xff]
      %v7501 = vld [vmem:[%s3 + $0xb8] sm:$0xff]
      %v7502 = vld [vmem:[%s3 + $0xc0] sm:$0xff]
      %v7503 = vld [vmem:[%s3 + $0xc8] sm:$0xff]
      %v7504 = vld [vmem:[%s3 + $0xd0] sm:$0xff]
      %v7505 = vld [vmem:[%s3 + $0xd8] sm:$0xff]
      %v7506 = vld [vmem:[%s3 + $0xe0] sm:$0xff]
      %v7507 = vld [vmem:[%s3 + $0xe8] sm:$0xff]
      %v7508 = vld [vmem:[%s3 + $0xf0] sm:$0xff]
      %v7509 = vld [vmem:[%s3 + $0xf8] sm:$0xff]
      %v7510 = vld [vmem:[%s3 + $0x100] sm:$0xff]
      %v7511 = vld [vmem:[%s3 + $0x108] sm:$0xff]
      %v7512 = vld [vmem:[%s3 + $0x110] sm:$0xff]
      %v7513 = vld [vmem:[%s3 + $0x118] sm:$0xff]
      %v7514 = vld [vmem:[%s3 + $0x120] sm:$0xff]
      %v7515 = vld [vmem:[%s3 + $0x128] sm:$0xff]
      %v7516 = vld [vmem:[%s3 + $0x130] sm:$0xff]
      %v7517 = vld [vmem:[%s3 + $0x138] sm:$0xff]
      %v7518 = vld [vmem:[%s3 + $0x140] sm:$0xff]
      %v7519 = vld [vmem:[%s3 + $0x148] sm:$0xff]
      %v7520 = vld [vmem:[%s3 + $0x150] sm:$0xff]
      %v7521 = vld [vmem:[%s3 + $0x158] sm:$0xff]
      %v7522 = vld [vmem:[%s3 + $0x160] sm:$0xff]
      %v7523 = vld [vmem:[%s3 + $0x168] sm:$0xff]
      %v7524 = vld [vmem:[%s3 + $0x170] sm:$0xff]
      %v7525 = vld [vmem:[%s3 + $0x178] sm:$0xff]
      %v7526 = vld [vmem:[%s3 + $0x180] sm:$0xff]
      %v7527 = vld [vmem:[%s3 + $0x188] sm:$0xff]
      %v7528 = vld [vmem:[%s3 + $0x190] sm:$0xff]
      %v7529 = vld [vmem:[%s3 + $0x198] sm:$0xff]
      %v7530 = vld [vmem:[%s3 + $0x1a0] sm:$0xff]
      %v7531 = vld [vmem:[%s3 + $0x1a8] sm:$0xff]
      %v7532 = vld [vmem:[%s3 + $0x1b0] sm:$0xff]
      %v7533 = vld [vmem:[%s3 + $0x1b8] sm:$0xff]
      %v7534 = vld [vmem:[%s3 + $0x1c0] sm:$0xff]
      %v7535 = vld [vmem:[%s3 + $0x1c8] sm:$0xff]
      %v7536 = vld [vmem:[%s3 + $0x1d0] sm:$0xff]
      %v7537 = vld [vmem:[%s3 + $0x1d8] sm:$0xff]
      %v7538 = vld [vmem:[%s3 + $0x1e0] sm:$0xff]
      %v7539 = vld [vmem:[%s3 + $0x1e8] sm:$0xff]
      %v7540 = vld [vmem:[%s3 + $0x1f0] sm:$0xff]
      %v7541 = vld [vmem:[%s3 + $0x1f8] sm:$0xff]
      %v7542 = vld [vmem:[%s3 + $0x200] sm:$0xff]
      %v7543 = vld [vmem:[%s3 + $0x208] sm:$0xff]
      %v7544 = vld [vmem:[%s3 + $0x210] sm:$0xff]
      %v7545 = vld [vmem:[%s3 + $0x218] sm:$0xff]
      %v7546 = vld [vmem:[%s3 + $0x220] sm:$0xff]
      %v7547 = vld [vmem:[%s3 + $0x228] sm:$0xff]
      %v7548 = vld [vmem:[%s3 + $0x230] sm:$0xff]
      %v7549 = vld [vmem:[%s3 + $0x238] sm:$0xff]
      %v7550 = vld [vmem:[%s3 + $0x240] sm:$0xff]
      %v7551 = vld [vmem:[%s3 + $0x248] sm:$0xff]
      %v7552 = vld [vmem:[%s3 + $0x250] sm:$0xff]
      %v7553 = vld [vmem:[%s3 + $0x258] sm:$0xff]
      %v7554 = vld [vmem:[%s3 + $0x260] sm:$0xff]
      %v7555 = vld [vmem:[%s3 + $0x268] sm:$0xff]
      %v7556 = vld [vmem:[%s3 + $0x270] sm:$0xff]
      %v7557 = vld [vmem:[%s3 + $0x278] sm:$0xff]
      %v7558 = vld [vmem:[%s3 + $0x280] sm:$0xff]
      %v7559 = vld [vmem:[%s3 + $0x288] sm:$0xff]
      %v7560 = vld [vmem:[%s3 + $0x290] sm:$0xff]
      %v7561 = vld [vmem:[%s3 + $0x298] sm:$0xff]
      %v7562 = vld [vmem:[%s3 + $0x2a0] sm:$0xff]
      %v7563 = vld [vmem:[%s3 + $0x2a8] sm:$0xff]
      %v7564 = vld [vmem:[%s3 + $0x2b0] sm:$0xff]
      %v7565 = vld [vmem:[%s3 + $0x2b8] sm:$0xff]
      %v7566 = vld [vmem:[%s3 + $0x2c0] sm:$0xff]
      %v7567 = vld [vmem:[%s3 + $0x2c8] sm:$0xff]
      %v7568 = vld [vmem:[%s3 + $0x2d0] sm:$0xff]
      %v7569 = vld [vmem:[%s3 + $0x2d8] sm:$0xff]
      %v7570 = vld [vmem:[%s3 + $0x2e0] sm:$0xff]
      %v7571 = vld [vmem:[%s3 + $0x2e8] sm:$0xff]
      %v7572 = vld [vmem:[%s3 + $0x2f0] sm:$0xff]
      %v7573 = vld [vmem:[%s3 + $0x2f8] sm:$0xff]
      %v7574 = vld [vmem:[%s3 + $0x300] sm:$0xff]
      %v7575 = vld [vmem:[%s3 + $0x308] sm:$0xff]
      %v7576 = vld [vmem:[%s3 + $0x310] sm:$0xff]
      %v7577 = vld [vmem:[%s3 + $0x318] sm:$0xff]
      %v7578 = vld [vmem:[%s3 + $0x320] sm:$0xff]
      %v7579 = vld [vmem:[%s3 + $0x328] sm:$0xff]
      %v7580 = vld [vmem:[%s3 + $0x330] sm:$0xff]
      %v7581 = vld [vmem:[%s3 + $0x338] sm:$0xff]
      %v7582 = vld [vmem:[%s3 + $0x340] sm:$0xff]
      %v7583 = vld [vmem:[%s3 + $0x348] sm:$0xff]
      %v7584 = vld [vmem:[%s3 + $0x350] sm:$0xff]
      %v7585 = vld [vmem:[%s3 + $0x358] sm:$0xff]
      %v7586 = vld [vmem:[%s3 + $0x360] sm:$0xff]
      %v7587 = vld [vmem:[%s3 + $0x368] sm:$0xff]
      %v7588 = vld [vmem:[%s3 + $0x370] sm:$0xff]
      %v7589 = vld [vmem:[%s3 + $0x378] sm:$0xff]
      %v7590 = vld [vmem:[%s3 + $0x380] sm:$0xff]
      %v7591 = vld [vmem:[%s3 + $0x388] sm:$0xff]
      %v7592 = vld [vmem:[%s3 + $0x390] sm:$0xff]
      %v7593 = vld [vmem:[%s3 + $0x398] sm:$0xff]
      %v7594 = vld [vmem:[%s3 + $0x3a0] sm:$0xff]
      %v7595 = vld [vmem:[%s3 + $0x3a8] sm:$0xff]
      %v7596 = vld [vmem:[%s3 + $0x3b0] sm:$0xff]
      %v7597 = vld [vmem:[%s3 + $0x3b8] sm:$0xff]
      %v7598 = vld [vmem:[%s3 + $0x3c0] sm:$0xff]
      %v7599 = vld [vmem:[%s3 + $0x3c8] sm:$0xff]
      %v7600 = vld [vmem:[%s3 + $0x3d0] sm:$0xff]
      %v7601 = vld [vmem:[%s3 + $0x3d8] sm:$0xff]
      %v7602 = vld [vmem:[%s3 + $0x3e0] sm:$0xff]
      %v7603 = vld [vmem:[%s3 + $0x3e8] sm:$0xff]
      %v7604 = vld [vmem:[%s3 + $0x3f0] sm:$0xff]
      %v7605 = vld [vmem:[%s3 + $0x3f8] sm:$0xff]
      %v7606 = vld [vmem:[%s3 + $0x400] sm:$0xff]
      %v7607 = vld [vmem:[%s3 + $0x408] sm:$0xff]
      %v7608 = vld [vmem:[%s3 + $0x410] sm:$0xff]
      %v7609 = vld [vmem:[%s3 + $0x418] sm:$0xff]
      %v7610 = vld [vmem:[%s3 + $0x420] sm:$0xff]
      %v7611 = vld [vmem:[%s3 + $0x428] sm:$0xff]
      %v7612 = vld [vmem:[%s3 + $0x430] sm:$0xff]
      %v7613 = vld [vmem:[%s3 + $0x438] sm:$0xff]
      %v7614 = vld [vmem:[%s3 + $0x440] sm:$0xff]
      %v7615 = vld [vmem:[%s3 + $0x448] sm:$0xff]
      %v7616 = vld [vmem:[%s3 + $0x450] sm:$0xff]
      %v7617 = vld [vmem:[%s3 + $0x458] sm:$0xff]
      %v7618 = vld [vmem:[%s3 + $0x460] sm:$0xff]
      %v7619 = vld [vmem:[%s3 + $0x468] sm:$0xff]
      %v7620 = vld [vmem:[%s3 + $0x470] sm:$0xff]
      %v7621 = vld [vmem:[%s3 + $0x478] sm:$0xff]
      %v7622 = vld [vmem:[%s3 + $0x480] sm:$0xff]
      %v7623 = vld [vmem:[%s3 + $0x488] sm:$0xff]
      %v7624 = vld [vmem:[%s3 + $0x490] sm:$0xff]
      %v7625 = vld [vmem:[%s3 + $0x498] sm:$0xff]
      %v7626 = vld [vmem:[%s3 + $0x4a0] sm:$0xff]
      %v7627 = vld [vmem:[%s3 + $0x4a8] sm:$0xff]
      %v7628 = vld [vmem:[%s3 + $0x4b0] sm:$0xff]
      %v7629 = vld [vmem:[%s3 + $0x4b8] sm:$0xff]
      %v7630 = vld [vmem:[%s3 + $0x4c0] sm:$0xff]
      %v7631 = vld [vmem:[%s3 + $0x4c8] sm:$0xff]
      %v7632 = vld [vmem:[%s3 + $0x4d0] sm:$0xff]
      %v7633 = vld [vmem:[%s3 + $0x4d8] sm:$0xff]
      %v7634 = vld [vmem:[%s3 + $0x4e0] sm:$0xff]
      %v7635 = vld [vmem:[%s3 + $0x4e8] sm:$0xff]
      %v7636 = vld [vmem:[%s3 + $0x4f0] sm:$0xff]
      %v7637 = vld [vmem:[%s3 + $0x4f8] sm:$0xff]
      %v7638 = vld [vmem:[%s3 + $0x500] sm:$0xff]
      %v7639 = vld [vmem:[%s3 + $0x508] sm:$0xff]
      %v7640 = vld [vmem:[%s3 + $0x510] sm:$0xff]
      %v7641 = vld [vmem:[%s3 + $0x518] sm:$0xff]
      %v7642 = vld [vmem:[%s3 + $0x520] sm:$0xff]
      %v7643 = vld [vmem:[%s3 + $0x528] sm:$0xff]
      %v7644 = vld [vmem:[%s3 + $0x530] sm:$0xff]
      %v7645 = vld [vmem:[%s3 + $0x538] sm:$0xff]
      %v7646 = vld [vmem:[%s3 + $0x540] sm:$0xff]
      %v7647 = vld [vmem:[%s3 + $0x548] sm:$0xff]
      %v7648 = vld [vmem:[%s3 + $0x550] sm:$0xff]
      %v7649 = vld [vmem:[%s3 + $0x558] sm:$0xff]
      %v7650 = vld [vmem:[%s3 + $0x560] sm:$0xff]
      %v7651 = vld [vmem:[%s3 + $0x568] sm:$0xff]
      %v7652 = vld [vmem:[%s3 + $0x570] sm:$0xff]
      %v7653 = vld [vmem:[%s3 + $0x578] sm:$0xff]
      %v7654 = vld [vmem:[%s3 + $0x580] sm:$0xff]
      %v7655 = vld [vmem:[%s3 + $0x588] sm:$0xff]
      %v7656 = vld [vmem:[%s3 + $0x590] sm:$0xff]
      %v7657 = vld [vmem:[%s3 + $0x598] sm:$0xff]
      %v7658 = vld [vmem:[%s3 + $0x5a0] sm:$0xff]
      %v7659 = vld [vmem:[%s3 + $0x5a8] sm:$0xff]
      %v7660 = vld [vmem:[%s3 + $0x5b0] sm:$0xff]
      %v7661 = vld [vmem:[%s3 + $0x5b8] sm:$0xff]
      %v7662 = vld [vmem:[%s3 + $0x5c0] sm:$0xff]
      %v7663 = vld [vmem:[%s3 + $0x5c8] sm:$0xff]
      %v7664 = vld [vmem:[%s3 + $0x5d0] sm:$0xff]
      %v7665 = vld [vmem:[%s3 + $0x5d8] sm:$0xff]
      %v7666 = vld [vmem:[%s3 + $0x5e0] sm:$0xff]
      %v7667 = vld [vmem:[%s3 + $0x5e8] sm:$0xff]
      %v7668 = vld [vmem:[%s3 + $0x5f0] sm:$0xff]
      %v7669 = vld [vmem:[%s3 + $0x5f8] sm:$0xff]
      %v7670 = vld [vmem:[%s3 + $0x600] sm:$0xff]
      %v7671 = vld [vmem:[%s3 + $0x608] sm:$0xff]
      %v7672 = vld [vmem:[%s3 + $0x610] sm:$0xff]
      %v7673 = vld [vmem:[%s3 + $0x618] sm:$0xff]
      %v7674 = vld [vmem:[%s3 + $0x620] sm:$0xff]
      %v7675 = vld [vmem:[%s3 + $0x628] sm:$0xff]
      %v7676 = vld [vmem:[%s3 + $0x630] sm:$0xff]
      %v7677 = vld [vmem:[%s3 + $0x638] sm:$0xff]
      %v7678 = vld [vmem:[%s3 + $0x640] sm:$0xff]
      %v7679 = vld [vmem:[%s3 + $0x648] sm:$0xff]
      %v7680 = vld [vmem:[%s3 + $0x650] sm:$0xff]
      %v7681 = vld [vmem:[%s3 + $0x658] sm:$0xff]
      %v7682 = vld [vmem:[%s3 + $0x660] sm:$0xff]
      %v7683 = vld [vmem:[%s3 + $0x668] sm:$0xff]
      %v7684 = vld [vmem:[%s3 + $0x670] sm:$0xff]
      %v7685 = vld [vmem:[%s3 + $0x678] sm:$0xff]
      %v7686 = vld [vmem:[%s3 + $0x680] sm:$0xff]
      %v7687 = vld [vmem:[%s3 + $0x688] sm:$0xff]
      %v7688 = vld [vmem:[%s3 + $0x690] sm:$0xff]
      %v7689 = vld [vmem:[%s3 + $0x698] sm:$0xff]
      %v7690 = vld [vmem:[%s3 + $0x6a0] sm:$0xff]
      %v7691 = vld [vmem:[%s3 + $0x6a8] sm:$0xff]
      %v7692 = vld [vmem:[%s3 + $0x6b0] sm:$0xff]
      %v7693 = vld [vmem:[%s3 + $0x6b8] sm:$0xff]
      %v7694 = vld [vmem:[%s3 + $0x6c0] sm:$0xff]
      %v7695 = vld [vmem:[%s3 + $0x6c8] sm:$0xff]
      %v7696 = vld [vmem:[%s3 + $0x6d0] sm:$0xff]
      %v7697 = vld [vmem:[%s3 + $0x6d8] sm:$0xff]
      %v7698 = vld [vmem:[%s3 + $0x6e0] sm:$0xff]
      %v7699 = vld [vmem:[%s3 + $0x6e8] sm:$0xff]
      %v7700 = vld [vmem:[%s3 + $0x6f0] sm:$0xff]
      %v7701 = vld [vmem:[%s3 + $0x6f8] sm:$0xff]
      %v7702 = vld [vmem:[%s3 + $0x700] sm:$0xff]
      %v7703 = vld [vmem:[%s3 + $0x708] sm:$0xff]
      %v7704 = vld [vmem:[%s3 + $0x710] sm:$0xff]
      %v7705 = vld [vmem:[%s3 + $0x718] sm:$0xff]
      %v7706 = vld [vmem:[%s3 + $0x720] sm:$0xff]
      %v7707 = vld [vmem:[%s3 + $0x728] sm:$0xff]
      %v7708 = vld [vmem:[%s3 + $0x730] sm:$0xff]
      %v7709 = vld [vmem:[%s3 + $0x738] sm:$0xff]
      %v7710 = vld [vmem:[%s3 + $0x740] sm:$0xff]
      %v7711 = vld [vmem:[%s3 + $0x748] sm:$0xff]
      %v7712 = vld [vmem:[%s3 + $0x750] sm:$0xff]
      %v7713 = vld [vmem:[%s3 + $0x758] sm:$0xff]
      %v7714 = vld [vmem:[%s3 + $0x760] sm:$0xff]
      %v7715 = vld [vmem:[%s3 + $0x768] sm:$0xff]
      %v7716 = vld [vmem:[%s3 + $0x770] sm:$0xff]
      %v7717 = vld [vmem:[%s3 + $0x778] sm:$0xff]
      %v7718 = vld [vmem:[%s3 + $0x780] sm:$0xff]
      %v7719 = vld [vmem:[%s3 + $0x788] sm:$0xff]
      %v7720 = vld [vmem:[%s3 + $0x790] sm:$0xff]
      %v7721 = vld [vmem:[%s3 + $0x798] sm:$0xff]
      %v7722 = vld [vmem:[%s3 + $0x7a0] sm:$0xff]
      %v7723 = vld [vmem:[%s3 + $0x7a8] sm:$0xff]
      %v7724 = vld [vmem:[%s3 + $0x7b0] sm:$0xff]
      %v7725 = vld [vmem:[%s3 + $0x7b8] sm:$0xff]
      %v7726 = vld [vmem:[%s3 + $0x7c0] sm:$0xff]
      %v7727 = vld [vmem:[%s3 + $0x7c8] sm:$0xff]
      %v7728 = vld [vmem:[%s3 + $0x7d0] sm:$0xff]
      %v7729 = vld [vmem:[%s3 + $0x7d8] sm:$0xff]
      %v7730 = vld [vmem:[%s3 + $0x7e0] sm:$0xff]
      %v7731 = vld [vmem:[%s3 + $0x7e8] sm:$0xff]
      %v7732 = vld [vmem:[%s3 + $0x7f0] sm:$0xff]
      %v7733 = vld [vmem:[%s3 + $0x7f8] sm:$0xff]
      %v7734 = vld [vmem:[%s3 + $0x800] sm:$0xff]
      %v7735 = vld [vmem:[%s3 + $0x808] sm:$0xff]
      %v7736 = vld [vmem:[%s3 + $0x810] sm:$0xff]
      %v7737 = vld [vmem:[%s3 + $0x818] sm:$0xff]
      %v7738 = vld [vmem:[%s3 + $0x820] sm:$0xff]
      %v7739 = vld [vmem:[%s3 + $0x828] sm:$0xff]
      %v7740 = vld [vmem:[%s3 + $0x830] sm:$0xff]
      %v7741 = vld [vmem:[%s3 + $0x838] sm:$0xff]
      %v7742 = vld [vmem:[%s3 + $0x840] sm:$0xff]
      %v7743 = vld [vmem:[%s3 + $0x848] sm:$0xff]
      %v7744 = vld [vmem:[%s3 + $0x850] sm:$0xff]
      %v7745 = vld [vmem:[%s3 + $0x858] sm:$0xff]
      %v7746 = vld [vmem:[%s3 + $0x860] sm:$0xff]
      %v7747 = vld [vmem:[%s3 + $0x868] sm:$0xff]
      %v7748 = vld [vmem:[%s3 + $0x870] sm:$0xff]
      %v7749 = vld [vmem:[%s3 + $0x878] sm:$0xff]
      %v7750 = vld [vmem:[%s3 + $0x880] sm:$0xff]
      %v7751 = vld [vmem:[%s3 + $0x888] sm:$0xff]
      %v7752 = vld [vmem:[%s3 + $0x890] sm:$0xff]
      %v7753 = vld [vmem:[%s3 + $0x898] sm:$0xff]
      %v7754 = vld [vmem:[%s3 + $0x8a0] sm:$0xff]
      %v7755 = vld [vmem:[%s3 + $0x8a8] sm:$0xff]
      %v7756 = vld [vmem:[%s3 + $0x8b0] sm:$0xff]
      %v7757 = vld [vmem:[%s3 + $0x8b8] sm:$0xff]
      %v7758 = vld [vmem:[%s3 + $0x8c0] sm:$0xff]
      %v7759 = vld [vmem:[%s3 + $0x8c8] sm:$0xff]
      %v7760 = vld [vmem:[%s3 + $0x8d0] sm:$0xff]
      %v7761 = vld [vmem:[%s3 + $0x8d8] sm:$0xff]
      %v7762 = vld [vmem:[%s3 + $0x8e0] sm:$0xff]
      %v7763 = vld [vmem:[%s3 + $0x8e8] sm:$0xff]
      %v7764 = vld [vmem:[%s3 + $0x8f0] sm:$0xff]
      %v7765 = vld [vmem:[%s3 + $0x8f8] sm:$0xff]
      %v7766 = vld [vmem:[%s3 + $0x900] sm:$0xff]
      %v7767 = vld [vmem:[%s3 + $0x908] sm:$0xff]
      %v7768 = vld [vmem:[%s3 + $0x910] sm:$0xff]
      %v7769 = vld [vmem:[%s3 + $0x918] sm:$0xff]
      %v7770 = vld [vmem:[%s3 + $0x920] sm:$0xff]
      %v7771 = vld [vmem:[%s3 + $0x928] sm:$0xff]
      %v7772 = vld [vmem:[%s3 + $0x930] sm:$0xff]
      %v7773 = vld [vmem:[%s3 + $0x938] sm:$0xff]
      %v7774 = vld [vmem:[%s3 + $0x940] sm:$0xff]
      %v7775 = vld [vmem:[%s3 + $0x948] sm:$0xff]
      %v7776 = vld [vmem:[%s3 + $0x950] sm:$0xff]
      %v7777 = vld [vmem:[%s3 + $0x958] sm:$0xff]
      %v7778 = vld [vmem:[%s3 + $0x960] sm:$0xff]
      %v7779 = vld [vmem:[%s3 + $0x968] sm:$0xff]
      %v7780 = vld [vmem:[%s3 + $0x970] sm:$0xff]
      %v7781 = vld [vmem:[%s3 + $0x978] sm:$0xff]
      %v7782 = vld [vmem:[%s3 + $0x980] sm:$0xff]
      %v7783 = vld [vmem:[%s3 + $0x988] sm:$0xff]
      %v7784 = vld [vmem:[%s3 + $0x990] sm:$0xff]
      %v7785 = vld [vmem:[%s3 + $0x998] sm:$0xff]
      %v7786 = vld [vmem:[%s3 + $0x9a0] sm:$0xff]
      %v7787 = vld [vmem:[%s3 + $0x9a8] sm:$0xff]
      %v7788 = vld [vmem:[%s3 + $0x9b0] sm:$0xff]
      %v7789 = vld [vmem:[%s3 + $0x9b8] sm:$0xff]
      %v7790 = vld [vmem:[%s3 + $0x9c0] sm:$0xff]
      %v7791 = vld [vmem:[%s3 + $0x9c8] sm:$0xff]
      %v7792 = vld [vmem:[%s3 + $0x9d0] sm:$0xff]
      %v7793 = vld [vmem:[%s3 + $0x9d8] sm:$0xff]
      %v7794 = vld [vmem:[%s3 + $0x9e0] sm:$0xff]
      %v7795 = vld [vmem:[%s3 + $0x9e8] sm:$0xff]
      %v7796 = vld [vmem:[%s3 + $0x9f0] sm:$0xff]
      %v7797 = vld [vmem:[%s3 + $0x9f8] sm:$0xff]
      %v7798 = vld [vmem:[%s3 + $0xa00] sm:$0xff]
      %v7799 = vld [vmem:[%s3 + $0xa08] sm:$0xff]
      %v7800 = vld [vmem:[%s3 + $0xa10] sm:$0xff]
      %v7801 = vld [vmem:[%s3 + $0xa18] sm:$0xff]
      %v7802 = vld [vmem:[%s3 + $0xa20] sm:$0xff]
      %v7803 = vld [vmem:[%s3 + $0xa28] sm:$0xff]
      %v7804 = vld [vmem:[%s3 + $0xa30] sm:$0xff]
      %v7805 = vld [vmem:[%s3 + $0xa38] sm:$0xff]
      %v7806 = vld [vmem:[%s3 + $0xa40] sm:$0xff]
      %v7807 = vld [vmem:[%s3 + $0xa48] sm:$0xff]
      %v7808 = vld [vmem:[%s3 + $0xa50] sm:$0xff]
      %v7809 = vld [vmem:[%s3 + $0xa58] sm:$0xff]
      %v7810 = vld [vmem:[%s3 + $0xa60] sm:$0xff]
      %v7811 = vld [vmem:[%s3 + $0xa68] sm:$0xff]
      %v7812 = vld [vmem:[%s3 + $0xa70] sm:$0xff]
      %v7813 = vld [vmem:[%s3 + $0xa78] sm:$0xff]
      %v7814 = vld [vmem:[%s3 + $0xa80] sm:$0xff]
      %v7815 = vld [vmem:[%s3 + $0xa88] sm:$0xff]
      %v7816 = vld [vmem:[%s3 + $0xa90] sm:$0xff]
      %v7817 = vld [vmem:[%s3 + $0xa98] sm:$0xff]
      %v7818 = vld [vmem:[%s3 + $0xaa0] sm:$0xff]
      %v7819 = vld [vmem:[%s3 + $0xaa8] sm:$0xff]
      %v7820 = vld [vmem:[%s3 + $0xab0] sm:$0xff]
      %v7821 = vld [vmem:[%s3 + $0xab8] sm:$0xff]
      %v7822 = vld [vmem:[%s3 + $0xac0] sm:$0xff]
      %v7823 = vld [vmem:[%s3 + $0xac8] sm:$0xff]
      %v7824 = vld [vmem:[%s3 + $0xad0] sm:$0xff]
      %v7825 = vld [vmem:[%s3 + $0xad8] sm:$0xff]
      %v7826 = vld [vmem:[%s3 + $0xae0] sm:$0xff]
      %v7827 = vld [vmem:[%s3 + $0xae8] sm:$0xff]
      %v7828 = vld [vmem:[%s3 + $0xaf0] sm:$0xff]
      %v7829 = vld [vmem:[%s3 + $0xaf8] sm:$0xff]
      %v7830 = vld [vmem:[%s3 + $0xb00] sm:$0xff]
      %v7831 = vld [vmem:[%s3 + $0xb08] sm:$0xff]
      %v7832 = vld [vmem:[%s3 + $0xb10] sm:$0xff]
      %v7833 = vld [vmem:[%s3 + $0xb18] sm:$0xff]
      %v7834 = vld [vmem:[%s3 + $0xb20] sm:$0xff]
      %v7835 = vld [vmem:[%s3 + $0xb28] sm:$0xff]
      %v7836 = vld [vmem:[%s3 + $0xb30] sm:$0xff]
      %v7837 = vld [vmem:[%s3 + $0xb38] sm:$0xff]
      %v7838 = vld [vmem:[%s3 + $0xb40] sm:$0xff]
      %v7839 = vld [vmem:[%s3 + $0xb48] sm:$0xff]
      %v7840 = vld [vmem:[%s3 + $0xb50] sm:$0xff]
      %v7841 = vld [vmem:[%s3 + $0xb58] sm:$0xff]
      %v7842 = vld [vmem:[%s3 + $0xb60] sm:$0xff]
      %v7843 = vld [vmem:[%s3 + $0xb68] sm:$0xff]
      %v7844 = vld [vmem:[%s3 + $0xb70] sm:$0xff]
      %v7845 = vld [vmem:[%s3 + $0xb78] sm:$0xff]
      %v7846 = vld [vmem:[%s3 + $0xb80] sm:$0xff]
      %v7847 = vld [vmem:[%s3 + $0xb88] sm:$0xff]
      %v7848 = vld [vmem:[%s3 + $0xb90] sm:$0xff]
      %v7849 = vld [vmem:[%s3 + $0xb98] sm:$0xff]
      %v7850 = vld [vmem:[%s3 + $0xba0] sm:$0xff]
      %v7851 = vld [vmem:[%s3 + $0xba8] sm:$0xff]
      %v7852 = vld [vmem:[%s3 + $0xbb0] sm:$0xff]
      %v7853 = vld [vmem:[%s3 + $0xbb8] sm:$0xff]
      %v7854 = vld [vmem:[%s3 + $0xbc0] sm:$0xff]
      %v7855 = vld [vmem:[%s3 + $0xbc8] sm:$0xff]
      %v7856 = vld [vmem:[%s3 + $0xbd0] sm:$0xff]
      %v7857 = vld [vmem:[%s3 + $0xbd8] sm:$0xff]
      %v7858 = vld [vmem:[%s3 + $0xbe0] sm:$0xff]
      %v7859 = vld [vmem:[%s3 + $0xbe8] sm:$0xff]
      %v7860 = vld [vmem:[%s3 + $0xbf0] sm:$0xff]
      %v7861 = vld [vmem:[%s3 + $0xbf8] sm:$0xff]
      %v7862 = vld [vmem:[%s3 + $0xc00] sm:$0xff]
      %v7863 = vld [vmem:[%s3 + $0xc08] sm:$0xff]
      %v7864 = vld [vmem:[%s3 + $0xc10] sm:$0xff]
      %v7865 = vld [vmem:[%s3 + $0xc18] sm:$0xff]
      %v7866 = vld [vmem:[%s3 + $0xc20] sm:$0xff]
      %v7867 = vld [vmem:[%s3 + $0xc28] sm:$0xff]
      %v7868 = vld [vmem:[%s3 + $0xc30] sm:$0xff]
      %v7869 = vld [vmem:[%s3 + $0xc38] sm:$0xff]
      %v7870 = vld [vmem:[%s3 + $0xc40] sm:$0xff]
      %v7871 = vld [vmem:[%s3 + $0xc48] sm:$0xff]
      %v7872 = vld [vmem:[%s3 + $0xc50] sm:$0xff]
      %v7873 = vld [vmem:[%s3 + $0xc58] sm:$0xff]
      %v7874 = vld [vmem:[%s3 + $0xc60] sm:$0xff]
      %v7875 = vld [vmem:[%s3 + $0xc68] sm:$0xff]
      %v7876 = vld [vmem:[%s3 + $0xc70] sm:$0xff]
      %v7877 = vld [vmem:[%s3 + $0xc78] sm:$0xff]
      %v7878 = vld [vmem:[%s3 + $0xc80] sm:$0xff]
      %v7879 = vld [vmem:[%s3 + $0xc88] sm:$0xff]
      %v7880 = vld [vmem:[%s3 + $0xc90] sm:$0xff]
      %v7881 = vld [vmem:[%s3 + $0xc98] sm:$0xff]
      %v7882 = vld [vmem:[%s3 + $0xca0] sm:$0xff]
      %v7883 = vld [vmem:[%s3 + $0xca8] sm:$0xff]
      %v7884 = vld [vmem:[%s3 + $0xcb0] sm:$0xff]
      %v7885 = vld [vmem:[%s3 + $0xcb8] sm:$0xff]
      %v7886 = vld [vmem:[%s3 + $0xcc0] sm:$0xff]
      %v7887 = vld [vmem:[%s3 + $0xcc8] sm:$0xff]
      %v7888 = vld [vmem:[%s3 + $0xcd0] sm:$0xff]
      %v7889 = vld [vmem:[%s3 + $0xcd8] sm:$0xff]
      %v7890 = vld [vmem:[%s3 + $0xce0] sm:$0xff]
      %v7891 = vld [vmem:[%s3 + $0xce8] sm:$0xff]
      %v7892 = vld [vmem:[%s3 + $0xcf0] sm:$0xff]
      %v7893 = vld [vmem:[%s3 + $0xcf8] sm:$0xff]
      %v7894 = vld [vmem:[%s4] sm:$0x3]
      %v7896 = vperm.slane %v7894, 0
      %v7897 = vperm.slane %v7894, 1
      %v7900 = vrot.slane %v7417, 1
      %v7901 = vrot.slane %v7424, 1
      %v7902 = vrot.slane %v7425, 1
      %v7903 = vrot.slane %v7426, 1
      %v7904 = vrot.slane %v7429, 1
      %v7905 = vrot.slane %v7432, 1
      %v7906 = vrot.slane %v7433, 1
      %v7907 = vrot.slane %v7434, 1
      %v7908 = vrot.slane %v7437, 1
      %v7909 = vrot.slane %v7440, 1
      %v7910 = vrot.slane %v7443, 1
      %v7911 = vrot.slane %v7444, 1
      %v7912 = vrot.slane %v7456, 1
      %v7913 = vrot.slane %v7463, 1
      %v7914 = vrot.slane %v7465, 1
      %v7915 = vrot.slane %v7467, 1
      %v7916 = vrot.slane %v7468, 1
      %v7917 = vrot.slane %v7469, 1
      %v7918 = vrot.slane %v7472, 1
      %v7919 = vrot.slane %v7475, 1
      %v7920 = vrot.slane %v7476, 1
      %v7921 = vrot.slane %v7477, 1
      %v8364 = vunpack.c.l.b16 %v7478
      %v8365 = vunpack.c.h.b16 %v7478
      %v8366 = vunpack.c.l.b16 %v7479
      %v8367 = vunpack.c.h.b16 %v7479
      %v8368 = vunpack.c.l.b16 %v7480
      %v8369 = vunpack.c.h.b16 %v7480
      %v8370 = vunpack.c.l.b16 %v7481
      %v8371 = vunpack.c.h.b16 %v7481
      %v8372 = vunpack.c.l.b16 %v7482
      %v8373 = vunpack.c.h.b16 %v7482
      %v8374 = vunpack.c.l.b16 %v7483
      %v8375 = vunpack.c.h.b16 %v7483
      %v8376 = vunpack.c.l.b16 %v7484
      %v8377 = vunpack.c.h.b16 %v7484
      %v8378 = vunpack.c.l.b16 %v7485
      %v8379 = vunpack.c.h.b16 %v7485
      %v8380 = vunpack.c.l.b16 %v7486
      %v8381 = vunpack.c.h.b16 %v7486
      %v8382 = vunpack.c.l.b16 %v7487
      %v8383 = vunpack.c.h.b16 %v7487
      %v8384 = vunpack.c.l.b16 %v7488
      %v8385 = vunpack.c.h.b16 %v7488
      %v8386 = vunpack.c.l.b16 %v7489
      %v8387 = vunpack.c.h.b16 %v7489
      %v8388 = vunpack.c.l.b16 %v7490
      %v8389 = vunpack.c.h.b16 %v7490
      %v8390 = vunpack.c.l.b16 %v7491
      %v8391 = vunpack.c.h.b16 %v7491
      %v8392 = vunpack.c.l.b16 %v7492
      %v8393 = vunpack.c.h.b16 %v7492
      %v8394 = vunpack.c.l.b16 %v7493
      %v8395 = vunpack.c.h.b16 %v7493
      %v8396 = vunpack.c.l.b16 %v7494
      %v8397 = vunpack.c.h.b16 %v7494
      %v8398 = vunpack.c.l.b16 %v7495
      %v8399 = vunpack.c.h.b16 %v7495
      %v8400 = vunpack.c.l.b16 %v7496
      %v8401 = vunpack.c.h.b16 %v7496
      %v8402 = vunpack.c.l.b16 %v7497
      %v8403 = vunpack.c.h.b16 %v7497
      %v8404 = vunpack.c.l.b16 %v7498
      %v8405 = vunpack.c.h.b16 %v7498
      %v8406 = vunpack.c.l.b16 %v7499
      %v8407 = vunpack.c.h.b16 %v7499
      %v8408 = vunpack.c.l.b16 %v7500
      %v8409 = vunpack.c.h.b16 %v7500
      %v8410 = vunpack.c.l.b16 %v7501
      %v8411 = vunpack.c.h.b16 %v7501
      %v8412 = vunpack.c.l.b16 %v7502
      %v8413 = vunpack.c.h.b16 %v7502
      %v8414 = vunpack.c.l.b16 %v7503
      %v8415 = vunpack.c.h.b16 %v7503
      %v8416 = vunpack.c.l.b16 %v7504
      %v8417 = vunpack.c.h.b16 %v7504
      %v8418 = vunpack.c.l.b16 %v7505
      %v8419 = vunpack.c.h.b16 %v7505
      %v8420 = vunpack.c.l.b16 %v7506
      %v8421 = vunpack.c.h.b16 %v7506
      %v8422 = vunpack.c.l.b16 %v7507
      %v8423 = vunpack.c.h.b16 %v7507
      %v8424 = vunpack.c.l.b16 %v7508
      %v8425 = vunpack.c.h.b16 %v7508
      %v8426 = vunpack.c.l.b16 %v7509
      %v8427 = vunpack.c.h.b16 %v7509
      %v8428 = vunpack.c.l.b16 %v7510
      %v8429 = vunpack.c.h.b16 %v7510
      %v8430 = vunpack.c.l.b16 %v7511
      %v8431 = vunpack.c.h.b16 %v7511
      %v8432 = vunpack.c.l.b16 %v7512
      %v8433 = vunpack.c.h.b16 %v7512
      %v8434 = vunpack.c.l.b16 %v7513
      %v8435 = vunpack.c.h.b16 %v7513
      %v8436 = vunpack.c.l.b16 %v7514
      %v8437 = vunpack.c.h.b16 %v7514
      %v8438 = vunpack.c.l.b16 %v7515
      %v8439 = vunpack.c.h.b16 %v7515
      %v8440 = vunpack.c.l.b16 %v7516
      %v8441 = vunpack.c.h.b16 %v7516
      %v8442 = vunpack.c.l.b16 %v7517
      %v8443 = vunpack.c.h.b16 %v7517
      %v8444 = vunpack.c.l.b16 %v7518
      %v8445 = vunpack.c.h.b16 %v7518
      %v8446 = vunpack.c.l.b16 %v7519
      %v8447 = vunpack.c.h.b16 %v7519
      %v8448 = vunpack.c.l.b16 %v7520
      %v8449 = vunpack.c.h.b16 %v7520
      %v8450 = vunpack.c.l.b16 %v7521
      %v8451 = vunpack.c.h.b16 %v7521
      %v8452 = vunpack.c.l.b16 %v7522
      %v8453 = vunpack.c.h.b16 %v7522
      %v8454 = vunpack.c.l.b16 %v7523
      %v8455 = vunpack.c.h.b16 %v7523
      %v8456 = vunpack.c.l.b16 %v7524
      %v8457 = vunpack.c.h.b16 %v7524
      %v8458 = vunpack.c.l.b16 %v7525
      %v8459 = vunpack.c.h.b16 %v7525
      %v8460 = vunpack.c.l.b16 %v7526
      %v8461 = vunpack.c.h.b16 %v7526
      %v8462 = vunpack.c.l.b16 %v7527
      %v8463 = vunpack.c.h.b16 %v7527
      %v8464 = vunpack.c.l.b16 %v7528
      %v8465 = vunpack.c.h.b16 %v7528
      %v8466 = vunpack.c.l.b16 %v7529
      %v8467 = vunpack.c.h.b16 %v7529
      %v8468 = vunpack.c.l.b16 %v7530
      %v8469 = vunpack.c.h.b16 %v7530
      %v8470 = vunpack.c.l.b16 %v7531
      %v8471 = vunpack.c.h.b16 %v7531
      %v8472 = vunpack.c.l.b16 %v7532
      %v8473 = vunpack.c.h.b16 %v7532
      %v8474 = vunpack.c.l.b16 %v7533
      %v8475 = vunpack.c.h.b16 %v7533
      %v8476 = vunpack.c.l.b16 %v7534
      %v8477 = vunpack.c.h.b16 %v7534
      %v8478 = vunpack.c.l.b16 %v7535
      %v8479 = vunpack.c.h.b16 %v7535
      %v8480 = vunpack.c.l.b16 %v7536
      %v8481 = vunpack.c.h.b16 %v7536
      %v8482 = vunpack.c.l.b16 %v7537
      %v8483 = vunpack.c.h.b16 %v7537
      %v8484 = vunpack.c.l.b16 %v7538
      %v8485 = vunpack.c.h.b16 %v7538
      %v8486 = vunpack.c.l.b16 %v7539
      %v8487 = vunpack.c.h.b16 %v7539
      %v8488 = vunpack.c.l.b16 %v7540
      %v8489 = vunpack.c.h.b16 %v7540
      %v8490 = vunpack.c.l.b16 %v7541
      %v8491 = vunpack.c.h.b16 %v7541
      %v8492 = vunpack.c.l.b16 %v7542
      %v8493 = vunpack.c.h.b16 %v7542
      %v8494 = vunpack.c.l.b16 %v7543
      %v8495 = vunpack.c.h.b16 %v7543
      %v8496 = vunpack.c.l.b16 %v7544
      %v8497 = vunpack.c.h.b16 %v7544
      %v8498 = vunpack.c.l.b16 %v7545
      %v8499 = vunpack.c.h.b16 %v7545
      %v8500 = vunpack.c.l.b16 %v7546
      %v8501 = vunpack.c.h.b16 %v7546
      %v8502 = vunpack.c.l.b16 %v7547
      %v8503 = vunpack.c.h.b16 %v7547
      %v8504 = vunpack.c.l.b16 %v7548
      %v8505 = vunpack.c.h.b16 %v7548
      %v8506 = vunpack.c.l.b16 %v7549
      %v8507 = vunpack.c.h.b16 %v7549
      %v8508 = vunpack.c.l.b16 %v7550
      %v8509 = vunpack.c.h.b16 %v7550
      %v8510 = vunpack.c.l.b16 %v7551
      %v8511 = vunpack.c.h.b16 %v7551
      %v8512 = vunpack.c.l.b16 %v7552
      %v8513 = vunpack.c.h.b16 %v7552
      %v8514 = vunpack.c.l.b16 %v7553
      %v8515 = vunpack.c.h.b16 %v7553
      %v8516 = vunpack.c.l.b16 %v7554
      %v8517 = vunpack.c.h.b16 %v7554
      %v8518 = vunpack.c.l.b16 %v7555
      %v8519 = vunpack.c.h.b16 %v7555
      %v8520 = vunpack.c.l.b16 %v7556
      %v8521 = vunpack.c.h.b16 %v7556
      %v8522 = vunpack.c.l.b16 %v7557
      %v8523 = vunpack.c.h.b16 %v7557
      %v8524 = vunpack.c.l.b16 %v7558
      %v8525 = vunpack.c.h.b16 %v7558
      %v8526 = vunpack.c.l.b16 %v7559
      %v8527 = vunpack.c.h.b16 %v7559
      %v8528 = vunpack.c.l.b16 %v7560
      %v8529 = vunpack.c.h.b16 %v7560
      %v8530 = vunpack.c.l.b16 %v7561
      %v8531 = vunpack.c.h.b16 %v7561
      %v8532 = vunpack.c.l.b16 %v7562
      %v8533 = vunpack.c.h.b16 %v7562
      %v8534 = vunpack.c.l.b16 %v7563
      %v8535 = vunpack.c.h.b16 %v7563
      %v8536 = vunpack.c.l.b16 %v7564
      %v8537 = vunpack.c.h.b16 %v7564
      %v8538 = vunpack.c.l.b16 %v7565
      %v8539 = vunpack.c.h.b16 %v7565
      %v8540 = vunpack.c.l.b16 %v7566
      %v8541 = vunpack.c.h.b16 %v7566
      %v8542 = vunpack.c.l.b16 %v7567
      %v8543 = vunpack.c.h.b16 %v7567
      %v8544 = vunpack.c.l.b16 %v7568
      %v8545 = vunpack.c.h.b16 %v7568
      %v8546 = vunpack.c.l.b16 %v7569
      %v8547 = vunpack.c.h.b16 %v7569
      %v8548 = vunpack.c.l.b16 %v7570
      %v8549 = vunpack.c.h.b16 %v7570
      %v8550 = vunpack.c.l.b16 %v7571
      %v8551 = vunpack.c.h.b16 %v7571
      %v8552 = vunpack.c.l.b16 %v7572
      %v8553 = vunpack.c.h.b16 %v7572
      %v8554 = vunpack.c.l.b16 %v7573
      %v8555 = vunpack.c.h.b16 %v7573
      %v8556 = vunpack.c.l.b16 %v7574
      %v8557 = vunpack.c.h.b16 %v7574
      %v8558 = vunpack.c.l.b16 %v7575
      %v8559 = vunpack.c.h.b16 %v7575
      %v8560 = vunpack.c.l.b16 %v7576
      %v8561 = vunpack.c.h.b16 %v7576
      %v8562 = vunpack.c.l.b16 %v7577
      %v8563 = vunpack.c.h.b16 %v7577
      %v8564 = vunpack.c.l.b16 %v7578
      %v8565 = vunpack.c.h.b16 %v7578
      %v8566 = vunpack.c.l.b16 %v7579
      %v8567 = vunpack.c.h.b16 %v7579
      %v8568 = vunpack.c.l.b16 %v7580
      %v8569 = vunpack.c.h.b16 %v7580
      %v8570 = vunpack.c.l.b16 %v7581
      %v8571 = vunpack.c.h.b16 %v7581
      %v8572 = vunpack.c.l.b16 %v7582
      %v8573 = vunpack.c.h.b16 %v7582
      %v8574 = vunpack.c.l.b16 %v7583
      %v8575 = vunpack.c.h.b16 %v7583
      %v8576 = vunpack.c.l.b16 %v7584
      %v8577 = vunpack.c.h.b16 %v7584
      %v8578 = vunpack.c.l.b16 %v7585
      %v8579 = vunpack.c.h.b16 %v7585
      %v8580 = vunpack.c.l.b16 %v7586
      %v8581 = vunpack.c.h.b16 %v7586
      %v8582 = vunpack.c.l.b16 %v7587
      %v8583 = vunpack.c.h.b16 %v7587
      %v8584 = vunpack.c.l.b16 %v7588
      %v8585 = vunpack.c.h.b16 %v7588
      %v8586 = vunpack.c.l.b16 %v7589
      %v8587 = vunpack.c.h.b16 %v7589
      %v8588 = vunpack.c.l.b16 %v7590
      %v8589 = vunpack.c.h.b16 %v7590
      %v8590 = vunpack.c.l.b16 %v7591
      %v8591 = vunpack.c.h.b16 %v7591
      %v8592 = vunpack.c.l.b16 %v7592
      %v8593 = vunpack.c.h.b16 %v7592
      %v8594 = vunpack.c.l.b16 %v7593
      %v8595 = vunpack.c.h.b16 %v7593
      %v8596 = vunpack.c.l.b16 %v7594
      %v8597 = vunpack.c.h.b16 %v7594
      %v8598 = vunpack.c.l.b16 %v7595
      %v8599 = vunpack.c.h.b16 %v7595
      %v8600 = vunpack.c.l.b16 %v7596
      %v8601 = vunpack.c.h.b16 %v7596
      %v8602 = vunpack.c.l.b16 %v7597
      %v8603 = vunpack.c.h.b16 %v7597
      %v8604 = vunpack.c.l.b16 %v7598
      %v8605 = vunpack.c.h.b16 %v7598
      %v8606 = vunpack.c.l.b16 %v7599
      %v8607 = vunpack.c.h.b16 %v7599
      %v8608 = vunpack.c.l.b16 %v7600
      %v8609 = vunpack.c.h.b16 %v7600
      %v8610 = vunpack.c.l.b16 %v7601
      %v8611 = vunpack.c.h.b16 %v7601
      %v8612 = vunpack.c.l.b16 %v7602
      %v8613 = vunpack.c.h.b16 %v7602
      %v8614 = vunpack.c.l.b16 %v7603
      %v8615 = vunpack.c.h.b16 %v7603
      %v8616 = vunpack.c.l.b16 %v7604
      %v8617 = vunpack.c.h.b16 %v7604
      %v8618 = vunpack.c.l.b16 %v7605
      %v8619 = vunpack.c.h.b16 %v7605
      %v8620 = vunpack.c.l.b16 %v7606
      %v8621 = vunpack.c.h.b16 %v7606
      %v8622 = vunpack.c.l.b16 %v7607
      %v8623 = vunpack.c.h.b16 %v7607
      %v8624 = vunpack.c.l.b16 %v7608
      %v8625 = vunpack.c.h.b16 %v7608
      %v8626 = vunpack.c.l.b16 %v7609
      %v8627 = vunpack.c.h.b16 %v7609
      %v8628 = vunpack.c.l.b16 %v7610
      %v8629 = vunpack.c.h.b16 %v7610
      %v8630 = vunpack.c.l.b16 %v7611
      %v8631 = vunpack.c.h.b16 %v7611
      %v8632 = vunpack.c.l.b16 %v7612
      %v8633 = vunpack.c.h.b16 %v7612
      %v8634 = vunpack.c.l.b16 %v7613
      %v8635 = vunpack.c.h.b16 %v7613
      %v8636 = vunpack.c.l.b16 %v7614
      %v8637 = vunpack.c.h.b16 %v7614
      %v8638 = vunpack.c.l.b16 %v7615
      %v8639 = vunpack.c.h.b16 %v7615
      %v8640 = vunpack.c.l.b16 %v7616
      %v8641 = vunpack.c.h.b16 %v7616
      %v8642 = vunpack.c.l.b16 %v7617
      %v8643 = vunpack.c.h.b16 %v7617
      %v8644 = vunpack.c.l.b16 %v7618
      %v8645 = vunpack.c.h.b16 %v7618
      %v8646 = vunpack.c.l.b16 %v7619
      %v8647 = vunpack.c.h.b16 %v7619
      %v8648 = vunpack.c.l.b16 %v7620
      %v8649 = vunpack.c.h.b16 %v7620
      %v8650 = vunpack.c.l.b16 %v7621
      %v8651 = vunpack.c.h.b16 %v7621
      %v8652 = vunpack.c.l.b16 %v7622
      %v8653 = vunpack.c.h.b16 %v7622
      %v8654 = vunpack.c.l.b16 %v7623
      %v8655 = vunpack.c.h.b16 %v7623
      %v8656 = vunpack.c.l.b16 %v7624
      %v8657 = vunpack.c.h.b16 %v7624
      %v8658 = vunpack.c.l.b16 %v7625
      %v8659 = vunpack.c.h.b16 %v7625
      %v8660 = vunpack.c.l.b16 %v7626
      %v8661 = vunpack.c.h.b16 %v7626
      %v8662 = vunpack.c.l.b16 %v7627
      %v8663 = vunpack.c.h.b16 %v7627
      %v8664 = vunpack.c.l.b16 %v7628
      %v8665 = vunpack.c.h.b16 %v7628
      %v8666 = vunpack.c.l.b16 %v7629
      %v8667 = vunpack.c.h.b16 %v7629
      %v8668 = vunpack.c.l.b16 %v7630
      %v8669 = vunpack.c.h.b16 %v7630
      %v8670 = vunpack.c.l.b16 %v7631
      %v8671 = vunpack.c.h.b16 %v7631
      %v8672 = vunpack.c.l.b16 %v7632
      %v8673 = vunpack.c.h.b16 %v7632
      %v8674 = vunpack.c.l.b16 %v7633
      %v8675 = vunpack.c.h.b16 %v7633
      %v8676 = vunpack.c.l.b16 %v7634
      %v8677 = vunpack.c.h.b16 %v7634
      %v8678 = vunpack.c.l.b16 %v7635
      %v8679 = vunpack.c.h.b16 %v7635
      %v8680 = vunpack.c.l.b16 %v7636
      %v8681 = vunpack.c.h.b16 %v7636
      %v8682 = vunpack.c.l.b16 %v7637
      %v8683 = vunpack.c.h.b16 %v7637
      %v8684 = vunpack.c.l.b16 %v7638
      %v8685 = vunpack.c.h.b16 %v7638
      %v8686 = vunpack.c.l.b16 %v7639
      %v8687 = vunpack.c.h.b16 %v7639
      %v8688 = vunpack.c.l.b16 %v7640
      %v8689 = vunpack.c.h.b16 %v7640
      %v8690 = vunpack.c.l.b16 %v7641
      %v8691 = vunpack.c.h.b16 %v7641
      %v8692 = vunpack.c.l.b16 %v7642
      %v8693 = vunpack.c.h.b16 %v7642
      %v8694 = vunpack.c.l.b16 %v7643
      %v8695 = vunpack.c.h.b16 %v7643
      %v8696 = vunpack.c.l.b16 %v7644
      %v8697 = vunpack.c.h.b16 %v7644
      %v8698 = vunpack.c.l.b16 %v7645
      %v8699 = vunpack.c.h.b16 %v7645
      %v8700 = vunpack.c.l.b16 %v7646
      %v8701 = vunpack.c.h.b16 %v7646
      %v8702 = vunpack.c.l.b16 %v7647
      %v8703 = vunpack.c.h.b16 %v7647
      %v8704 = vunpack.c.l.b16 %v7648
      %v8705 = vunpack.c.h.b16 %v7648
      %v8706 = vunpack.c.l.b16 %v7649
      %v8707 = vunpack.c.h.b16 %v7649
      %v8708 = vunpack.c.l.b16 %v7650
      %v8709 = vunpack.c.h.b16 %v7650
      %v8710 = vunpack.c.l.b16 %v7651
      %v8711 = vunpack.c.h.b16 %v7651
      %v8712 = vunpack.c.l.b16 %v7652
      %v8713 = vunpack.c.h.b16 %v7652
      %v8714 = vunpack.c.l.b16 %v7653
      %v8715 = vunpack.c.h.b16 %v7653
      %v8716 = vunpack.c.l.b16 %v7654
      %v8717 = vunpack.c.h.b16 %v7654
      %v8718 = vunpack.c.l.b16 %v7655
      %v8719 = vunpack.c.h.b16 %v7655
      %v8720 = vunpack.c.l.b16 %v7656
      %v8721 = vunpack.c.h.b16 %v7656
      %v8722 = vunpack.c.l.b16 %v7657
      %v8723 = vunpack.c.h.b16 %v7657
      %v8724 = vunpack.c.l.b16 %v7658
      %v8725 = vunpack.c.h.b16 %v7658
      %v8726 = vunpack.c.l.b16 %v7659
      %v8727 = vunpack.c.h.b16 %v7659
      %v8728 = vunpack.c.l.b16 %v7660
      %v8729 = vunpack.c.h.b16 %v7660
      %v8730 = vunpack.c.l.b16 %v7661
      %v8731 = vunpack.c.h.b16 %v7661
      %v8732 = vunpack.c.l.b16 %v7662
      %v8733 = vunpack.c.h.b16 %v7662
      %v8734 = vunpack.c.l.b16 %v7663
      %v8735 = vunpack.c.h.b16 %v7663
      %v8736 = vunpack.c.l.b16 %v7664
      %v8737 = vunpack.c.h.b16 %v7664
      %v8738 = vunpack.c.l.b16 %v7665
      %v8739 = vunpack.c.h.b16 %v7665
      %v8740 = vunpack.c.l.b16 %v7666
      %v8741 = vunpack.c.h.b16 %v7666
      %v8742 = vunpack.c.l.b16 %v7667
      %v8743 = vunpack.c.h.b16 %v7667
      %v8744 = vunpack.c.l.b16 %v7668
      %v8745 = vunpack.c.h.b16 %v7668
      %v8746 = vunpack.c.l.b16 %v7669
      %v8747 = vunpack.c.h.b16 %v7669
      %v8748 = vunpack.c.l.b16 %v7670
      %v8749 = vunpack.c.h.b16 %v7670
      %v8750 = vunpack.c.l.b16 %v7671
      %v8751 = vunpack.c.h.b16 %v7671
      %v8752 = vunpack.c.l.b16 %v7672
      %v8753 = vunpack.c.h.b16 %v7672
      %v8754 = vunpack.c.l.b16 %v7673
      %v8755 = vunpack.c.h.b16 %v7673
      %v8756 = vunpack.c.l.b16 %v7674
      %v8757 = vunpack.c.h.b16 %v7674
      %v8758 = vunpack.c.l.b16 %v7675
      %v8759 = vunpack.c.h.b16 %v7675
      %v8760 = vunpack.c.l.b16 %v7676
      %v8761 = vunpack.c.h.b16 %v7676
      %v8762 = vunpack.c.l.b16 %v7677
      %v8763 = vunpack.c.h.b16 %v7677
      %v8764 = vunpack.c.l.b16 %v7678
      %v8765 = vunpack.c.h.b16 %v7678
      %v8766 = vunpack.c.l.b16 %v7679
      %v8767 = vunpack.c.h.b16 %v7679
      %v8768 = vunpack.c.l.b16 %v7680
      %v8769 = vunpack.c.h.b16 %v7680
      %v8770 = vunpack.c.l.b16 %v7681
      %v8771 = vunpack.c.h.b16 %v7681
      %v8772 = vunpack.c.l.b16 %v7682
      %v8773 = vunpack.c.h.b16 %v7682
      %v8774 = vunpack.c.l.b16 %v7683
      %v8775 = vunpack.c.h.b16 %v7683
      %v8776 = vunpack.c.l.b16 %v7684
      %v8777 = vunpack.c.h.b16 %v7684
      %v8778 = vunpack.c.l.b16 %v7685
      %v8779 = vunpack.c.h.b16 %v7685
      %v8780 = vunpack.c.l.b16 %v7686
      %v8781 = vunpack.c.h.b16 %v7686
      %v8782 = vunpack.c.l.b16 %v7687
      %v8783 = vunpack.c.h.b16 %v7687
      %v8784 = vunpack.c.l.b16 %v7688
      %v8785 = vunpack.c.h.b16 %v7688
      %v8786 = vunpack.c.l.b16 %v7689
      %v8787 = vunpack.c.h.b16 %v7689
      %v8788 = vunpack.c.l.b16 %v7690
      %v8789 = vunpack.c.h.b16 %v7690
      %v8790 = vunpack.c.l.b16 %v7691
      %v8791 = vunpack.c.h.b16 %v7691
      %v8792 = vunpack.c.l.b16 %v7692
      %v8793 = vunpack.c.h.b16 %v7692
      %v8794 = vunpack.c.l.b16 %v7693
      %v8795 = vunpack.c.h.b16 %v7693
      %v8796 = vunpack.c.l.b16 %v7694
      %v8797 = vunpack.c.h.b16 %v7694
      %v8798 = vunpack.c.l.b16 %v7695
      %v8799 = vunpack.c.h.b16 %v7695
      %v8800 = vunpack.c.l.b16 %v7696
      %v8801 = vunpack.c.h.b16 %v7696
      %v8802 = vunpack.c.l.b16 %v7697
      %v8803 = vunpack.c.h.b16 %v7697
      %v8804 = vunpack.c.l.b16 %v7698
      %v8805 = vunpack.c.h.b16 %v7698
      %v8806 = vunpack.c.l.b16 %v7699
      %v8807 = vunpack.c.h.b16 %v7699
      %v8808 = vunpack.c.l.b16 %v7700
      %v8809 = vunpack.c.h.b16 %v7700
      %v8810 = vunpack.c.l.b16 %v7701
      %v8811 = vunpack.c.h.b16 %v7701
      %v8812 = vunpack.c.l.b16 %v7702
      %v8813 = vunpack.c.h.b16 %v7702
      %v8814 = vunpack.c.l.b16 %v7703
      %v8815 = vunpack.c.h.b16 %v7703
      %v8816 = vunpack.c.l.b16 %v7704
      %v8817 = vunpack.c.h.b16 %v7704
      %v8818 = vunpack.c.l.b16 %v7705
      %v8819 = vunpack.c.h.b16 %v7705
      %v8820 = vunpack.c.l.b16 %v7706
      %v8821 = vunpack.c.h.b16 %v7706
      %v8822 = vunpack.c.l.b16 %v7707
      %v8823 = vunpack.c.h.b16 %v7707
      %v8824 = vunpack.c.l.b16 %v7708
      %v8825 = vunpack.c.h.b16 %v7708
      %v8826 = vunpack.c.l.b16 %v7709
      %v8827 = vunpack.c.h.b16 %v7709
      %v8828 = vunpack.c.l.b16 %v7710
      %v8829 = vunpack.c.h.b16 %v7710
      %v8830 = vunpack.c.l.b16 %v7711
      %v8831 = vunpack.c.h.b16 %v7711
      %v8832 = vunpack.c.l.b16 %v7712
      %v8833 = vunpack.c.h.b16 %v7712
      %v8834 = vunpack.c.l.b16 %v7713
      %v8835 = vunpack.c.h.b16 %v7713
      %v8836 = vunpack.c.l.b16 %v7714
      %v8837 = vunpack.c.h.b16 %v7714
      %v8838 = vunpack.c.l.b16 %v7715
      %v8839 = vunpack.c.h.b16 %v7715
      %v8840 = vunpack.c.l.b16 %v7716
      %v8841 = vunpack.c.h.b16 %v7716
      %v8842 = vunpack.c.l.b16 %v7717
      %v8843 = vunpack.c.h.b16 %v7717
      %v8844 = vunpack.c.l.b16 %v7718
      %v8845 = vunpack.c.h.b16 %v7718
      %v8846 = vunpack.c.l.b16 %v7719
      %v8847 = vunpack.c.h.b16 %v7719
      %v8848 = vunpack.c.l.b16 %v7720
      %v8849 = vunpack.c.h.b16 %v7720
      %v8850 = vunpack.c.l.b16 %v7721
      %v8851 = vunpack.c.h.b16 %v7721
      %v8852 = vunpack.c.l.b16 %v7722
      %v8853 = vunpack.c.h.b16 %v7722
      %v8854 = vunpack.c.l.b16 %v7723
      %v8855 = vunpack.c.h.b16 %v7723
      %v8856 = vunpack.c.l.b16 %v7724
      %v8857 = vunpack.c.h.b16 %v7724
      %v8858 = vunpack.c.l.b16 %v7725
      %v8859 = vunpack.c.h.b16 %v7725
      %v8860 = vunpack.c.l.b16 %v7726
      %v8861 = vunpack.c.h.b16 %v7726
      %v8862 = vunpack.c.l.b16 %v7727
      %v8863 = vunpack.c.h.b16 %v7727
      %v8864 = vunpack.c.l.b16 %v7728
      %v8865 = vunpack.c.h.b16 %v7728
      %v8866 = vunpack.c.l.b16 %v7729
      %v8867 = vunpack.c.h.b16 %v7729
      %v8868 = vunpack.c.l.b16 %v7730
      %v8869 = vunpack.c.h.b16 %v7730
      %v8870 = vunpack.c.l.b16 %v7731
      %v8871 = vunpack.c.h.b16 %v7731
      %v8872 = vunpack.c.l.b16 %v7732
      %v8873 = vunpack.c.h.b16 %v7732
      %v8874 = vunpack.c.l.b16 %v7733
      %v8875 = vunpack.c.h.b16 %v7733
      %v8876 = vunpack.c.l.b16 %v7734
      %v8877 = vunpack.c.h.b16 %v7734
      %v8878 = vunpack.c.l.b16 %v7735
      %v8879 = vunpack.c.h.b16 %v7735
      %v8880 = vunpack.c.l.b16 %v7736
      %v8881 = vunpack.c.h.b16 %v7736
      %v8882 = vunpack.c.l.b16 %v7737
      %v8883 = vunpack.c.h.b16 %v7737
      %v8884 = vunpack.c.l.b16 %v7738
      %v8885 = vunpack.c.h.b16 %v7738
      %v8886 = vunpack.c.l.b16 %v7739
      %v8887 = vunpack.c.h.b16 %v7739
      %v8888 = vunpack.c.l.b16 %v7740
      %v8889 = vunpack.c.h.b16 %v7740
      %v8890 = vunpack.c.l.b16 %v7741
      %v8891 = vunpack.c.h.b16 %v7741
      %v8892 = vunpack.c.l.b16 %v7742
      %v8893 = vunpack.c.h.b16 %v7742
      %v8894 = vunpack.c.l.b16 %v7743
      %v8895 = vunpack.c.h.b16 %v7743
      %v8896 = vunpack.c.l.b16 %v7744
      %v8897 = vunpack.c.h.b16 %v7744
      %v8898 = vunpack.c.l.b16 %v7745
      %v8899 = vunpack.c.h.b16 %v7745
      %v8900 = vunpack.c.l.b16 %v7746
      %v8901 = vunpack.c.h.b16 %v7746
      %v8902 = vunpack.c.l.b16 %v7747
      %v8903 = vunpack.c.h.b16 %v7747
      %v8904 = vunpack.c.l.b16 %v7748
      %v8905 = vunpack.c.h.b16 %v7748
      %v8906 = vunpack.c.l.b16 %v7749
      %v8907 = vunpack.c.h.b16 %v7749
      %v8908 = vunpack.c.l.b16 %v7750
      %v8909 = vunpack.c.h.b16 %v7750
      %v8910 = vunpack.c.l.b16 %v7751
      %v8911 = vunpack.c.h.b16 %v7751
      %v8912 = vunpack.c.l.b16 %v7752
      %v8913 = vunpack.c.h.b16 %v7752
      %v8914 = vunpack.c.l.b16 %v7753
      %v8915 = vunpack.c.h.b16 %v7753
      %v8916 = vunpack.c.l.b16 %v7754
      %v8917 = vunpack.c.h.b16 %v7754
      %v8918 = vunpack.c.l.b16 %v7755
      %v8919 = vunpack.c.h.b16 %v7755
      %v8920 = vunpack.c.l.b16 %v7756
      %v8921 = vunpack.c.h.b16 %v7756
      %v8922 = vunpack.c.l.b16 %v7757
      %v8923 = vunpack.c.h.b16 %v7757
      %v8924 = vunpack.c.l.b16 %v7758
      %v8925 = vunpack.c.h.b16 %v7758
      %v8926 = vunpack.c.l.b16 %v7759
      %v8927 = vunpack.c.h.b16 %v7759
      %v8928 = vunpack.c.l.b16 %v7760
      %v8929 = vunpack.c.h.b16 %v7760
      %v8930 = vunpack.c.l.b16 %v7761
      %v8931 = vunpack.c.h.b16 %v7761
      %v8932 = vunpack.c.l.b16 %v7762
      %v8933 = vunpack.c.h.b16 %v7762
      %v8934 = vunpack.c.l.b16 %v7763
      %v8935 = vunpack.c.h.b16 %v7763
      %v8936 = vunpack.c.l.b16 %v7764
      %v8937 = vunpack.c.h.b16 %v7764
      %v8938 = vunpack.c.l.b16 %v7765
      %v8939 = vunpack.c.h.b16 %v7765
      %v8940 = vunpack.c.l.b16 %v7766
      %v8941 = vunpack.c.h.b16 %v7766
      %v8942 = vunpack.c.l.b16 %v7767
      %v8943 = vunpack.c.h.b16 %v7767
      %v8944 = vunpack.c.l.b16 %v7768
      %v8945 = vunpack.c.h.b16 %v7768
      %v8946 = vunpack.c.l.b16 %v7769
      %v8947 = vunpack.c.h.b16 %v7769
      %v8948 = vunpack.c.l.b16 %v7770
      %v8949 = vunpack.c.h.b16 %v7770
      %v8950 = vunpack.c.l.b16 %v7771
      %v8951 = vunpack.c.h.b16 %v7771
      %v8952 = vunpack.c.l.b16 %v7772
      %v8953 = vunpack.c.h.b16 %v7772
      %v8954 = vunpack.c.l.b16 %v7773
      %v8955 = vunpack.c.h.b16 %v7773
      %v8956 = vunpack.c.l.b16 %v7774
      %v8957 = vunpack.c.h.b16 %v7774
      %v8958 = vunpack.c.l.b16 %v7775
      %v8959 = vunpack.c.h.b16 %v7775
      %v8960 = vunpack.c.l.b16 %v7776
      %v8961 = vunpack.c.h.b16 %v7776
      %v8962 = vunpack.c.l.b16 %v7777
      %v8963 = vunpack.c.h.b16 %v7777
      %v8964 = vunpack.c.l.b16 %v7778
      %v8965 = vunpack.c.h.b16 %v7778
      %v8966 = vunpack.c.l.b16 %v7779
      %v8967 = vunpack.c.h.b16 %v7779
      %v8968 = vunpack.c.l.b16 %v7780
      %v8969 = vunpack.c.h.b16 %v7780
      %v8970 = vunpack.c.l.b16 %v7781
      %v8971 = vunpack.c.h.b16 %v7781
      %v8972 = vunpack.c.l.b16 %v7782
      %v8973 = vunpack.c.h.b16 %v7782
      %v8974 = vunpack.c.l.b16 %v7783
      %v8975 = vunpack.c.h.b16 %v7783
      %v8976 = vunpack.c.l.b16 %v7784
      %v8977 = vunpack.c.h.b16 %v7784
      %v8978 = vunpack.c.l.b16 %v7785
      %v8979 = vunpack.c.h.b16 %v7785
      %v8980 = vunpack.c.l.b16 %v7786
      %v8981 = vunpack.c.h.b16 %v7786
      %v8982 = vunpack.c.l.b16 %v7787
      %v8983 = vunpack.c.h.b16 %v7787
      %v8984 = vunpack.c.l.b16 %v7788
      %v8985 = vunpack.c.h.b16 %v7788
      %v8986 = vunpack.c.l.b16 %v7789
      %v8987 = vunpack.c.h.b16 %v7789
      %v8988 = vunpack.c.l.b16 %v7790
      %v8989 = vunpack.c.h.b16 %v7790
      %v8990 = vunpack.c.l.b16 %v7791
      %v8991 = vunpack.c.h.b16 %v7791
      %v8992 = vunpack.c.l.b16 %v7792
      %v8993 = vunpack.c.h.b16 %v7792
      %v8994 = vunpack.c.l.b16 %v7793
      %v8995 = vunpack.c.h.b16 %v7793
      %v8996 = vunpack.c.l.b16 %v7794
      %v8997 = vunpack.c.h.b16 %v7794
      %v8998 = vunpack.c.l.b16 %v7795
      %v8999 = vunpack.c.h.b16 %v7795
      %v9000 = vunpack.c.l.b16 %v7796
      %v9001 = vunpack.c.h.b16 %v7796
      %v9002 = vunpack.c.l.b16 %v7797
      %v9003 = vunpack.c.h.b16 %v7797
      %v9004 = vunpack.c.l.b16 %v7798
      %v9005 = vunpack.c.h.b16 %v7798
      %v9006 = vunpack.c.l.b16 %v7799
      %v9007 = vunpack.c.h.b16 %v7799
      %v9008 = vunpack.c.l.b16 %v7800
      %v9009 = vunpack.c.h.b16 %v7800
      %v9010 = vunpack.c.l.b16 %v7801
      %v9011 = vunpack.c.h.b16 %v7801
      %v9012 = vunpack.c.l.b16 %v7802
      %v9013 = vunpack.c.h.b16 %v7802
      %v9014 = vunpack.c.l.b16 %v7803
      %v9015 = vunpack.c.h.b16 %v7803
      %v9016 = vunpack.c.l.b16 %v7804
      %v9017 = vunpack.c.h.b16 %v7804
      %v9018 = vunpack.c.l.b16 %v7805
      %v9019 = vunpack.c.h.b16 %v7805
      %v9020 = vunpack.c.l.b16 %v7806
      %v9021 = vunpack.c.h.b16 %v7806
      %v9022 = vunpack.c.l.b16 %v7807
      %v9023 = vunpack.c.h.b16 %v7807
      %v9024 = vunpack.c.l.b16 %v7808
      %v9025 = vunpack.c.h.b16 %v7808
      %v9026 = vunpack.c.l.b16 %v7809
      %v9027 = vunpack.c.h.b16 %v7809
      %v9028 = vunpack.c.l.b16 %v7810
      %v9029 = vunpack.c.h.b16 %v7810
      %v9030 = vunpack.c.l.b16 %v7811
      %v9031 = vunpack.c.h.b16 %v7811
      %v9032 = vunpack.c.l.b16 %v7812
      %v9033 = vunpack.c.h.b16 %v7812
      %v9034 = vunpack.c.l.b16 %v7813
      %v9035 = vunpack.c.h.b16 %v7813
      %v9036 = vunpack.c.l.b16 %v7814
      %v9037 = vunpack.c.h.b16 %v7814
      %v9038 = vunpack.c.l.b16 %v7815
      %v9039 = vunpack.c.h.b16 %v7815
      %v9040 = vunpack.c.l.b16 %v7816
      %v9041 = vunpack.c.h.b16 %v7816
      %v9042 = vunpack.c.l.b16 %v7817
      %v9043 = vunpack.c.h.b16 %v7817
      %v9044 = vunpack.c.l.b16 %v7818
      %v9045 = vunpack.c.h.b16 %v7818
      %v9046 = vunpack.c.l.b16 %v7819
      %v9047 = vunpack.c.h.b16 %v7819
      %v9048 = vunpack.c.l.b16 %v7820
      %v9049 = vunpack.c.h.b16 %v7820
      %v9050 = vunpack.c.l.b16 %v7821
      %v9051 = vunpack.c.h.b16 %v7821
      %v9052 = vunpack.c.l.b16 %v7822
      %v9053 = vunpack.c.h.b16 %v7822
      %v9054 = vunpack.c.l.b16 %v7823
      %v9055 = vunpack.c.h.b16 %v7823
      %v9056 = vunpack.c.l.b16 %v7824
      %v9057 = vunpack.c.h.b16 %v7824
      %v9058 = vunpack.c.l.b16 %v7825
      %v9059 = vunpack.c.h.b16 %v7825
      %v9060 = vunpack.c.l.b16 %v7826
      %v9061 = vunpack.c.h.b16 %v7826
      %v9062 = vunpack.c.l.b16 %v7827
      %v9063 = vunpack.c.h.b16 %v7827
      %v9064 = vunpack.c.l.b16 %v7828
      %v9065 = vunpack.c.h.b16 %v7828
      %v9066 = vunpack.c.l.b16 %v7829
      %v9067 = vunpack.c.h.b16 %v7829
      %v9068 = vunpack.c.l.b16 %v7830
      %v9069 = vunpack.c.h.b16 %v7830
      %v9070 = vunpack.c.l.b16 %v7831
      %v9071 = vunpack.c.h.b16 %v7831
      %v9072 = vunpack.c.l.b16 %v7832
      %v9073 = vunpack.c.h.b16 %v7832
      %v9074 = vunpack.c.l.b16 %v7833
      %v9075 = vunpack.c.h.b16 %v7833
      %v9076 = vunpack.c.l.b16 %v7834
      %v9077 = vunpack.c.h.b16 %v7834
      %v9078 = vunpack.c.l.b16 %v7835
      %v9079 = vunpack.c.h.b16 %v7835
      %v9080 = vunpack.c.l.b16 %v7836
      %v9081 = vunpack.c.h.b16 %v7836
      %v9082 = vunpack.c.l.b16 %v7837
      %v9083 = vunpack.c.h.b16 %v7837
      %v9084 = vunpack.c.l.b16 %v7838
      %v9085 = vunpack.c.h.b16 %v7838
      %v9086 = vunpack.c.l.b16 %v7839
      %v9087 = vunpack.c.h.b16 %v7839
      %v9088 = vunpack.c.l.b16 %v7840
      %v9089 = vunpack.c.h.b16 %v7840
      %v9090 = vunpack.c.l.b16 %v7841
      %v9091 = vunpack.c.h.b16 %v7841
      %v9092 = vunpack.c.l.b16 %v7842
      %v9093 = vunpack.c.h.b16 %v7842
      %v9094 = vunpack.c.l.b16 %v7843
      %v9095 = vunpack.c.h.b16 %v7843
      %v9096 = vunpack.c.l.b16 %v7844
      %v9097 = vunpack.c.h.b16 %v7844
      %v9098 = vunpack.c.l.b16 %v7845
      %v9099 = vunpack.c.h.b16 %v7845
      %v9100 = vunpack.c.l.b16 %v7846
      %v9101 = vunpack.c.h.b16 %v7846
      %v9102 = vunpack.c.l.b16 %v7847
      %v9103 = vunpack.c.h.b16 %v7847
      %v9104 = vunpack.c.l.b16 %v7848
      %v9105 = vunpack.c.h.b16 %v7848
      %v9106 = vunpack.c.l.b16 %v7849
      %v9107 = vunpack.c.h.b16 %v7849
      %v9108 = vunpack.c.l.b16 %v7850
      %v9109 = vunpack.c.h.b16 %v7850
      %v9110 = vunpack.c.l.b16 %v7851
      %v9111 = vunpack.c.h.b16 %v7851
      %v9112 = vunpack.c.l.b16 %v7852
      %v9113 = vunpack.c.h.b16 %v7852
      %v9114 = vunpack.c.l.b16 %v7853
      %v9115 = vunpack.c.h.b16 %v7853
      %v9116 = vunpack.c.l.b16 %v7854
      %v9117 = vunpack.c.h.b16 %v7854
      %v9118 = vunpack.c.l.b16 %v7855
      %v9119 = vunpack.c.h.b16 %v7855
      %v9120 = vunpack.c.l.b16 %v7856
      %v9121 = vunpack.c.h.b16 %v7856
      %v9122 = vunpack.c.l.b16 %v7857
      %v9123 = vunpack.c.h.b16 %v7857
      %v9124 = vunpack.c.l.b16 %v7858
      %v9125 = vunpack.c.h.b16 %v7858
      %v9126 = vunpack.c.l.b16 %v7859
      %v9127 = vunpack.c.h.b16 %v7859
      %v9128 = vunpack.c.l.b16 %v7860
      %v9129 = vunpack.c.h.b16 %v7860
      %v9130 = vunpack.c.l.b16 %v7861
      %v9131 = vunpack.c.h.b16 %v7861
      %v9132 = vunpack.c.l.b16 %v7862
      %v9133 = vunpack.c.h.b16 %v7862
      %v9134 = vunpack.c.l.b16 %v7863
      %v9135 = vunpack.c.h.b16 %v7863
      %v9136 = vunpack.c.l.b16 %v7864
      %v9137 = vunpack.c.h.b16 %v7864
      %v9138 = vunpack.c.l.b16 %v7865
      %v9139 = vunpack.c.h.b16 %v7865
      %v9140 = vunpack.c.l.b16 %v7866
      %v9141 = vunpack.c.h.b16 %v7866
      %v9142 = vunpack.c.l.b16 %v7867
      %v9143 = vunpack.c.h.b16 %v7867
      %v9144 = vunpack.c.l.b16 %v7868
      %v9145 = vunpack.c.h.b16 %v7868
      %v9146 = vunpack.c.l.b16 %v7869
      %v9147 = vunpack.c.h.b16 %v7869
      %v9148 = vunpack.c.l.b16 %v7870
      %v9149 = vunpack.c.h.b16 %v7870
      %v9150 = vunpack.c.l.b16 %v7871
      %v9151 = vunpack.c.h.b16 %v7871
      %v9152 = vunpack.c.l.b16 %v7872
      %v9153 = vunpack.c.h.b16 %v7872
      %v9154 = vunpack.c.l.b16 %v7873
      %v9155 = vunpack.c.h.b16 %v7873
      %v9156 = vunpack.c.l.b16 %v7874
      %v9157 = vunpack.c.h.b16 %v7874
      %v9158 = vunpack.c.l.b16 %v7875
      %v9159 = vunpack.c.h.b16 %v7875
      %v9160 = vunpack.c.l.b16 %v7876
      %v9161 = vunpack.c.h.b16 %v7876
      %v9162 = vunpack.c.l.b16 %v7877
      %v9163 = vunpack.c.h.b16 %v7877
      %v9164 = vunpack.c.l.b16 %v7878
      %v9165 = vunpack.c.h.b16 %v7878
      %v9166 = vunpack.c.l.b16 %v7879
      %v9167 = vunpack.c.h.b16 %v7879
      %v9168 = vunpack.c.l.b16 %v7880
      %v9169 = vunpack.c.h.b16 %v7880
      %v9170 = vunpack.c.l.b16 %v7881
      %v9171 = vunpack.c.h.b16 %v7881
      %v9172 = vunpack.c.l.b16 %v7882
      %v9173 = vunpack.c.h.b16 %v7882
      %v9174 = vunpack.c.l.b16 %v7883
      %v9175 = vunpack.c.h.b16 %v7883
      %v9176 = vunpack.c.l.b16 %v7884
      %v9177 = vunpack.c.h.b16 %v7884
      %v9178 = vunpack.c.l.b16 %v7885
      %v9179 = vunpack.c.h.b16 %v7885
      %v9180 = vunpack.c.l.b16 %v7886
      %v9181 = vunpack.c.h.b16 %v7886
      %v9182 = vunpack.c.l.b16 %v7887
      %v9183 = vunpack.c.h.b16 %v7887
      %v9184 = vunpack.c.l.b16 %v7888
      %v9185 = vunpack.c.h.b16 %v7888
      %v9186 = vunpack.c.l.b16 %v7889
      %v9187 = vunpack.c.h.b16 %v7889
      %v9188 = vunpack.c.l.b16 %v7890
      %v9189 = vunpack.c.h.b16 %v7890
      %v9190 = vunpack.c.l.b16 %v7891
      %v9191 = vunpack.c.h.b16 %v7891
      %v9192 = vunpack.c.l.b16 %v7892
      %v9193 = vunpack.c.h.b16 %v7892
      %v9194 = vunpack.c.l.b16 %v7893
      %v9195 = vunpack.c.h.b16 %v7893
      %v9196 = vpack.c.b16 %v8366, %v8364
      %v9197 = vpack.c.b16 %v8367, %v8365
      %v9198 = vpack.c.b16 %v8370, %v8368
      %v9199 = vpack.c.b16 %v8371, %v8369
      %v9200 = vpack.c.b16 %v8374, %v8372
      %v9201 = vpack.c.b16 %v8375, %v8373
      %v9202 = vpack.c.b16 %v8378, %v8376
      %v9203 = vpack.c.b16 %v8379, %v8377
      %v9204 = vpack.c.b16 %v8382, %v8380
      %v9205 = vpack.c.b16 %v8383, %v8381
      %v9206 = vpack.c.b16 %v8386, %v8384
      %v9207 = vpack.c.b16 %v8387, %v8385
      %v9208 = vpack.c.b16 %v8390, %v8388
      %v9209 = vpack.c.b16 %v8391, %v8389
      %v9210 = vpack.c.b16 %v8394, %v8392
      %v9211 = vpack.c.b16 %v8395, %v8393
      %v9212 = vpack.c.b16 %v8398, %v8396
      %v9213 = vpack.c.b16 %v8399, %v8397
      %v9214 = vpack.c.b16 %v8402, %v8400
      %v9215 = vpack.c.b16 %v8403, %v8401
      %v9216 = vpack.c.b16 %v8406, %v8404
      %v9217 = vpack.c.b16 %v8407, %v8405
      %v9218 = vpack.c.b16 %v8410, %v8408
      %v9219 = vpack.c.b16 %v8411, %v8409
      %v9220 = vpack.c.b16 %v8414, %v8412
      %v9221 = vpack.c.b16 %v8415, %v8413
      %v9222 = vpack.c.b16 %v8418, %v8416
      %v9223 = vpack.c.b16 %v8419, %v8417
      %v9224 = vpack.c.b16 %v8422, %v8420
      %v9225 = vpack.c.b16 %v8423, %v8421
      %v9226 = vpack.c.b16 %v8426, %v8424
      %v9227 = vpack.c.b16 %v8427, %v8425
      %v9228 = vpack.c.b16 %v8430, %v8428
      %v9229 = vpack.c.b16 %v8431, %v8429
      %v9230 = vpack.c.b16 %v8434, %v8432
      %v9231 = vpack.c.b16 %v8435, %v8433
      %v9232 = vpack.c.b16 %v8438, %v8436
      %v9233 = vpack.c.b16 %v8439, %v8437
      %v9234 = vpack.c.b16 %v8442, %v8440
      %v9235 = vpack.c.b16 %v8443, %v8441
      %v9236 = vpack.c.b16 %v8446, %v8444
      %v9237 = vpack.c.b16 %v8447, %v8445
      %v9238 = vpack.c.b16 %v8450, %v8448
      %v9239 = vpack.c.b16 %v8451, %v8449
      %v9240 = vpack.c.b16 %v8454, %v8452
      %v9241 = vpack.c.b16 %v8455, %v8453
      %v9242 = vpack.c.b16 %v8458, %v8456
      %v9243 = vpack.c.b16 %v8459, %v8457
      %v9244 = vpack.c.b16 %v8462, %v8460
      %v9245 = vpack.c.b16 %v8463, %v8461
      %v9246 = vpack.c.b16 %v8466, %v8464
      %v9247 = vpack.c.b16 %v8467, %v8465
      %v9248 = vpack.c.b16 %v8470, %v8468
      %v9249 = vpack.c.b16 %v8471, %v8469
      %v9250 = vpack.c.b16 %v8474, %v8472
      %v9251 = vpack.c.b16 %v8475, %v8473
      %v9252 = vpack.c.b16 %v8478, %v8476
      %v9253 = vpack.c.b16 %v8479, %v8477
      %v9254 = vpack.c.b16 %v8482, %v8480
      %v9255 = vpack.c.b16 %v8483, %v8481
      %v9256 = vpack.c.b16 %v8486, %v8484
      %v9257 = vpack.c.b16 %v8487, %v8485
      %v9258 = vpack.c.b16 %v8490, %v8488
      %v9259 = vpack.c.b16 %v8491, %v8489
      %v9260 = vpack.c.b16 %v8494, %v8492
      %v9261 = vpack.c.b16 %v8495, %v8493
      %v9262 = vpack.c.b16 %v8498, %v8496
      %v9263 = vpack.c.b16 %v8499, %v8497
      %v9264 = vpack.c.b16 %v8502, %v8500
      %v9265 = vpack.c.b16 %v8503, %v8501
      %v9266 = vpack.c.b16 %v8506, %v8504
      %v9267 = vpack.c.b16 %v8507, %v8505
      %v9268 = vpack.c.b16 %v8510, %v8508
      %v9269 = vpack.c.b16 %v8511, %v8509
      %v9270 = vpack.c.b16 %v8514, %v8512
      %v9271 = vpack.c.b16 %v8515, %v8513
      %v9272 = vpack.c.b16 %v8518, %v8516
      %v9273 = vpack.c.b16 %v8519, %v8517
      %v9274 = vpack.c.b16 %v8522, %v8520
      %v9275 = vpack.c.b16 %v8523, %v8521
      %v9276 = vpack.c.b16 %v8526, %v8524
      %v9277 = vpack.c.b16 %v8527, %v8525
      %v9278 = vpack.c.b16 %v8530, %v8528
      %v9279 = vpack.c.b16 %v8531, %v8529
      %v9280 = vpack.c.b16 %v8534, %v8532
      %v9281 = vpack.c.b16 %v8535, %v8533
      %v9282 = vpack.c.b16 %v8538, %v8536
      %v9283 = vpack.c.b16 %v8539, %v8537
      %v9284 = vpack.c.b16 %v8542, %v8540
      %v9285 = vpack.c.b16 %v8543, %v8541
      %v9286 = vpack.c.b16 %v8546, %v8544
      %v9287 = vpack.c.b16 %v8547, %v8545
      %v9288 = vpack.c.b16 %v8550, %v8548
      %v9289 = vpack.c.b16 %v8551, %v8549
      %v9290 = vpack.c.b16 %v8554, %v8552
      %v9291 = vpack.c.b16 %v8555, %v8553
      %v9292 = vpack.c.b16 %v8558, %v8556
      %v9293 = vpack.c.b16 %v8559, %v8557
      %v9294 = vpack.c.b16 %v8562, %v8560
      %v9295 = vpack.c.b16 %v8563, %v8561
      %v9296 = vpack.c.b16 %v8566, %v8564
      %v9297 = vpack.c.b16 %v8567, %v8565
      %v9298 = vpack.c.b16 %v8570, %v8568
      %v9299 = vpack.c.b16 %v8571, %v8569
      %v9300 = vpack.c.b16 %v8574, %v8572
      %v9301 = vpack.c.b16 %v8575, %v8573
      %v9302 = vpack.c.b16 %v8578, %v8576
      %v9303 = vpack.c.b16 %v8579, %v8577
      %v9304 = vpack.c.b16 %v8582, %v8580
      %v9305 = vpack.c.b16 %v8583, %v8581
      %v9306 = vpack.c.b16 %v8586, %v8584
      %v9307 = vpack.c.b16 %v8587, %v8585
      %v9308 = vpack.c.b16 %v8590, %v8588
      %v9309 = vpack.c.b16 %v8591, %v8589
      %v9310 = vpack.c.b16 %v8594, %v8592
      %v9311 = vpack.c.b16 %v8595, %v8593
      %v9312 = vpack.c.b16 %v8598, %v8596
      %v9313 = vpack.c.b16 %v8599, %v8597
      %v9314 = vpack.c.b16 %v8602, %v8600
      %v9315 = vpack.c.b16 %v8603, %v8601
      %v9316 = vpack.c.b16 %v8606, %v8604
      %v9317 = vpack.c.b16 %v8607, %v8605
      %v9318 = vpack.c.b16 %v8610, %v8608
      %v9319 = vpack.c.b16 %v8611, %v8609
      %v9320 = vpack.c.b16 %v8614, %v8612
      %v9321 = vpack.c.b16 %v8615, %v8613
      %v9322 = vpack.c.b16 %v8618, %v8616
      %v9323 = vpack.c.b16 %v8619, %v8617
      %v9324 = vpack.c.b16 %v8622, %v8620
      %v9325 = vpack.c.b16 %v8623, %v8621
      %v9326 = vpack.c.b16 %v8626, %v8624
      %v9327 = vpack.c.b16 %v8627, %v8625
      %v9328 = vpack.c.b16 %v8630, %v8628
      %v9329 = vpack.c.b16 %v8631, %v8629
      %v9330 = vpack.c.b16 %v8634, %v8632
      %v9331 = vpack.c.b16 %v8635, %v8633
      %v9332 = vpack.c.b16 %v8638, %v8636
      %v9333 = vpack.c.b16 %v8639, %v8637
      %v9334 = vpack.c.b16 %v8642, %v8640
      %v9335 = vpack.c.b16 %v8643, %v8641
      %v9336 = vpack.c.b16 %v8646, %v8644
      %v9337 = vpack.c.b16 %v8647, %v8645
      %v9338 = vpack.c.b16 %v8650, %v8648
      %v9339 = vpack.c.b16 %v8651, %v8649
      %v9340 = vpack.c.b16 %v8654, %v8652
      %v9341 = vpack.c.b16 %v8655, %v8653
      %v9342 = vpack.c.b16 %v8658, %v8656
      %v9343 = vpack.c.b16 %v8659, %v8657
      %v9344 = vpack.c.b16 %v8662, %v8660
      %v9345 = vpack.c.b16 %v8663, %v8661
      %v9346 = vpack.c.b16 %v8666, %v8664
      %v9347 = vpack.c.b16 %v8667, %v8665
      %v9348 = vpack.c.b16 %v8670, %v8668
      %v9349 = vpack.c.b16 %v8671, %v8669
      %v9350 = vpack.c.b16 %v8674, %v8672
      %v9351 = vpack.c.b16 %v8675, %v8673
      %v9352 = vpack.c.b16 %v8678, %v8676
      %v9353 = vpack.c.b16 %v8679, %v8677
      %v9354 = vpack.c.b16 %v8682, %v8680
      %v9355 = vpack.c.b16 %v8683, %v8681
      %v9356 = vpack.c.b16 %v8686, %v8684
      %v9357 = vpack.c.b16 %v8687, %v8685
      %v9358 = vpack.c.b16 %v8690, %v8688
      %v9359 = vpack.c.b16 %v8691, %v8689
      %v9360 = vpack.c.b16 %v8694, %v8692
      %v9361 = vpack.c.b16 %v8695, %v8693
      %v9362 = vpack.c.b16 %v8698, %v8696
      %v9363 = vpack.c.b16 %v8699, %v8697
      %v9364 = vpack.c.b16 %v8702, %v8700
      %v9365 = vpack.c.b16 %v8703, %v8701
      %v9366 = vpack.c.b16 %v8706, %v8704
      %v9367 = vpack.c.b16 %v8707, %v8705
      %v9368 = vpack.c.b16 %v8710, %v8708
      %v9369 = vpack.c.b16 %v8711, %v8709
      %v9370 = vpack.c.b16 %v8714, %v8712
      %v9371 = vpack.c.b16 %v8715, %v8713
      %v9372 = vpack.c.b16 %v8718, %v8716
      %v9373 = vpack.c.b16 %v8719, %v8717
      %v9374 = vpack.c.b16 %v8722, %v8720
      %v9375 = vpack.c.b16 %v8723, %v8721
      %v9376 = vpack.c.b16 %v8726, %v8724
      %v9377 = vpack.c.b16 %v8727, %v8725
      %v9378 = vpack.c.b16 %v8730, %v8728
      %v9379 = vpack.c.b16 %v8731, %v8729
      %v9380 = vpack.c.b16 %v8734, %v8732
      %v9381 = vpack.c.b16 %v8735, %v8733
      %v9382 = vpack.c.b16 %v8738, %v8736
      %v9383 = vpack.c.b16 %v8739, %v8737
      %v9384 = vpack.c.b16 %v8742, %v8740
      %v9385 = vpack.c.b16 %v8743, %v8741
      %v9386 = vpack.c.b16 %v8746, %v8744
      %v9387 = vpack.c.b16 %v8747, %v8745
      %v9388 = vpack.c.b16 %v8750, %v8748
      %v9389 = vpack.c.b16 %v8751, %v8749
      %v9390 = vpack.c.b16 %v8754, %v8752
      %v9391 = vpack.c.b16 %v8755, %v8753
      %v9392 = vpack.c.b16 %v8758, %v8756
      %v9393 = vpack.c.b16 %v8759, %v8757
      %v9394 = vpack.c.b16 %v8762, %v8760
      %v9395 = vpack.c.b16 %v8763, %v8761
      %v9396 = vpack.c.b16 %v8766, %v8764
      %v9397 = vpack.c.b16 %v8767, %v8765
      %v9398 = vpack.c.b16 %v8770, %v8768
      %v9399 = vpack.c.b16 %v8771, %v8769
      %v9400 = vpack.c.b16 %v8774, %v8772
      %v9401 = vpack.c.b16 %v8775, %v8773
      %v9402 = vpack.c.b16 %v8778, %v8776
      %v9403 = vpack.c.b16 %v8779, %v8777
      %v9404 = vpack.c.b16 %v8782, %v8780
      %v9405 = vpack.c.b16 %v8783, %v8781
      %v9406 = vpack.c.b16 %v8786, %v8784
      %v9407 = vpack.c.b16 %v8787, %v8785
      %v9408 = vpack.c.b16 %v8790, %v8788
      %v9409 = vpack.c.b16 %v8791, %v8789
      %v9410 = vpack.c.b16 %v8794, %v8792
      %v9411 = vpack.c.b16 %v8795, %v8793
      %v9412 = vpack.c.b16 %v8798, %v8796
      %v9413 = vpack.c.b16 %v8799, %v8797
      %v9414 = vpack.c.b16 %v8802, %v8800
      %v9415 = vpack.c.b16 %v8803, %v8801
      %v9416 = vpack.c.b16 %v8806, %v8804
      %v9417 = vpack.c.b16 %v8807, %v8805
      %v9418 = vpack.c.b16 %v8810, %v8808
      %v9419 = vpack.c.b16 %v8811, %v8809
      %v9420 = vpack.c.b16 %v8814, %v8812
      %v9421 = vpack.c.b16 %v8815, %v8813
      %v9422 = vpack.c.b16 %v8818, %v8816
      %v9423 = vpack.c.b16 %v8819, %v8817
      %v9424 = vpack.c.b16 %v8822, %v8820
      %v9425 = vpack.c.b16 %v8823, %v8821
      %v9426 = vpack.c.b16 %v8826, %v8824
      %v9427 = vpack.c.b16 %v8827, %v8825
      %v9428 = vpack.c.b16 %v8830, %v8828
      %v9429 = vpack.c.b16 %v8831, %v8829
      %v9430 = vpack.c.b16 %v8834, %v8832
      %v9431 = vpack.c.b16 %v8835, %v8833
      %v9432 = vpack.c.b16 %v8838, %v8836
      %v9433 = vpack.c.b16 %v8839, %v8837
      %v9434 = vpack.c.b16 %v8842, %v8840
      %v9435 = vpack.c.b16 %v8843, %v8841
      %v9436 = vpack.c.b16 %v8846, %v8844
      %v9437 = vpack.c.b16 %v8847, %v8845
      %v9438 = vpack.c.b16 %v8850, %v8848
      %v9439 = vpack.c.b16 %v8851, %v8849
      %v9440 = vpack.c.b16 %v8854, %v8852
      %v9441 = vpack.c.b16 %v8855, %v8853
      %v9442 = vpack.c.b16 %v8858, %v8856
      %v9443 = vpack.c.b16 %v8859, %v8857
      %v9444 = vpack.c.b16 %v8862, %v8860
      %v9445 = vpack.c.b16 %v8863, %v8861
      %v9446 = vpack.c.b16 %v8866, %v8864
      %v9447 = vpack.c.b16 %v8867, %v8865
      %v9448 = vpack.c.b16 %v8870, %v8868
      %v9449 = vpack.c.b16 %v8871, %v8869
      %v9450 = vpack.c.b16 %v8874, %v8872
      %v9451 = vpack.c.b16 %v8875, %v8873
      %v9452 = vpack.c.b16 %v8878, %v8876
      %v9453 = vpack.c.b16 %v8879, %v8877
      %v9454 = vpack.c.b16 %v8882, %v8880
      %v9455 = vpack.c.b16 %v8883, %v8881
      %v9456 = vpack.c.b16 %v8886, %v8884
      %v9457 = vpack.c.b16 %v8887, %v8885
      %v9458 = vpack.c.b16 %v8890, %v8888
      %v9459 = vpack.c.b16 %v8891, %v8889
      %v9460 = vpack.c.b16 %v8894, %v8892
      %v9461 = vpack.c.b16 %v8895, %v8893
      %v9462 = vpack.c.b16 %v8898, %v8896
      %v9463 = vpack.c.b16 %v8899, %v8897
      %v9464 = vpack.c.b16 %v8902, %v8900
      %v9465 = vpack.c.b16 %v8903, %v8901
      %v9466 = vpack.c.b16 %v8906, %v8904
      %v9467 = vpack.c.b16 %v8907, %v8905
      %v9468 = vpack.c.b16 %v8910, %v8908
      %v9469 = vpack.c.b16 %v8911, %v8909
      %v9470 = vpack.c.b16 %v8914, %v8912
      %v9471 = vpack.c.b16 %v8915, %v8913
      %v9472 = vpack.c.b16 %v8918, %v8916
      %v9473 = vpack.c.b16 %v8919, %v8917
      %v9474 = vpack.c.b16 %v8922, %v8920
      %v9475 = vpack.c.b16 %v8923, %v8921
      %v9476 = vpack.c.b16 %v8926, %v8924
      %v9477 = vpack.c.b16 %v8927, %v8925
      %v9478 = vpack.c.b16 %v8930, %v8928
      %v9479 = vpack.c.b16 %v8931, %v8929
      %v9480 = vpack.c.b16 %v8934, %v8932
      %v9481 = vpack.c.b16 %v8935, %v8933
      %v9482 = vpack.c.b16 %v8938, %v8936
      %v9483 = vpack.c.b16 %v8939, %v8937
      %v9484 = vpack.c.b16 %v8942, %v8940
      %v9485 = vpack.c.b16 %v8943, %v8941
      %v9486 = vpack.c.b16 %v8946, %v8944
      %v9487 = vpack.c.b16 %v8947, %v8945
      %v9488 = vpack.c.b16 %v8950, %v8948
      %v9489 = vpack.c.b16 %v8951, %v8949
      %v9490 = vpack.c.b16 %v8954, %v8952
      %v9491 = vpack.c.b16 %v8955, %v8953
      %v9492 = vpack.c.b16 %v8958, %v8956
      %v9493 = vpack.c.b16 %v8959, %v8957
      %v9494 = vpack.c.b16 %v8962, %v8960
      %v9495 = vpack.c.b16 %v8963, %v8961
      %v9496 = vpack.c.b16 %v8966, %v8964
      %v9497 = vpack.c.b16 %v8967, %v8965
      %v9498 = vpack.c.b16 %v8970, %v8968
      %v9499 = vpack.c.b16 %v8971, %v8969
      %v9500 = vpack.c.b16 %v8974, %v8972
      %v9501 = vpack.c.b16 %v8975, %v8973
      %v9502 = vpack.c.b16 %v8978, %v8976
      %v9503 = vpack.c.b16 %v8979, %v8977
      %v9504 = vpack.c.b16 %v8982, %v8980
      %v9505 = vpack.c.b16 %v8983, %v8981
      %v9506 = vpack.c.b16 %v8986, %v8984
      %v9507 = vpack.c.b16 %v8987, %v8985
      %v9508 = vpack.c.b16 %v8990, %v8988
      %v9509 = vpack.c.b16 %v8991, %v8989
      %v9510 = vpack.c.b16 %v8994, %v8992
      %v9511 = vpack.c.b16 %v8995, %v8993
      %v9512 = vpack.c.b16 %v8998, %v8996
      %v9513 = vpack.c.b16 %v8999, %v8997
      %v9514 = vpack.c.b16 %v9002, %v9000
      %v9515 = vpack.c.b16 %v9003, %v9001
      %v9516 = vpack.c.b16 %v9006, %v9004
      %v9517 = vpack.c.b16 %v9007, %v9005
      %v9518 = vpack.c.b16 %v9010, %v9008
      %v9519 = vpack.c.b16 %v9011, %v9009
      %v9520 = vpack.c.b16 %v9014, %v9012
      %v9521 = vpack.c.b16 %v9015, %v9013
      %v9522 = vpack.c.b16 %v9018, %v9016
      %v9523 = vpack.c.b16 %v9019, %v9017
      %v9524 = vpack.c.b16 %v9022, %v9020
      %v9525 = vpack.c.b16 %v9023, %v9021
      %v9526 = vpack.c.b16 %v9026, %v9024
      %v9527 = vpack.c.b16 %v9027, %v9025
      %v9528 = vpack.c.b16 %v9030, %v9028
      %v9529 = vpack.c.b16 %v9031, %v9029
      %v9530 = vpack.c.b16 %v9034, %v9032
      %v9531 = vpack.c.b16 %v9035, %v9033
      %v9532 = vpack.c.b16 %v9038, %v9036
      %v9533 = vpack.c.b16 %v9039, %v9037
      %v9534 = vpack.c.b16 %v9042, %v9040
      %v9535 = vpack.c.b16 %v9043, %v9041
      %v9536 = vpack.c.b16 %v9046, %v9044
      %v9537 = vpack.c.b16 %v9047, %v9045
      %v9538 = vpack.c.b16 %v9050, %v9048
      %v9539 = vpack.c.b16 %v9051, %v9049
      %v9540 = vpack.c.b16 %v9054, %v9052
      %v9541 = vpack.c.b16 %v9055, %v9053
      %v9542 = vpack.c.b16 %v9058, %v9056
      %v9543 = vpack.c.b16 %v9059, %v9057
      %v9544 = vpack.c.b16 %v9062, %v9060
      %v9545 = vpack.c.b16 %v9063, %v9061
      %v9546 = vpack.c.b16 %v9066, %v9064
      %v9547 = vpack.c.b16 %v9067, %v9065
      %v9548 = vpack.c.b16 %v9070, %v9068
      %v9549 = vpack.c.b16 %v9071, %v9069
      %v9550 = vpack.c.b16 %v9074, %v9072
      %v9551 = vpack.c.b16 %v9075, %v9073
      %v9552 = vpack.c.b16 %v9078, %v9076
      %v9553 = vpack.c.b16 %v9079, %v9077
      %v9554 = vpack.c.b16 %v9082, %v9080
      %v9555 = vpack.c.b16 %v9083, %v9081
      %v9556 = vpack.c.b16 %v9086, %v9084
      %v9557 = vpack.c.b16 %v9087, %v9085
      %v9558 = vpack.c.b16 %v9090, %v9088
      %v9559 = vpack.c.b16 %v9091, %v9089
      %v9560 = vpack.c.b16 %v9094, %v9092
      %v9561 = vpack.c.b16 %v9095, %v9093
      %v9562 = vpack.c.b16 %v9098, %v9096
      %v9563 = vpack.c.b16 %v9099, %v9097
      %v9564 = vpack.c.b16 %v9102, %v9100
      %v9565 = vpack.c.b16 %v9103, %v9101
      %v9566 = vpack.c.b16 %v9106, %v9104
      %v9567 = vpack.c.b16 %v9107, %v9105
      %v9568 = vpack.c.b16 %v9110, %v9108
      %v9569 = vpack.c.b16 %v9111, %v9109
      %v9570 = vpack.c.b16 %v9114, %v9112
      %v9571 = vpack.c.b16 %v9115, %v9113
      %v9572 = vpack.c.b16 %v9118, %v9116
      %v9573 = vpack.c.b16 %v9119, %v9117
      %v9574 = vpack.c.b16 %v9122, %v9120
      %v9575 = vpack.c.b16 %v9123, %v9121
      %v9576 = vpack.c.b16 %v9126, %v9124
      %v9577 = vpack.c.b16 %v9127, %v9125
      %v9578 = vpack.c.b16 %v9130, %v9128
      %v9579 = vpack.c.b16 %v9131, %v9129
      %v9580 = vpack.c.b16 %v9134, %v9132
      %v9581 = vpack.c.b16 %v9135, %v9133
      %v9582 = vpack.c.b16 %v9138, %v9136
      %v9583 = vpack.c.b16 %v9139, %v9137
      %v9584 = vpack.c.b16 %v9142, %v9140
      %v9585 = vpack.c.b16 %v9143, %v9141
      %v9586 = vpack.c.b16 %v9146, %v9144
      %v9587 = vpack.c.b16 %v9147, %v9145
      %v9588 = vpack.c.b16 %v9150, %v9148
      %v9589 = vpack.c.b16 %v9151, %v9149
      %v9590 = vpack.c.b16 %v9154, %v9152
      %v9591 = vpack.c.b16 %v9155, %v9153
      %v9592 = vpack.c.b16 %v9158, %v9156
      %v9593 = vpack.c.b16 %v9159, %v9157
      %v9594 = vpack.c.b16 %v9162, %v9160
      %v9595 = vpack.c.b16 %v9163, %v9161
      %v9596 = vpack.c.b16 %v9166, %v9164
      %v9597 = vpack.c.b16 %v9167, %v9165
      %v9598 = vpack.c.b16 %v9170, %v9168
      %v9599 = vpack.c.b16 %v9171, %v9169
      %v9600 = vpack.c.b16 %v9174, %v9172
      %v9601 = vpack.c.b16 %v9175, %v9173
      %v9602 = vpack.c.b16 %v9178, %v9176
      %v9603 = vpack.c.b16 %v9179, %v9177
      %v9604 = vpack.c.b16 %v9182, %v9180
      %v9605 = vpack.c.b16 %v9183, %v9181
      %v9606 = vpack.c.b16 %v9186, %v9184
      %v9607 = vpack.c.b16 %v9187, %v9185
      %v9608 = vpack.c.b16 %v9190, %v9188
      %v9609 = vpack.c.b16 %v9191, %v9189
      %v9610 = vpack.c.b16 %v9194, %v9192
      %v9611 = vpack.c.b16 %v9195, %v9193
      %10028 = vmatpush.bf16.msra.mxu0 %v9210
      %10029 = vmatpush.bf16.msra.mxu0 %v9208
      %10030 = vmatpush.bf16.msra.mxu0 %v9206
      %10031 = vmatpush.bf16.msra.mxu0 %v9204
      %10032 = vmatpush.bf16.msra.mxu0 %v9202
      %10033 = vmatpush.bf16.msra.mxu0 %v9200
      %10034 = vmatpush.bf16.msra.mxu0 %v9198
      %10035 = vmatpush.bf16.msra.mxu0 %v9196
      %10036 = vmatmul.bf16.gmra.mxu0 %v7425
      %v10037 = vpop.f32.mrf.mxu0
      %v10038 = vadd.f32 %v7896, %v10037
      %v10039 = vpop.f32.mrf.mxu0
      %10040 = vdwg.mxu0
      %10041 = vmatpush.bf16.msra.mxu0 %v9226
      %10042 = vmatpush.bf16.msra.mxu0 %v9224
      %10043 = vmatpush.bf16.msra.mxu0 %v9222
      %10044 = vmatpush.bf16.msra.mxu0 %v9220
      %10045 = vmatpush.bf16.msra.mxu0 %v9218
      %10046 = vmatpush.bf16.msra.mxu0 %v9216
      %10047 = vmatpush.bf16.msra.mxu0 %v9214
      %10048 = vmatpush.bf16.msra.mxu0 %v9212
      %10049 = vmatmul.bf16.gmra.mxu0 %v7426
      %v10050 = vpop.f32.mrf.mxu0
      %v10051 = vadd.f32 %v10038, %v10050
      %v10052 = vpop.f32.mrf.mxu0
      %10053 = vdwg.mxu0
      %10054 = vmatpush.bf16.msra.mxu0 %v9242
      %10055 = vmatpush.bf16.msra.mxu0 %v9240
      %10056 = vmatpush.bf16.msra.mxu0 %v9238
      %10057 = vmatpush.bf16.msra.mxu0 %v9236
      %10058 = vmatpush.bf16.msra.mxu0 %v9234
      %10059 = vmatpush.bf16.msra.mxu0 %v9232
      %10060 = vmatpush.bf16.msra.mxu0 %v9230
      %10061 = vmatpush.bf16.msra.mxu0 %v9228
      %10062 = vmatmul.bf16.gmra.mxu0 %v7900
      %v10063 = vpop.f32.mrf.mxu0
      %v10064 = vadd.f32 %v10051, %v10063
      %v10065 = vpop.f32.mrf.mxu0
      %10066 = vdwg.mxu0
      %10067 = vmatpush.bf16.msra.mxu0 %v9258
      %10068 = vmatpush.bf16.msra.mxu0 %v9256
      %10069 = vmatpush.bf16.msra.mxu0 %v9254
      %10070 = vmatpush.bf16.msra.mxu0 %v9252
      %10071 = vmatpush.bf16.msra.mxu0 %v9250
      %10072 = vmatpush.bf16.msra.mxu0 %v9248
      %10073 = vmatpush.bf16.msra.mxu0 %v9246
      %10074 = vmatpush.bf16.msra.mxu0 %v9244
      %10075 = vmatmul.bf16.gmra.mxu0 %v7901
      %v10076 = vpop.f32.mrf.mxu0
      %v10077 = vadd.f32 %v10064, %v10076
      %v10078 = vpop.f32.mrf.mxu0
      %10079 = vdwg.mxu0
      %10080 = vmatpush.bf16.msra.mxu0 %v9274
      %10081 = vmatpush.bf16.msra.mxu0 %v9272
      %10082 = vmatpush.bf16.msra.mxu0 %v9270
      %10083 = vmatpush.bf16.msra.mxu0 %v9268
      %10084 = vmatpush.bf16.msra.mxu0 %v9266
      %10085 = vmatpush.bf16.msra.mxu0 %v9264
      %10086 = vmatpush.bf16.msra.mxu0 %v9262
      %10087 = vmatpush.bf16.msra.mxu0 %v9260
      %10088 = vmatmul.bf16.gmra.mxu0 %v7902
      %v10089 = vpop.f32.mrf.mxu0
      %v10090 = vadd.f32 %v10077, %v10089
      %v10091 = vpop.f32.mrf.mxu0
      %10092 = vdwg.mxu0
      %10093 = vmatpush.bf16.msra.mxu0 %v9290
      %10094 = vmatpush.bf16.msra.mxu0 %v9288
      %10095 = vmatpush.bf16.msra.mxu0 %v9286
      %10096 = vmatpush.bf16.msra.mxu0 %v9284
      %10097 = vmatpush.bf16.msra.mxu0 %v9282
      %10098 = vmatpush.bf16.msra.mxu0 %v9280
      %10099 = vmatpush.bf16.msra.mxu0 %v9278
      %10100 = vmatpush.bf16.msra.mxu0 %v9276
      %10101 = vmatmul.bf16.gmra.mxu0 %v7903
      %v10102 = vpop.f32.mrf.mxu0
      %v10103 = vadd.f32 %v10090, %v10102
      %v10104 = vpop.f32.mrf.mxu0
      %10105 = vdwg.mxu0
      %10106 = vmatpush.bf16.msra.mxu0 %v9306
      %10107 = vmatpush.bf16.msra.mxu0 %v9304
      %10108 = vmatpush.bf16.msra.mxu0 %v9302
      %10109 = vmatpush.bf16.msra.mxu0 %v9300
      %10110 = vmatpush.bf16.msra.mxu0 %v9298
      %10111 = vmatpush.bf16.msra.mxu0 %v9296
      %10112 = vmatpush.bf16.msra.mxu0 %v9294
      %10113 = vmatpush.bf16.msra.mxu0 %v9292
      %10114 = vmatmul.bf16.gmra.mxu0 %v7904
      %v10115 = vpop.f32.mrf.mxu0
      %v10116 = vadd.f32 %v10103, %v10115
      %v10117 = vpop.f32.mrf.mxu0
      %10118 = vdwg.mxu0
      %10119 = vmatpush.bf16.msra.mxu0 %v9322
      %10120 = vmatpush.bf16.msra.mxu0 %v9320
      %10121 = vmatpush.bf16.msra.mxu0 %v9318
      %10122 = vmatpush.bf16.msra.mxu0 %v9316
      %10123 = vmatpush.bf16.msra.mxu0 %v9314
      %10124 = vmatpush.bf16.msra.mxu0 %v9312
      %10125 = vmatpush.bf16.msra.mxu0 %v9310
      %10126 = vmatpush.bf16.msra.mxu0 %v9308
      %10127 = vmatmul.bf16.gmra.mxu0 %v7905
      %v10128 = vpop.f32.mrf.mxu0
      %v10129 = vadd.f32 %v10116, %v10128
      %v10130 = vpop.f32.mrf.mxu0
      %10131 = vdwg.mxu0
      %10132 = vmatpush.bf16.msra.mxu0 %v9338
      %10133 = vmatpush.bf16.msra.mxu0 %v9336
      %10134 = vmatpush.bf16.msra.mxu0 %v9334
      %10135 = vmatpush.bf16.msra.mxu0 %v9332
      %10136 = vmatpush.bf16.msra.mxu0 %v9330
      %10137 = vmatpush.bf16.msra.mxu0 %v9328
      %10138 = vmatpush.bf16.msra.mxu0 %v9326
      %10139 = vmatpush.bf16.msra.mxu0 %v9324
      %10140 = vmatmul.bf16.gmra.mxu0 %v7906
      %v10141 = vpop.f32.mrf.mxu0
      %v10142 = vadd.f32 %v10129, %v10141
      %v10143 = vpop.f32.mrf.mxu0
      %10144 = vdwg.mxu0
      %10145 = vmatpush.bf16.msra.mxu0 %v9354
      %10146 = vmatpush.bf16.msra.mxu0 %v9352
      %10147 = vmatpush.bf16.msra.mxu0 %v9350
      %10148 = vmatpush.bf16.msra.mxu0 %v9348
      %10149 = vmatpush.bf16.msra.mxu0 %v9346
      %10150 = vmatpush.bf16.msra.mxu0 %v9344
      %10151 = vmatpush.bf16.msra.mxu0 %v9342
      %10152 = vmatpush.bf16.msra.mxu0 %v9340
      %10153 = vmatmul.bf16.gmra.mxu0 %v7907
      %v10154 = vpop.f32.mrf.mxu0
      %v10155 = vadd.f32 %v10142, %v10154
      %v10156 = vpop.f32.mrf.mxu0
      %10157 = vdwg.mxu0
      %10158 = vmatpush.bf16.msra.mxu0 %v9370
      %10159 = vmatpush.bf16.msra.mxu0 %v9368
      %10160 = vmatpush.bf16.msra.mxu0 %v9366
      %10161 = vmatpush.bf16.msra.mxu0 %v9364
      %10162 = vmatpush.bf16.msra.mxu0 %v9362
      %10163 = vmatpush.bf16.msra.mxu0 %v9360
      %10164 = vmatpush.bf16.msra.mxu0 %v9358
      %10165 = vmatpush.bf16.msra.mxu0 %v9356
      %10166 = vmatmul.bf16.gmra.mxu0 %v7908
      %v10167 = vpop.f32.mrf.mxu0
      %v10168 = vadd.f32 %v10155, %v10167
      %v10169 = vpop.f32.mrf.mxu0
      %10170 = vdwg.mxu0
      %10171 = vmatpush.bf16.msra.mxu0 %v9386
      %10172 = vmatpush.bf16.msra.mxu0 %v9384
      %10173 = vmatpush.bf16.msra.mxu0 %v9382
      %10174 = vmatpush.bf16.msra.mxu0 %v9380
      %10175 = vmatpush.bf16.msra.mxu0 %v9378
      %10176 = vmatpush.bf16.msra.mxu0 %v9376
      %10177 = vmatpush.bf16.msra.mxu0 %v9374
      %10178 = vmatpush.bf16.msra.mxu0 %v9372
      %10179 = vmatmul.bf16.gmra.mxu0 %v7909
      %v10180 = vpop.f32.mrf.mxu0
      %v10181 = vadd.f32 %v10168, %v10180
      %v10182 = vpop.f32.mrf.mxu0
      %10183 = vdwg.mxu0
      %10184 = vmatpush.bf16.msra.mxu0 %v9402
      %10185 = vmatpush.bf16.msra.mxu0 %v9400
      %10186 = vmatpush.bf16.msra.mxu0 %v9398
      %10187 = vmatpush.bf16.msra.mxu0 %v9396
      %10188 = vmatpush.bf16.msra.mxu0 %v9394
      %10189 = vmatpush.bf16.msra.mxu0 %v9392
      %10190 = vmatpush.bf16.msra.mxu0 %v9390
      %10191 = vmatpush.bf16.msra.mxu0 %v9388
      %10192 = vmatmul.bf16.gmra.mxu0 %v7910
      %v10193 = vpop.f32.mrf.mxu0
      %v10194 = vadd.f32 %v10181, %v10193
      %v10195 = vpop.f32.mrf.mxu0
      %10196 = vdwg.mxu0
      %10197 = vmatpush.bf16.msra.mxu0 %v9418
      %10198 = vmatpush.bf16.msra.mxu0 %v9416
      %10199 = vmatpush.bf16.msra.mxu0 %v9414
      %10200 = vmatpush.bf16.msra.mxu0 %v9412
      %10201 = vmatpush.bf16.msra.mxu0 %v9410
      %10202 = vmatpush.bf16.msra.mxu0 %v9408
      %10203 = vmatpush.bf16.msra.mxu0 %v9406
      %10204 = vmatpush.bf16.msra.mxu0 %v9404
      %10205 = vmatmul.bf16.gmra.mxu0 %v7911
      %v10206 = vpop.f32.mrf.mxu0
      %v10207 = vadd.f32 %v10194, %v10206
      %v10208 = vpop.f32.mrf.mxu0
      %10209 = vdwg.mxu0
      %10210 = vmatpush.bf16.msra.mxu0 %v9434
      %10211 = vmatpush.bf16.msra.mxu0 %v9432
      %10212 = vmatpush.bf16.msra.mxu0 %v9430
      %10213 = vmatpush.bf16.msra.mxu0 %v9428
      %10214 = vmatpush.bf16.msra.mxu0 %v9426
      %10215 = vmatpush.bf16.msra.mxu0 %v9424
      %10216 = vmatpush.bf16.msra.mxu0 %v9422
      %10217 = vmatpush.bf16.msra.mxu0 %v9420
      %10218 = vmatmul.bf16.gmra.mxu0 %v7912
      %v10219 = vpop.f32.mrf.mxu0
      %v10220 = vadd.f32 %v10207, %v10219
      %v10221 = vpop.f32.mrf.mxu0
      %10222 = vdwg.mxu0
      %10223 = vmatpush.bf16.msra.mxu0 %v9450
      %10224 = vmatpush.bf16.msra.mxu0 %v9448
      %10225 = vmatpush.bf16.msra.mxu0 %v9446
      %10226 = vmatpush.bf16.msra.mxu0 %v9444
      %10227 = vmatpush.bf16.msra.mxu0 %v9442
      %10228 = vmatpush.bf16.msra.mxu0 %v9440
      %10229 = vmatpush.bf16.msra.mxu0 %v9438
      %10230 = vmatpush.bf16.msra.mxu0 %v9436
      %10231 = vmatmul.bf16.gmra.mxu0 %v7913
      %v10232 = vpop.f32.mrf.mxu0
      %v10233 = vadd.f32 %v10220, %v10232
      %v10234 = vpop.f32.mrf.mxu0
      %10235 = vdwg.mxu0
      %10236 = vmatpush.bf16.msra.mxu0 %v9466
      %10237 = vmatpush.bf16.msra.mxu0 %v9464
      %10238 = vmatpush.bf16.msra.mxu0 %v9462
      %10239 = vmatpush.bf16.msra.mxu0 %v9460
      %10240 = vmatpush.bf16.msra.mxu0 %v9458
      %10241 = vmatpush.bf16.msra.mxu0 %v9456
      %10242 = vmatpush.bf16.msra.mxu0 %v9454
      %10243 = vmatpush.bf16.msra.mxu0 %v9452
      %10244 = vmatmul.bf16.gmra.mxu0 %v7468
      %v10245 = vpop.f32.mrf.mxu0
      %v10246 = vadd.f32 %v10233, %v10245
      %v10247 = vpop.f32.mrf.mxu0
      %10248 = vdwg.mxu0
      %10249 = vmatpush.bf16.msra.mxu0 %v9482
      %10250 = vmatpush.bf16.msra.mxu0 %v9480
      %10251 = vmatpush.bf16.msra.mxu0 %v9478
      %10252 = vmatpush.bf16.msra.mxu0 %v9476
      %10253 = vmatpush.bf16.msra.mxu0 %v9474
      %10254 = vmatpush.bf16.msra.mxu0 %v9472
      %10255 = vmatpush.bf16.msra.mxu0 %v9470
      %10256 = vmatpush.bf16.msra.mxu0 %v9468
      %10257 = vmatmul.bf16.gmra.mxu0 %v7469
      %v10258 = vpop.f32.mrf.mxu0
      %v10259 = vadd.f32 %v10246, %v10258
      %v10260 = vpop.f32.mrf.mxu0
      %10261 = vdwg.mxu0
      %10262 = vmatpush.bf16.msra.mxu0 %v9498
      %10263 = vmatpush.bf16.msra.mxu0 %v9496
      %10264 = vmatpush.bf16.msra.mxu0 %v9494
      %10265 = vmatpush.bf16.msra.mxu0 %v9492
      %10266 = vmatpush.bf16.msra.mxu0 %v9490
      %10267 = vmatpush.bf16.msra.mxu0 %v9488
      %10268 = vmatpush.bf16.msra.mxu0 %v9486
      %10269 = vmatpush.bf16.msra.mxu0 %v9484
      %10270 = vmatmul.bf16.gmra.mxu0 %v7914
      %v10271 = vpop.f32.mrf.mxu0
      %v10272 = vadd.f32 %v10259, %v10271
      %v10273 = vpop.f32.mrf.mxu0
      %10274 = vdwg.mxu0
      %10275 = vmatpush.bf16.msra.mxu0 %v9514
      %10276 = vmatpush.bf16.msra.mxu0 %v9512
      %10277 = vmatpush.bf16.msra.mxu0 %v9510
      %10278 = vmatpush.bf16.msra.mxu0 %v9508
      %10279 = vmatpush.bf16.msra.mxu0 %v9506
      %10280 = vmatpush.bf16.msra.mxu0 %v9504
      %10281 = vmatpush.bf16.msra.mxu0 %v9502
      %10282 = vmatpush.bf16.msra.mxu0 %v9500
      %10283 = vmatmul.bf16.gmra.mxu0 %v7915
      %v10284 = vpop.f32.mrf.mxu0
      %v10285 = vadd.f32 %v10272, %v10284
      %v10286 = vpop.f32.mrf.mxu0
      %10287 = vdwg.mxu0
      %10288 = vmatpush.bf16.msra.mxu0 %v9530
      %10289 = vmatpush.bf16.msra.mxu0 %v9528
      %10290 = vmatpush.bf16.msra.mxu0 %v9526
      %10291 = vmatpush.bf16.msra.mxu0 %v9524
      %10292 = vmatpush.bf16.msra.mxu0 %v9522
      %10293 = vmatpush.bf16.msra.mxu0 %v9520
      %10294 = vmatpush.bf16.msra.mxu0 %v9518
      %10295 = vmatpush.bf16.msra.mxu0 %v9516
      %10296 = vmatmul.bf16.gmra.mxu0 %v7916
      %v10297 = vpop.f32.mrf.mxu0
      %v10298 = vadd.f32 %v10285, %v10297
      %v10299 = vpop.f32.mrf.mxu0
      %10300 = vdwg.mxu0
      %10301 = vmatpush.bf16.msra.mxu0 %v9546
      %10302 = vmatpush.bf16.msra.mxu0 %v9544
      %10303 = vmatpush.bf16.msra.mxu0 %v9542
      %10304 = vmatpush.bf16.msra.mxu0 %v9540
      %10305 = vmatpush.bf16.msra.mxu0 %v9538
      %10306 = vmatpush.bf16.msra.mxu0 %v9536
      %10307 = vmatpush.bf16.msra.mxu0 %v9534
      %10308 = vmatpush.bf16.msra.mxu0 %v9532
      %10309 = vmatmul.bf16.gmra.mxu0 %v7917
      %v10310 = vpop.f32.mrf.mxu0
      %v10311 = vadd.f32 %v10298, %v10310
      %v10312 = vpop.f32.mrf.mxu0
      %10313 = vdwg.mxu0
      %10314 = vmatpush.bf16.msra.mxu0 %v9562
      %10315 = vmatpush.bf16.msra.mxu0 %v9560
      %10316 = vmatpush.bf16.msra.mxu0 %v9558
      %10317 = vmatpush.bf16.msra.mxu0 %v9556
      %10318 = vmatpush.bf16.msra.mxu0 %v9554
      %10319 = vmatpush.bf16.msra.mxu0 %v9552
      %10320 = vmatpush.bf16.msra.mxu0 %v9550
      %10321 = vmatpush.bf16.msra.mxu0 %v9548
      %10322 = vmatmul.bf16.gmra.mxu0 %v7918
      %v10323 = vpop.f32.mrf.mxu0
      %v10324 = vadd.f32 %v10311, %v10323
      %v10325 = vpop.f32.mrf.mxu0
      %10326 = vdwg.mxu0
      %10327 = vmatpush.bf16.msra.mxu0 %v9578
      %10328 = vmatpush.bf16.msra.mxu0 %v9576
      %10329 = vmatpush.bf16.msra.mxu0 %v9574
      %10330 = vmatpush.bf16.msra.mxu0 %v9572
      %10331 = vmatpush.bf16.msra.mxu0 %v9570
      %10332 = vmatpush.bf16.msra.mxu0 %v9568
      %10333 = vmatpush.bf16.msra.mxu0 %v9566
      %10334 = vmatpush.bf16.msra.mxu0 %v9564
      %10335 = vmatmul.bf16.gmra.mxu0 %v7919
      %v10336 = vpop.f32.mrf.mxu0
      %v10337 = vadd.f32 %v10324, %v10336
      %v10338 = vpop.f32.mrf.mxu0
      %10339 = vdwg.mxu0
      %10340 = vmatpush.bf16.msra.mxu0 %v9594
      %10341 = vmatpush.bf16.msra.mxu0 %v9592
      %10342 = vmatpush.bf16.msra.mxu0 %v9590
      %10343 = vmatpush.bf16.msra.mxu0 %v9588
      %10344 = vmatpush.bf16.msra.mxu0 %v9586
      %10345 = vmatpush.bf16.msra.mxu0 %v9584
      %10346 = vmatpush.bf16.msra.mxu0 %v9582
      %10347 = vmatpush.bf16.msra.mxu0 %v9580
      %10348 = vmatmul.bf16.gmra.mxu0 %v7920
      %v10349 = vpop.f32.mrf.mxu0
      %v10350 = vadd.f32 %v10337, %v10349
      %v10351 = vpop.f32.mrf.mxu0
      %10352 = vdwg.mxu0
      %10353 = vmatpush.bf16.msra.mxu0 %v9610
      %10354 = vmatpush.bf16.msra.mxu0 %v9608
      %10355 = vmatpush.bf16.msra.mxu0 %v9606
      %10356 = vmatpush.bf16.msra.mxu0 %v9604
      %10357 = vmatpush.bf16.msra.mxu0 %v9602
      %10358 = vmatpush.bf16.msra.mxu0 %v9600
      %10359 = vmatpush.bf16.msra.mxu0 %v9598
      %10360 = vmatpush.bf16.msra.mxu0 %v9596
      %10361 = vmatmul.bf16.gmra.mxu0 %v7921
      %v10362 = vpop.f32.mrf.mxu0
      %v10363 = vadd.f32 %v10350, %v10362
      %v10364 = vpop.f32.mrf.mxu0
      %10365 = vdwg.mxu0
      %10366 = vmatpush.bf16.msra.mxu0 %v9211
      %10367 = vmatpush.bf16.msra.mxu0 %v9209
      %10368 = vmatpush.bf16.msra.mxu0 %v9207
      %10369 = vmatpush.bf16.msra.mxu0 %v9205
      %10370 = vmatpush.bf16.msra.mxu0 %v9203
      %10371 = vmatpush.bf16.msra.mxu0 %v9201
      %10372 = vmatpush.bf16.msra.mxu0 %v9199
      %10373 = vmatpush.bf16.msra.mxu0 %v9197
      %10374 = vmatmul.bf16.gmra.mxu0 %v7425
      %v10375 = vpop.f32.mrf.mxu0
      %v10376 = vadd.f32 %v7897, %v10375
      %v10377 = vpop.f32.mrf.mxu0
      %10378 = vdwg.mxu0
      %10379 = vmatpush.bf16.msra.mxu0 %v9227
      %10380 = vmatpush.bf16.msra.mxu0 %v9225
      %10381 = vmatpush.bf16.msra.mxu0 %v9223
      %10382 = vmatpush.bf16.msra.mxu0 %v9221
      %10383 = vmatpush.bf16.msra.mxu0 %v9219
      %10384 = vmatpush.bf16.msra.mxu0 %v9217
      %10385 = vmatpush.bf16.msra.mxu0 %v9215
      %10386 = vmatpush.bf16.msra.mxu0 %v9213
      %10387 = vmatmul.bf16.gmra.mxu0 %v7426
      %v10388 = vpop.f32.mrf.mxu0
      %v10389 = vadd.f32 %v10376, %v10388
      %v10390 = vpop.f32.mrf.mxu0
      %10391 = vdwg.mxu0
      %10392 = vmatpush.bf16.msra.mxu0 %v9243
      %10393 = vmatpush.bf16.msra.mxu0 %v9241
      %10394 = vmatpush.bf16.msra.mxu0 %v9239
      %10395 = vmatpush.bf16.msra.mxu0 %v9237
      %10396 = vmatpush.bf16.msra.mxu0 %v9235
      %10397 = vmatpush.bf16.msra.mxu0 %v9233
      %10398 = vmatpush.bf16.msra.mxu0 %v9231
      %10399 = vmatpush.bf16.msra.mxu0 %v9229
      %10400 = vmatmul.bf16.gmra.mxu0 %v7900
      %v10401 = vpop.f32.mrf.mxu0
      %v10402 = vadd.f32 %v10389, %v10401
      %v10403 = vpop.f32.mrf.mxu0
      %10404 = vdwg.mxu0
      %10405 = vmatpush.bf16.msra.mxu0 %v9259
      %10406 = vmatpush.bf16.msra.mxu0 %v9257
      %10407 = vmatpush.bf16.msra.mxu0 %v9255
      %10408 = vmatpush.bf16.msra.mxu0 %v9253
      %10409 = vmatpush.bf16.msra.mxu0 %v9251
      %10410 = vmatpush.bf16.msra.mxu0 %v9249
      %10411 = vmatpush.bf16.msra.mxu0 %v9247
      %10412 = vmatpush.bf16.msra.mxu0 %v9245
      %10413 = vmatmul.bf16.gmra.mxu0 %v7901
      %v10414 = vpop.f32.mrf.mxu0
      %v10415 = vadd.f32 %v10402, %v10414
      %v10416 = vpop.f32.mrf.mxu0
      %10417 = vdwg.mxu0
      %10418 = vmatpush.bf16.msra.mxu0 %v9275
      %10419 = vmatpush.bf16.msra.mxu0 %v9273
      %10420 = vmatpush.bf16.msra.mxu0 %v9271
      %10421 = vmatpush.bf16.msra.mxu0 %v9269
      %10422 = vmatpush.bf16.msra.mxu0 %v9267
      %10423 = vmatpush.bf16.msra.mxu0 %v9265
      %10424 = vmatpush.bf16.msra.mxu0 %v9263
      %10425 = vmatpush.bf16.msra.mxu0 %v9261
      %10426 = vmatmul.bf16.gmra.mxu0 %v7902
      %v10427 = vpop.f32.mrf.mxu0
      %v10428 = vadd.f32 %v10415, %v10427
      %v10429 = vpop.f32.mrf.mxu0
      %10430 = vdwg.mxu0
      %10431 = vmatpush.bf16.msra.mxu0 %v9291
      %10432 = vmatpush.bf16.msra.mxu0 %v9289
      %10433 = vmatpush.bf16.msra.mxu0 %v9287
      %10434 = vmatpush.bf16.msra.mxu0 %v9285
      %10435 = vmatpush.bf16.msra.mxu0 %v9283
      %10436 = vmatpush.bf16.msra.mxu0 %v9281
      %10437 = vmatpush.bf16.msra.mxu0 %v9279
      %10438 = vmatpush.bf16.msra.mxu0 %v9277
      %10439 = vmatmul.bf16.gmra.mxu0 %v7903
      %v10440 = vpop.f32.mrf.mxu0
      %v10441 = vadd.f32 %v10428, %v10440
      %v10442 = vpop.f32.mrf.mxu0
      %10443 = vdwg.mxu0
      %10444 = vmatpush.bf16.msra.mxu0 %v9307
      %10445 = vmatpush.bf16.msra.mxu0 %v9305
      %10446 = vmatpush.bf16.msra.mxu0 %v9303
      %10447 = vmatpush.bf16.msra.mxu0 %v9301
      %10448 = vmatpush.bf16.msra.mxu0 %v9299
      %10449 = vmatpush.bf16.msra.mxu0 %v9297
      %10450 = vmatpush.bf16.msra.mxu0 %v9295
      %10451 = vmatpush.bf16.msra.mxu0 %v9293
      %10452 = vmatmul.bf16.gmra.mxu0 %v7904
      %v10453 = vpop.f32.mrf.mxu0
      %v10454 = vadd.f32 %v10441, %v10453
      %v10455 = vpop.f32.mrf.mxu0
      %10456 = vdwg.mxu0
      %10457 = vmatpush.bf16.msra.mxu0 %v9323
      %10458 = vmatpush.bf16.msra.mxu0 %v9321
      %10459 = vmatpush.bf16.msra.mxu0 %v9319
      %10460 = vmatpush.bf16.msra.mxu0 %v9317
      %10461 = vmatpush.bf16.msra.mxu0 %v9315
      %10462 = vmatpush.bf16.msra.mxu0 %v9313
      %10463 = vmatpush.bf16.msra.mxu0 %v9311
      %10464 = vmatpush.bf16.msra.mxu0 %v9309
      %10465 = vmatmul.bf16.gmra.mxu0 %v7905
      %v10466 = vpop.f32.mrf.mxu0
      %v10467 = vadd.f32 %v10454, %v10466
      %v10468 = vpop.f32.mrf.mxu0
      %10469 = vdwg.mxu0
      %10470 = vmatpush.bf16.msra.mxu0 %v9339
      %10471 = vmatpush.bf16.msra.mxu0 %v9337
      %10472 = vmatpush.bf16.msra.mxu0 %v9335
      %10473 = vmatpush.bf16.msra.mxu0 %v9333
      %10474 = vmatpush.bf16.msra.mxu0 %v9331
      %10475 = vmatpush.bf16.msra.mxu0 %v9329
      %10476 = vmatpush.bf16.msra.mxu0 %v9327
      %10477 = vmatpush.bf16.msra.mxu0 %v9325
      %10478 = vmatmul.bf16.gmra.mxu0 %v7906
      %v10479 = vpop.f32.mrf.mxu0
      %v10480 = vadd.f32 %v10467, %v10479
      %v10481 = vpop.f32.mrf.mxu0
      %10482 = vdwg.mxu0
      %10483 = vmatpush.bf16.msra.mxu0 %v9355
      %10484 = vmatpush.bf16.msra.mxu0 %v9353
      %10485 = vmatpush.bf16.msra.mxu0 %v9351
      %10486 = vmatpush.bf16.msra.mxu0 %v9349
      %10487 = vmatpush.bf16.msra.mxu0 %v9347
      %10488 = vmatpush.bf16.msra.mxu0 %v9345
      %10489 = vmatpush.bf16.msra.mxu0 %v9343
      %10490 = vmatpush.bf16.msra.mxu0 %v9341
      %10491 = vmatmul.bf16.gmra.mxu0 %v7907
      %v10492 = vpop.f32.mrf.mxu0
      %v10493 = vadd.f32 %v10480, %v10492
      %v10494 = vpop.f32.mrf.mxu0
      %10495 = vdwg.mxu0
      %10496 = vmatpush.bf16.msra.mxu0 %v9371
      %10497 = vmatpush.bf16.msra.mxu0 %v9369
      %10498 = vmatpush.bf16.msra.mxu0 %v9367
      %10499 = vmatpush.bf16.msra.mxu0 %v9365
      %10500 = vmatpush.bf16.msra.mxu0 %v9363
      %10501 = vmatpush.bf16.msra.mxu0 %v9361
      %10502 = vmatpush.bf16.msra.mxu0 %v9359
      %10503 = vmatpush.bf16.msra.mxu0 %v9357
      %10504 = vmatmul.bf16.gmra.mxu0 %v7908
      %v10505 = vpop.f32.mrf.mxu0
      %v10506 = vadd.f32 %v10493, %v10505
      %v10507 = vpop.f32.mrf.mxu0
      %10508 = vdwg.mxu0
      %10509 = vmatpush.bf16.msra.mxu0 %v9387
      %10510 = vmatpush.bf16.msra.mxu0 %v9385
      %10511 = vmatpush.bf16.msra.mxu0 %v9383
      %10512 = vmatpush.bf16.msra.mxu0 %v9381
      %10513 = vmatpush.bf16.msra.mxu0 %v9379
      %10514 = vmatpush.bf16.msra.mxu0 %v9377
      %10515 = vmatpush.bf16.msra.mxu0 %v9375
      %10516 = vmatpush.bf16.msra.mxu0 %v9373
      %10517 = vmatmul.bf16.gmra.mxu0 %v7909
      %v10518 = vpop.f32.mrf.mxu0
      %v10519 = vadd.f32 %v10506, %v10518
      %v10520 = vpop.f32.mrf.mxu0
      %10521 = vdwg.mxu0
      %10522 = vmatpush.bf16.msra.mxu0 %v9403
      %10523 = vmatpush.bf16.msra.mxu0 %v9401
      %10524 = vmatpush.bf16.msra.mxu0 %v9399
      %10525 = vmatpush.bf16.msra.mxu0 %v9397
      %10526 = vmatpush.bf16.msra.mxu0 %v9395
      %10527 = vmatpush.bf16.msra.mxu0 %v9393
      %10528 = vmatpush.bf16.msra.mxu0 %v9391
      %10529 = vmatpush.bf16.msra.mxu0 %v9389
      %10530 = vmatmul.bf16.gmra.mxu0 %v7910
      %v10531 = vpop.f32.mrf.mxu0
      %v10532 = vadd.f32 %v10519, %v10531
      %v10533 = vpop.f32.mrf.mxu0
      %10534 = vdwg.mxu0
      %10535 = vmatpush.bf16.msra.mxu0 %v9419
      %10536 = vmatpush.bf16.msra.mxu0 %v9417
      %10537 = vmatpush.bf16.msra.mxu0 %v9415
      %10538 = vmatpush.bf16.msra.mxu0 %v9413
      %10539 = vmatpush.bf16.msra.mxu0 %v9411
      %10540 = vmatpush.bf16.msra.mxu0 %v9409
      %10541 = vmatpush.bf16.msra.mxu0 %v9407
      %10542 = vmatpush.bf16.msra.mxu0 %v9405
      %10543 = vmatmul.bf16.gmra.mxu0 %v7911
      %v10544 = vpop.f32.mrf.mxu0
      %v10545 = vadd.f32 %v10532, %v10544
      %v10546 = vpop.f32.mrf.mxu0
      %10547 = vdwg.mxu0
      %10548 = vmatpush.bf16.msra.mxu0 %v9435
      %10549 = vmatpush.bf16.msra.mxu0 %v9433
      %10550 = vmatpush.bf16.msra.mxu0 %v9431
      %10551 = vmatpush.bf16.msra.mxu0 %v9429
      %10552 = vmatpush.bf16.msra.mxu0 %v9427
      %10553 = vmatpush.bf16.msra.mxu0 %v9425
      %10554 = vmatpush.bf16.msra.mxu0 %v9423
      %10555 = vmatpush.bf16.msra.mxu0 %v9421
      %10556 = vmatmul.bf16.gmra.mxu0 %v7912
      %v10557 = vpop.f32.mrf.mxu0
      %v10558 = vadd.f32 %v10545, %v10557
      %v10559 = vpop.f32.mrf.mxu0
      %10560 = vdwg.mxu0
      %10561 = vmatpush.bf16.msra.mxu0 %v9451
      %10562 = vmatpush.bf16.msra.mxu0 %v9449
      %10563 = vmatpush.bf16.msra.mxu0 %v9447
      %10564 = vmatpush.bf16.msra.mxu0 %v9445
      %10565 = vmatpush.bf16.msra.mxu0 %v9443
      %10566 = vmatpush.bf16.msra.mxu0 %v9441
      %10567 = vmatpush.bf16.msra.mxu0 %v9439
      %10568 = vmatpush.bf16.msra.mxu0 %v9437
      %10569 = vmatmul.bf16.gmra.mxu0 %v7913
      %v10570 = vpop.f32.mrf.mxu0
      %v10571 = vadd.f32 %v10558, %v10570
      %v10572 = vpop.f32.mrf.mxu0
      %10573 = vdwg.mxu0
      %10574 = vmatpush.bf16.msra.mxu0 %v9467
      %10575 = vmatpush.bf16.msra.mxu0 %v9465
      %10576 = vmatpush.bf16.msra.mxu0 %v9463
      %10577 = vmatpush.bf16.msra.mxu0 %v9461
      %10578 = vmatpush.bf16.msra.mxu0 %v9459
      %10579 = vmatpush.bf16.msra.mxu0 %v9457
      %10580 = vmatpush.bf16.msra.mxu0 %v9455
      %10581 = vmatpush.bf16.msra.mxu0 %v9453
      %10582 = vmatmul.bf16.gmra.mxu0 %v7468
      %v10583 = vpop.f32.mrf.mxu0
      %v10584 = vadd.f32 %v10571, %v10583
      %v10585 = vpop.f32.mrf.mxu0
      %10586 = vdwg.mxu0
      %10587 = vmatpush.bf16.msra.mxu0 %v9483
      %10588 = vmatpush.bf16.msra.mxu0 %v9481
      %10589 = vmatpush.bf16.msra.mxu0 %v9479
      %10590 = vmatpush.bf16.msra.mxu0 %v9477
      %10591 = vmatpush.bf16.msra.mxu0 %v9475
      %10592 = vmatpush.bf16.msra.mxu0 %v9473
      %10593 = vmatpush.bf16.msra.mxu0 %v9471
      %10594 = vmatpush.bf16.msra.mxu0 %v9469
      %10595 = vmatmul.bf16.gmra.mxu0 %v7469
      %v10596 = vpop.f32.mrf.mxu0
      %v10597 = vadd.f32 %v10584, %v10596
      %v10598 = vpop.f32.mrf.mxu0
      %10599 = vdwg.mxu0
      %10600 = vmatpush.bf16.msra.mxu0 %v9499
      %10601 = vmatpush.bf16.msra.mxu0 %v9497
      %10602 = vmatpush.bf16.msra.mxu0 %v9495
      %10603 = vmatpush.bf16.msra.mxu0 %v9493
      %10604 = vmatpush.bf16.msra.mxu0 %v9491
      %10605 = vmatpush.bf16.msra.mxu0 %v9489
      %10606 = vmatpush.bf16.msra.mxu0 %v9487
      %10607 = vmatpush.bf16.msra.mxu0 %v9485
      %10608 = vmatmul.bf16.gmra.mxu0 %v7914
      %v10609 = vpop.f32.mrf.mxu0
      %v10610 = vadd.f32 %v10597, %v10609
      %v10611 = vpop.f32.mrf.mxu0
      %10612 = vdwg.mxu0
      %10613 = vmatpush.bf16.msra.mxu0 %v9515
      %10614 = vmatpush.bf16.msra.mxu0 %v9513
      %10615 = vmatpush.bf16.msra.mxu0 %v9511
      %10616 = vmatpush.bf16.msra.mxu0 %v9509
      %10617 = vmatpush.bf16.msra.mxu0 %v9507
      %10618 = vmatpush.bf16.msra.mxu0 %v9505
      %10619 = vmatpush.bf16.msra.mxu0 %v9503
      %10620 = vmatpush.bf16.msra.mxu0 %v9501
      %10621 = vmatmul.bf16.gmra.mxu0 %v7915
      %v10622 = vpop.f32.mrf.mxu0
      %v10623 = vadd.f32 %v10610, %v10622
      %v10624 = vpop.f32.mrf.mxu0
      %10625 = vdwg.mxu0
      %10626 = vmatpush.bf16.msra.mxu0 %v9531
      %10627 = vmatpush.bf16.msra.mxu0 %v9529
      %10628 = vmatpush.bf16.msra.mxu0 %v9527
      %10629 = vmatpush.bf16.msra.mxu0 %v9525
      %10630 = vmatpush.bf16.msra.mxu0 %v9523
      %10631 = vmatpush.bf16.msra.mxu0 %v9521
      %10632 = vmatpush.bf16.msra.mxu0 %v9519
      %10633 = vmatpush.bf16.msra.mxu0 %v9517
      %10634 = vmatmul.bf16.gmra.mxu0 %v7916
      %v10635 = vpop.f32.mrf.mxu0
      %v10636 = vadd.f32 %v10623, %v10635
      %v10637 = vpop.f32.mrf.mxu0
      %10638 = vdwg.mxu0
      %10639 = vmatpush.bf16.msra.mxu0 %v9547
      %10640 = vmatpush.bf16.msra.mxu0 %v9545
      %10641 = vmatpush.bf16.msra.mxu0 %v9543
      %10642 = vmatpush.bf16.msra.mxu0 %v9541
      %10643 = vmatpush.bf16.msra.mxu0 %v9539
      %10644 = vmatpush.bf16.msra.mxu0 %v9537
      %10645 = vmatpush.bf16.msra.mxu0 %v9535
      %10646 = vmatpush.bf16.msra.mxu0 %v9533
      %10647 = vmatmul.bf16.gmra.mxu0 %v7917
      %v10648 = vpop.f32.mrf.mxu0
      %v10649 = vadd.f32 %v10636, %v10648
      %v10650 = vpop.f32.mrf.mxu0
      %10651 = vdwg.mxu0
      %10652 = vmatpush.bf16.msra.mxu0 %v9563
      %10653 = vmatpush.bf16.msra.mxu0 %v9561
      %10654 = vmatpush.bf16.msra.mxu0 %v9559
      %10655 = vmatpush.bf16.msra.mxu0 %v9557
      %10656 = vmatpush.bf16.msra.mxu0 %v9555
      %10657 = vmatpush.bf16.msra.mxu0 %v9553
      %10658 = vmatpush.bf16.msra.mxu0 %v9551
      %10659 = vmatpush.bf16.msra.mxu0 %v9549
      %10660 = vmatmul.bf16.gmra.mxu0 %v7918
      %v10661 = vpop.f32.mrf.mxu0
      %v10662 = vadd.f32 %v10649, %v10661
      %v10663 = vpop.f32.mrf.mxu0
      %10664 = vdwg.mxu0
      %10665 = vmatpush.bf16.msra.mxu0 %v9579
      %10666 = vmatpush.bf16.msra.mxu0 %v9577
      %10667 = vmatpush.bf16.msra.mxu0 %v9575
      %10668 = vmatpush.bf16.msra.mxu0 %v9573
      %10669 = vmatpush.bf16.msra.mxu0 %v9571
      %10670 = vmatpush.bf16.msra.mxu0 %v9569
      %10671 = vmatpush.bf16.msra.mxu0 %v9567
      %10672 = vmatpush.bf16.msra.mxu0 %v9565
      %10673 = vmatmul.bf16.gmra.mxu0 %v7919
      %v10674 = vpop.f32.mrf.mxu0
      %v10675 = vadd.f32 %v10662, %v10674
      %v10676 = vpop.f32.mrf.mxu0
      %10677 = vdwg.mxu0
      %10678 = vmatpush.bf16.msra.mxu0 %v9595
      %10679 = vmatpush.bf16.msra.mxu0 %v9593
      %10680 = vmatpush.bf16.msra.mxu0 %v9591
      %10681 = vmatpush.bf16.msra.mxu0 %v9589
      %10682 = vmatpush.bf16.msra.mxu0 %v9587
      %10683 = vmatpush.bf16.msra.mxu0 %v9585
      %10684 = vmatpush.bf16.msra.mxu0 %v9583
      %10685 = vmatpush.bf16.msra.mxu0 %v9581
      %10686 = vmatmul.bf16.gmra.mxu0 %v7920
      %v10687 = vpop.f32.mrf.mxu0
      %v10688 = vadd.f32 %v10675, %v10687
      %v10689 = vpop.f32.mrf.mxu0
      %10690 = vdwg.mxu0
      %10691 = vmatpush.bf16.msra.mxu0 %v9611
      %10692 = vmatpush.bf16.msra.mxu0 %v9609
      %10693 = vmatpush.bf16.msra.mxu0 %v9607
      %10694 = vmatpush.bf16.msra.mxu0 %v9605
      %10695 = vmatpush.bf16.msra.mxu0 %v9603
      %10696 = vmatpush.bf16.msra.mxu0 %v9601
      %10697 = vmatpush.bf16.msra.mxu0 %v9599
      %10698 = vmatpush.bf16.msra.mxu0 %v9597
      %10699 = vmatmul.bf16.gmra.mxu0 %v7921
      %v10700 = vpop.f32.mrf.mxu0
      %v10701 = vadd.f32 %v10688, %v10700
      %v10702 = vpop.f32.mrf.mxu0
      %10703 = vdwg.mxu0
      %10704 = vst [vmem:[%s200] sm:$0xff] %v10363
      %10705 = vst [vmem:[%s200 + $0x8] sm:$0xff] %v10701
      %p10706 = scmp.lt.s32.totalorder %s20, 1
      %s10707 = scalar_select %p10706, %s20, 1
      %p10708 = scmp.lt.s32.totalorder %s21, 0
      %s10709 = scalar_select %p10708, %s21, 0
      %s10710 = smul.addr %s10709, 2
      %s10711 = smul.addr %s10707, 2
      %s10712 = sadd.s32 %s10710, %s10711
      %s10713 = smul.addr %s10712, 8
      %s10714 = scalar_lea.vmem %s5, %s10713
      // Predicated region
      $region56: #{autoencoder_forward.1} parent=35 // pred_check
        %p10715 = pneg %p132
      $region57: #{autoencoder_forward.1} parent=35 // pred_check_branch
        %10717 = sbr.rel (%p10715) target = $region59
      $region58: #{autoencoder_forward.1} parent=35 // pred_region
        _
      $region59: #{autoencoder_forward.1} parent=35 // pred_fallthru
        _
    $region36: #{autoencoder_forward.1} parent=5 // pred_fallthru
      _
    %p10718 = scmp.le.s32.totalorder 2, %s11
    // Predicated region
    $region60: #{autoencoder_forward.1} parent=5 // pred_check
      %p10719 = pneg %p10718
    $region61: #{autoencoder_forward.1} parent=5 // pred_check_branch
      %10721 = sbr.rel (%p10719) target = $region63
    $region62: #{autoencoder_forward.1} parent=5 // pred_region
      %s10722 = ssub.s32 %s11, 2
      // Predicated region
      $region64: #{autoencoder_forward.1} parent=62 // pred_check
        %p10723 = pneg %p138
      $region65: #{autoencoder_forward.1} parent=62 // pred_check_branch
        %10725 = sbr.rel (%p10723) target = $region67
      $region66: #{autoencoder_forward.1} parent=62 // pred_region
        %p10726 = scmp.lt.s32.totalorder %s22, 1
        %s10727 = scalar_select %p10726, %s22, 1
        %p10728 = scmp.lt.s32.totalorder %s23, 0
        %s10729 = scalar_select %p10728, %s23, 0
        %s10730 = smul.addr %s10729, 2
        %s10731 = smul.addr %s10727, 2
        %s10732 = sadd.s32 %s10730, %s10731
        %s10733 = smul.addr %s10732, 8
        %s10734 = scalar_lea.vmem %s5, %s10733
      $region67: #{autoencoder_forward.1} parent=62 // pred_fallthru
        _
    $region63: #{autoencoder_forward.1} parent=5 // pred_fallthru
      _
  $region6: #{autoencoder_forward.1} parent=0 // loop_footer
    %s15 = sadd.s32 1, %s11
  $region7: #{autoencoder_forward.1} parent=0 // loop_footer_branch
    %10 = sbr.rel target = $region3
  $region8: #{autoencoder_forward.1} parent=0 // loop_exit
    _
  %10735 = vsyncmov [#allocation3]
  %s10736 = vpop.sfrf %10735
  %p10737 = scmp.eq.s32.totalorder %s10736, 0
  %p10738 = pneg %p10737
  %10740 = shalt.err (%p10738)

</llo_original>
